<compile_context>
chip_gen: v6e
topology: v6e:2x2x1
jax: 0.10.0
libtpu: 0.0.40
codegen_flags: <defaults>
</compile_context>

<pallas_src>
import functools
import math

import jax
import jax.numpy as jnp
from jax.experimental import pallas as pl
from jax.experimental.pallas import tpu as pltpu


def _round_up(x, m):
    return ((x + m - 1) // m) * m


def _pad128(c):
    return _round_up(c, 128)


def _pick_tile(dim):
    for c in (512, 384, 256, 128):
        if dim % c == 0:
            return c
    return 128


# ----------------------------------------------------------------------------
# Fused tiled matmul + bias + ReLU kernel (MXU).  BN scale already folded
# into the weight columns; bias carries the BN shift.
# ----------------------------------------------------------------------------
def _matmul_bn_act_kernel(x_ref, w_ref, b_ref, o_ref, acc_ref, *, relu):
    @pl.when(pl.program_id(2) == 0)
    def _():
        acc_ref[...] = jnp.zeros_like(acc_ref)

    acc_ref[...] += jnp.dot(x_ref[...], w_ref[...],
                            preferred_element_type=jnp.float32)

    @pl.when(pl.program_id(2) == pl.num_programs(2) - 1)
    def _():
        acc = acc_ref[...] + b_ref[...]
        if relu:
            acc = jnp.maximum(acc, 0.0)
        o_ref[...] = acc.astype(o_ref.dtype)


def fused_matmul_bn_act(x2d, w, bias, *, relu=True, out_dtype=jnp.bfloat16):
    M, K = x2d.shape
    Kw, Cout = w.shape
    assert Kw == K and K % 128 == 0 and Cout % 128 == 0

    tn = _pick_tile(Cout)
    tk = K if K <= 1024 else _pick_tile(K)
    tm = min(512, _round_up(M, 8))
    Mp = _round_up(M, tm)
    if Mp != M:
        x2d = jnp.pad(x2d, ((0, Mp - M), (0, 0)))

    grid = (Mp // tm, Cout // tn, K // tk)
    out_itemsize = jnp.dtype(out_dtype).itemsize
    cost = pl.CostEstimate(
        flops=2 * Mp * K * Cout,
        transcendentals=0,
        bytes_accessed=int(Mp * K * 2 * (Cout // tn)        # x re-read per j
                           + K * Cout * 2 * (Mp // tm)      # w re-read per i
                           + Mp * Cout * out_itemsize + 4 * Cout))

    out = pl.pallas_call(
        functools.partial(_matmul_bn_act_kernel, relu=relu),
        out_shape=jax.ShapeDtypeStruct((Mp, Cout), out_dtype),
        grid_spec=pltpu.PrefetchScalarGridSpec(
            num_scalar_prefetch=0,
            grid=grid,
            in_specs=[
                pl.BlockSpec((tm, tk), lambda i, j, k: (i, k)),
                pl.BlockSpec((tk, tn), lambda i, j, k: (k, j)),
                pl.BlockSpec((1, tn), lambda i, j, k: (0, j)),
            ],
            out_specs=pl.BlockSpec((tm, tn), lambda i, j, k: (i, j)),
            scratch_shapes=[pltpu.VMEM((tm, tn), jnp.float32)],
        ),
        compiler_params=pltpu.CompilerParams(
            dimension_semantics=("parallel", "parallel", "arbitrary"),
            vmem_limit_bytes=32 * 1024 * 1024),
        cost_estimate=cost,
    )(x2d.astype(jnp.bfloat16), w.astype(jnp.bfloat16),
      bias.astype(jnp.float32))
    return out[:M] if Mp != M else out


# ----------------------------------------------------------------------------
# 3x3 / stride-2 max pool: spatially tiled, separable 3-tap max (VPU).
# Six stride-2 phase views of the -inf padded map (made with XLA slicing);
# every Pallas block is (1, th, ~Wo, C) so VMEM stays small at any resolution
# and the grid exposes (N * Ho/th) parallel units.
# ----------------------------------------------------------------------------
def _maxpool_kernel(eet_ref, eot_ref, oet_ref, oot_ref, eeb_ref, eob_ref,
                    o_ref):
    Wo = o_ref.shape[2]

    def row3(even_ref, odd_ref):          # 3-tap max along W for one row-phase
        e = even_ref[...]
        return jnp.maximum(jnp.maximum(e[:, :, :Wo, :], odd_ref[...]),
                           e[:, :, 1:Wo + 1, :])

    top = row3(eet_ref, eot_ref)          # padded rows 2*ho
    mid = row3(oet_ref, oot_ref)          # padded rows 2*ho + 1
    bot = row3(eeb_ref, eob_ref)          # padded rows 2*ho + 2
    o_ref[...] = jnp.maximum(jnp.maximum(top, mid), bot)


def maxpool3x3_s2(x, *, row_tile=8):
    """3x3, stride 2, padding 1 max-pool over NHWC."""
    N, H, W, C = x.shape
    Ho = (H - 1) // 2 + 1
    Wo = (W - 1) // 2 + 1
    xp = jnp.pad(x, ((0, 0), (1, 1), (1, 1), (0, 0)),
                 constant_values=-jnp.inf)

    def view(r0, c0, ncols):               # stride-2 phase view (XLA slice)
        return jax.lax.slice(
            xp, (0, r0, c0, 0),
            (N, r0 + 2 * (Ho - 1) + 1, c0 + 2 * (ncols - 1) + 1, C),
            (1, 2, 2, 1))

    views = [view(0, 0, Wo + 1), view(0, 1, Wo),    # top row of each window
             view(1, 0, Wo + 1), view(1, 1, Wo),    # middle row
             view(2, 0, Wo + 1), view(2, 1, Wo)]    # bottom row

    th = min(row_tile, Ho)
    Hot = _round_up(Ho, th)
    if Hot != Ho:
        views = [jnp.pad(v, ((0, 0), (0, Hot - Ho), (0, 0), (0, 0)),
                         constant_values=-jnp.inf) for v in views]

    def in_spec(ncols):
        return pl.BlockSpec((1, th, ncols, C), lambda n, t: (n, t, 0, 0))

    out = pl.pallas_call(
        _maxpool_kernel,
        out_shape=jax.ShapeDtypeStruct((N, Hot, Wo, C), x.dtype),
        grid_spec=pltpu.PrefetchScalarGridSpec(
            num_scalar_prefetch=0,
            grid=(N, Hot // th),
            in_specs=[in_spec(Wo + 1), in_spec(Wo),
                      in_spec(Wo + 1), in_spec(Wo),
                      in_spec(Wo + 1), in_spec(Wo)],
            out_specs=pl.BlockSpec((1, th, Wo, C), lambda n, t: (n, t, 0, 0)),
        ),
        compiler_params=pltpu.CompilerParams(
            dimension_semantics=("parallel", "parallel")),
    )(*views)
    return out[:, :Ho] if Hot != Ho else out


# ----------------------------------------------------------------------------
# Global average pool: tiled row reduction, f32 accumulator, channel-parallel.
# ----------------------------------------------------------------------------
def _avgpool_kernel(x_ref, o_ref, acc_ref, *, inv_count):
    @pl.when(pl.program_id(2) == 0)
    def _():
        acc_ref[...] = jnp.zeros_like(acc_ref)

    acc_ref[...] += jnp.sum(x_ref[...].astype(jnp.float32), axis=1,
                            keepdims=True)

    @pl.when(pl.program_id(2) == pl.num_programs(2) - 1)
    def _():
        o_ref[...] = (acc_ref[...] * inv_count).astype(o_ref.dtype)


def global_avg_pool(x, *, row_tile=512, chan_tile=128):
    N, H, W, C = x.shape
    assert C % 128 == 0
    R = H * W
    x3 = x.reshape(N, R, C)
    tr = min(row_tile, _round_up(R, 8))
    Rp = _round_up(R, tr)
    if Rp != R:    # zero rows do not change the sum; divide by the true count
        x3 = jnp.pad(x3, ((0, 0), (0, Rp - R), (0, 0)))
    tc = min(chan_tile, C)
    out = pl.pallas_call(
        functools.partial(_avgpool_kernel, inv_count=1.0 / R),
        out_shape=jax.ShapeDtypeStruct((N, 1, C), x.dtype),
        grid_spec=pltpu.PrefetchScalarGridSpec(
            num_scalar_prefetch=0,
            grid=(N, C // tc, Rp // tr),
            in_specs=[pl.BlockSpec((1, tr, tc), lambda n, c, r: (n, r, c))],
            out_specs=pl.BlockSpec((1, 1, tc), lambda n, c, r: (n, 0, c)),
            scratch_shapes=[pltpu.VMEM((1, 1, tc), jnp.float32)],
        ),
        compiler_params=pltpu.CompilerParams(
            dimension_semantics=("parallel", "parallel", "arbitrary")),
    )(x3)
    return out.reshape(N, 1, 1, C)


# ----------------------------------------------------------------------------
# Glue: im2col patch extraction over the TRUE channel count (pure slicing /
# padding); contraction dim is padded to 128 only once, after tap concat.
# ----------------------------------------------------------------------------
def im2col(x, k, stride, padding, dilation):
    """x: (N,H,W,Cin_true) -> patches (N,Ho,Wo,k*k*Cin_true), tap-major."""
    N, H, W, C = x.shape
    xp = jnp.pad(x, ((0, 0), (padding, padding), (padding, padding), (0, 0)))
    Hp, Wp = H + 2 * padding, W + 2 * padding
    eff = dilation * (k - 1) + 1
    Ho = (Hp - eff) // stride + 1
    Wo = (Wp - eff) // stride + 1
    cols = []
    for ki in range(k):
        for kj in range(k):
            r0, c0 = ki * dilation, kj * dilation
            sl = xp[:, r0:r0 + stride * (Ho - 1) + 1:stride,
                       c0:c0 + stride * (Wo - 1) + 1:stride, :]
            cols.append(sl)
    return jnp.concatenate(cols, axis=-1), Ho, Wo


def conv_bn_act(x, p, *, k, cin, stride=1, padding=0, dilation=1, relu=True,
                out_dtype=jnp.bfloat16):
    N = x.shape[0]
    if k == 1 and stride == 1 and padding == 0:
        Ho, Wo = x.shape[1], x.shape[2]
        x2d = x.reshape(N * Ho * Wo, x.shape[3])
    else:
        xs = x[..., :cin] if x.shape[3] != cin else x    # drop lane padding
        patches, Ho, Wo = im2col(xs, k, stride, padding, dilation)
        x2d = patches.reshape(N * Ho * Wo, k * k * cin)
    Kp = p["w"].shape[0]
    if x2d.shape[1] != Kp:                               # pad K to 128 mult.
        x2d = jnp.pad(x2d, ((0, 0), (0, Kp - x2d.shape[1])))
    y = fused_matmul_bn_act(x2d, p["w"], p["bias"], relu=relu,
                            out_dtype=out_dtype)
    return y.reshape(N, Ho, Wo, p["w"].shape[1])


# ----------------------------------------------------------------------------
# Deterministic parameter init (synthetic: conv weight with BN scale folded
# in f32, plus folded BN bias).  Weights are (round_up(k*k*cin,128), coutp);
# padded rows/columns are exact zeros so the math is unchanged.
# ----------------------------------------------------------------------------
def init_conv_bn(key, cin, cout, k):
    kw, ks, kb = jax.random.split(key, 3)
    kk = k * k
    kp = _round_up(kk * cin, 128)
    coutp = _pad128(cout)
    fan_in = kk * cin
    w = jax.random.normal(kw, (kk * cin, cout), jnp.float32) \
        * (1.0 / math.sqrt(fan_in))
    scale = 1.0 + 0.1 * jax.random.normal(ks, (cout,), jnp.float32)
    bias = 0.1 * jax.random.normal(kb, (cout,), jnp.float32)
    w = w * scale[None, :]                   # fold BN scale (f32, pre-cast)
    w_p = jnp.zeros((kp, coutp), jnp.float32).at[:kk * cin, :cout].set(w)
    b_p = jnp.zeros((1, coutp), jnp.float32).at[0, :cout].set(bias)
    return dict(w=w_p.astype(jnp.bfloat16), bias=b_p)


def init_params(key, in_channels, num_classes):
    ks = jax.random.split(key, 12)
    return dict(
        # synthetic small ResNet-style backbone ending at backbone_output=2048
        stem=init_conv_bn(ks[0], in_channels, 16, 3),
        layer1=init_conv_bn(ks[1], 16, 32, 3),
        layer2=init_conv_bn(ks[2], 32, 64, 3),
        layer3=init_conv_bn(ks[3], 64, 64, 3),
        layer4=init_conv_bn(ks[4], 64, 2048, 3),
        # pre_aspp: Conv2dBn 1x1, 2048 -> neck_input=512
        pre_aspp=init_conv_bn(ks[5], 2048, 512, 1),
        # ASPP: 5 branches, 512 -> 256
        aspp_b0=init_conv_bn(ks[6], 512, 256, 1),
        aspp_b1=init_conv_bn(ks[7], 512, 256, 3),
        aspp_b2=init_conv_bn(ks[8], 512, 256, 3),
        aspp_b3=init_conv_bn(ks[9], 512, 256, 3),
        aspp_pool=init_conv_bn(ks[10], 512, 256, 1),
        # Decoderv3: branch(5)*256 -> 256 -> num_classes
        dec_proj=init_conv_bn(ks[11], 5 * 256, 256, 1),
        dec_cls=init_conv_bn(jax.random.fold_in(key, 99), 256, num_classes, 1),
    )


# ----------------------------------------------------------------------------
# DeepLabv3 forward
# ----------------------------------------------------------------------------
def deeplabv3_forward(x_nchw, params, num_classes):
    x = jnp.transpose(x_nchw, (0, 2, 3, 1)).astype(jnp.bfloat16)  # NCHW->NHWC
    N, H, W, Cin = x.shape

    # backbone
    s = conv_bn_act(x, params["stem"], k=3, cin=Cin, stride=2, padding=1)
    s = maxpool3x3_s2(s)
    s1 = conv_bn_act(s, params["layer1"], k=3, cin=16, stride=1, padding=1)
    s2 = conv_bn_act(s1, params["layer2"], k=3, cin=32, stride=2, padding=1)
    s3 = conv_bn_act(s2, params["layer3"], k=3, cin=64, stride=2, padding=1)
    s4 = conv_bn_act(s3, params["layer4"], k=3, cin=64, stride=1,
                     padding=2, dilation=2)

    # pre-ASPP 1x1 Conv2dBn (2048 -> 512)
    neck = conv_bn_act(s4, params["pre_aspp"], k=1, cin=2048)
    Hf, Wf = neck.shape[1], neck.shape[2]

    # ASPP: 1x1 + three dilated 3x3 + image pooling branch (512 -> 256 each)
    b0 = conv_bn_act(neck, params["aspp_b0"], k=1, cin=512)
    b1 = conv_bn_act(neck, params["aspp_b1"], k=3, cin=512, padding=6,
                     dilation=6)
    b2 = conv_bn_act(neck, params["aspp_b2"], k=3, cin=512, padding=12,
                     dilation=12)
    b3 = conv_bn_act(neck, params["aspp_b3"], k=3, cin=512, padding=18,
                     dilation=18)
    pooled = global_avg_pool(neck)
    b4 = conv_bn_act(pooled, params["aspp_pool"], k=1, cin=512)  # (N,1,1,256)
    # TODO(synk): reference ASPP uses fixed up_scale=last_layer=40; here the
    # pooled branch stays spatially constant and is folded into the decoder
    # projection as a per-image additive term (no HBM broadcast).

    aspp4 = jnp.concatenate([b0, b1, b2, b3], axis=-1)           # 4*256=1024

    # Decoderv3 projection: main K=1024 matmul + per-image pooled contribution
    Wd, bd = params["dec_proj"]["w"], params["dec_proj"]["bias"]
    C4 = 4 * 256
    Cd = Wd.shape[1]
    main = fused_matmul_bn_act(aspp4.reshape(N * Hf * Wf, C4), Wd[:C4], bd,
                               relu=False)
    poolc = fused_matmul_bn_act(b4.reshape(N, 256), Wd[C4:],
                                jnp.zeros_like(bd), relu=False,
                                out_dtype=jnp.float32)
    d = jnp.maximum(main.reshape(N, Hf, Wf, Cd)
                    + poolc.reshape(N, 1, 1, Cd), 0.0)
    d = d.astype(jnp.bfloat16)

    # classify + upsample to input resolution
    logits = conv_bn_act(d, params["dec_cls"], k=1, cin=256, relu=False,
                         out_dtype=jnp.float32)
    logits = logits[..., :num_classes]                    # drop lane padding
    logits = jax.image.resize(logits, (N, H, W, num_classes),
                              method="bilinear")
    return jnp.transpose(logits, (0, 3, 1, 2))            # back to NCHW


# ----------------------------------------------------------------------------
if __name__ == "__main__":
    key = jax.random.PRNGKey(0)
    kp, kx = jax.random.split(key)

    num_classes = 4
    in_channels = 3
    params = init_params(kp, in_channels, num_classes)

    # small input (batch=2, 3x32x32, NCHW like PyTorch)
    x = jax.random.normal(kx, (2, in_channels, 32, 32), jnp.float32)

    fwd = jax.jit(lambda inp, p: deeplabv3_forward(inp, p, num_classes))
    out = fwd(x, params)
    jax.block_until_ready(out)

    assert out.shape == (2, num_classes, 32, 32), out.shape
    assert out.dtype == jnp.float32
    assert bool(jnp.all(jnp.isfinite(out)))
    print("KERNEL_OK")
</pallas_src>

<mosaic_0001>
module attributes {stable_mosaic.version = 11 : i64} {
  func.func @_matmul_bn_act_kernel(%arg0: i32, %arg1: i32, %arg2: i32, %arg3: memref<512x128xbf16, #tpu.memory_space<vmem>>, %arg4: memref<128x128xbf16, #tpu.memory_space<vmem>>, %arg5: memref<1x128xf32, #tpu.memory_space<vmem>>, %arg6: memref<512x128xbf16, #tpu.memory_space<vmem>>, %arg7: memref<512x128xf32, #tpu.memory_space<vmem>>) attributes {dimension_semantics = [#tpu.dimension_semantics<parallel>, #tpu.dimension_semantics<parallel>, #tpu.dimension_semantics<arbitrary>], iteration_bounds = array<i64: 1, 1, 1>, scalar_prefetch = 0 : i64, scratch_operands = 1 : i64, tpu.core_type = #tpu.core_type<tc>, window_params = [{transform_indices = @transform_0, window_bounds = array<i64: 512, 128>}, {transform_indices = @transform_1, window_bounds = array<i64: 128, 128>}, {transform_indices = @transform_2, window_bounds = array<i64: 1, 128>}, {transform_indices = @transform_3, window_bounds = array<i64: 512, 128>}]} {
    %c0_i32 = arith.constant 0 : i32
    %0 = arith.cmpi eq, %arg2, %c0_i32 : i32
    %1 = arith.extui %0 : i1 to i32
    %c0_i32_0 = arith.constant 0 : i32
    %2 = arith.cmpi ne, %1, %c0_i32_0 : i32
    scf.if %2 {
      %cst_10 = arith.constant 0.000000e+00 : f32
      %12 = vector.broadcast %cst_10 : f32 to vector<512x128xf32>
      %c0_11 = arith.constant 0 : index
      %c0_12 = arith.constant 0 : index
      %13 = vector.load %arg7[%c0_11, %c0_12] : memref<512x128xf32, #tpu.memory_space<vmem>>, vector<512x128xf32>
      tpu.vector_store %arg7[%c0_11, %c0_12], %12 {strides = array<i32>} : memref<512x128xf32, #tpu.memory_space<vmem>>, vector<512x128xf32>,
    } else {
    }
    %c0 = arith.constant 0 : index
    %c0_1 = arith.constant 0 : index
    %3 = vector.load %arg7[%c0, %c0_1] : memref<512x128xf32, #tpu.memory_space<vmem>>, vector<512x128xf32>
    %c0_2 = arith.constant 0 : index
    %c0_3 = arith.constant 0 : index
    %4 = vector.load %arg3[%c0_2, %c0_3] : memref<512x128xbf16, #tpu.memory_space<vmem>>, vector<512x128xbf16>
    %c0_4 = arith.constant 0 : index
    %c0_5 = arith.constant 0 : index
    %5 = vector.load %arg4[%c0_4, %c0_5] : memref<128x128xbf16, #tpu.memory_space<vmem>>, vector<128x128xbf16>
    %cst = arith.constant dense<0.000000e+00> : vector<512x128xf32>
    %6 = tpu.matmul %4, %5, %cst {dimension_numbers = #tpu.dot_dimension_numbers<[1], [0], [0], [1], [0, 0, 1, 1], [], []>} : vector<512x128xbf16>, vector<128x128xbf16>, vector<512x128xf32> -> vector<512x128xf32>
    %7 = arith.addf %3, %6 : vector<512x128xf32>
    %c0_6 = arith.constant 0 : index
    %c0_7 = arith.constant 0 : index
    %8 = vector.load %arg7[%c0_6, %c0_7] : memref<512x128xf32, #tpu.memory_space<vmem>>, vector<512x128xf32>
    tpu.vector_store %arg7[%c0_6, %c0_7], %7 {strides = array<i32>} : memref<512x128xf32, #tpu.memory_space<vmem>>, vector<512x128xf32>,
    %c0_i32_8 = arith.constant 0 : i32
    %9 = arith.cmpi eq, %arg2, %c0_i32_8 : i32
    %10 = arith.extui %9 : i1 to i32
    %c0_i32_9 = arith.constant 0 : i32
    %11 = arith.cmpi ne, %10, %c0_i32_9 : i32
    scf.if %11 {
      %c0_10 = arith.constant 0 : index
      %c0_11 = arith.constant 0 : index
      %12 = vector.load %arg7[%c0_10, %c0_11] : memref<512x128xf32, #tpu.memory_space<vmem>>, vector<512x128xf32>
      %c0_12 = arith.constant 0 : index
      %c0_13 = arith.constant 0 : index
      %13 = vector.load %arg5[%c0_12, %c0_13] : memref<1x128xf32, #tpu.memory_space<vmem>>, vector<1x128xf32>
      %14 = vector.broadcast %13 : vector<1x128xf32> to vector<512x128xf32>
      %15 = arith.addf %12, %14 : vector<512x128xf32>
      %cst_14 = arith.constant 0.000000e+00 : f32
      %16 = vector.broadcast %cst_14 : f32 to vector<512x128xf32>
      %17 = arith.maximumf %15, %16 : vector<512x128xf32>
      %18 = arith.truncf %17 : vector<512x128xf32> to vector<512x128xbf16>
      %c0_15 = arith.constant 0 : index
      %c0_16 = arith.constant 0 : index
      %19 = vector.load %arg6[%c0_15, %c0_16] : memref<512x128xbf16, #tpu.memory_space<vmem>>, vector<512x128xbf16>
      tpu.vector_store %arg6[%c0_15, %c0_16], %18 {strides = array<i32>} : memref<512x128xbf16, #tpu.memory_space<vmem>>, vector<512x128xbf16>,
    } else {
    }
    return
  }
  func.func @transform_0(%arg0: i32, %arg1: i32, %arg2: i32) -> (i32, i32) {
    %c0_i32 = arith.constant 0 : i32
    return %arg0, %arg2 : i32, i32
  }
  func.func @transform_1(%arg0: i32, %arg1: i32, %arg2: i32) -> (i32, i32) {
    %c0_i32 = arith.constant 0 : i32
    return %arg2, %arg1 : i32, i32
  }
  func.func @transform_2(%arg0: i32, %arg1: i32, %arg2: i32) -> (i32, i32) {
    %c0_i32 = arith.constant 0 : i32
    %c0_i32_0 = arith.constant 0 : i32
    return %c0_i32, %arg1 : i32, i32
  }
  func.func @transform_3(%arg0: i32, %arg1: i32, %arg2: i32) -> (i32, i32) {
    %c0_i32 = arith.constant 0 : i32
    return %arg0, %arg1 : i32, i32
  }
}

module attributes {stable_mosaic.version = 11 : i64} {
  func.func @_maxpool_kernel(%arg0: i32, %arg1: i32, %arg2: memref<1x8x9x128xbf16, #tpu.memory_space<vmem>>, %arg3: memref<1x8x8x128xbf16, #tpu.memory_space<vmem>>, %arg4: memref<1x8x9x128xbf16, #tpu.memory_space<vmem>>, %arg5: memref<1x8x8x128xbf16, #tpu.memory_space<vmem>>, %arg6: memref<1x8x9x128xbf16, #tpu.memory_space<vmem>>, %arg7: memref<1x8x8x128xbf16, #tpu.memory_space<vmem>>, %arg8: memref<1x8x8x128xbf16, #tpu.memory_space<vmem>>) attributes {dimension_semantics = [#tpu.dimension_semantics<parallel>, #tpu.dimension_semantics<parallel>], iteration_bounds = array<i64: 2, 1>, scalar_prefetch = 0 : i64, scratch_operands = 0 : i64, tpu.core_type = #tpu.core_type<tc>, window_params = [{transform_indices = @transform_0, window_bounds = array<i64: 1, 8, 9, 128>}, {transform_indices = @transform_1, window_bounds = array<i64: 1, 8, 8, 128>}, {transform_indices = @transform_2, window_bounds = array<i64: 1, 8, 9, 128>}, {transform_indices = @transform_3, window_bounds = array<i64: 1, 8, 8, 128>}, {transform_indices = @transform_4, window_bounds = array<i64: 1, 8, 9, 128>}, {transform_indices = @transform_5, window_bounds = array<i64: 1, 8, 8, 128>}, {transform_indices = @transform_6, window_bounds = array<i64: 1, 8, 8, 128>}]} {
    %c0 = arith.constant 0 : index
    %c0_0 = arith.constant 0 : index
    %c0_1 = arith.constant 0 : index
    %c0_2 = arith.constant 0 : index
    %0 = vector.load %arg2[%c0, %c0_0, %c0_1, %c0_2] : memref<1x8x9x128xbf16, #tpu.memory_space<vmem>>, vector<1x8x9x128xbf16>
    %1 = vector.extract_strided_slice %0 {offsets = [0, 0, 0, 0], sizes = [1, 8, 8, 128], strides = [1, 1, 1, 1]} : vector<1x8x9x128xbf16> to vector<1x8x8x128xbf16>
    %c0_3 = arith.constant 0 : index
    %c0_4 = arith.constant 0 : index
    %c0_5 = arith.constant 0 : index
    %c0_6 = arith.constant 0 : index
    %2 = vector.load %arg3[%c0_3, %c0_4, %c0_5, %c0_6] : memref<1x8x8x128xbf16, #tpu.memory_space<vmem>>, vector<1x8x8x128xbf16>
    %3 = arith.maximumf %1, %2 : vector<1x8x8x128xbf16>
    %4 = vector.extract_strided_slice %0 {offsets = [0, 0, 1, 0], sizes = [1, 8, 8, 128], strides = [1, 1, 1, 1]} : vector<1x8x9x128xbf16> to vector<1x8x8x128xbf16>
    %5 = arith.maximumf %3, %4 : vector<1x8x8x128xbf16>
    %c0_7 = arith.constant 0 : index
    %c0_8 = arith.constant 0 : index
    %c0_9 = arith.constant 0 : index
    %c0_10 = arith.constant 0 : index
    %6 = vector.load %arg4[%c0_7, %c0_8, %c0_9, %c0_10] : memref<1x8x9x128xbf16, #tpu.memory_space<vmem>>, vector<1x8x9x128xbf16>
    %7 = vector.extract_strided_slice %6 {offsets = [0, 0, 0, 0], sizes = [1, 8, 8, 128], strides = [1, 1, 1, 1]} : vector<1x8x9x128xbf16> to vector<1x8x8x128xbf16>
    %c0_11 = arith.constant 0 : index
    %c0_12 = arith.constant 0 : index
    %c0_13 = arith.constant 0 : index
    %c0_14 = arith.constant 0 : index
    %8 = vector.load %arg5[%c0_11, %c0_12, %c0_13, %c0_14] : memref<1x8x8x128xbf16, #tpu.memory_space<vmem>>, vector<1x8x8x128xbf16>
    %9 = arith.maximumf %7, %8 : vector<1x8x8x128xbf16>
    %10 = vector.extract_strided_slice %6 {offsets = [0, 0, 1, 0], sizes = [1, 8, 8, 128], strides = [1, 1, 1, 1]} : vector<1x8x9x128xbf16> to vector<1x8x8x128xbf16>
    %11 = arith.maximumf %9, %10 : vector<1x8x8x128xbf16>
    %c0_15 = arith.constant 0 : index
    %c0_16 = arith.constant 0 : index
    %c0_17 = arith.constant 0 : index
    %c0_18 = arith.constant 0 : index
    %12 = vector.load %arg6[%c0_15, %c0_16, %c0_17, %c0_18] : memref<1x8x9x128xbf16, #tpu.memory_space<vmem>>, vector<1x8x9x128xbf16>
    %13 = vector.extract_strided_slice %12 {offsets = [0, 0, 0, 0], sizes = [1, 8, 8, 128], strides = [1, 1, 1, 1]} : vector<1x8x9x128xbf16> to vector<1x8x8x128xbf16>
    %c0_19 = arith.constant 0 : index
    %c0_20 = arith.constant 0 : index
    %c0_21 = arith.constant 0 : index
    %c0_22 = arith.constant 0 : index
    %14 = vector.load %arg7[%c0_19, %c0_20, %c0_21, %c0_22] : memref<1x8x8x128xbf16, #tpu.memory_space<vmem>>, vector<1x8x8x128xbf16>
    %15 = arith.maximumf %13, %14 : vector<1x8x8x128xbf16>
    %16 = vector.extract_strided_slice %12 {offsets = [0, 0, 1, 0], sizes = [1, 8, 8, 128], strides = [1, 1, 1, 1]} : vector<1x8x9x128xbf16> to vector<1x8x8x128xbf16>
    %17 = arith.maximumf %15, %16 : vector<1x8x8x128xbf16>
    %18 = arith.maximumf %5, %11 : vector<1x8x8x128xbf16>
    %19 = arith.maximumf %18, %17 : vector<1x8x8x128xbf16>
    %c0_23 = arith.constant 0 : index
    %c0_24 = arith.constant 0 : index
    %c0_25 = arith.constant 0 : index
    %c0_26 = arith.constant 0 : index
    %20 = vector.load %arg8[%c0_23, %c0_24, %c0_25, %c0_26] : memref<1x8x8x128xbf16, #tpu.memory_space<vmem>>, vector<1x8x8x128xbf16>
    tpu.vector_store %arg8[%c0_23, %c0_24, %c0_25, %c0_26], %19 {strides = array<i32>} : memref<1x8x8x128xbf16, #tpu.memory_space<vmem>>, vector<1x8x8x128xbf16>,
    return
  }
  func.func @transform_0(%arg0: i32, %arg1: i32) -> (i32, i32, i32, i32) {
    %c0_i32 = arith.constant 0 : i32
    %c0_i32_0 = arith.constant 0 : i32
    %c0_i32_1 = arith.constant 0 : i32
    return %arg0, %arg1, %c0_i32, %c0_i32_0 : i32, i32, i32, i32
  }
  func.func @transform_1(%arg0: i32, %arg1: i32) -> (i32, i32, i32, i32) {
    %c0_i32 = arith.constant 0 : i32
    %c0_i32_0 = arith.constant 0 : i32
    %c0_i32_1 = arith.constant 0 : i32
    return %arg0, %arg1, %c0_i32, %c0_i32_0 : i32, i32, i32, i32
  }
  func.func @transform_2(%arg0: i32, %arg1: i32) -> (i32, i32, i32, i32) {
    %c0_i32 = arith.constant 0 : i32
    %c0_i32_0 = arith.constant 0 : i32
    %c0_i32_1 = arith.constant 0 : i32
    return %arg0, %arg1, %c0_i32, %c0_i32_0 : i32, i32, i32, i32
  }
  func.func @transform_3(%arg0: i32, %arg1: i32) -> (i32, i32, i32, i32) {
    %c0_i32 = arith.constant 0 : i32
    %c0_i32_0 = arith.constant 0 : i32
    %c0_i32_1 = arith.constant 0 : i32
    return %arg0, %arg1, %c0_i32, %c0_i32_0 : i32, i32, i32, i32
  }
  func.func @transform_4(%arg0: i32, %arg1: i32) -> (i32, i32, i32, i32) {
    %c0_i32 = arith.constant 0 : i32
    %c0_i32_0 = arith.constant 0 : i32
    %c0_i32_1 = arith.constant 0 : i32
    return %arg0, %arg1, %c0_i32, %c0_i32_0 : i32, i32, i32, i32
  }
  func.func @transform_5(%arg0: i32, %arg1: i32) -> (i32, i32, i32, i32) {
    %c0_i32 = arith.constant 0 : i32
    %c0_i32_0 = arith.constant 0 : i32
    %c0_i32_1 = arith.constant 0 : i32
    return %arg0, %arg1, %c0_i32, %c0_i32_0 : i32, i32, i32, i32
  }
  func.func @transform_6(%arg0: i32, %arg1: i32) -> (i32, i32, i32, i32) {
    %c0_i32 = arith.constant 0 : i32
    %c0_i32_0 = arith.constant 0 : i32
    %c0_i32_1 = arith.constant 0 : i32
    return %arg0, %arg1, %c0_i32, %c0_i32_0 : i32, i32, i32, i32
  }
}

module attributes {stable_mosaic.version = 11 : i64} {
  func.func @_matmul_bn_act_kernel(%arg0: i32, %arg1: i32, %arg2: i32, %arg3: memref<128x256xbf16, #tpu.memory_space<vmem>>, %arg4: memref<256x128xbf16, #tpu.memory_space<vmem>>, %arg5: memref<1x128xf32, #tpu.memory_space<vmem>>, %arg6: memref<128x128xbf16, #tpu.memory_space<vmem>>, %arg7: memref<128x128xf32, #tpu.memory_space<vmem>>) attributes {dimension_semantics = [#tpu.dimension_semantics<parallel>, #tpu.dimension_semantics<parallel>, #tpu.dimension_semantics<arbitrary>], iteration_bounds = array<i64: 1, 1, 1>, scalar_prefetch = 0 : i64, scratch_operands = 1 : i64, tpu.core_type = #tpu.core_type<tc>, window_params = [{transform_indices = @transform_0, window_bounds = array<i64: 128, 256>}, {transform_indices = @transform_1, window_bounds = array<i64: 256, 128>}, {transform_indices = @transform_2, window_bounds = array<i64: 1, 128>}, {transform_indices = @transform_3, window_bounds = array<i64: 128, 128>}]} {
    %c0_i32 = arith.constant 0 : i32
    %0 = arith.cmpi eq, %arg2, %c0_i32 : i32
    %1 = arith.extui %0 : i1 to i32
    %c0_i32_0 = arith.constant 0 : i32
    %2 = arith.cmpi ne, %1, %c0_i32_0 : i32
    scf.if %2 {
      %cst_10 = arith.constant 0.000000e+00 : f32
      %12 = vector.broadcast %cst_10 : f32 to vector<128x128xf32>
      %c0_11 = arith.constant 0 : index
      %c0_12 = arith.constant 0 : index
      %13 = vector.load %arg7[%c0_11, %c0_12] : memref<128x128xf32, #tpu.memory_space<vmem>>, vector<128x128xf32>
      tpu.vector_store %arg7[%c0_11, %c0_12], %12 {strides = array<i32>} : memref<128x128xf32, #tpu.memory_space<vmem>>, vector<128x128xf32>,
    } else {
    }
    %c0 = arith.constant 0 : index
    %c0_1 = arith.constant 0 : index
    %3 = vector.load %arg7[%c0, %c0_1] : memref<128x128xf32, #tpu.memory_space<vmem>>, vector<128x128xf32>
    %c0_2 = arith.constant 0 : index
    %c0_3 = arith.constant 0 : index
    %4 = vector.load %arg3[%c0_2, %c0_3] : memref<128x256xbf16, #tpu.memory_space<vmem>>, vector<128x256xbf16>
    %c0_4 = arith.constant 0 : index
    %c0_5 = arith.constant 0 : index
    %5 = vector.load %arg4[%c0_4, %c0_5] : memref<256x128xbf16, #tpu.memory_space<vmem>>, vector<256x128xbf16>
    %cst = arith.constant dense<0.000000e+00> : vector<128x128xf32>
    %6 = tpu.matmul %4, %5, %cst {dimension_numbers = #tpu.dot_dimension_numbers<[1], [0], [0], [1], [0, 0, 1, 1], [], []>} : vector<128x256xbf16>, vector<256x128xbf16>, vector<128x128xf32> -> vector<128x128xf32>
    %7 = arith.addf %3, %6 : vector<128x128xf32>
    %c0_6 = arith.constant 0 : index
    %c0_7 = arith.constant 0 : index
    %8 = vector.load %arg7[%c0_6, %c0_7] : memref<128x128xf32, #tpu.memory_space<vmem>>, vector<128x128xf32>
    tpu.vector_store %arg7[%c0_6, %c0_7], %7 {strides = array<i32>} : memref<128x128xf32, #tpu.memory_space<vmem>>, vector<128x128xf32>,
    %c0_i32_8 = arith.constant 0 : i32
    %9 = arith.cmpi eq, %arg2, %c0_i32_8 : i32
    %10 = arith.extui %9 : i1 to i32
    %c0_i32_9 = arith.constant 0 : i32
    %11 = arith.cmpi ne, %10, %c0_i32_9 : i32
    scf.if %11 {
      %c0_10 = arith.constant 0 : index
      %c0_11 = arith.constant 0 : index
      %12 = vector.load %arg7[%c0_10, %c0_11] : memref<128x128xf32, #tpu.memory_space<vmem>>, vector<128x128xf32>
      %c0_12 = arith.constant 0 : index
      %c0_13 = arith.constant 0 : index
      %13 = vector.load %arg5[%c0_12, %c0_13] : memref<1x128xf32, #tpu.memory_space<vmem>>, vector<1x128xf32>
      %14 = vector.broadcast %13 : vector<1x128xf32> to vector<128x128xf32>
      %15 = arith.addf %12, %14 : vector<128x128xf32>
      %cst_14 = arith.constant 0.000000e+00 : f32
      %16 = vector.broadcast %cst_14 : f32 to vector<128x128xf32>
      %17 = arith.maximumf %15, %16 : vector<128x128xf32>
      %18 = arith.truncf %17 : vector<128x128xf32> to vector<128x128xbf16>
      %c0_15 = arith.constant 0 : index
      %c0_16 = arith.constant 0 : index
      %19 = vector.load %arg6[%c0_15, %c0_16] : memref<128x128xbf16, #tpu.memory_space<vmem>>, vector<128x128xbf16>
      tpu.vector_store %arg6[%c0_15, %c0_16], %18 {strides = array<i32>} : memref<128x128xbf16, #tpu.memory_space<vmem>>, vector<128x128xbf16>,
    } else {
    }
    return
  }
  func.func @transform_0(%arg0: i32, %arg1: i32, %arg2: i32) -> (i32, i32) {
    %c0_i32 = arith.constant 0 : i32
    return %arg0, %arg2 : i32, i32
  }
  func.func @transform_1(%arg0: i32, %arg1: i32, %arg2: i32) -> (i32, i32) {
    %c0_i32 = arith.constant 0 : i32
    return %arg2, %arg1 : i32, i32
  }
  func.func @transform_2(%arg0: i32, %arg1: i32, %arg2: i32) -> (i32, i32) {
    %c0_i32 = arith.constant 0 : i32
    %c0_i32_0 = arith.constant 0 : i32
    return %c0_i32, %arg1 : i32, i32
  }
  func.func @transform_3(%arg0: i32, %arg1: i32, %arg2: i32) -> (i32, i32) {
    %c0_i32 = arith.constant 0 : i32
    return %arg0, %arg1 : i32, i32
  }
}

module attributes {stable_mosaic.version = 11 : i64} {
  func.func @_matmul_bn_act_kernel(%arg0: i32, %arg1: i32, %arg2: i32, %arg3: memref<32x384xbf16, #tpu.memory_space<vmem>>, %arg4: memref<384x128xbf16, #tpu.memory_space<vmem>>, %arg5: memref<1x128xf32, #tpu.memory_space<vmem>>, %arg6: memref<32x128xbf16, #tpu.memory_space<vmem>>, %arg7: memref<32x128xf32, #tpu.memory_space<vmem>>) attributes {dimension_semantics = [#tpu.dimension_semantics<parallel>, #tpu.dimension_semantics<parallel>, #tpu.dimension_semantics<arbitrary>], iteration_bounds = array<i64: 1, 1, 1>, scalar_prefetch = 0 : i64, scratch_operands = 1 : i64, tpu.core_type = #tpu.core_type<tc>, window_params = [{transform_indices = @transform_0, window_bounds = array<i64: 32, 384>}, {transform_indices = @transform_1, window_bounds = array<i64: 384, 128>}, {transform_indices = @transform_2, window_bounds = array<i64: 1, 128>}, {transform_indices = @transform_3, window_bounds = array<i64: 32, 128>}]} {
    %c0_i32 = arith.constant 0 : i32
    %0 = arith.cmpi eq, %arg2, %c0_i32 : i32
    %1 = arith.extui %0 : i1 to i32
    %c0_i32_0 = arith.constant 0 : i32
    %2 = arith.cmpi ne, %1, %c0_i32_0 : i32
    scf.if %2 {
      %cst_10 = arith.constant 0.000000e+00 : f32
      %12 = vector.broadcast %cst_10 : f32 to vector<32x128xf32>
      %c0_11 = arith.constant 0 : index
      %c0_12 = arith.constant 0 : index
      %13 = vector.load %arg7[%c0_11, %c0_12] : memref<32x128xf32, #tpu.memory_space<vmem>>, vector<32x128xf32>
      tpu.vector_store %arg7[%c0_11, %c0_12], %12 {strides = array<i32>} : memref<32x128xf32, #tpu.memory_space<vmem>>, vector<32x128xf32>,
    } else {
    }
    %c0 = arith.constant 0 : index
    %c0_1 = arith.constant 0 : index
    %3 = vector.load %arg7[%c0, %c0_1] : memref<32x128xf32, #tpu.memory_space<vmem>>, vector<32x128xf32>
    %c0_2 = arith.constant 0 : index
    %c0_3 = arith.constant 0 : index
    %4 = vector.load %arg3[%c0_2, %c0_3] : memref<32x384xbf16, #tpu.memory_space<vmem>>, vector<32x384xbf16>
    %c0_4 = arith.constant 0 : index
    %c0_5 = arith.constant 0 : index
    %5 = vector.load %arg4[%c0_4, %c0_5] : memref<384x128xbf16, #tpu.memory_space<vmem>>, vector<384x128xbf16>
    %cst = arith.constant dense<0.000000e+00> : vector<32x128xf32>
    %6 = tpu.matmul %4, %5, %cst {dimension_numbers = #tpu.dot_dimension_numbers<[1], [0], [0], [1], [0, 0, 1, 1], [], []>} : vector<32x384xbf16>, vector<384x128xbf16>, vector<32x128xf32> -> vector<32x128xf32>
    %7 = arith.addf %3, %6 : vector<32x128xf32>
    %c0_6 = arith.constant 0 : index
    %c0_7 = arith.constant 0 : index
    %8 = vector.load %arg7[%c0_6, %c0_7] : memref<32x128xf32, #tpu.memory_space<vmem>>, vector<32x128xf32>
    tpu.vector_store %arg7[%c0_6, %c0_7], %7 {strides = array<i32>} : memref<32x128xf32, #tpu.memory_space<vmem>>, vector<32x128xf32>,
    %c0_i32_8 = arith.constant 0 : i32
    %9 = arith.cmpi eq, %arg2, %c0_i32_8 : i32
    %10 = arith.extui %9 : i1 to i32
    %c0_i32_9 = arith.constant 0 : i32
    %11 = arith.cmpi ne, %10, %c0_i32_9 : i32
    scf.if %11 {
      %c0_10 = arith.constant 0 : index
      %c0_11 = arith.constant 0 : index
      %12 = vector.load %arg7[%c0_10, %c0_11] : memref<32x128xf32, #tpu.memory_space<vmem>>, vector<32x128xf32>
      %c0_12 = arith.constant 0 : index
      %c0_13 = arith.constant 0 : index
      %13 = vector.load %arg5[%c0_12, %c0_13] : memref<1x128xf32, #tpu.memory_space<vmem>>, vector<1x128xf32>
      %14 = vector.broadcast %13 : vector<1x128xf32> to vector<32x128xf32>
      %15 = arith.addf %12, %14 : vector<32x128xf32>
      %cst_14 = arith.constant 0.000000e+00 : f32
      %16 = vector.broadcast %cst_14 : f32 to vector<32x128xf32>
      %17 = arith.maximumf %15, %16 : vector<32x128xf32>
      %18 = arith.truncf %17 : vector<32x128xf32> to vector<32x128xbf16>
      %c0_15 = arith.constant 0 : index
      %c0_16 = arith.constant 0 : index
      %19 = vector.load %arg6[%c0_15, %c0_16] : memref<32x128xbf16, #tpu.memory_space<vmem>>, vector<32x128xbf16>
      tpu.vector_store %arg6[%c0_15, %c0_16], %18 {strides = array<i32>} : memref<32x128xbf16, #tpu.memory_space<vmem>>, vector<32x128xbf16>,
    } else {
    }
    return
  }
  func.func @transform_0(%arg0: i32, %arg1: i32, %arg2: i32) -> (i32, i32) {
    %c0_i32 = arith.constant 0 : i32
    return %arg0, %arg2 : i32, i32
  }
  func.func @transform_1(%arg0: i32, %arg1: i32, %arg2: i32) -> (i32, i32) {
    %c0_i32 = arith.constant 0 : i32
    return %arg2, %arg1 : i32, i32
  }
  func.func @transform_2(%arg0: i32, %arg1: i32, %arg2: i32) -> (i32, i32) {
    %c0_i32 = arith.constant 0 : i32
    %c0_i32_0 = arith.constant 0 : i32
    return %c0_i32, %arg1 : i32, i32
  }
  func.func @transform_3(%arg0: i32, %arg1: i32, %arg2: i32) -> (i32, i32) {
    %c0_i32 = arith.constant 0 : i32
    return %arg0, %arg1 : i32, i32
  }
}

module attributes {stable_mosaic.version = 11 : i64} {
  func.func @_matmul_bn_act_kernel(%arg0: i32, %arg1: i32, %arg2: i32, %arg3: memref<8x640xbf16, #tpu.memory_space<vmem>>, %arg4: memref<640x128xbf16, #tpu.memory_space<vmem>>, %arg5: memref<1x128xf32, #tpu.memory_space<vmem>>, %arg6: memref<8x128xbf16, #tpu.memory_space<vmem>>, %arg7: memref<8x128xf32, #tpu.memory_space<vmem>>) attributes {dimension_semantics = [#tpu.dimension_semantics<parallel>, #tpu.dimension_semantics<parallel>, #tpu.dimension_semantics<arbitrary>], iteration_bounds = array<i64: 1, 1, 1>, scalar_prefetch = 0 : i64, scratch_operands = 1 : i64, tpu.core_type = #tpu.core_type<tc>, window_params = [{transform_indices = @transform_0, window_bounds = array<i64: 8, 640>}, {transform_indices = @transform_1, window_bounds = array<i64: 640, 128>}, {transform_indices = @transform_2, window_bounds = array<i64: 1, 128>}, {transform_indices = @transform_3, window_bounds = array<i64: 8, 128>}]} {
    %c0_i32 = arith.constant 0 : i32
    %0 = arith.cmpi eq, %arg2, %c0_i32 : i32
    %1 = arith.extui %0 : i1 to i32
    %c0_i32_0 = arith.constant 0 : i32
    %2 = arith.cmpi ne, %1, %c0_i32_0 : i32
    scf.if %2 {
      %cst_10 = arith.constant 0.000000e+00 : f32
      %12 = vector.broadcast %cst_10 : f32 to vector<8x128xf32>
      %c0_11 = arith.constant 0 : index
      %c0_12 = arith.constant 0 : index
      %13 = vector.load %arg7[%c0_11, %c0_12] : memref<8x128xf32, #tpu.memory_space<vmem>>, vector<8x128xf32>
      tpu.vector_store %arg7[%c0_11, %c0_12], %12 {strides = array<i32>} : memref<8x128xf32, #tpu.memory_space<vmem>>, vector<8x128xf32>,
    } else {
    }
    %c0 = arith.constant 0 : index
    %c0_1 = arith.constant 0 : index
    %3 = vector.load %arg7[%c0, %c0_1] : memref<8x128xf32, #tpu.memory_space<vmem>>, vector<8x128xf32>
    %c0_2 = arith.constant 0 : index
    %c0_3 = arith.constant 0 : index
    %4 = vector.load %arg3[%c0_2, %c0_3] : memref<8x640xbf16, #tpu.memory_space<vmem>>, vector<8x640xbf16>
    %c0_4 = arith.constant 0 : index
    %c0_5 = arith.constant 0 : index
    %5 = vector.load %arg4[%c0_4, %c0_5] : memref<640x128xbf16, #tpu.memory_space<vmem>>, vector<640x128xbf16>
    %cst = arith.constant dense<0.000000e+00> : vector<8x128xf32>
    %6 = tpu.matmul %4, %5, %cst {dimension_numbers = #tpu.dot_dimension_numbers<[1], [0], [0], [1], [0, 0, 1, 1], [], []>} : vector<8x640xbf16>, vector<640x128xbf16>, vector<8x128xf32> -> vector<8x128xf32>
    %7 = arith.addf %3, %6 : vector<8x128xf32>
    %c0_6 = arith.constant 0 : index
    %c0_7 = arith.constant 0 : index
    %8 = vector.load %arg7[%c0_6, %c0_7] : memref<8x128xf32, #tpu.memory_space<vmem>>, vector<8x128xf32>
    tpu.vector_store %arg7[%c0_6, %c0_7], %7 {strides = array<i32>} : memref<8x128xf32, #tpu.memory_space<vmem>>, vector<8x128xf32>,
    %c0_i32_8 = arith.constant 0 : i32
    %9 = arith.cmpi eq, %arg2, %c0_i32_8 : i32
    %10 = arith.extui %9 : i1 to i32
    %c0_i32_9 = arith.constant 0 : i32
    %11 = arith.cmpi ne, %10, %c0_i32_9 : i32
    scf.if %11 {
      %c0_10 = arith.constant 0 : index
      %c0_11 = arith.constant 0 : index
      %12 = vector.load %arg7[%c0_10, %c0_11] : memref<8x128xf32, #tpu.memory_space<vmem>>, vector<8x128xf32>
      %c0_12 = arith.constant 0 : index
      %c0_13 = arith.constant 0 : index
      %13 = vector.load %arg5[%c0_12, %c0_13] : memref<1x128xf32, #tpu.memory_space<vmem>>, vector<1x128xf32>
      %14 = vector.broadcast %13 : vector<1x128xf32> to vector<8x128xf32>
      %15 = arith.addf %12, %14 : vector<8x128xf32>
      %cst_14 = arith.constant 0.000000e+00 : f32
      %16 = vector.broadcast %cst_14 : f32 to vector<8x128xf32>
      %17 = arith.maximumf %15, %16 : vector<8x128xf32>
      %18 = arith.truncf %17 : vector<8x128xf32> to vector<8x128xbf16>
      %c0_15 = arith.constant 0 : index
      %c0_16 = arith.constant 0 : index
      %19 = vector.load %arg6[%c0_15, %c0_16] : memref<8x128xbf16, #tpu.memory_space<vmem>>, vector<8x128xbf16>
      tpu.vector_store %arg6[%c0_15, %c0_16], %18 {strides = array<i32>} : memref<8x128xbf16, #tpu.memory_space<vmem>>, vector<8x128xbf16>,
    } else {
    }
    return
  }
  func.func @transform_0(%arg0: i32, %arg1: i32, %arg2: i32) -> (i32, i32) {
    %c0_i32 = arith.constant 0 : i32
    return %arg0, %arg2 : i32, i32
  }
  func.func @transform_1(%arg0: i32, %arg1: i32, %arg2: i32) -> (i32, i32) {
    %c0_i32 = arith.constant 0 : i32
    return %arg2, %arg1 : i32, i32
  }
  func.func @transform_2(%arg0: i32, %arg1: i32, %arg2: i32) -> (i32, i32) {
    %c0_i32 = arith.constant 0 : i32
    %c0_i32_0 = arith.constant 0 : i32
    return %c0_i32, %arg1 : i32, i32
  }
  func.func @transform_3(%arg0: i32, %arg1: i32, %arg2: i32) -> (i32, i32) {
    %c0_i32 = arith.constant 0 : i32
    return %arg0, %arg1 : i32, i32
  }
}

module attributes {stable_mosaic.version = 11 : i64} {
  func.func @_matmul_bn_act_kernel(%arg0: i32, %arg1: i32, %arg2: i32, %arg3: memref<8x640xbf16, #tpu.memory_space<vmem>>, %arg4: memref<640x512xbf16, #tpu.memory_space<vmem>>, %arg5: memref<1x512xf32, #tpu.memory_space<vmem>>, %arg6: memref<8x512xbf16, #tpu.memory_space<vmem>>, %arg7: memref<8x512xf32, #tpu.memory_space<vmem>>) attributes {dimension_semantics = [#tpu.dimension_semantics<parallel>, #tpu.dimension_semantics<parallel>, #tpu.dimension_semantics<arbitrary>], iteration_bounds = array<i64: 1, 4, 1>, scalar_prefetch = 0 : i64, scratch_operands = 1 : i64, tpu.core_type = #tpu.core_type<tc>, window_params = [{transform_indices = @transform_0, window_bounds = array<i64: 8, 640>}, {transform_indices = @transform_1, window_bounds = array<i64: 640, 512>}, {transform_indices = @transform_2, window_bounds = array<i64: 1, 512>}, {transform_indices = @transform_3, window_bounds = array<i64: 8, 512>}]} {
    %c0_i32 = arith.constant 0 : i32
    %0 = arith.cmpi eq, %arg2, %c0_i32 : i32
    %1 = arith.extui %0 : i1 to i32
    %c0_i32_0 = arith.constant 0 : i32
    %2 = arith.cmpi ne, %1, %c0_i32_0 : i32
    scf.if %2 {
      %cst_10 = arith.constant 0.000000e+00 : f32
      %12 = vector.broadcast %cst_10 : f32 to vector<8x512xf32>
      %c0_11 = arith.constant 0 : index
      %c0_12 = arith.constant 0 : index
      %13 = vector.load %arg7[%c0_11, %c0_12] : memref<8x512xf32, #tpu.memory_space<vmem>>, vector<8x512xf32>
      tpu.vector_store %arg7[%c0_11, %c0_12], %12 {strides = array<i32>} : memref<8x512xf32, #tpu.memory_space<vmem>>, vector<8x512xf32>,
    } else {
    }
    %c0 = arith.constant 0 : index
    %c0_1 = arith.constant 0 : index
    %3 = vector.load %arg7[%c0, %c0_1] : memref<8x512xf32, #tpu.memory_space<vmem>>, vector<8x512xf32>
    %c0_2 = arith.constant 0 : index
    %c0_3 = arith.constant 0 : index
    %4 = vector.load %arg3[%c0_2, %c0_3] : memref<8x640xbf16, #tpu.memory_space<vmem>>, vector<8x640xbf16>
    %c0_4 = arith.constant 0 : index
    %c0_5 = arith.constant 0 : index
    %5 = vector.load %arg4[%c0_4, %c0_5] : memref<640x512xbf16, #tpu.memory_space<vmem>>, vector<640x512xbf16>
    %cst = arith.constant dense<0.000000e+00> : vector<8x512xf32>
    %6 = tpu.matmul %4, %5, %cst {dimension_numbers = #tpu.dot_dimension_numbers<[1], [0], [0], [1], [0, 0, 1, 1], [], []>} : vector<8x640xbf16>, vector<640x512xbf16>, vector<8x512xf32> -> vector<8x512xf32>
    %7 = arith.addf %3, %6 : vector<8x512xf32>
    %c0_6 = arith.constant 0 : index
    %c0_7 = arith.constant 0 : index
    %8 = vector.load %arg7[%c0_6, %c0_7] : memref<8x512xf32, #tpu.memory_space<vmem>>, vector<8x512xf32>
    tpu.vector_store %arg7[%c0_6, %c0_7], %7 {strides = array<i32>} : memref<8x512xf32, #tpu.memory_space<vmem>>, vector<8x512xf32>,
    %c0_i32_8 = arith.constant 0 : i32
    %9 = arith.cmpi eq, %arg2, %c0_i32_8 : i32
    %10 = arith.extui %9 : i1 to i32
    %c0_i32_9 = arith.constant 0 : i32
    %11 = arith.cmpi ne, %10, %c0_i32_9 : i32
    scf.if %11 {
      %c0_10 = arith.constant 0 : index
      %c0_11 = arith.constant 0 : index
      %12 = vector.load %arg7[%c0_10, %c0_11] : memref<8x512xf32, #tpu.memory_space<vmem>>, vector<8x512xf32>
      %c0_12 = arith.constant 0 : index
      %c0_13 = arith.constant 0 : index
      %13 = vector.load %arg5[%c0_12, %c0_13] : memref<1x512xf32, #tpu.memory_space<vmem>>, vector<1x512xf32>
      %14 = vector.broadcast %13 : vector<1x512xf32> to vector<8x512xf32>
      %15 = arith.addf %12, %14 : vector<8x512xf32>
      %cst_14 = arith.constant 0.000000e+00 : f32
      %16 = vector.broadcast %cst_14 : f32 to vector<8x512xf32>
      %17 = arith.maximumf %15, %16 : vector<8x512xf32>
      %18 = arith.truncf %17 : vector<8x512xf32> to vector<8x512xbf16>
      %c0_15 = arith.constant 0 : index
      %c0_16 = arith.constant 0 : index
      %19 = vector.load %arg6[%c0_15, %c0_16] : memref<8x512xbf16, #tpu.memory_space<vmem>>, vector<8x512xbf16>
      tpu.vector_store %arg6[%c0_15, %c0_16], %18 {strides = array<i32>} : memref<8x512xbf16, #tpu.memory_space<vmem>>, vector<8x512xbf16>,
    } else {
    }
    return
  }
  func.func @transform_0(%arg0: i32, %arg1: i32, %arg2: i32) -> (i32, i32) {
    %c0_i32 = arith.constant 0 : i32
    return %arg0, %arg2 : i32, i32
  }
  func.func @transform_1(%arg0: i32, %arg1: i32, %arg2: i32) -> (i32, i32) {
    %c0_i32 = arith.constant 0 : i32
    return %arg2, %arg1 : i32, i32
  }
  func.func @transform_2(%arg0: i32, %arg1: i32, %arg2: i32) -> (i32, i32) {
    %c0_i32 = arith.constant 0 : i32
    %c0_i32_0 = arith.constant 0 : i32
    return %c0_i32, %arg1 : i32, i32
  }
  func.func @transform_3(%arg0: i32, %arg1: i32, %arg2: i32) -> (i32, i32) {
    %c0_i32 = arith.constant 0 : i32
    return %arg0, %arg1 : i32, i32
  }
}

module attributes {stable_mosaic.version = 11 : i64} {
  func.func @_matmul_bn_act_kernel(%arg0: i32, %arg1: i32, %arg2: i32, %arg3: memref<8x512xbf16, #tpu.memory_space<vmem>>, %arg4: memref<512x512xbf16, #tpu.memory_space<vmem>>, %arg5: memref<1x512xf32, #tpu.memory_space<vmem>>, %arg6: memref<8x512xbf16, #tpu.memory_space<vmem>>, %arg7: memref<8x512xf32, #tpu.memory_space<vmem>>) attributes {dimension_semantics = [#tpu.dimension_semantics<parallel>, #tpu.dimension_semantics<parallel>, #tpu.dimension_semantics<arbitrary>], iteration_bounds = array<i64: 1, 1, 4>, scalar_prefetch = 0 : i64, scratch_operands = 1 : i64, tpu.core_type = #tpu.core_type<tc>, window_params = [{transform_indices = @transform_0, window_bounds = array<i64: 8, 512>}, {transform_indices = @transform_1, window_bounds = array<i64: 512, 512>}, {transform_indices = @transform_2, window_bounds = array<i64: 1, 512>}, {transform_indices = @transform_3, window_bounds = array<i64: 8, 512>}]} {
    %c0_i32 = arith.constant 0 : i32
    %0 = arith.cmpi eq, %arg2, %c0_i32 : i32
    %1 = arith.extui %0 : i1 to i32
    %c0_i32_0 = arith.constant 0 : i32
    %2 = arith.cmpi ne, %1, %c0_i32_0 : i32
    scf.if %2 {
      %cst_9 = arith.constant 0.000000e+00 : f32
      %12 = vector.broadcast %cst_9 : f32 to vector<8x512xf32>
      %c0_10 = arith.constant 0 : index
      %c0_11 = arith.constant 0 : index
      %13 = vector.load %arg7[%c0_10, %c0_11] : memref<8x512xf32, #tpu.memory_space<vmem>>, vector<8x512xf32>
      tpu.vector_store %arg7[%c0_10, %c0_11], %12 {strides = array<i32>} : memref<8x512xf32, #tpu.memory_space<vmem>>, vector<8x512xf32>,
    } else {
    }
    %c0 = arith.constant 0 : index
    %c0_1 = arith.constant 0 : index
    %3 = vector.load %arg7[%c0, %c0_1] : memref<8x512xf32, #tpu.memory_space<vmem>>, vector<8x512xf32>
    %c0_2 = arith.constant 0 : index
    %c0_3 = arith.constant 0 : index
    %4 = vector.load %arg3[%c0_2, %c0_3] : memref<8x512xbf16, #tpu.memory_space<vmem>>, vector<8x512xbf16>
    %c0_4 = arith.constant 0 : index
    %c0_5 = arith.constant 0 : index
    %5 = vector.load %arg4[%c0_4, %c0_5] : memref<512x512xbf16, #tpu.memory_space<vmem>>, vector<512x512xbf16>
    %cst = arith.constant dense<0.000000e+00> : vector<8x512xf32>
    %6 = tpu.matmul %4, %5, %cst {dimension_numbers = #tpu.dot_dimension_numbers<[1], [0], [0], [1], [0, 0, 1, 1], [], []>} : vector<8x512xbf16>, vector<512x512xbf16>, vector<8x512xf32> -> vector<8x512xf32>
    %7 = arith.addf %3, %6 : vector<8x512xf32>
    %c0_6 = arith.constant 0 : index
    %c0_7 = arith.constant 0 : index
    %8 = vector.load %arg7[%c0_6, %c0_7] : memref<8x512xf32, #tpu.memory_space<vmem>>, vector<8x512xf32>
    tpu.vector_store %arg7[%c0_6, %c0_7], %7 {strides = array<i32>} : memref<8x512xf32, #tpu.memory_space<vmem>>, vector<8x512xf32>,
    %c3_i32 = arith.constant 3 : i32
    %9 = arith.cmpi eq, %arg2, %c3_i32 : i32
    %10 = arith.extui %9 : i1 to i32
    %c0_i32_8 = arith.constant 0 : i32
    %11 = arith.cmpi ne, %10, %c0_i32_8 : i32
    scf.if %11 {
      %c0_9 = arith.constant 0 : index
      %c0_10 = arith.constant 0 : index
      %12 = vector.load %arg7[%c0_9, %c0_10] : memref<8x512xf32, #tpu.memory_space<vmem>>, vector<8x512xf32>
      %c0_11 = arith.constant 0 : index
      %c0_12 = arith.constant 0 : index
      %13 = vector.load %arg5[%c0_11, %c0_12] : memref<1x512xf32, #tpu.memory_space<vmem>>, vector<1x512xf32>
      %14 = vector.broadcast %13 : vector<1x512xf32> to vector<8x512xf32>
      %15 = arith.addf %12, %14 : vector<8x512xf32>
      %cst_13 = arith.constant 0.000000e+00 : f32
      %16 = vector.broadcast %cst_13 : f32 to vector<8x512xf32>
      %17 = arith.maximumf %15, %16 : vector<8x512xf32>
      %18 = arith.truncf %17 : vector<8x512xf32> to vector<8x512xbf16>
      %c0_14 = arith.constant 0 : index
      %c0_15 = arith.constant 0 : index
      %19 = vector.load %arg6[%c0_14, %c0_15] : memref<8x512xbf16, #tpu.memory_space<vmem>>, vector<8x512xbf16>
      tpu.vector_store %arg6[%c0_14, %c0_15], %18 {strides = array<i32>} : memref<8x512xbf16, #tpu.memory_space<vmem>>, vector<8x512xbf16>,
    } else {
    }
    return
  }
  func.func @transform_0(%arg0: i32, %arg1: i32, %arg2: i32) -> (i32, i32) {
    %c0_i32 = arith.constant 0 : i32
    return %arg0, %arg2 : i32, i32
  }
  func.func @transform_1(%arg0: i32, %arg1: i32, %arg2: i32) -> (i32, i32) {
    %c0_i32 = arith.constant 0 : i32
    return %arg2, %arg1 : i32, i32
  }
  func.func @transform_2(%arg0: i32, %arg1: i32, %arg2: i32) -> (i32, i32) {
    %c0_i32 = arith.constant 0 : i32
    %c0_i32_0 = arith.constant 0 : i32
    return %c0_i32, %arg1 : i32, i32
  }
  func.func @transform_3(%arg0: i32, %arg1: i32, %arg2: i32) -> (i32, i32) {
    %c0_i32 = arith.constant 0 : i32
    return %arg0, %arg1 : i32, i32
  }
}

module attributes {stable_mosaic.version = 11 : i64} {
  func.func @_matmul_bn_act_kernel(%arg0: i32, %arg1: i32, %arg2: i32, %arg3: memref<8x512xbf16, #tpu.memory_space<vmem>>, %arg4: memref<512x256xbf16, #tpu.memory_space<vmem>>, %arg5: memref<1x256xf32, #tpu.memory_space<vmem>>, %arg6: memref<8x256xbf16, #tpu.memory_space<vmem>>, %arg7: memref<8x256xf32, #tpu.memory_space<vmem>>) attributes {dimension_semantics = [#tpu.dimension_semantics<parallel>, #tpu.dimension_semantics<parallel>, #tpu.dimension_semantics<arbitrary>], iteration_bounds = array<i64: 1, 1, 9>, scalar_prefetch = 0 : i64, scratch_operands = 1 : i64, tpu.core_type = #tpu.core_type<tc>, window_params = [{transform_indices = @transform_0, window_bounds = array<i64: 8, 512>}, {transform_indices = @transform_1, window_bounds = array<i64: 512, 256>}, {transform_indices = @transform_2, window_bounds = array<i64: 1, 256>}, {transform_indices = @transform_3, window_bounds = array<i64: 8, 256>}]} {
    %c0_i32 = arith.constant 0 : i32
    %0 = arith.cmpi eq, %arg2, %c0_i32 : i32
    %1 = arith.extui %0 : i1 to i32
    %c0_i32_0 = arith.constant 0 : i32
    %2 = arith.cmpi ne, %1, %c0_i32_0 : i32
    scf.if %2 {
      %cst_9 = arith.constant 0.000000e+00 : f32
      %12 = vector.broadcast %cst_9 : f32 to vector<8x256xf32>
      %c0_10 = arith.constant 0 : index
      %c0_11 = arith.constant 0 : index
      %13 = vector.load %arg7[%c0_10, %c0_11] : memref<8x256xf32, #tpu.memory_space<vmem>>, vector<8x256xf32>
      tpu.vector_store %arg7[%c0_10, %c0_11], %12 {strides = array<i32>} : memref<8x256xf32, #tpu.memory_space<vmem>>, vector<8x256xf32>,
    } else {
    }
    %c0 = arith.constant 0 : index
    %c0_1 = arith.constant 0 : index
    %3 = vector.load %arg7[%c0, %c0_1] : memref<8x256xf32, #tpu.memory_space<vmem>>, vector<8x256xf32>
    %c0_2 = arith.constant 0 : index
    %c0_3 = arith.constant 0 : index
    %4 = vector.load %arg3[%c0_2, %c0_3] : memref<8x512xbf16, #tpu.memory_space<vmem>>, vector<8x512xbf16>
    %c0_4 = arith.constant 0 : index
    %c0_5 = arith.constant 0 : index
    %5 = vector.load %arg4[%c0_4, %c0_5] : memref<512x256xbf16, #tpu.memory_space<vmem>>, vector<512x256xbf16>
    %cst = arith.constant dense<0.000000e+00> : vector<8x256xf32>
    %6 = tpu.matmul %4, %5, %cst {dimension_numbers = #tpu.dot_dimension_numbers<[1], [0], [0], [1], [0, 0, 1, 1], [], []>} : vector<8x512xbf16>, vector<512x256xbf16>, vector<8x256xf32> -> vector<8x256xf32>
    %7 = arith.addf %3, %6 : vector<8x256xf32>
    %c0_6 = arith.constant 0 : index
    %c0_7 = arith.constant 0 : index
    %8 = vector.load %arg7[%c0_6, %c0_7] : memref<8x256xf32, #tpu.memory_space<vmem>>, vector<8x256xf32>
    tpu.vector_store %arg7[%c0_6, %c0_7], %7 {strides = array<i32>} : memref<8x256xf32, #tpu.memory_space<vmem>>, vector<8x256xf32>,
    %c8_i32 = arith.constant 8 : i32
    %9 = arith.cmpi eq, %arg2, %c8_i32 : i32
    %10 = arith.extui %9 : i1 to i32
    %c0_i32_8 = arith.constant 0 : i32
    %11 = arith.cmpi ne, %10, %c0_i32_8 : i32
    scf.if %11 {
      %c0_9 = arith.constant 0 : index
      %c0_10 = arith.constant 0 : index
      %12 = vector.load %arg7[%c0_9, %c0_10] : memref<8x256xf32, #tpu.memory_space<vmem>>, vector<8x256xf32>
      %c0_11 = arith.constant 0 : index
      %c0_12 = arith.constant 0 : index
      %13 = vector.load %arg5[%c0_11, %c0_12] : memref<1x256xf32, #tpu.memory_space<vmem>>, vector<1x256xf32>
      %14 = vector.broadcast %13 : vector<1x256xf32> to vector<8x256xf32>
      %15 = arith.addf %12, %14 : vector<8x256xf32>
      %cst_13 = arith.constant 0.000000e+00 : f32
      %16 = vector.broadcast %cst_13 : f32 to vector<8x256xf32>
      %17 = arith.maximumf %15, %16 : vector<8x256xf32>
      %18 = arith.truncf %17 : vector<8x256xf32> to vector<8x256xbf16>
      %c0_14 = arith.constant 0 : index
      %c0_15 = arith.constant 0 : index
      %19 = vector.load %arg6[%c0_14, %c0_15] : memref<8x256xbf16, #tpu.memory_space<vmem>>, vector<8x256xbf16>
      tpu.vector_store %arg6[%c0_14, %c0_15], %18 {strides = array<i32>} : memref<8x256xbf16, #tpu.memory_space<vmem>>, vector<8x256xbf16>,
    } else {
    }
    return
  }
  func.func @transform_0(%arg0: i32, %arg1: i32, %arg2: i32) -> (i32, i32) {
    %c0_i32 = arith.constant 0 : i32
    return %arg0, %arg2 : i32, i32
  }
  func.func @transform_1(%arg0: i32, %arg1: i32, %arg2: i32) -> (i32, i32) {
    %c0_i32 = arith.constant 0 : i32
    return %arg2, %arg1 : i32, i32
  }
  func.func @transform_2(%arg0: i32, %arg1: i32, %arg2: i32) -> (i32, i32) {
    %c0_i32 = arith.constant 0 : i32
    %c0_i32_0 = arith.constant 0 : i32
    return %c0_i32, %arg1 : i32, i32
  }
  func.func @transform_3(%arg0: i32, %arg1: i32, %arg2: i32) -> (i32, i32) {
    %c0_i32 = arith.constant 0 : i32
    return %arg0, %arg1 : i32, i32
  }
}

module attributes {stable_mosaic.version = 11 : i64} {
  func.func @_matmul_bn_act_kernel(%arg0: i32, %arg1: i32, %arg2: i32, %arg3: memref<8x512xbf16, #tpu.memory_space<vmem>>, %arg4: memref<512x256xbf16, #tpu.memory_space<vmem>>, %arg5: memref<1x256xf32, #tpu.memory_space<vmem>>, %arg6: memref<8x256xbf16, #tpu.memory_space<vmem>>, %arg7: memref<8x256xf32, #tpu.memory_space<vmem>>) attributes {dimension_semantics = [#tpu.dimension_semantics<parallel>, #tpu.dimension_semantics<parallel>, #tpu.dimension_semantics<arbitrary>], iteration_bounds = array<i64: 1, 1, 1>, scalar_prefetch = 0 : i64, scratch_operands = 1 : i64, tpu.core_type = #tpu.core_type<tc>, window_params = [{transform_indices = @transform_0, window_bounds = array<i64: 8, 512>}, {transform_indices = @transform_1, window_bounds = array<i64: 512, 256>}, {transform_indices = @transform_2, window_bounds = array<i64: 1, 256>}, {transform_indices = @transform_3, window_bounds = array<i64: 8, 256>}]} {
    %c0_i32 = arith.constant 0 : i32
    %0 = arith.cmpi eq, %arg2, %c0_i32 : i32
    %1 = arith.extui %0 : i1 to i32
    %c0_i32_0 = arith.constant 0 : i32
    %2 = arith.cmpi ne, %1, %c0_i32_0 : i32
    scf.if %2 {
      %cst_10 = arith.constant 0.000000e+00 : f32
      %12 = vector.broadcast %cst_10 : f32 to vector<8x256xf32>
      %c0_11 = arith.constant 0 : index
      %c0_12 = arith.constant 0 : index
      %13 = vector.load %arg7[%c0_11, %c0_12] : memref<8x256xf32, #tpu.memory_space<vmem>>, vector<8x256xf32>
      tpu.vector_store %arg7[%c0_11, %c0_12], %12 {strides = array<i32>} : memref<8x256xf32, #tpu.memory_space<vmem>>, vector<8x256xf32>,
    } else {
    }
    %c0 = arith.constant 0 : index
    %c0_1 = arith.constant 0 : index
    %3 = vector.load %arg7[%c0, %c0_1] : memref<8x256xf32, #tpu.memory_space<vmem>>, vector<8x256xf32>
    %c0_2 = arith.constant 0 : index
    %c0_3 = arith.constant 0 : index
    %4 = vector.load %arg3[%c0_2, %c0_3] : memref<8x512xbf16, #tpu.memory_space<vmem>>, vector<8x512xbf16>
    %c0_4 = arith.constant 0 : index
    %c0_5 = arith.constant 0 : index
    %5 = vector.load %arg4[%c0_4, %c0_5] : memref<512x256xbf16, #tpu.memory_space<vmem>>, vector<512x256xbf16>
    %cst = arith.constant dense<0.000000e+00> : vector<8x256xf32>
    %6 = tpu.matmul %4, %5, %cst {dimension_numbers = #tpu.dot_dimension_numbers<[1], [0], [0], [1], [0, 0, 1, 1], [], []>} : vector<8x512xbf16>, vector<512x256xbf16>, vector<8x256xf32> -> vector<8x256xf32>
    %7 = arith.addf %3, %6 : vector<8x256xf32>
    %c0_6 = arith.constant 0 : index
    %c0_7 = arith.constant 0 : index
    %8 = vector.load %arg7[%c0_6, %c0_7] : memref<8x256xf32, #tpu.memory_space<vmem>>, vector<8x256xf32>
    tpu.vector_store %arg7[%c0_6, %c0_7], %7 {strides = array<i32>} : memref<8x256xf32, #tpu.memory_space<vmem>>, vector<8x256xf32>,
    %c0_i32_8 = arith.constant 0 : i32
    %9 = arith.cmpi eq, %arg2, %c0_i32_8 : i32
    %10 = arith.extui %9 : i1 to i32
    %c0_i32_9 = arith.constant 0 : i32
    %11 = arith.cmpi ne, %10, %c0_i32_9 : i32
    scf.if %11 {
      %c0_10 = arith.constant 0 : index
      %c0_11 = arith.constant 0 : index
      %12 = vector.load %arg7[%c0_10, %c0_11] : memref<8x256xf32, #tpu.memory_space<vmem>>, vector<8x256xf32>
      %c0_12 = arith.constant 0 : index
      %c0_13 = arith.constant 0 : index
      %13 = vector.load %arg5[%c0_12, %c0_13] : memref<1x256xf32, #tpu.memory_space<vmem>>, vector<1x256xf32>
      %14 = vector.broadcast %13 : vector<1x256xf32> to vector<8x256xf32>
      %15 = arith.addf %12, %14 : vector<8x256xf32>
      %cst_14 = arith.constant 0.000000e+00 : f32
      %16 = vector.broadcast %cst_14 : f32 to vector<8x256xf32>
      %17 = arith.maximumf %15, %16 : vector<8x256xf32>
      %18 = arith.truncf %17 : vector<8x256xf32> to vector<8x256xbf16>
      %c0_15 = arith.constant 0 : index
      %c0_16 = arith.constant 0 : index
      %19 = vector.load %arg6[%c0_15, %c0_16] : memref<8x256xbf16, #tpu.memory_space<vmem>>, vector<8x256xbf16>
      tpu.vector_store %arg6[%c0_15, %c0_16], %18 {strides = array<i32>} : memref<8x256xbf16, #tpu.memory_space<vmem>>, vector<8x256xbf16>,
    } else {
    }
    return
  }
  func.func @transform_0(%arg0: i32, %arg1: i32, %arg2: i32) -> (i32, i32) {
    %c0_i32 = arith.constant 0 : i32
    return %arg0, %arg2 : i32, i32
  }
  func.func @transform_1(%arg0: i32, %arg1: i32, %arg2: i32) -> (i32, i32) {
    %c0_i32 = arith.constant 0 : i32
    return %arg2, %arg1 : i32, i32
  }
  func.func @transform_2(%arg0: i32, %arg1: i32, %arg2: i32) -> (i32, i32) {
    %c0_i32 = arith.constant 0 : i32
    %c0_i32_0 = arith.constant 0 : i32
    return %c0_i32, %arg1 : i32, i32
  }
  func.func @transform_3(%arg0: i32, %arg1: i32, %arg2: i32) -> (i32, i32) {
    %c0_i32 = arith.constant 0 : i32
    return %arg0, %arg1 : i32, i32
  }
}

module attributes {stable_mosaic.version = 11 : i64} {
  func.func @_matmul_bn_act_kernel(%arg0: i32, %arg1: i32, %arg2: i32, %arg3: memref<8x1024xbf16, #tpu.memory_space<vmem>>, %arg4: memref<1024x256xbf16, #tpu.memory_space<vmem>>, %arg5: memref<1x256xf32, #tpu.memory_space<vmem>>, %arg6: memref<8x256xbf16, #tpu.memory_space<vmem>>, %arg7: memref<8x256xf32, #tpu.memory_space<vmem>>) attributes {dimension_semantics = [#tpu.dimension_semantics<parallel>, #tpu.dimension_semantics<parallel>, #tpu.dimension_semantics<arbitrary>], iteration_bounds = array<i64: 1, 1, 1>, scalar_prefetch = 0 : i64, scratch_operands = 1 : i64, tpu.core_type = #tpu.core_type<tc>, window_params = [{transform_indices = @transform_0, window_bounds = array<i64: 8, 1024>}, {transform_indices = @transform_1, window_bounds = array<i64: 1024, 256>}, {transform_indices = @transform_2, window_bounds = array<i64: 1, 256>}, {transform_indices = @transform_3, window_bounds = array<i64: 8, 256>}]} {
    %c0_i32 = arith.constant 0 : i32
    %0 = arith.cmpi eq, %arg2, %c0_i32 : i32
    %1 = arith.extui %0 : i1 to i32
    %c0_i32_0 = arith.constant 0 : i32
    %2 = arith.cmpi ne, %1, %c0_i32_0 : i32
    scf.if %2 {
      %cst_10 = arith.constant 0.000000e+00 : f32
      %12 = vector.broadcast %cst_10 : f32 to vector<8x256xf32>
      %c0_11 = arith.constant 0 : index
      %c0_12 = arith.constant 0 : index
      %13 = vector.load %arg7[%c0_11, %c0_12] : memref<8x256xf32, #tpu.memory_space<vmem>>, vector<8x256xf32>
      tpu.vector_store %arg7[%c0_11, %c0_12], %12 {strides = array<i32>} : memref<8x256xf32, #tpu.memory_space<vmem>>, vector<8x256xf32>,
    } else {
    }
    %c0 = arith.constant 0 : index
    %c0_1 = arith.constant 0 : index
    %3 = vector.load %arg7[%c0, %c0_1] : memref<8x256xf32, #tpu.memory_space<vmem>>, vector<8x256xf32>
    %c0_2 = arith.constant 0 : index
    %c0_3 = arith.constant 0 : index
    %4 = vector.load %arg3[%c0_2, %c0_3] : memref<8x1024xbf16, #tpu.memory_space<vmem>>, vector<8x1024xbf16>
    %c0_4 = arith.constant 0 : index
    %c0_5 = arith.constant 0 : index
    %5 = vector.load %arg4[%c0_4, %c0_5] : memref<1024x256xbf16, #tpu.memory_space<vmem>>, vector<1024x256xbf16>
    %cst = arith.constant dense<0.000000e+00> : vector<8x256xf32>
    %6 = tpu.matmul %4, %5, %cst {dimension_numbers = #tpu.dot_dimension_numbers<[1], [0], [0], [1], [0, 0, 1, 1], [], []>} : vector<8x1024xbf16>, vector<1024x256xbf16>, vector<8x256xf32> -> vector<8x256xf32>
    %7 = arith.addf %3, %6 : vector<8x256xf32>
    %c0_6 = arith.constant 0 : index
    %c0_7 = arith.constant 0 : index
    %8 = vector.load %arg7[%c0_6, %c0_7] : memref<8x256xf32, #tpu.memory_space<vmem>>, vector<8x256xf32>
    tpu.vector_store %arg7[%c0_6, %c0_7], %7 {strides = array<i32>} : memref<8x256xf32, #tpu.memory_space<vmem>>, vector<8x256xf32>,
    %c0_i32_8 = arith.constant 0 : i32
    %9 = arith.cmpi eq, %arg2, %c0_i32_8 : i32
    %10 = arith.extui %9 : i1 to i32
    %c0_i32_9 = arith.constant 0 : i32
    %11 = arith.cmpi ne, %10, %c0_i32_9 : i32
    scf.if %11 {
      %c0_10 = arith.constant 0 : index
      %c0_11 = arith.constant 0 : index
      %12 = vector.load %arg7[%c0_10, %c0_11] : memref<8x256xf32, #tpu.memory_space<vmem>>, vector<8x256xf32>
      %c0_12 = arith.constant 0 : index
      %c0_13 = arith.constant 0 : index
      %13 = vector.load %arg5[%c0_12, %c0_13] : memref<1x256xf32, #tpu.memory_space<vmem>>, vector<1x256xf32>
      %14 = vector.broadcast %13 : vector<1x256xf32> to vector<8x256xf32>
      %15 = arith.addf %12, %14 : vector<8x256xf32>
      %16 = arith.truncf %15 : vector<8x256xf32> to vector<8x256xbf16>
      %c0_14 = arith.constant 0 : index
      %c0_15 = arith.constant 0 : index
      %17 = vector.load %arg6[%c0_14, %c0_15] : memref<8x256xbf16, #tpu.memory_space<vmem>>, vector<8x256xbf16>
      tpu.vector_store %arg6[%c0_14, %c0_15], %16 {strides = array<i32>} : memref<8x256xbf16, #tpu.memory_space<vmem>>, vector<8x256xbf16>,
    } else {
    }
    return
  }
  func.func @transform_0(%arg0: i32, %arg1: i32, %arg2: i32) -> (i32, i32) {
    %c0_i32 = arith.constant 0 : i32
    return %arg0, %arg2 : i32, i32
  }
  func.func @transform_1(%arg0: i32, %arg1: i32, %arg2: i32) -> (i32, i32) {
    %c0_i32 = arith.constant 0 : i32
    return %arg2, %arg1 : i32, i32
  }
  func.func @transform_2(%arg0: i32, %arg1: i32, %arg2: i32) -> (i32, i32) {
    %c0_i32 = arith.constant 0 : i32
    %c0_i32_0 = arith.constant 0 : i32
    return %c0_i32, %arg1 : i32, i32
  }
  func.func @transform_3(%arg0: i32, %arg1: i32, %arg2: i32) -> (i32, i32) {
    %c0_i32 = arith.constant 0 : i32
    return %arg0, %arg1 : i32, i32
  }
}

module attributes {stable_mosaic.version = 11 : i64} {
  func.func @_avgpool_kernel(%arg0: i32, %arg1: i32, %arg2: i32, %arg3: memref<1x8x128xbf16, #tpu.memory_space<vmem>>, %arg4: memref<1x1x128xbf16, #tpu.memory_space<vmem>>, %arg5: memref<1x1x128xf32, #tpu.memory_space<vmem>>) attributes {dimension_semantics = [#tpu.dimension_semantics<parallel>, #tpu.dimension_semantics<parallel>, #tpu.dimension_semantics<arbitrary>], iteration_bounds = array<i64: 2, 4, 1>, scalar_prefetch = 0 : i64, scratch_operands = 1 : i64, tpu.core_type = #tpu.core_type<tc>, window_params = [{transform_indices = @transform_0, window_bounds = array<i64: 1, 8, 128>}, {transform_indices = @transform_1, window_bounds = array<i64: 1, 1, 128>}]} {
    %c0_i32 = arith.constant 0 : i32
    %0 = arith.cmpi eq, %arg2, %c0_i32 : i32
    %1 = arith.extui %0 : i1 to i32
    %c0_i32_0 = arith.constant 0 : i32
    %2 = arith.cmpi ne, %1, %c0_i32_0 : i32
    scf.if %2 {
      %cst_11 = arith.constant 0.000000e+00 : f32
      %13 = vector.broadcast %cst_11 : f32 to vector<1x1x128xf32>
      %c0_12 = arith.constant 0 : index
      %c0_13 = arith.constant 0 : index
      %c0_14 = arith.constant 0 : index
      %14 = vector.load %arg5[%c0_12, %c0_13, %c0_14] : memref<1x1x128xf32, #tpu.memory_space<vmem>>, vector<1x1x128xf32>
      tpu.vector_store %arg5[%c0_12, %c0_13, %c0_14], %13 {strides = array<i32>} : memref<1x1x128xf32, #tpu.memory_space<vmem>>, vector<1x1x128xf32>,
    } else {
    }
    %c0 = arith.constant 0 : index
    %c0_1 = arith.constant 0 : index
    %c0_2 = arith.constant 0 : index
    %3 = vector.load %arg5[%c0, %c0_1, %c0_2] : memref<1x1x128xf32, #tpu.memory_space<vmem>>, vector<1x1x128xf32>
    %c0_3 = arith.constant 0 : index
    %c0_4 = arith.constant 0 : index
    %c0_5 = arith.constant 0 : index
    %4 = vector.load %arg3[%c0_3, %c0_4, %c0_5] : memref<1x8x128xbf16, #tpu.memory_space<vmem>>, vector<1x8x128xbf16>
    %5 = arith.extf %4 : vector<1x8x128xbf16> to vector<1x8x128xf32>
    %cst = arith.constant dense<0.000000e+00> : vector<1x128xf32>
    %6 = vector.multi_reduction <add>, %5, %cst [1] : vector<1x8x128xf32> to vector<1x128xf32>
    %7 = vector.shape_cast %6 : vector<1x128xf32> to vector<1x1x128xf32>
    %8 = arith.addf %3, %7 : vector<1x1x128xf32>
    %c0_6 = arith.constant 0 : index
    %c0_7 = arith.constant 0 : index
    %c0_8 = arith.constant 0 : index
    %9 = vector.load %arg5[%c0_6, %c0_7, %c0_8] : memref<1x1x128xf32, #tpu.memory_space<vmem>>, vector<1x1x128xf32>
    tpu.vector_store %arg5[%c0_6, %c0_7, %c0_8], %8 {strides = array<i32>} : memref<1x1x128xf32, #tpu.memory_space<vmem>>, vector<1x1x128xf32>,
    %c0_i32_9 = arith.constant 0 : i32
    %10 = arith.cmpi eq, %arg2, %c0_i32_9 : i32
    %11 = arith.extui %10 : i1 to i32
    %c0_i32_10 = arith.constant 0 : i32
    %12 = arith.cmpi ne, %11, %c0_i32_10 : i32
    scf.if %12 {
      %c0_11 = arith.constant 0 : index
      %c0_12 = arith.constant 0 : index
      %c0_13 = arith.constant 0 : index
      %13 = vector.load %arg5[%c0_11, %c0_12, %c0_13] : memref<1x1x128xf32, #tpu.memory_space<vmem>>, vector<1x1x128xf32>
      %cst_14 = arith.constant 2.500000e-01 : f32
      %14 = vector.broadcast %cst_14 : f32 to vector<1x1x128xf32>
      %15 = arith.mulf %13, %14 : vector<1x1x128xf32>
      %16 = arith.truncf %15 : vector<1x1x128xf32> to vector<1x1x128xbf16>
      %c0_15 = arith.constant 0 : index
      %c0_16 = arith.constant 0 : index
      %c0_17 = arith.constant 0 : index
      %17 = vector.load %arg4[%c0_15, %c0_16, %c0_17] : memref<1x1x128xbf16, #tpu.memory_space<vmem>>, vector<1x1x128xbf16>
      tpu.vector_store %arg4[%c0_15, %c0_16, %c0_17], %16 {strides = array<i32>} : memref<1x1x128xbf16, #tpu.memory_space<vmem>>, vector<1x1x128xbf16>,
    } else {
    }
    return
  }
  func.func @transform_0(%arg0: i32, %arg1: i32, %arg2: i32) -> (i32, i32, i32) {
    %c0_i32 = arith.constant 0 : i32
    return %arg0, %arg2, %arg1 : i32, i32, i32
  }
  func.func @transform_1(%arg0: i32, %arg1: i32, %arg2: i32) -> (i32, i32, i32) {
    %c0_i32 = arith.constant 0 : i32
    %c0_i32_0 = arith.constant 0 : i32
    return %arg0, %c0_i32, %arg1 : i32, i32, i32
  }
}

module attributes {stable_mosaic.version = 11 : i64} {
  func.func @_matmul_bn_act_kernel(%arg0: i32, %arg1: i32, %arg2: i32, %arg3: memref<8x256xbf16, #tpu.memory_space<vmem>>, %arg4: memref<256x256xbf16, #tpu.memory_space<vmem>>, %arg5: memref<1x256xf32, #tpu.memory_space<vmem>>, %arg6: memref<8x256xf32, #tpu.memory_space<vmem>>, %arg7: memref<8x256xf32, #tpu.memory_space<vmem>>) attributes {dimension_semantics = [#tpu.dimension_semantics<parallel>, #tpu.dimension_semantics<parallel>, #tpu.dimension_semantics<arbitrary>], iteration_bounds = array<i64: 1, 1, 1>, scalar_prefetch = 0 : i64, scratch_operands = 1 : i64, tpu.core_type = #tpu.core_type<tc>, window_params = [{transform_indices = @transform_0, window_bounds = array<i64: 8, 256>}, {transform_indices = @transform_1, window_bounds = array<i64: 256, 256>}, {transform_indices = @transform_2, window_bounds = array<i64: 1, 256>}, {transform_indices = @transform_3, window_bounds = array<i64: 8, 256>}]} {
    %c0_i32 = arith.constant 0 : i32
    %0 = arith.cmpi eq, %arg2, %c0_i32 : i32
    %1 = arith.extui %0 : i1 to i32
    %c0_i32_0 = arith.constant 0 : i32
    %2 = arith.cmpi ne, %1, %c0_i32_0 : i32
    scf.if %2 {
      %cst_10 = arith.constant 0.000000e+00 : f32
      %12 = vector.broadcast %cst_10 : f32 to vector<8x256xf32>
      %c0_11 = arith.constant 0 : index
      %c0_12 = arith.constant 0 : index
      %13 = vector.load %arg7[%c0_11, %c0_12] : memref<8x256xf32, #tpu.memory_space<vmem>>, vector<8x256xf32>
      tpu.vector_store %arg7[%c0_11, %c0_12], %12 {strides = array<i32>} : memref<8x256xf32, #tpu.memory_space<vmem>>, vector<8x256xf32>,
    } else {
    }
    %c0 = arith.constant 0 : index
    %c0_1 = arith.constant 0 : index
    %3 = vector.load %arg7[%c0, %c0_1] : memref<8x256xf32, #tpu.memory_space<vmem>>, vector<8x256xf32>
    %c0_2 = arith.constant 0 : index
    %c0_3 = arith.constant 0 : index
    %4 = vector.load %arg3[%c0_2, %c0_3] : memref<8x256xbf16, #tpu.memory_space<vmem>>, vector<8x256xbf16>
    %c0_4 = arith.constant 0 : index
    %c0_5 = arith.constant 0 : index
    %5 = vector.load %arg4[%c0_4, %c0_5] : memref<256x256xbf16, #tpu.memory_space<vmem>>, vector<256x256xbf16>
    %cst = arith.constant dense<0.000000e+00> : vector<8x256xf32>
    %6 = tpu.matmul %4, %5, %cst {dimension_numbers = #tpu.dot_dimension_numbers<[1], [0], [0], [1], [0, 0, 1, 1], [], []>} : vector<8x256xbf16>, vector<256x256xbf16>, vector<8x256xf32> -> vector<8x256xf32>
    %7 = arith.addf %3, %6 : vector<8x256xf32>
    %c0_6 = arith.constant 0 : index
    %c0_7 = arith.constant 0 : index
    %8 = vector.load %arg7[%c0_6, %c0_7] : memref<8x256xf32, #tpu.memory_space<vmem>>, vector<8x256xf32>
    tpu.vector_store %arg7[%c0_6, %c0_7], %7 {strides = array<i32>} : memref<8x256xf32, #tpu.memory_space<vmem>>, vector<8x256xf32>,
    %c0_i32_8 = arith.constant 0 : i32
    %9 = arith.cmpi eq, %arg2, %c0_i32_8 : i32
    %10 = arith.extui %9 : i1 to i32
    %c0_i32_9 = arith.constant 0 : i32
    %11 = arith.cmpi ne, %10, %c0_i32_9 : i32
    scf.if %11 {
      %c0_10 = arith.constant 0 : index
      %c0_11 = arith.constant 0 : index
      %12 = vector.load %arg7[%c0_10, %c0_11] : memref<8x256xf32, #tpu.memory_space<vmem>>, vector<8x256xf32>
      %c0_12 = arith.constant 0 : index
      %c0_13 = arith.constant 0 : index
      %13 = vector.load %arg5[%c0_12, %c0_13] : memref<1x256xf32, #tpu.memory_space<vmem>>, vector<1x256xf32>
      %14 = vector.broadcast %13 : vector<1x256xf32> to vector<8x256xf32>
      %15 = arith.addf %12, %14 : vector<8x256xf32>
      %c0_14 = arith.constant 0 : index
      %c0_15 = arith.constant 0 : index
      %16 = vector.load %arg6[%c0_14, %c0_15] : memref<8x256xf32, #tpu.memory_space<vmem>>, vector<8x256xf32>
      tpu.vector_store %arg6[%c0_14, %c0_15], %15 {strides = array<i32>} : memref<8x256xf32, #tpu.memory_space<vmem>>, vector<8x256xf32>,
    } else {
    }
    return
  }
  func.func @transform_0(%arg0: i32, %arg1: i32, %arg2: i32) -> (i32, i32) {
    %c0_i32 = arith.constant 0 : i32
    return %arg0, %arg2 : i32, i32
  }
  func.func @transform_1(%arg0: i32, %arg1: i32, %arg2: i32) -> (i32, i32) {
    %c0_i32 = arith.constant 0 : i32
    return %arg2, %arg1 : i32, i32
  }
  func.func @transform_2(%arg0: i32, %arg1: i32, %arg2: i32) -> (i32, i32) {
    %c0_i32 = arith.constant 0 : i32
    %c0_i32_0 = arith.constant 0 : i32
    return %c0_i32, %arg1 : i32, i32
  }
  func.func @transform_3(%arg0: i32, %arg1: i32, %arg2: i32) -> (i32, i32) {
    %c0_i32 = arith.constant 0 : i32
    return %arg0, %arg1 : i32, i32
  }
}

module attributes {stable_mosaic.version = 11 : i64} {
  func.func @_matmul_bn_act_kernel(%arg0: i32, %arg1: i32, %arg2: i32, %arg3: memref<8x256xbf16, #tpu.memory_space<vmem>>, %arg4: memref<256x128xbf16, #tpu.memory_space<vmem>>, %arg5: memref<1x128xf32, #tpu.memory_space<vmem>>, %arg6: memref<8x128xf32, #tpu.memory_space<vmem>>, %arg7: memref<8x128xf32, #tpu.memory_space<vmem>>) attributes {dimension_semantics = [#tpu.dimension_semantics<parallel>, #tpu.dimension_semantics<parallel>, #tpu.dimension_semantics<arbitrary>], iteration_bounds = array<i64: 1, 1, 1>, scalar_prefetch = 0 : i64, scratch_operands = 1 : i64, tpu.core_type = #tpu.core_type<tc>, window_params = [{transform_indices = @transform_0, window_bounds = array<i64: 8, 256>}, {transform_indices = @transform_1, window_bounds = array<i64: 256, 128>}, {transform_indices = @transform_2, window_bounds = array<i64: 1, 128>}, {transform_indices = @transform_3, window_bounds = array<i64: 8, 128>}]} {
    %c0_i32 = arith.constant 0 : i32
    %0 = arith.cmpi eq, %arg2, %c0_i32 : i32
    %1 = arith.extui %0 : i1 to i32
    %c0_i32_0 = arith.constant 0 : i32
    %2 = arith.cmpi ne, %1, %c0_i32_0 : i32
    scf.if %2 {
      %cst_10 = arith.constant 0.000000e+00 : f32
      %12 = vector.broadcast %cst_10 : f32 to vector<8x128xf32>
      %c0_11 = arith.constant 0 : index
      %c0_12 = arith.constant 0 : index
      %13 = vector.load %arg7[%c0_11, %c0_12] : memref<8x128xf32, #tpu.memory_space<vmem>>, vector<8x128xf32>
      tpu.vector_store %arg7[%c0_11, %c0_12], %12 {strides = array<i32>} : memref<8x128xf32, #tpu.memory_space<vmem>>, vector<8x128xf32>,
    } else {
    }
    %c0 = arith.constant 0 : index
    %c0_1 = arith.constant 0 : index
    %3 = vector.load %arg7[%c0, %c0_1] : memref<8x128xf32, #tpu.memory_space<vmem>>, vector<8x128xf32>
    %c0_2 = arith.constant 0 : index
    %c0_3 = arith.constant 0 : index
    %4 = vector.load %arg3[%c0_2, %c0_3] : memref<8x256xbf16, #tpu.memory_space<vmem>>, vector<8x256xbf16>
    %c0_4 = arith.constant 0 : index
    %c0_5 = arith.constant 0 : index
    %5 = vector.load %arg4[%c0_4, %c0_5] : memref<256x128xbf16, #tpu.memory_space<vmem>>, vector<256x128xbf16>
    %cst = arith.constant dense<0.000000e+00> : vector<8x128xf32>
    %6 = tpu.matmul %4, %5, %cst {dimension_numbers = #tpu.dot_dimension_numbers<[1], [0], [0], [1], [0, 0, 1, 1], [], []>} : vector<8x256xbf16>, vector<256x128xbf16>, vector<8x128xf32> -> vector<8x128xf32>
    %7 = arith.addf %3, %6 : vector<8x128xf32>
    %c0_6 = arith.constant 0 : index
    %c0_7 = arith.constant 0 : index
    %8 = vector.load %arg7[%c0_6, %c0_7] : memref<8x128xf32, #tpu.memory_space<vmem>>, vector<8x128xf32>
    tpu.vector_store %arg7[%c0_6, %c0_7], %7 {strides = array<i32>} : memref<8x128xf32, #tpu.memory_space<vmem>>, vector<8x128xf32>,
    %c0_i32_8 = arith.constant 0 : i32
    %9 = arith.cmpi eq, %arg2, %c0_i32_8 : i32
    %10 = arith.extui %9 : i1 to i32
    %c0_i32_9 = arith.constant 0 : i32
    %11 = arith.cmpi ne, %10, %c0_i32_9 : i32
    scf.if %11 {
      %c0_10 = arith.constant 0 : index
      %c0_11 = arith.constant 0 : index
      %12 = vector.load %arg7[%c0_10, %c0_11] : memref<8x128xf32, #tpu.memory_space<vmem>>, vector<8x128xf32>
      %c0_12 = arith.constant 0 : index
      %c0_13 = arith.constant 0 : index
      %13 = vector.load %arg5[%c0_12, %c0_13] : memref<1x128xf32, #tpu.memory_space<vmem>>, vector<1x128xf32>
      %14 = vector.broadcast %13 : vector<1x128xf32> to vector<8x128xf32>
      %15 = arith.addf %12, %14 : vector<8x128xf32>
      %c0_14 = arith.constant 0 : index
      %c0_15 = arith.constant 0 : index
      %16 = vector.load %arg6[%c0_14, %c0_15] : memref<8x128xf32, #tpu.memory_space<vmem>>, vector<8x128xf32>
      tpu.vector_store %arg6[%c0_14, %c0_15], %15 {strides = array<i32>} : memref<8x128xf32, #tpu.memory_space<vmem>>, vector<8x128xf32>,
    } else {
    }
    return
  }
  func.func @transform_0(%arg0: i32, %arg1: i32, %arg2: i32) -> (i32, i32) {
    %c0_i32 = arith.constant 0 : i32
    return %arg0, %arg2 : i32, i32
  }
  func.func @transform_1(%arg0: i32, %arg1: i32, %arg2: i32) -> (i32, i32) {
    %c0_i32 = arith.constant 0 : i32
    return %arg2, %arg1 : i32, i32
  }
  func.func @transform_2(%arg0: i32, %arg1: i32, %arg2: i32) -> (i32, i32) {
    %c0_i32 = arith.constant 0 : i32
    %c0_i32_0 = arith.constant 0 : i32
    return %c0_i32, %arg1 : i32, i32
  }
  func.func @transform_3(%arg0: i32, %arg1: i32, %arg2: i32) -> (i32, i32) {
    %c0_i32 = arith.constant 0 : i32
    return %arg0, %arg1 : i32, i32
  }
}

</mosaic_0001>

<llo_original>
// kernel: _lambda_.17
$region0: #{_lambda_.17}
  #allocation0 [shape = 'u32[]', space=smem, size = 0x4, offset = 0x4, fixed_abs, tag = 'smem constant byte address 0x4 - core index']
  #allocation1 [shape = 'u32[144,128]{1,0:T(1,128)}', space=vmem, size = 0x12000, scoped, tag = 'internal scratch']
  %s0 = inlined_call_operand.vmem [shape: bf16[2,8,9,128], index: 0, kind: input, shape index: {}]
  %s1 = inlined_call_operand.vmem [shape: bf16[2,8,8,128], index: 1, kind: input, shape index: {}]
  %s2 = inlined_call_operand.vmem [shape: bf16[2,8,9,128], index: 2, kind: input, shape index: {}]
  %s3 = inlined_call_operand.vmem [shape: bf16[2,8,8,128], index: 3, kind: input, shape index: {}]
  %s4 = inlined_call_operand.vmem [shape: bf16[2,8,9,128], index: 4, kind: input, shape index: {}]
  %s5 = inlined_call_operand.vmem [shape: bf16[2,8,8,128], index: 5, kind: input, shape index: {}]
  %s6 = inlined_call_operand.vmem [shape: bf16[2,8,8,128], index: 6, kind: output, shape index: {}]
  %s7 = sld [smem:[#allocation0]]
  $region57: #{_lambda_.17} parent=0
    _
  %s9 = ssub.s32 1, %s7
  %s10 = scalar_select 0, %s9, %s7
  loop: start=0, step=1, limit=4
  $region2: #{_lambda_.17} parent=0 // loop_pre_header
    _
  $region3: #{_lambda_.17} parent=0 // loop_header
    %s12 = sphi 0, %s16
    %p13 = scmp.ge.s32.totalorder %s12, 4
    %s19 = sphi 0, %s31
    %s20 = sphi 0, %s27
    %s21 = sphi 0, %s19
    %s22 = sphi 0, %s20
    %s23 = sphi 0, %s21
    %s24 = sphi 0, %s22
    %s36 = sphi 0, %s38
    %s39 = sphi 0, %s36
    %s40 = sphi 0, %s39
    %s56 = sphi 0, %s40
    %s64 = sphi 0, %s66
    %s67 = sphi 0, %s64
    %s68 = sphi 0, %s67
    %s84 = sphi 0, %s68
    %s92 = sphi 0, %s94
    %s95 = sphi 0, %s92
    %s96 = sphi 0, %s95
    %s112 = sphi 0, %s96
    %s120 = sphi 0, %s122
    %s123 = sphi 0, %s120
    %s124 = sphi 0, %s123
    %s140 = sphi 0, %s124
    %s148 = sphi 0, %s150
    %s151 = sphi 0, %s148
    %s152 = sphi 0, %s151
    %s168 = sphi 0, %s152
    %s176 = sphi 0, %s178
    %s179 = sphi 0, %s176
    %s180 = sphi 0, %s179
    %s196 = sphi 0, %s180
    %s204 = sphi 0, %s206
    %s207 = sphi 0, %s204
    %s208 = sphi 0, %s207
    %s224 = sphi 0, %s208
  $region4: #{_lambda_.17} parent=0 // loop_header_branch
    %15 = sbr.rel (%p13) target = $region8
  $region5: #{_lambda_.17} parent=0 // loop_body
    %s17 = ssub.s32 %s12, 1
    %s18 = ssub.s32 %s12, 2
    %s25 = sadd.s32 1, %s20
    %p26 = scmp.ge.s32.totalorder %s25, 1
    %s27 = scalar_select %p26, 0, %s25
    %s28 = sadd.s32 1, %s19
    %s29 = scalar_select %p26, %s28, %s19
    %p30 = scmp.ge.s32.totalorder %s29, 2
    %s31 = scalar_select %p30, 0, %s29
    %s32 = ssub.s32 %s19, %s31
    %s33 = ssub.s32 %s20, %s27
    %s34 = sor.u32 %s32, %s33
    %p35 = scmp.eq.s32.totalorder %s34, 0
    %s37 = sadd.s32 %s36, 1
    %s38 = scalar_select %p35, %s36, %s37
    %p41 = pneg %p35
    %p42 = scmp.eq.s32.totalorder %s12, 1
    %p43 = por %p41, %p42
    %p44 = scmp.ne.s32.totalorder %s36, %s39
    %p45 = scmp.eq.s32.totalorder %s12, 0
    %p46 = por %p44, %p45
    %p47 = scmp.ne.s32.totalorder %s36, %s39
    %p48 = scmp.eq.s32.totalorder %s17, 1
    %p49 = por %p47, %p48
    %p50 = scmp.ne.s32.totalorder %s39, %s40
    %p51 = scmp.eq.s32.totalorder %s17, 0
    %p52 = por %p50, %p51
    %p53 = scmp.ne.s32.totalorder %s39, %s40
    %p54 = scmp.eq.s32.totalorder %s18, 1
    %p55 = por %p53, %p54
    %p57 = scmp.ne.s32.totalorder %s40, %s56
    %p58 = scmp.eq.s32.totalorder %s18, 0
    %p59 = por %p57, %p58
    %s60 = ssub.s32 %s19, %s31
    %s61 = ssub.s32 %s20, %s27
    %s62 = sor.u32 %s60, %s61
    %p63 = scmp.eq.s32.totalorder %s62, 0
    %s65 = sadd.s32 %s64, 1
    %s66 = scalar_select %p63, %s64, %s65
    %p69 = pneg %p63
    %p70 = scmp.eq.s32.totalorder %s12, 1
    %p71 = por %p69, %p70
    %p72 = scmp.ne.s32.totalorder %s64, %s67
    %p73 = scmp.eq.s32.totalorder %s12, 0
    %p74 = por %p72, %p73
    %p75 = scmp.ne.s32.totalorder %s64, %s67
    %p76 = scmp.eq.s32.totalorder %s17, 1
    %p77 = por %p75, %p76
    %p78 = scmp.ne.s32.totalorder %s67, %s68
    %p79 = scmp.eq.s32.totalorder %s17, 0
    %p80 = por %p78, %p79
    %p81 = scmp.ne.s32.totalorder %s67, %s68
    %p82 = scmp.eq.s32.totalorder %s18, 1
    %p83 = por %p81, %p82
    %p85 = scmp.ne.s32.totalorder %s68, %s84
    %p86 = scmp.eq.s32.totalorder %s18, 0
    %p87 = por %p85, %p86
    %s88 = ssub.s32 %s19, %s31
    %s89 = ssub.s32 %s20, %s27
    %s90 = sor.u32 %s88, %s89
    %p91 = scmp.eq.s32.totalorder %s90, 0
    %s93 = sadd.s32 %s92, 1
    %s94 = scalar_select %p91, %s92, %s93
    %p97 = pneg %p91
    %p98 = scmp.eq.s32.totalorder %s12, 1
    %p99 = por %p97, %p98
    %p100 = scmp.ne.s32.totalorder %s92, %s95
    %p101 = scmp.eq.s32.totalorder %s12, 0
    %p102 = por %p100, %p101
    %p103 = scmp.ne.s32.totalorder %s92, %s95
    %p104 = scmp.eq.s32.totalorder %s17, 1
    %p105 = por %p103, %p104
    %p106 = scmp.ne.s32.totalorder %s95, %s96
    %p107 = scmp.eq.s32.totalorder %s17, 0
    %p108 = por %p106, %p107
    %p109 = scmp.ne.s32.totalorder %s95, %s96
    %p110 = scmp.eq.s32.totalorder %s18, 1
    %p111 = por %p109, %p110
    %p113 = scmp.ne.s32.totalorder %s96, %s112
    %p114 = scmp.eq.s32.totalorder %s18, 0
    %p115 = por %p113, %p114
    %s116 = ssub.s32 %s19, %s31
    %s117 = ssub.s32 %s20, %s27
    %s118 = sor.u32 %s116, %s117
    %p119 = scmp.eq.s32.totalorder %s118, 0
    %s121 = sadd.s32 %s120, 1
    %s122 = scalar_select %p119, %s120, %s121
    %p125 = pneg %p119
    %p126 = scmp.eq.s32.totalorder %s12, 1
    %p127 = por %p125, %p126
    %p128 = scmp.ne.s32.totalorder %s120, %s123
    %p129 = scmp.eq.s32.totalorder %s12, 0
    %p130 = por %p128, %p129
    %p131 = scmp.ne.s32.totalorder %s120, %s123
    %p132 = scmp.eq.s32.totalorder %s17, 1
    %p133 = por %p131, %p132
    %p134 = scmp.ne.s32.totalorder %s123, %s124
    %p135 = scmp.eq.s32.totalorder %s17, 0
    %p136 = por %p134, %p135
    %p137 = scmp.ne.s32.totalorder %s123, %s124
    %p138 = scmp.eq.s32.totalorder %s18, 1
    %p139 = por %p137, %p138
    %p141 = scmp.ne.s32.totalorder %s124, %s140
    %p142 = scmp.eq.s32.totalorder %s18, 0
    %p143 = por %p141, %p142
    %s144 = ssub.s32 %s19, %s31
    %s145 = ssub.s32 %s20, %s27
    %s146 = sor.u32 %s144, %s145
    %p147 = scmp.eq.s32.totalorder %s146, 0
    %s149 = sadd.s32 %s148, 1
    %s150 = scalar_select %p147, %s148, %s149
    %p153 = pneg %p147
    %p154 = scmp.eq.s32.totalorder %s12, 1
    %p155 = por %p153, %p154
    %p156 = scmp.ne.s32.totalorder %s148, %s151
    %p157 = scmp.eq.s32.totalorder %s12, 0
    %p158 = por %p156, %p157
    %p159 = scmp.ne.s32.totalorder %s148, %s151
    %p160 = scmp.eq.s32.totalorder %s17, 1
    %p161 = por %p159, %p160
    %p162 = scmp.ne.s32.totalorder %s151, %s152
    %p163 = scmp.eq.s32.totalorder %s17, 0
    %p164 = por %p162, %p163
    %p165 = scmp.ne.s32.totalorder %s151, %s152
    %p166 = scmp.eq.s32.totalorder %s18, 1
    %p167 = por %p165, %p166
    %p169 = scmp.ne.s32.totalorder %s152, %s168
    %p170 = scmp.eq.s32.totalorder %s18, 0
    %p171 = por %p169, %p170
    %s172 = ssub.s32 %s19, %s31
    %s173 = ssub.s32 %s20, %s27
    %s174 = sor.u32 %s172, %s173
    %p175 = scmp.eq.s32.totalorder %s174, 0
    %s177 = sadd.s32 %s176, 1
    %s178 = scalar_select %p175, %s176, %s177
    %p181 = pneg %p175
    %p182 = scmp.eq.s32.totalorder %s12, 1
    %p183 = por %p181, %p182
    %p184 = scmp.ne.s32.totalorder %s176, %s179
    %p185 = scmp.eq.s32.totalorder %s12, 0
    %p186 = por %p184, %p185
    %p187 = scmp.ne.s32.totalorder %s176, %s179
    %p188 = scmp.eq.s32.totalorder %s17, 1
    %p189 = por %p187, %p188
    %p190 = scmp.ne.s32.totalorder %s179, %s180
    %p191 = scmp.eq.s32.totalorder %s17, 0
    %p192 = por %p190, %p191
    %p193 = scmp.ne.s32.totalorder %s179, %s180
    %p194 = scmp.eq.s32.totalorder %s18, 1
    %p195 = por %p193, %p194
    %p197 = scmp.ne.s32.totalorder %s180, %s196
    %p198 = scmp.eq.s32.totalorder %s18, 0
    %p199 = por %p197, %p198
    %s200 = ssub.s32 %s19, %s31
    %s201 = ssub.s32 %s20, %s27
    %s202 = sor.u32 %s200, %s201
    %p203 = scmp.eq.s32.totalorder %s202, 0
    %s205 = sadd.s32 %s204, 1
    %s206 = scalar_select %p203, %s204, %s205
    %p209 = pneg %p203
    %p210 = scmp.eq.s32.totalorder %s12, 1
    %p211 = por %p209, %p210
    %p212 = scmp.ne.s32.totalorder %s204, %s207
    %p213 = scmp.eq.s32.totalorder %s12, 0
    %p214 = por %p212, %p213
    %p215 = scmp.ne.s32.totalorder %s204, %s207
    %p216 = scmp.eq.s32.totalorder %s17, 1
    %p217 = por %p215, %p216
    %p218 = scmp.ne.s32.totalorder %s207, %s208
    %p219 = scmp.eq.s32.totalorder %s17, 0
    %p220 = por %p218, %p219
    %p221 = scmp.ne.s32.totalorder %s207, %s208
    %p222 = scmp.eq.s32.totalorder %s18, 1
    %p223 = por %p221, %p222
    %p225 = scmp.ne.s32.totalorder %s208, %s224
    %p226 = scmp.eq.s32.totalorder %s18, 0
    %p227 = por %p225, %p226
    %p228 = scmp.le.s32.totalorder 1, %s12
    %p229 = scmp.lt.s32.totalorder %s12, 3
    %p230 = pnand %p228, %p229
    %p231 = pneg %p230
    // Predicated region
    $region9: #{_lambda_.17} parent=5 // pred_check
      _
    $region10: #{_lambda_.17} parent=5 // pred_check_branch
      %233 = sbr.rel (%p230) target = $region12
    $region11: #{_lambda_.17} parent=5 // pred_region
      %s234 = ssub.s32 %s12, 1
    $region12: #{_lambda_.17} parent=5 // pred_fallthru
      _
    %p235 = scmp.lt.s32.totalorder %s12, 2
    // Predicated region
    $region13: #{_lambda_.17} parent=5 // pred_check
      %p236 = pneg %p235
    $region14: #{_lambda_.17} parent=5 // pred_check_branch
      %238 = sbr.rel (%p236) target = $region16
    $region15: #{_lambda_.17} parent=5 // pred_region
      // Predicated region
      $region17: #{_lambda_.17} parent=15 // pred_check
        %p239 = pneg %p46
      $region18: #{_lambda_.17} parent=15 // pred_check_branch
        %241 = sbr.rel (%p239) target = $region20
      $region19: #{_lambda_.17} parent=15 // pred_region
        %s242 = smul.u32 8, %s20
        %p243 = scmp.lt.s32.totalorder %s19, 1
        %s244 = scalar_select %p243, %s19, 1
        %p245 = scmp.lt.s32.totalorder %s242, 7
        %s246 = scalar_select %p245, %s242, 7
        %s247 = smul.addr %s246, 2
        %s248 = smul.addr %s244, 16
        %s249 = sadd.s32 %s247, %s248
        %s250 = smul.addr %s249, 4
        %s251 = scalar_lea.vmem %s0, %s250
        %s252 = smul.u32 8, %s20
      $region20: #{_lambda_.17} parent=15 // pred_fallthru
        _
      // Predicated region
      $region21: #{_lambda_.17} parent=15 // pred_check
        %p253 = pneg %p74
      $region22: #{_lambda_.17} parent=15 // pred_check_branch
        %255 = sbr.rel (%p253) target = $region24
      $region23: #{_lambda_.17} parent=15 // pred_region
        %s256 = smul.u32 8, %s20
        %p257 = scmp.lt.s32.totalorder %s19, 1
        %s258 = scalar_select %p257, %s19, 1
        %p259 = scmp.lt.s32.totalorder %s256, 7
        %s260 = scalar_select %p259, %s256, 7
        %s261 = smul.addr %s258, 8
        %s262 = sadd.s32 %s260, %s261
        %s263 = smul.addr %s262, 4
        %s264 = scalar_lea.vmem %s1, %s263
        %s265 = smul.u32 8, %s20
      $region24: #{_lambda_.17} parent=15 // pred_fallthru
        _
      // Predicated region
      $region25: #{_lambda_.17} parent=15 // pred_check
        %p266 = pneg %p102
      $region26: #{_lambda_.17} parent=15 // pred_check_branch
        %268 = sbr.rel (%p266) target = $region28
      $region27: #{_lambda_.17} parent=15 // pred_region
        %s269 = smul.u32 8, %s20
        %p270 = scmp.lt.s32.totalorder %s19, 1
        %s271 = scalar_select %p270, %s19, 1
        %p272 = scmp.lt.s32.totalorder %s269, 7
        %s273 = scalar_select %p272, %s269, 7
        %s274 = smul.addr %s273, 2
        %s275 = smul.addr %s271, 16
        %s276 = sadd.s32 %s274, %s275
        %s277 = smul.addr %s276, 4
        %s278 = scalar_lea.vmem %s2, %s277
        %s279 = smul.u32 8, %s20
      $region28: #{_lambda_.17} parent=15 // pred_fallthru
        _
      // Predicated region
      $region29: #{_lambda_.17} parent=15 // pred_check
        %p280 = pneg %p130
      $region30: #{_lambda_.17} parent=15 // pred_check_branch
        %282 = sbr.rel (%p280) target = $region32
      $region31: #{_lambda_.17} parent=15 // pred_region
        %s283 = smul.u32 8, %s20
        %p284 = scmp.lt.s32.totalorder %s19, 1
        %s285 = scalar_select %p284, %s19, 1
        %p286 = scmp.lt.s32.totalorder %s283, 7
        %s287 = scalar_select %p286, %s283, 7
        %s288 = smul.addr %s285, 8
        %s289 = sadd.s32 %s287, %s288
        %s290 = smul.addr %s289, 4
        %s291 = scalar_lea.vmem %s3, %s290
        %s292 = smul.u32 8, %s20
      $region32: #{_lambda_.17} parent=15 // pred_fallthru
        _
      // Predicated region
      $region33: #{_lambda_.17} parent=15 // pred_check
        %p293 = pneg %p158
      $region34: #{_lambda_.17} parent=15 // pred_check_branch
        %295 = sbr.rel (%p293) target = $region36
      $region35: #{_lambda_.17} parent=15 // pred_region
        %s296 = smul.u32 8, %s20
        %p297 = scmp.lt.s32.totalorder %s19, 1
        %s298 = scalar_select %p297, %s19, 1
        %p299 = scmp.lt.s32.totalorder %s296, 7
        %s300 = scalar_select %p299, %s296, 7
        %s301 = smul.addr %s300, 2
        %s302 = smul.addr %s298, 16
        %s303 = sadd.s32 %s301, %s302
        %s304 = smul.addr %s303, 4
        %s305 = scalar_lea.vmem %s4, %s304
        %s306 = smul.u32 8, %s20
      $region36: #{_lambda_.17} parent=15 // pred_fallthru
        _
      // Predicated region
      $region37: #{_lambda_.17} parent=15 // pred_check
        %p307 = pneg %p186
      $region38: #{_lambda_.17} parent=15 // pred_check_branch
        %309 = sbr.rel (%p307) target = $region40
      $region39: #{_lambda_.17} parent=15 // pred_region
        %s310 = smul.u32 8, %s20
        %p311 = scmp.lt.s32.totalorder %s19, 1
        %s312 = scalar_select %p311, %s19, 1
        %p313 = scmp.lt.s32.totalorder %s310, 7
        %s314 = scalar_select %p313, %s310, 7
        %s315 = smul.addr %s312, 8
        %s316 = sadd.s32 %s314, %s315
        %s317 = smul.addr %s316, 4
        %s318 = scalar_lea.vmem %s5, %s317
        %s319 = smul.u32 8, %s20
      $region40: #{_lambda_.17} parent=15 // pred_fallthru
        _
    $region16: #{_lambda_.17} parent=5 // pred_fallthru
      _
    %p320 = scmp.le.s32.totalorder 1, %s12
    %p321 = scmp.lt.s32.totalorder %s12, 3
    %p322 = pnand %p320, %p321
    %p323 = pneg %p322
    // Predicated region
    $region41: #{_lambda_.17} parent=5 // pred_check
      _
    $region42: #{_lambda_.17} parent=5 // pred_check_branch
      %325 = sbr.rel (%p322) target = $region44
    $region43: #{_lambda_.17} parent=5 // pred_region
      %s326 = ssub.s32 %s12, 1
      %s327 = smul.u32 8, %s22
      %p328 = scmp.lt.s32.totalorder %s21, 1
      %s329 = scalar_select %p328, %s21, 1
      %p330 = scmp.lt.s32.totalorder %s327, 7
      %s331 = scalar_select %p330, %s327, 7
      %s332 = smul.addr %s331, 2
      %s333 = smul.addr %s329, 16
      %s334 = sadd.s32 %s332, %s333
      %s335 = smul.addr %s334, 4
      %s336 = scalar_lea.vmem %s0, %s335
      %p337 = pneg %p52
      %p338 = pneg %p49
      %s339 = smul.u32 8, %s22
      %p340 = scmp.lt.s32.totalorder %s21, 1
      %s341 = scalar_select %p340, %s21, 1
      %p342 = scmp.lt.s32.totalorder %s339, 7
      %s343 = scalar_select %p342, %s339, 7
      %s344 = smul.addr %s341, 8
      %s345 = sadd.s32 %s343, %s344
      %s346 = smul.addr %s345, 4
      %s347 = scalar_lea.vmem %s1, %s346
      %p348 = pneg %p80
      %p349 = pneg %p77
      %s350 = smul.u32 8, %s22
      %p351 = scmp.lt.s32.totalorder %s21, 1
      %s352 = scalar_select %p351, %s21, 1
      %p353 = scmp.lt.s32.totalorder %s350, 7
      %s354 = scalar_select %p353, %s350, 7
      %s355 = smul.addr %s354, 2
      %s356 = smul.addr %s352, 16
      %s357 = sadd.s32 %s355, %s356
      %s358 = smul.addr %s357, 4
      %s359 = scalar_lea.vmem %s2, %s358
      %p360 = pneg %p108
      %p361 = pneg %p105
      %s362 = smul.u32 8, %s22
      %p363 = scmp.lt.s32.totalorder %s21, 1
      %s364 = scalar_select %p363, %s21, 1
      %p365 = scmp.lt.s32.totalorder %s362, 7
      %s366 = scalar_select %p365, %s362, 7
      %s367 = smul.addr %s364, 8
      %s368 = sadd.s32 %s366, %s367
      %s369 = smul.addr %s368, 4
      %s370 = scalar_lea.vmem %s3, %s369
      %p371 = pneg %p136
      %p372 = pneg %p133
      %s373 = smul.u32 8, %s22
      %p374 = scmp.lt.s32.totalorder %s21, 1
      %s375 = scalar_select %p374, %s21, 1
      %p376 = scmp.lt.s32.totalorder %s373, 7
      %s377 = scalar_select %p376, %s373, 7
      %s378 = smul.addr %s377, 2
      %s379 = smul.addr %s375, 16
      %s380 = sadd.s32 %s378, %s379
      %s381 = smul.addr %s380, 4
      %s382 = scalar_lea.vmem %s4, %s381
      %p383 = pneg %p164
      %p384 = pneg %p161
      %s385 = smul.u32 8, %s22
      %p386 = scmp.lt.s32.totalorder %s21, 1
      %s387 = scalar_select %p386, %s21, 1
      %p388 = scmp.lt.s32.totalorder %s385, 7
      %s389 = scalar_select %p388, %s385, 7
      %s390 = smul.addr %s387, 8
      %s391 = sadd.s32 %s389, %s390
      %s392 = smul.addr %s391, 4
      %s393 = scalar_lea.vmem %s5, %s392
      %p394 = pneg %p192
      %p395 = pneg %p189
      %p396 = pneg %p220
      %p397 = pneg %p217
      %s398 = smul.u32 8, %s22
      %p399 = scmp.lt.s32.totalorder %s21, 1
      %s400 = scalar_select %p399, %s21, 1
      %p401 = scmp.lt.s32.totalorder %s398, 7
      %s402 = scalar_select %p401, %s398, 7
      %s403 = smul.addr %s400, 8
      %s404 = sadd.s32 %s402, %s403
      %s405 = smul.addr %s404, 4
      %s406 = scalar_lea.vmem %s6, %s405
      %s407 = smul.u32 8, %s22
      %p408 = scmp.lt.s32.totalorder %s21, 1
      %s409 = scalar_select %p408, %s21, 1
      %p410 = scmp.lt.s32.totalorder %s407, 7
      %s411 = scalar_select %p410, %s407, 7
      %s412 = smul.addr %s411, 2
      %s413 = smul.addr %s409, 16
      %s414 = sadd.s32 %s412, %s413
      %s415 = smul.addr %s414, 4
      %s416 = scalar_lea.vmem %s0, %s415
      %s417 = smul.u32 8, %s22
      %s418 = smul.u32 8, %s22
      %p419 = scmp.lt.s32.totalorder %s21, 1
      %s420 = scalar_select %p419, %s21, 1
      %p421 = scmp.lt.s32.totalorder %s418, 7
      %s422 = scalar_select %p421, %s418, 7
      %s423 = smul.addr %s420, 8
      %s424 = sadd.s32 %s422, %s423
      %s425 = smul.addr %s424, 4
      %s426 = scalar_lea.vmem %s1, %s425
      %s427 = smul.u32 8, %s22
      %s428 = smul.u32 8, %s22
      %p429 = scmp.lt.s32.totalorder %s21, 1
      %s430 = scalar_select %p429, %s21, 1
      %p431 = scmp.lt.s32.totalorder %s428, 7
      %s432 = scalar_select %p431, %s428, 7
      %s433 = smul.addr %s432, 2
      %s434 = smul.addr %s430, 16
      %s435 = sadd.s32 %s433, %s434
      %s436 = smul.addr %s435, 4
      %s437 = scalar_lea.vmem %s2, %s436
      %s438 = smul.u32 8, %s22
      %s439 = smul.u32 8, %s22
      %p440 = scmp.lt.s32.totalorder %s21, 1
      %s441 = scalar_select %p440, %s21, 1
      %p442 = scmp.lt.s32.totalorder %s439, 7
      %s443 = scalar_select %p442, %s439, 7
      %s444 = smul.addr %s441, 8
      %s445 = sadd.s32 %s443, %s444
      %s446 = smul.addr %s445, 4
      %s447 = scalar_lea.vmem %s3, %s446
      %s448 = smul.u32 8, %s22
      %s449 = smul.u32 8, %s22
      %p450 = scmp.lt.s32.totalorder %s21, 1
      %s451 = scalar_select %p450, %s21, 1
      %p452 = scmp.lt.s32.totalorder %s449, 7
      %s453 = scalar_select %p452, %s449, 7
      %s454 = smul.addr %s453, 2
      %s455 = smul.addr %s451, 16
      %s456 = sadd.s32 %s454, %s455
      %s457 = smul.addr %s456, 4
      %s458 = scalar_lea.vmem %s4, %s457
      %s459 = smul.u32 8, %s22
      %s460 = smul.u32 8, %s22
      %p461 = scmp.lt.s32.totalorder %s21, 1
      %s462 = scalar_select %p461, %s21, 1
      %p463 = scmp.lt.s32.totalorder %s460, 7
      %s464 = scalar_select %p463, %s460, 7
      %s465 = smul.addr %s462, 8
      %s466 = sadd.s32 %s464, %s465
      %s467 = smul.addr %s466, 4
      %s468 = scalar_lea.vmem %s5, %s467
      %s469 = smul.u32 8, %s22
      %s470 = smul.u32 8, %s22
      %p471 = scmp.lt.s32.totalorder %s21, 1
      %s472 = scalar_select %p471, %s21, 1
      %p473 = scmp.lt.s32.totalorder %s470, 7
      %s474 = scalar_select %p473, %s470, 7
      %s475 = smul.addr %s472, 8
      %s476 = sadd.s32 %s474, %s475
      %s477 = smul.addr %s476, 4
      %s478 = scalar_lea.vmem %s6, %s477
      %s479 = smul.u32 8, %s22
      %v480 = vld [vmem:[%s416] sm:$0xf]
      %v481 = vld [vmem:[%s416 + $0x4] sm:$0x1]
      %v482 = vld [vmem:[%s416 + $0x8] sm:$0xf]
      %v483 = vld [vmem:[%s416 + $0xc] sm:$0x1]
      %v484 = vld [vmem:[%s416 + $0x10] sm:$0xf]
      %v485 = vld [vmem:[%s416 + $0x14] sm:$0x1]
      %v486 = vld [vmem:[%s416 + $0x18] sm:$0xf]
      %v487 = vld [vmem:[%s416 + $0x1c] sm:$0x1]
      %v488 = vld [vmem:[%s416 + $0x20] sm:$0xf]
      %v489 = vld [vmem:[%s416 + $0x24] sm:$0x1]
      %v490 = vld [vmem:[%s416 + $0x28] sm:$0xf]
      %v491 = vld [vmem:[%s416 + $0x2c] sm:$0x1]
      %v492 = vld [vmem:[%s416 + $0x30] sm:$0xf]
      %v493 = vld [vmem:[%s416 + $0x34] sm:$0x1]
      %v494 = vld [vmem:[%s416 + $0x38] sm:$0xf]
      %v495 = vld [vmem:[%s416 + $0x3c] sm:$0x1]
      %v496 = vld [vmem:[%s426] sm:$0xf]
      %v497 = vld [vmem:[%s426 + $0x4] sm:$0xf]
      %v498 = vld [vmem:[%s426 + $0x8] sm:$0xf]
      %v499 = vld [vmem:[%s426 + $0xc] sm:$0xf]
      %v500 = vld [vmem:[%s426 + $0x10] sm:$0xf]
      %v501 = vld [vmem:[%s426 + $0x14] sm:$0xf]
      %v502 = vld [vmem:[%s426 + $0x18] sm:$0xf]
      %v503 = vld [vmem:[%s426 + $0x1c] sm:$0xf]
      %v504 = vmax.bf16 %v480, %v496
      %v505 = vmax.bf16 %v482, %v497
      %v506 = vmax.bf16 %v484, %v498
      %v507 = vmax.bf16 %v486, %v499
      %v508 = vmax.bf16 %v488, %v500
      %v509 = vmax.bf16 %v490, %v501
      %v510 = vmax.bf16 %v492, %v502
      %v511 = vmax.bf16 %v494, %v503
      %vm512 = vsmask.f32 3328
      %vm513 = vsmask.f32 7440
      %vm514 = vmor %vm512, %vm513
      %v516 = vshrl.u32 %v480, 16
      %v518 = vrot.slane %v516, 4
      %v519 = vshll.u32 %v480, 16
      %v521 = vrot.slane %v519, 5
      %v522 = vor.u32 %v518, %v521
      %v523 = vrot.slane %v522, 4
      %v525 = vshll.u32 %v481, 16
      %v527 = vrot.slane %v525, 5
      %v528 = vsel %vm514, %v523, %v527
      %v530 = vshrl.u32 %v482, 16
      %v532 = vrot.slane %v530, 4
      %v533 = vshll.u32 %v482, 16
      %v535 = vrot.slane %v533, 5
      %v536 = vor.u32 %v532, %v535
      %v537 = vrot.slane %v536, 4
      %v539 = vshll.u32 %v483, 16
      %v541 = vrot.slane %v539, 5
      %v542 = vsel %vm514, %v537, %v541
      %v544 = vshrl.u32 %v484, 16
      %v546 = vrot.slane %v544, 4
      %v547 = vshll.u32 %v484, 16
      %v549 = vrot.slane %v547, 5
      %v550 = vor.u32 %v546, %v549
      %v551 = vrot.slane %v550, 4
      %v553 = vshll.u32 %v485, 16
      %v555 = vrot.slane %v553, 5
      %v556 = vsel %vm514, %v551, %v555
      %v558 = vshrl.u32 %v486, 16
      %v560 = vrot.slane %v558, 4
      %v561 = vshll.u32 %v486, 16
      %v563 = vrot.slane %v561, 5
      %v564 = vor.u32 %v560, %v563
      %v565 = vrot.slane %v564, 4
      %v567 = vshll.u32 %v487, 16
      %v569 = vrot.slane %v567, 5
      %v570 = vsel %vm514, %v565, %v569
      %v572 = vshrl.u32 %v488, 16
      %v574 = vrot.slane %v572, 4
      %v575 = vshll.u32 %v488, 16
      %v577 = vrot.slane %v575, 5
      %v578 = vor.u32 %v574, %v577
      %v579 = vrot.slane %v578, 4
      %v581 = vshll.u32 %v489, 16
      %v583 = vrot.slane %v581, 5
      %v584 = vsel %vm514, %v579, %v583
      %v586 = vshrl.u32 %v490, 16
      %v588 = vrot.slane %v586, 4
      %v589 = vshll.u32 %v490, 16
      %v591 = vrot.slane %v589, 5
      %v592 = vor.u32 %v588, %v591
      %v593 = vrot.slane %v592, 4
      %v595 = vshll.u32 %v491, 16
      %v597 = vrot.slane %v595, 5
      %v598 = vsel %vm514, %v593, %v597
      %v600 = vshrl.u32 %v492, 16
      %v602 = vrot.slane %v600, 4
      %v603 = vshll.u32 %v492, 16
      %v605 = vrot.slane %v603, 5
      %v606 = vor.u32 %v602, %v605
      %v607 = vrot.slane %v606, 4
      %v609 = vshll.u32 %v493, 16
      %v611 = vrot.slane %v609, 5
      %v612 = vsel %vm514, %v607, %v611
      %v614 = vshrl.u32 %v494, 16
      %v616 = vrot.slane %v614, 4
      %v617 = vshll.u32 %v494, 16
      %v619 = vrot.slane %v617, 5
      %v620 = vor.u32 %v616, %v619
      %v621 = vrot.slane %v620, 4
      %v623 = vshll.u32 %v495, 16
      %v625 = vrot.slane %v623, 5
      %v626 = vsel %vm514, %v621, %v625
      %v635 = vmax.bf16 %v504, %v528
      %v636 = vmax.bf16 %v505, %v542
      %v637 = vmax.bf16 %v506, %v556
      %v638 = vmax.bf16 %v507, %v570
      %v639 = vmax.bf16 %v508, %v584
      %v640 = vmax.bf16 %v509, %v598
      %v641 = vmax.bf16 %v510, %v612
      %v642 = vmax.bf16 %v511, %v626
      %v643 = vld [vmem:[%s437] sm:$0xf]
      %v644 = vld [vmem:[%s437 + $0x4] sm:$0x1]
      %v645 = vld [vmem:[%s437 + $0x8] sm:$0xf]
      %v646 = vld [vmem:[%s437 + $0xc] sm:$0x1]
      %v647 = vld [vmem:[%s437 + $0x10] sm:$0xf]
      %v648 = vld [vmem:[%s437 + $0x14] sm:$0x1]
      %v649 = vld [vmem:[%s437 + $0x18] sm:$0xf]
      %v650 = vld [vmem:[%s437 + $0x1c] sm:$0x1]
      %v651 = vld [vmem:[%s437 + $0x20] sm:$0xf]
      %v652 = vld [vmem:[%s437 + $0x24] sm:$0x1]
      %v653 = vld [vmem:[%s437 + $0x28] sm:$0xf]
      %v654 = vld [vmem:[%s437 + $0x2c] sm:$0x1]
      %v655 = vld [vmem:[%s437 + $0x30] sm:$0xf]
      %v656 = vld [vmem:[%s437 + $0x34] sm:$0x1]
      %v657 = vld [vmem:[%s437 + $0x38] sm:$0xf]
      %v658 = vld [vmem:[%s437 + $0x3c] sm:$0x1]
      %v659 = vld [vmem:[%s447] sm:$0xf]
      %v660 = vld [vmem:[%s447 + $0x4] sm:$0xf]
      %v661 = vld [vmem:[%s447 + $0x8] sm:$0xf]
      %v662 = vld [vmem:[%s447 + $0xc] sm:$0xf]
      %v663 = vld [vmem:[%s447 + $0x10] sm:$0xf]
      %v664 = vld [vmem:[%s447 + $0x14] sm:$0xf]
      %v665 = vld [vmem:[%s447 + $0x18] sm:$0xf]
      %v666 = vld [vmem:[%s447 + $0x1c] sm:$0xf]
      %v667 = vmax.bf16 %v643, %v659
      %v668 = vmax.bf16 %v645, %v660
      %v669 = vmax.bf16 %v647, %v661
      %v670 = vmax.bf16 %v649, %v662
      %v671 = vmax.bf16 %v651, %v663
      %v672 = vmax.bf16 %v653, %v664
      %v673 = vmax.bf16 %v655, %v665
      %v674 = vmax.bf16 %v657, %v666
      %v676 = vshrl.u32 %v643, 16
      %v678 = vrot.slane %v676, 4
      %v679 = vshll.u32 %v643, 16
      %v681 = vrot.slane %v679, 5
      %v682 = vor.u32 %v678, %v681
      %v683 = vrot.slane %v682, 4
      %v685 = vshll.u32 %v644, 16
      %v687 = vrot.slane %v685, 5
      %v688 = vsel %vm514, %v683, %v687
      %v690 = vshrl.u32 %v645, 16
      %v692 = vrot.slane %v690, 4
      %v693 = vshll.u32 %v645, 16
      %v695 = vrot.slane %v693, 5
      %v696 = vor.u32 %v692, %v695
      %v697 = vrot.slane %v696, 4
      %v699 = vshll.u32 %v646, 16
      %v701 = vrot.slane %v699, 5
      %v702 = vsel %vm514, %v697, %v701
      %v704 = vshrl.u32 %v647, 16
      %v706 = vrot.slane %v704, 4
      %v707 = vshll.u32 %v647, 16
      %v709 = vrot.slane %v707, 5
      %v710 = vor.u32 %v706, %v709
      %v711 = vrot.slane %v710, 4
      %v713 = vshll.u32 %v648, 16
      %v715 = vrot.slane %v713, 5
      %v716 = vsel %vm514, %v711, %v715
      %v718 = vshrl.u32 %v649, 16
      %v720 = vrot.slane %v718, 4
      %v721 = vshll.u32 %v649, 16
      %v723 = vrot.slane %v721, 5
      %v724 = vor.u32 %v720, %v723
      %v725 = vrot.slane %v724, 4
      %v727 = vshll.u32 %v650, 16
      %v729 = vrot.slane %v727, 5
      %v730 = vsel %vm514, %v725, %v729
      %v732 = vshrl.u32 %v651, 16
      %v734 = vrot.slane %v732, 4
      %v735 = vshll.u32 %v651, 16
      %v737 = vrot.slane %v735, 5
      %v738 = vor.u32 %v734, %v737
      %v739 = vrot.slane %v738, 4
      %v741 = vshll.u32 %v652, 16
      %v743 = vrot.slane %v741, 5
      %v744 = vsel %vm514, %v739, %v743
      %v746 = vshrl.u32 %v653, 16
      %v748 = vrot.slane %v746, 4
      %v749 = vshll.u32 %v653, 16
      %v751 = vrot.slane %v749, 5
      %v752 = vor.u32 %v748, %v751
      %v753 = vrot.slane %v752, 4
      %v755 = vshll.u32 %v654, 16
      %v757 = vrot.slane %v755, 5
      %v758 = vsel %vm514, %v753, %v757
      %v760 = vshrl.u32 %v655, 16
      %v762 = vrot.slane %v760, 4
      %v763 = vshll.u32 %v655, 16
      %v765 = vrot.slane %v763, 5
      %v766 = vor.u32 %v762, %v765
      %v767 = vrot.slane %v766, 4
      %v769 = vshll.u32 %v656, 16
      %v771 = vrot.slane %v769, 5
      %v772 = vsel %vm514, %v767, %v771
      %v774 = vshrl.u32 %v657, 16
      %v776 = vrot.slane %v774, 4
      %v777 = vshll.u32 %v657, 16
      %v779 = vrot.slane %v777, 5
      %v780 = vor.u32 %v776, %v779
      %v781 = vrot.slane %v780, 4
      %v783 = vshll.u32 %v658, 16
      %v785 = vrot.slane %v783, 5
      %v786 = vsel %vm514, %v781, %v785
      %v795 = vmax.bf16 %v667, %v688
      %v796 = vmax.bf16 %v668, %v702
      %v797 = vmax.bf16 %v669, %v716
      %v798 = vmax.bf16 %v670, %v730
      %v799 = vmax.bf16 %v671, %v744
      %v800 = vmax.bf16 %v672, %v758
      %v801 = vmax.bf16 %v673, %v772
      %v802 = vmax.bf16 %v674, %v786
      %v803 = vld [vmem:[%s458] sm:$0xf]
      %v804 = vld [vmem:[%s458 + $0x4] sm:$0x1]
      %v805 = vld [vmem:[%s458 + $0x8] sm:$0xf]
      %v806 = vld [vmem:[%s458 + $0xc] sm:$0x1]
      %v807 = vld [vmem:[%s458 + $0x10] sm:$0xf]
      %v808 = vld [vmem:[%s458 + $0x14] sm:$0x1]
      %v809 = vld [vmem:[%s458 + $0x18] sm:$0xf]
      %v810 = vld [vmem:[%s458 + $0x1c] sm:$0x1]
      %v811 = vld [vmem:[%s458 + $0x20] sm:$0xf]
      %v812 = vld [vmem:[%s458 + $0x24] sm:$0x1]
      %v813 = vld [vmem:[%s458 + $0x28] sm:$0xf]
      %v814 = vld [vmem:[%s458 + $0x2c] sm:$0x1]
      %v815 = vld [vmem:[%s458 + $0x30] sm:$0xf]
      %v816 = vld [vmem:[%s458 + $0x34] sm:$0x1]
      %v817 = vld [vmem:[%s458 + $0x38] sm:$0xf]
      %v818 = vld [vmem:[%s458 + $0x3c] sm:$0x1]
      %v819 = vld [vmem:[%s468] sm:$0xf]
      %v820 = vld [vmem:[%s468 + $0x4] sm:$0xf]
      %v821 = vld [vmem:[%s468 + $0x8] sm:$0xf]
      %v822 = vld [vmem:[%s468 + $0xc] sm:$0xf]
      %v823 = vld [vmem:[%s468 + $0x10] sm:$0xf]
      %v824 = vld [vmem:[%s468 + $0x14] sm:$0xf]
      %v825 = vld [vmem:[%s468 + $0x18] sm:$0xf]
      %v826 = vld [vmem:[%s468 + $0x1c] sm:$0xf]
      %v827 = vmax.bf16 %v803, %v819
      %v828 = vmax.bf16 %v805, %v820
      %v829 = vmax.bf16 %v807, %v821
      %v830 = vmax.bf16 %v809, %v822
      %v831 = vmax.bf16 %v811, %v823
      %v832 = vmax.bf16 %v813, %v824
      %v833 = vmax.bf16 %v815, %v825
      %v834 = vmax.bf16 %v817, %v826
      %v836 = vshrl.u32 %v803, 16
      %v838 = vrot.slane %v836, 4
      %v839 = vshll.u32 %v803, 16
      %v841 = vrot.slane %v839, 5
      %v842 = vor.u32 %v838, %v841
      %v843 = vrot.slane %v842, 4
      %v845 = vshll.u32 %v804, 16
      %v847 = vrot.slane %v845, 5
      %v848 = vsel %vm514, %v843, %v847
      %v850 = vshrl.u32 %v805, 16
      %v852 = vrot.slane %v850, 4
      %v853 = vshll.u32 %v805, 16
      %v855 = vrot.slane %v853, 5
      %v856 = vor.u32 %v852, %v855
      %v857 = vrot.slane %v856, 4
      %v859 = vshll.u32 %v806, 16
      %v861 = vrot.slane %v859, 5
      %v862 = vsel %vm514, %v857, %v861
      %v864 = vshrl.u32 %v807, 16
      %v866 = vrot.slane %v864, 4
      %v867 = vshll.u32 %v807, 16
      %v869 = vrot.slane %v867, 5
      %v870 = vor.u32 %v866, %v869
      %v871 = vrot.slane %v870, 4
      %v873 = vshll.u32 %v808, 16
      %v875 = vrot.slane %v873, 5
      %v876 = vsel %vm514, %v871, %v875
      %v878 = vshrl.u32 %v809, 16
      %v880 = vrot.slane %v878, 4
      %v881 = vshll.u32 %v809, 16
      %v883 = vrot.slane %v881, 5
      %v884 = vor.u32 %v880, %v883
      %v885 = vrot.slane %v884, 4
      %v887 = vshll.u32 %v810, 16
      %v889 = vrot.slane %v887, 5
      %v890 = vsel %vm514, %v885, %v889
      %v892 = vshrl.u32 %v811, 16
      %v894 = vrot.slane %v892, 4
      %v895 = vshll.u32 %v811, 16
      %v897 = vrot.slane %v895, 5
      %v898 = vor.u32 %v894, %v897
      %v899 = vrot.slane %v898, 4
      %v901 = vshll.u32 %v812, 16
      %v903 = vrot.slane %v901, 5
      %v904 = vsel %vm514, %v899, %v903
      %v906 = vshrl.u32 %v813, 16
      %v908 = vrot.slane %v906, 4
      %v909 = vshll.u32 %v813, 16
      %v911 = vrot.slane %v909, 5
      %v912 = vor.u32 %v908, %v911
      %v913 = vrot.slane %v912, 4
      %v915 = vshll.u32 %v814, 16
      %v917 = vrot.slane %v915, 5
      %v918 = vsel %vm514, %v913, %v917
      %v920 = vshrl.u32 %v815, 16
      %v922 = vrot.slane %v920, 4
      %v923 = vshll.u32 %v815, 16
      %v925 = vrot.slane %v923, 5
      %v926 = vor.u32 %v922, %v925
      %v927 = vrot.slane %v926, 4
      %v929 = vshll.u32 %v816, 16
      %v931 = vrot.slane %v929, 5
      %v932 = vsel %vm514, %v927, %v931
      %v934 = vshrl.u32 %v817, 16
      %v936 = vrot.slane %v934, 4
      %v937 = vshll.u32 %v817, 16
      %v939 = vrot.slane %v937, 5
      %v940 = vor.u32 %v936, %v939
      %v941 = vrot.slane %v940, 4
      %v943 = vshll.u32 %v818, 16
      %v945 = vrot.slane %v943, 5
      %v946 = vsel %vm514, %v941, %v945
      %v955 = vmax.bf16 %v827, %v848
      %v956 = vmax.bf16 %v828, %v862
      %v957 = vmax.bf16 %v829, %v876
      %v958 = vmax.bf16 %v830, %v890
      %v959 = vmax.bf16 %v831, %v904
      %v960 = vmax.bf16 %v832, %v918
      %v961 = vmax.bf16 %v833, %v932
      %v962 = vmax.bf16 %v834, %v946
      %v963 = vmax.bf16 %v635, %v795
      %v964 = vmax.bf16 %v636, %v796
      %v965 = vmax.bf16 %v637, %v797
      %v966 = vmax.bf16 %v638, %v798
      %v967 = vmax.bf16 %v639, %v799
      %v968 = vmax.bf16 %v640, %v800
      %v969 = vmax.bf16 %v641, %v801
      %v970 = vmax.bf16 %v642, %v802
      %v971 = vmax.bf16 %v963, %v955
      %v972 = vmax.bf16 %v964, %v956
      %v973 = vmax.bf16 %v965, %v957
      %v974 = vmax.bf16 %v966, %v958
      %v975 = vmax.bf16 %v967, %v959
      %v976 = vmax.bf16 %v968, %v960
      %v977 = vmax.bf16 %v969, %v961
      %v978 = vmax.bf16 %v970, %v962
      %979 = vst [vmem:[%s478] sm:$0xf] %v971
      %980 = vst [vmem:[%s478 + $0x4] sm:$0xf] %v972
      %981 = vst [vmem:[%s478 + $0x8] sm:$0xf] %v973
      %982 = vst [vmem:[%s478 + $0xc] sm:$0xf] %v974
      %983 = vst [vmem:[%s478 + $0x10] sm:$0xf] %v975
      %984 = vst [vmem:[%s478 + $0x14] sm:$0xf] %v976
      %985 = vst [vmem:[%s478 + $0x18] sm:$0xf] %v977
      %986 = vst [vmem:[%s478 + $0x1c] sm:$0xf] %v978
      %s987 = smul.u32 8, %s22
      %p988 = scmp.lt.s32.totalorder %s21, 1
      %s989 = scalar_select %p988, %s21, 1
      %p990 = scmp.lt.s32.totalorder %s987, 7
      %s991 = scalar_select %p990, %s987, 7
      %s992 = smul.addr %s989, 8
      %s993 = sadd.s32 %s991, %s992
      %s994 = smul.addr %s993, 4
      %s995 = scalar_lea.vmem %s6, %s994
      // Predicated region
      $region45: #{_lambda_.17} parent=43 // pred_check
        %p996 = pneg %p217
      $region46: #{_lambda_.17} parent=43 // pred_check_branch
        %998 = sbr.rel (%p996) target = $region48
      $region47: #{_lambda_.17} parent=43 // pred_region
        %s999 = smul.u32 8, %s22
      $region48: #{_lambda_.17} parent=43 // pred_fallthru
        _
    $region44: #{_lambda_.17} parent=5 // pred_fallthru
      _
    %p1000 = scmp.le.s32.totalorder 2, %s12
    // Predicated region
    $region49: #{_lambda_.17} parent=5 // pred_check
      %p1001 = pneg %p1000
    $region50: #{_lambda_.17} parent=5 // pred_check_branch
      %1003 = sbr.rel (%p1001) target = $region52
    $region51: #{_lambda_.17} parent=5 // pred_region
      %s1004 = ssub.s32 %s12, 2
      // Predicated region
      $region53: #{_lambda_.17} parent=51 // pred_check
        %p1005 = pneg %p223
      $region54: #{_lambda_.17} parent=51 // pred_check_branch
        %1007 = sbr.rel (%p1005) target = $region56
      $region55: #{_lambda_.17} parent=51 // pred_region
        %s1008 = smul.u32 8, %s24
        %p1009 = scmp.lt.s32.totalorder %s23, 1
        %s1010 = scalar_select %p1009, %s23, 1
        %p1011 = scmp.lt.s32.totalorder %s1008, 7
        %s1012 = scalar_select %p1011, %s1008, 7
        %s1013 = smul.addr %s1010, 8
        %s1014 = sadd.s32 %s1012, %s1013
        %s1015 = smul.addr %s1014, 4
        %s1016 = scalar_lea.vmem %s6, %s1015
      $region56: #{_lambda_.17} parent=51 // pred_fallthru
        _
    $region52: #{_lambda_.17} parent=5 // pred_fallthru
      _
  $region6: #{_lambda_.17} parent=0 // loop_footer
    %s16 = sadd.s32 1, %s12
  $region7: #{_lambda_.17} parent=0 // loop_footer_branch
    %11 = sbr.rel target = $region3
  $region8: #{_lambda_.17} parent=0 // loop_exit
    _

// kernel: _lambda_.16
$region0: #{_lambda_.16}
  #allocation0 [shape = 'u32[]', space=smem, size = 0x4, offset = 0x4, fixed_abs, tag = 'smem constant byte address 0x4 - core index']
  #allocation1 [shape = 'u32[144,128]{1,0:T(1,128)}', space=vmem, size = 0x12000, scoped, tag = 'internal scratch']
  #allocation2 [shape = 'f32[512,128]{1,0:T(8,128)}', space=vmem, size = 0x40000, scoped, tag = 'scratch operand']
  %s0 = inlined_call_operand.vmem [shape: bf16[512,128], index: 0, kind: input, shape index: {}]
  %s1 = inlined_call_operand.hbm [shape: bf16[128,128], index: 1, kind: input, shape index: {}]
  %s2 = inlined_call_operand.hbm [shape: f32[1,128], index: 2, kind: input, shape index: {}]
  %s3 = inlined_call_operand.vmem [shape: bf16[512,128], index: 3, kind: output, shape index: {}]
  %s4 = sld [smem:[#allocation0]]
  $region38: #{_lambda_.16} parent=0
    _
  %s6 = ssub.s32 1, %s4
  %s7 = scalar_select 0, %s6, %s4
  $region1: #{_lambda_.16} parent=0
    #allocation3 [shape = 'u8[32768]{0}', space=vmem, size = 0x8000, scoped, tag = 'input window, operand 1, single buffered']
    #allocation4 [shape = 's32[1]{0}', space=sflag, size = 0x4, scoped, tag = 'scoped memory for _lambda_.16']
    #allocation5 [shape = 'u8[512]{0}', space=vmem, size = 0x400, scoped, tag = 'input window, operand 2, single buffered']
    #allocation6 [shape = 's32[1]{0}', space=sflag, size = 0x4, scoped, tag = 'scoped memory for _lambda_.16']
    %8 = vsyncpa [#allocation4], 0
    %9 = vsyncpa [#allocation6], 0
    // Predicated region
    $region2: #{_lambda_.16} parent=1 // pred_check
      _
    $region3: #{_lambda_.16} parent=1 // pred_check_branch
      %11 = sbr.rel (0) target = $region5
    $region4: #{_lambda_.16} parent=1 // pred_region
      _
    $region5: #{_lambda_.16} parent=1 // pred_fallthru
      _
    // Predicated region
    $region6: #{_lambda_.16} parent=1 // pred_check
      _
    $region7: #{_lambda_.16} parent=1 // pred_check_branch
      %13 = sbr.rel (0) target = $region9
    $region8: #{_lambda_.16} parent=1 // pred_region
      %s15 = ssub.s32 1024, 1024
      %16 = vsyncadd [#allocation4], %s15
      %s17 = sshll.u32 [#allocation3], 4
      %s18 = int_to_ptr.vmem [resolvable:$true] %s17
      %23 = dma.hbm_to_vmem [thread:$0]  %s1, 1024, %s18, [#allocation4], 64, 64, 4
    $region9: #{_lambda_.16} parent=1 // pred_fallthru
      _
    // Predicated region
    $region10: #{_lambda_.16} parent=1 // pred_check
      _
    $region11: #{_lambda_.16} parent=1 // pred_check_branch
      %25 = sbr.rel (0) target = $region13
    $region12: #{_lambda_.16} parent=1 // pred_region
      %s27 = ssub.s32 16, 16
      %28 = vsyncadd [#allocation6], %s27
      %s30 = sshll.u32 [#allocation5], 4
      %s31 = int_to_ptr.vmem [resolvable:$true] %s30
      %33 = dma.hbm_to_vmem [thread:$0]  %s2, 16, %s31, [#allocation6]
    $region13: #{_lambda_.16} parent=1 // pred_fallthru
      _
    // Predicated region
    $region14: #{_lambda_.16} parent=1 // pred_check
      _
    $region15: #{_lambda_.16} parent=1 // pred_check_branch
      %35 = sbr.rel (0) target = $region17
    $region16: #{_lambda_.16} parent=1 // pred_region
      %36 = dma.done [#allocation4], 1024
    $region17: #{_lambda_.16} parent=1 // pred_fallthru
      _
    // Predicated region
    $region18: #{_lambda_.16} parent=1 // pred_check
      _
    $region19: #{_lambda_.16} parent=1 // pred_check_branch
      %38 = sbr.rel (0) target = $region21
    $region20: #{_lambda_.16} parent=1 // pred_region
      %39 = dma.done [#allocation6], 16
    $region21: #{_lambda_.16} parent=1 // pred_fallthru
      _
    %p41 = scmp.eq.s32.totalorder 0, 0
    // Predicated region
    $region22: #{_lambda_.16} parent=1 // pred_check
      %p42 = pneg %p41
    $region23: #{_lambda_.16} parent=1 // pred_check_branch
      %44 = sbr.rel (%p42) target = $region25
    $region24: #{_lambda_.16} parent=1 // pred_region
      %45 = vst [vmem:[#allocation2] sm:$0xff] 0.0
      %46 = vst [vmem:[#allocation2 + $0x8] sm:$0xff] 0.0
      %47 = vst [vmem:[#allocation2 + $0x10] sm:$0xff] 0.0
      %48 = vst [vmem:[#allocation2 + $0x18] sm:$0xff] 0.0
      %49 = vst [vmem:[#allocation2 + $0x20] sm:$0xff] 0.0
      %50 = vst [vmem:[#allocation2 + $0x28] sm:$0xff] 0.0
      %51 = vst [vmem:[#allocation2 + $0x30] sm:$0xff] 0.0
      %52 = vst [vmem:[#allocation2 + $0x38] sm:$0xff] 0.0
      %53 = vst [vmem:[#allocation2 + $0x40] sm:$0xff] 0.0
      %54 = vst [vmem:[#allocation2 + $0x48] sm:$0xff] 0.0
      %55 = vst [vmem:[#allocation2 + $0x50] sm:$0xff] 0.0
      %56 = vst [vmem:[#allocation2 + $0x58] sm:$0xff] 0.0
      %57 = vst [vmem:[#allocation2 + $0x60] sm:$0xff] 0.0
      %58 = vst [vmem:[#allocation2 + $0x68] sm:$0xff] 0.0
      %59 = vst [vmem:[#allocation2 + $0x70] sm:$0xff] 0.0
      %60 = vst [vmem:[#allocation2 + $0x78] sm:$0xff] 0.0
      %61 = vst [vmem:[#allocation2 + $0x80] sm:$0xff] 0.0
      %62 = vst [vmem:[#allocation2 + $0x88] sm:$0xff] 0.0
      %63 = vst [vmem:[#allocation2 + $0x90] sm:$0xff] 0.0
      %64 = vst [vmem:[#allocation2 + $0x98] sm:$0xff] 0.0
      %65 = vst [vmem:[#allocation2 + $0xa0] sm:$0xff] 0.0
      %66 = vst [vmem:[#allocation2 + $0xa8] sm:$0xff] 0.0
      %67 = vst [vmem:[#allocation2 + $0xb0] sm:$0xff] 0.0
      %68 = vst [vmem:[#allocation2 + $0xb8] sm:$0xff] 0.0
      %69 = vst [vmem:[#allocation2 + $0xc0] sm:$0xff] 0.0
      %70 = vst [vmem:[#allocation2 + $0xc8] sm:$0xff] 0.0
      %71 = vst [vmem:[#allocation2 + $0xd0] sm:$0xff] 0.0
      %72 = vst [vmem:[#allocation2 + $0xd8] sm:$0xff] 0.0
      %73 = vst [vmem:[#allocation2 + $0xe0] sm:$0xff] 0.0
      %74 = vst [vmem:[#allocation2 + $0xe8] sm:$0xff] 0.0
      %75 = vst [vmem:[#allocation2 + $0xf0] sm:$0xff] 0.0
      %76 = vst [vmem:[#allocation2 + $0xf8] sm:$0xff] 0.0
      %77 = vst [vmem:[#allocation2 + $0x100] sm:$0xff] 0.0
      %78 = vst [vmem:[#allocation2 + $0x108] sm:$0xff] 0.0
      %79 = vst [vmem:[#allocation2 + $0x110] sm:$0xff] 0.0
      %80 = vst [vmem:[#allocation2 + $0x118] sm:$0xff] 0.0
      %81 = vst [vmem:[#allocation2 + $0x120] sm:$0xff] 0.0
      %82 = vst [vmem:[#allocation2 + $0x128] sm:$0xff] 0.0
      %83 = vst [vmem:[#allocation2 + $0x130] sm:$0xff] 0.0
      %84 = vst [vmem:[#allocation2 + $0x138] sm:$0xff] 0.0
      %85 = vst [vmem:[#allocation2 + $0x140] sm:$0xff] 0.0
      %86 = vst [vmem:[#allocation2 + $0x148] sm:$0xff] 0.0
      %87 = vst [vmem:[#allocation2 + $0x150] sm:$0xff] 0.0
      %88 = vst [vmem:[#allocation2 + $0x158] sm:$0xff] 0.0
      %89 = vst [vmem:[#allocation2 + $0x160] sm:$0xff] 0.0
      %90 = vst [vmem:[#allocation2 + $0x168] sm:$0xff] 0.0
      %91 = vst [vmem:[#allocation2 + $0x170] sm:$0xff] 0.0
      %92 = vst [vmem:[#allocation2 + $0x178] sm:$0xff] 0.0
      %93 = vst [vmem:[#allocation2 + $0x180] sm:$0xff] 0.0
      %94 = vst [vmem:[#allocation2 + $0x188] sm:$0xff] 0.0
      %95 = vst [vmem:[#allocation2 + $0x190] sm:$0xff] 0.0
      %96 = vst [vmem:[#allocation2 + $0x198] sm:$0xff] 0.0
      %97 = vst [vmem:[#allocation2 + $0x1a0] sm:$0xff] 0.0
      %98 = vst [vmem:[#allocation2 + $0x1a8] sm:$0xff] 0.0
      %99 = vst [vmem:[#allocation2 + $0x1b0] sm:$0xff] 0.0
      %100 = vst [vmem:[#allocation2 + $0x1b8] sm:$0xff] 0.0
      %101 = vst [vmem:[#allocation2 + $0x1c0] sm:$0xff] 0.0
      %102 = vst [vmem:[#allocation2 + $0x1c8] sm:$0xff] 0.0
      %103 = vst [vmem:[#allocation2 + $0x1d0] sm:$0xff] 0.0
      %104 = vst [vmem:[#allocation2 + $0x1d8] sm:$0xff] 0.0
      %105 = vst [vmem:[#allocation2 + $0x1e0] sm:$0xff] 0.0
      %106 = vst [vmem:[#allocation2 + $0x1e8] sm:$0xff] 0.0
      %107 = vst [vmem:[#allocation2 + $0x1f0] sm:$0xff] 0.0
      %108 = vst [vmem:[#allocation2 + $0x1f8] sm:$0xff] 0.0
    $region25: #{_lambda_.16} parent=1 // pred_fallthru
      _
    %v109 = vld [vmem:[#allocation2] sm:$0xff]
    %v110 = vld [vmem:[#allocation2 + $0x8] sm:$0xff]
    %v111 = vld [vmem:[#allocation2 + $0x10] sm:$0xff]
    %v112 = vld [vmem:[#allocation2 + $0x18] sm:$0xff]
    %v113 = vld [vmem:[#allocation2 + $0x20] sm:$0xff]
    %v114 = vld [vmem:[#allocation2 + $0x28] sm:$0xff]
    %v115 = vld [vmem:[#allocation2 + $0x30] sm:$0xff]
    %v116 = vld [vmem:[#allocation2 + $0x38] sm:$0xff]
    %v117 = vld [vmem:[#allocation2 + $0x40] sm:$0xff]
    %v118 = vld [vmem:[#allocation2 + $0x48] sm:$0xff]
    %v119 = vld [vmem:[#allocation2 + $0x50] sm:$0xff]
    %v120 = vld [vmem:[#allocation2 + $0x58] sm:$0xff]
    %v121 = vld [vmem:[#allocation2 + $0x60] sm:$0xff]
    %v122 = vld [vmem:[#allocation2 + $0x68] sm:$0xff]
    %v123 = vld [vmem:[#allocation2 + $0x70] sm:$0xff]
    %v124 = vld [vmem:[#allocation2 + $0x78] sm:$0xff]
    %v125 = vld [vmem:[#allocation2 + $0x80] sm:$0xff]
    %v126 = vld [vmem:[#allocation2 + $0x88] sm:$0xff]
    %v127 = vld [vmem:[#allocation2 + $0x90] sm:$0xff]
    %v128 = vld [vmem:[#allocation2 + $0x98] sm:$0xff]
    %v129 = vld [vmem:[#allocation2 + $0xa0] sm:$0xff]
    %v130 = vld [vmem:[#allocation2 + $0xa8] sm:$0xff]
    %v131 = vld [vmem:[#allocation2 + $0xb0] sm:$0xff]
    %v132 = vld [vmem:[#allocation2 + $0xb8] sm:$0xff]
    %v133 = vld [vmem:[#allocation2 + $0xc0] sm:$0xff]
    %v134 = vld [vmem:[#allocation2 + $0xc8] sm:$0xff]
    %v135 = vld [vmem:[#allocation2 + $0xd0] sm:$0xff]
    %v136 = vld [vmem:[#allocation2 + $0xd8] sm:$0xff]
    %v137 = vld [vmem:[#allocation2 + $0xe0] sm:$0xff]
    %v138 = vld [vmem:[#allocation2 + $0xe8] sm:$0xff]
    %v139 = vld [vmem:[#allocation2 + $0xf0] sm:$0xff]
    %v140 = vld [vmem:[#allocation2 + $0xf8] sm:$0xff]
    %v141 = vld [vmem:[#allocation2 + $0x100] sm:$0xff]
    %v142 = vld [vmem:[#allocation2 + $0x108] sm:$0xff]
    %v143 = vld [vmem:[#allocation2 + $0x110] sm:$0xff]
    %v144 = vld [vmem:[#allocation2 + $0x118] sm:$0xff]
    %v145 = vld [vmem:[#allocation2 + $0x120] sm:$0xff]
    %v146 = vld [vmem:[#allocation2 + $0x128] sm:$0xff]
    %v147 = vld [vmem:[#allocation2 + $0x130] sm:$0xff]
    %v148 = vld [vmem:[#allocation2 + $0x138] sm:$0xff]
    %v149 = vld [vmem:[#allocation2 + $0x140] sm:$0xff]
    %v150 = vld [vmem:[#allocation2 + $0x148] sm:$0xff]
    %v151 = vld [vmem:[#allocation2 + $0x150] sm:$0xff]
    %v152 = vld [vmem:[#allocation2 + $0x158] sm:$0xff]
    %v153 = vld [vmem:[#allocation2 + $0x160] sm:$0xff]
    %v154 = vld [vmem:[#allocation2 + $0x168] sm:$0xff]
    %v155 = vld [vmem:[#allocation2 + $0x170] sm:$0xff]
    %v156 = vld [vmem:[#allocation2 + $0x178] sm:$0xff]
    %v157 = vld [vmem:[#allocation2 + $0x180] sm:$0xff]
    %v158 = vld [vmem:[#allocation2 + $0x188] sm:$0xff]
    %v159 = vld [vmem:[#allocation2 + $0x190] sm:$0xff]
    %v160 = vld [vmem:[#allocation2 + $0x198] sm:$0xff]
    %v161 = vld [vmem:[#allocation2 + $0x1a0] sm:$0xff]
    %v162 = vld [vmem:[#allocation2 + $0x1a8] sm:$0xff]
    %v163 = vld [vmem:[#allocation2 + $0x1b0] sm:$0xff]
    %v164 = vld [vmem:[#allocation2 + $0x1b8] sm:$0xff]
    %v165 = vld [vmem:[#allocation2 + $0x1c0] sm:$0xff]
    %v166 = vld [vmem:[#allocation2 + $0x1c8] sm:$0xff]
    %v167 = vld [vmem:[#allocation2 + $0x1d0] sm:$0xff]
    %v168 = vld [vmem:[#allocation2 + $0x1d8] sm:$0xff]
    %v169 = vld [vmem:[#allocation2 + $0x1e0] sm:$0xff]
    %v170 = vld [vmem:[#allocation2 + $0x1e8] sm:$0xff]
    %v171 = vld [vmem:[#allocation2 + $0x1f0] sm:$0xff]
    %v172 = vld [vmem:[#allocation2 + $0x1f8] sm:$0xff]
    %v173 = vld [vmem:[%s0] sm:$0xf]
    %v174 = vld [vmem:[%s0 + $0x4] sm:$0xf]
    %v175 = vld [vmem:[%s0 + $0x8] sm:$0xf]
    %v176 = vld [vmem:[%s0 + $0xc] sm:$0xf]
    %v177 = vld [vmem:[%s0 + $0x10] sm:$0xf]
    %v178 = vld [vmem:[%s0 + $0x14] sm:$0xf]
    %v179 = vld [vmem:[%s0 + $0x18] sm:$0xf]
    %v180 = vld [vmem:[%s0 + $0x1c] sm:$0xf]
    %v181 = vld [vmem:[%s0 + $0x20] sm:$0xf]
    %v182 = vld [vmem:[%s0 + $0x24] sm:$0xf]
    %v183 = vld [vmem:[%s0 + $0x28] sm:$0xf]
    %v184 = vld [vmem:[%s0 + $0x2c] sm:$0xf]
    %v185 = vld [vmem:[%s0 + $0x30] sm:$0xf]
    %v186 = vld [vmem:[%s0 + $0x34] sm:$0xf]
    %v187 = vld [vmem:[%s0 + $0x38] sm:$0xf]
    %v188 = vld [vmem:[%s0 + $0x3c] sm:$0xf]
    %v189 = vld [vmem:[%s0 + $0x40] sm:$0xf]
    %v190 = vld [vmem:[%s0 + $0x44] sm:$0xf]
    %v191 = vld [vmem:[%s0 + $0x48] sm:$0xf]
    %v192 = vld [vmem:[%s0 + $0x4c] sm:$0xf]
    %v193 = vld [vmem:[%s0 + $0x50] sm:$0xf]
    %v194 = vld [vmem:[%s0 + $0x54] sm:$0xf]
    %v195 = vld [vmem:[%s0 + $0x58] sm:$0xf]
    %v196 = vld [vmem:[%s0 + $0x5c] sm:$0xf]
    %v197 = vld [vmem:[%s0 + $0x60] sm:$0xf]
    %v198 = vld [vmem:[%s0 + $0x64] sm:$0xf]
    %v199 = vld [vmem:[%s0 + $0x68] sm:$0xf]
    %v200 = vld [vmem:[%s0 + $0x6c] sm:$0xf]
    %v201 = vld [vmem:[%s0 + $0x70] sm:$0xf]
    %v202 = vld [vmem:[%s0 + $0x74] sm:$0xf]
    %v203 = vld [vmem:[%s0 + $0x78] sm:$0xf]
    %v204 = vld [vmem:[%s0 + $0x7c] sm:$0xf]
    %v205 = vld [vmem:[%s0 + $0x80] sm:$0xf]
    %v206 = vld [vmem:[%s0 + $0x84] sm:$0xf]
    %v207 = vld [vmem:[%s0 + $0x88] sm:$0xf]
    %v208 = vld [vmem:[%s0 + $0x8c] sm:$0xf]
    %v209 = vld [vmem:[%s0 + $0x90] sm:$0xf]
    %v210 = vld [vmem:[%s0 + $0x94] sm:$0xf]
    %v211 = vld [vmem:[%s0 + $0x98] sm:$0xf]
    %v212 = vld [vmem:[%s0 + $0x9c] sm:$0xf]
    %v213 = vld [vmem:[%s0 + $0xa0] sm:$0xf]
    %v214 = vld [vmem:[%s0 + $0xa4] sm:$0xf]
    %v215 = vld [vmem:[%s0 + $0xa8] sm:$0xf]
    %v216 = vld [vmem:[%s0 + $0xac] sm:$0xf]
    %v217 = vld [vmem:[%s0 + $0xb0] sm:$0xf]
    %v218 = vld [vmem:[%s0 + $0xb4] sm:$0xf]
    %v219 = vld [vmem:[%s0 + $0xb8] sm:$0xf]
    %v220 = vld [vmem:[%s0 + $0xbc] sm:$0xf]
    %v221 = vld [vmem:[%s0 + $0xc0] sm:$0xf]
    %v222 = vld [vmem:[%s0 + $0xc4] sm:$0xf]
    %v223 = vld [vmem:[%s0 + $0xc8] sm:$0xf]
    %v224 = vld [vmem:[%s0 + $0xcc] sm:$0xf]
    %v225 = vld [vmem:[%s0 + $0xd0] sm:$0xf]
    %v226 = vld [vmem:[%s0 + $0xd4] sm:$0xf]
    %v227 = vld [vmem:[%s0 + $0xd8] sm:$0xf]
    %v228 = vld [vmem:[%s0 + $0xdc] sm:$0xf]
    %v229 = vld [vmem:[%s0 + $0xe0] sm:$0xf]
    %v230 = vld [vmem:[%s0 + $0xe4] sm:$0xf]
    %v231 = vld [vmem:[%s0 + $0xe8] sm:$0xf]
    %v232 = vld [vmem:[%s0 + $0xec] sm:$0xf]
    %v233 = vld [vmem:[%s0 + $0xf0] sm:$0xf]
    %v234 = vld [vmem:[%s0 + $0xf4] sm:$0xf]
    %v235 = vld [vmem:[%s0 + $0xf8] sm:$0xf]
    %v236 = vld [vmem:[%s0 + $0xfc] sm:$0xf]
    %v237 = vld [vmem:[#allocation3] sm:$0xf]
    %v238 = vld [vmem:[#allocation3 + $0x4] sm:$0xf]
    %v239 = vld [vmem:[#allocation3 + $0x8] sm:$0xf]
    %v240 = vld [vmem:[#allocation3 + $0xc] sm:$0xf]
    %v241 = vld [vmem:[#allocation3 + $0x10] sm:$0xf]
    %v242 = vld [vmem:[#allocation3 + $0x14] sm:$0xf]
    %v243 = vld [vmem:[#allocation3 + $0x18] sm:$0xf]
    %v244 = vld [vmem:[#allocation3 + $0x1c] sm:$0xf]
    %v245 = vld [vmem:[#allocation3 + $0x20] sm:$0xf]
    %v246 = vld [vmem:[#allocation3 + $0x24] sm:$0xf]
    %v247 = vld [vmem:[#allocation3 + $0x28] sm:$0xf]
    %v248 = vld [vmem:[#allocation3 + $0x2c] sm:$0xf]
    %v249 = vld [vmem:[#allocation3 + $0x30] sm:$0xf]
    %v250 = vld [vmem:[#allocation3 + $0x34] sm:$0xf]
    %v251 = vld [vmem:[#allocation3 + $0x38] sm:$0xf]
    %v252 = vld [vmem:[#allocation3 + $0x3c] sm:$0xf]
    %v317 = vunpack.c.l.b16 %v173
    %v318 = vunpack.c.l.b16 %v174
    %v319 = vunpack.c.l.b16 %v175
    %v320 = vunpack.c.l.b16 %v176
    %v321 = vunpack.c.l.b16 %v177
    %v322 = vunpack.c.l.b16 %v178
    %v323 = vunpack.c.l.b16 %v179
    %v324 = vunpack.c.l.b16 %v180
    %v325 = vunpack.c.l.b16 %v181
    %v326 = vunpack.c.l.b16 %v182
    %v327 = vunpack.c.l.b16 %v183
    %v328 = vunpack.c.l.b16 %v184
    %v329 = vunpack.c.l.b16 %v185
    %v330 = vunpack.c.l.b16 %v186
    %v331 = vunpack.c.l.b16 %v187
    %v332 = vunpack.c.l.b16 %v188
    %v333 = vunpack.c.l.b16 %v189
    %v334 = vunpack.c.l.b16 %v190
    %v335 = vunpack.c.l.b16 %v191
    %v336 = vunpack.c.l.b16 %v192
    %v337 = vunpack.c.l.b16 %v193
    %v338 = vunpack.c.l.b16 %v194
    %v339 = vunpack.c.l.b16 %v195
    %v340 = vunpack.c.l.b16 %v196
    %v341 = vunpack.c.l.b16 %v197
    %v342 = vunpack.c.l.b16 %v198
    %v343 = vunpack.c.l.b16 %v199
    %v344 = vunpack.c.l.b16 %v200
    %v345 = vunpack.c.l.b16 %v201
    %v346 = vunpack.c.l.b16 %v202
    %v347 = vunpack.c.l.b16 %v203
    %v348 = vunpack.c.l.b16 %v204
    %v349 = vunpack.c.l.b16 %v205
    %v350 = vunpack.c.l.b16 %v206
    %v351 = vunpack.c.l.b16 %v207
    %v352 = vunpack.c.l.b16 %v208
    %v353 = vunpack.c.l.b16 %v209
    %v354 = vunpack.c.l.b16 %v210
    %v355 = vunpack.c.l.b16 %v211
    %v356 = vunpack.c.l.b16 %v212
    %v357 = vunpack.c.l.b16 %v213
    %v358 = vunpack.c.l.b16 %v214
    %v359 = vunpack.c.l.b16 %v215
    %v360 = vunpack.c.l.b16 %v216
    %v361 = vunpack.c.l.b16 %v217
    %v362 = vunpack.c.l.b16 %v218
    %v363 = vunpack.c.l.b16 %v219
    %v364 = vunpack.c.l.b16 %v220
    %v365 = vunpack.c.l.b16 %v221
    %v366 = vunpack.c.l.b16 %v222
    %v367 = vunpack.c.l.b16 %v223
    %v368 = vunpack.c.l.b16 %v224
    %v369 = vunpack.c.l.b16 %v225
    %v370 = vunpack.c.l.b16 %v226
    %v371 = vunpack.c.l.b16 %v227
    %v372 = vunpack.c.l.b16 %v228
    %v373 = vunpack.c.l.b16 %v229
    %v374 = vunpack.c.l.b16 %v230
    %v375 = vunpack.c.l.b16 %v231
    %v376 = vunpack.c.l.b16 %v232
    %v377 = vunpack.c.l.b16 %v233
    %v378 = vunpack.c.l.b16 %v234
    %v379 = vunpack.c.l.b16 %v235
    %v380 = vunpack.c.l.b16 %v236
    %v381 = vpack.c.b16 %v318, %v317
    %v382 = vpack.c.b16 %v320, %v319
    %v383 = vpack.c.b16 %v322, %v321
    %v384 = vpack.c.b16 %v324, %v323
    %v385 = vpack.c.b16 %v326, %v325
    %v386 = vpack.c.b16 %v328, %v327
    %v387 = vpack.c.b16 %v330, %v329
    %v388 = vpack.c.b16 %v332, %v331
    %v389 = vpack.c.b16 %v334, %v333
    %v390 = vpack.c.b16 %v336, %v335
    %v391 = vpack.c.b16 %v338, %v337
    %v392 = vpack.c.b16 %v340, %v339
    %v393 = vpack.c.b16 %v342, %v341
    %v394 = vpack.c.b16 %v344, %v343
    %v395 = vpack.c.b16 %v346, %v345
    %v396 = vpack.c.b16 %v348, %v347
    %v397 = vpack.c.b16 %v350, %v349
    %v398 = vpack.c.b16 %v352, %v351
    %v399 = vpack.c.b16 %v354, %v353
    %v400 = vpack.c.b16 %v356, %v355
    %v401 = vpack.c.b16 %v358, %v357
    %v402 = vpack.c.b16 %v360, %v359
    %v403 = vpack.c.b16 %v362, %v361
    %v404 = vpack.c.b16 %v364, %v363
    %v405 = vpack.c.b16 %v366, %v365
    %v406 = vpack.c.b16 %v368, %v367
    %v407 = vpack.c.b16 %v370, %v369
    %v408 = vpack.c.b16 %v372, %v371
    %v409 = vpack.c.b16 %v374, %v373
    %v410 = vpack.c.b16 %v376, %v375
    %v411 = vpack.c.b16 %v378, %v377
    %v412 = vpack.c.b16 %v380, %v379
    %v461 = vunpack.c.l.b16 %v237
    %v462 = vunpack.c.l.b16 %v238
    %v463 = vunpack.c.l.b16 %v239
    %v464 = vunpack.c.l.b16 %v240
    %v465 = vunpack.c.l.b16 %v241
    %v466 = vunpack.c.l.b16 %v242
    %v467 = vunpack.c.l.b16 %v243
    %v468 = vunpack.c.l.b16 %v244
    %v469 = vunpack.c.l.b16 %v245
    %v470 = vunpack.c.l.b16 %v246
    %v471 = vunpack.c.l.b16 %v247
    %v472 = vunpack.c.l.b16 %v248
    %v473 = vunpack.c.l.b16 %v249
    %v474 = vunpack.c.l.b16 %v250
    %v475 = vunpack.c.l.b16 %v251
    %v476 = vunpack.c.l.b16 %v252
    %v477 = vpack.c.b16 %v462, %v461
    %v478 = vpack.c.b16 %v464, %v463
    %v479 = vpack.c.b16 %v466, %v465
    %v480 = vpack.c.b16 %v468, %v467
    %v481 = vpack.c.b16 %v470, %v469
    %v482 = vpack.c.b16 %v472, %v471
    %v483 = vpack.c.b16 %v474, %v473
    %v484 = vpack.c.b16 %v476, %v475
    %493 = vmatprep.subr.bf16.mxu0 0
    %494 = vmatpush1.bf16.msra.mxu0 %v484
    %495 = vmatprep.subr.bf16.mxu0 0
    %496 = vmatpush1.bf16.msra.mxu0 %v483
    %497 = vmatprep.subr.bf16.mxu0 0
    %498 = vmatpush1.bf16.msra.mxu0 %v482
    %499 = vmatprep.subr.bf16.mxu0 0
    %500 = vmatpush1.bf16.msra.mxu0 %v481
    %501 = vmatprep.subr.bf16.mxu0 0
    %502 = vmatpush1.bf16.msra.mxu0 %v480
    %503 = vmatprep.subr.bf16.mxu0 0
    %504 = vmatpush1.bf16.msra.mxu0 %v479
    %505 = vmatprep.subr.bf16.mxu0 0
    %506 = vmatpush1.bf16.msra.mxu0 %v478
    %507 = vmatprep.subr.bf16.mxu0 0
    %508 = vmatpush1.bf16.msra.mxu0 %v477
    %509 = vmatprep.subr.bf16.mxu0 0
    %510 = vmatpush2.bf16.msra.mxu0 0
    %511 = vmatprep.subr.bf16.mxu0 0
    %512 = vmatpush2.bf16.msra.mxu0 0
    %513 = vmatprep.subr.bf16.mxu0 0
    %514 = vmatpush2.bf16.msra.mxu0 0
    %515 = vmatprep.subr.bf16.mxu0 0
    %516 = vmatpush2.bf16.msra.mxu0 0
    %517 = vmatprep.subr.bf16.mxu0 0
    %518 = vmatpush2.bf16.msra.mxu0 0
    %519 = vmatprep.subr.bf16.mxu0 0
    %520 = vmatpush2.bf16.msra.mxu0 0
    %521 = vmatprep.subr.bf16.mxu0 0
    %522 = vmatpush2.bf16.msra.mxu0 0
    %523 = vmatprep.subr.bf16.mxu0 0
    %524 = vmatpush2.bf16.msra.mxu0 0
    %525 = vmatprep.mubr.bf16.mxu0 0
    %526 = vmatmul.mubr.bf16.gmra.mxu0 %v381
    %v527 = vpop.f32.mrf.mxu0
    %v528 = vadd.f32 0.0, %v527
    %v529 = vpop.f32.mrf.mxu0
    %v530 = vpop.f32.mrf.mxu0
    %v531 = vadd.f32 0.0, %v530
    %v532 = vpop.f32.mrf.mxu0
    %533 = vmatprep.mubr.bf16.mxu0 0
    %534 = vmatmul.mubr.bf16.gmra.mxu0 %v382
    %v535 = vpop.f32.mrf.mxu0
    %v536 = vadd.f32 0.0, %v535
    %v537 = vpop.f32.mrf.mxu0
    %v538 = vpop.f32.mrf.mxu0
    %v539 = vadd.f32 0.0, %v538
    %v540 = vpop.f32.mrf.mxu0
    %541 = vmatprep.mubr.bf16.mxu0 0
    %542 = vmatmul.mubr.bf16.gmra.mxu0 %v383
    %v543 = vpop.f32.mrf.mxu0
    %v544 = vadd.f32 0.0, %v543
    %v545 = vpop.f32.mrf.mxu0
    %v546 = vpop.f32.mrf.mxu0
    %v547 = vadd.f32 0.0, %v546
    %v548 = vpop.f32.mrf.mxu0
    %549 = vmatprep.mubr.bf16.mxu0 0
    %550 = vmatmul.mubr.bf16.gmra.mxu0 %v384
    %v551 = vpop.f32.mrf.mxu0
    %v552 = vadd.f32 0.0, %v551
    %v553 = vpop.f32.mrf.mxu0
    %v554 = vpop.f32.mrf.mxu0
    %v555 = vadd.f32 0.0, %v554
    %v556 = vpop.f32.mrf.mxu0
    %557 = vmatprep.mubr.bf16.mxu0 0
    %558 = vmatmul.mubr.bf16.gmra.mxu0 %v385
    %v559 = vpop.f32.mrf.mxu0
    %v560 = vadd.f32 0.0, %v559
    %v561 = vpop.f32.mrf.mxu0
    %v562 = vpop.f32.mrf.mxu0
    %v563 = vadd.f32 0.0, %v562
    %v564 = vpop.f32.mrf.mxu0
    %565 = vmatprep.mubr.bf16.mxu0 0
    %566 = vmatmul.mubr.bf16.gmra.mxu0 %v386
    %v567 = vpop.f32.mrf.mxu0
    %v568 = vadd.f32 0.0, %v567
    %v569 = vpop.f32.mrf.mxu0
    %v570 = vpop.f32.mrf.mxu0
    %v571 = vadd.f32 0.0, %v570
    %v572 = vpop.f32.mrf.mxu0
    %573 = vmatprep.mubr.bf16.mxu0 0
    %574 = vmatmul.mubr.bf16.gmra.mxu0 %v387
    %v575 = vpop.f32.mrf.mxu0
    %v576 = vadd.f32 0.0, %v575
    %v577 = vpop.f32.mrf.mxu0
    %v578 = vpop.f32.mrf.mxu0
    %v579 = vadd.f32 0.0, %v578
    %v580 = vpop.f32.mrf.mxu0
    %581 = vmatprep.mubr.bf16.mxu0 0
    %582 = vmatmul.mubr.bf16.gmra.mxu0 %v388
    %v583 = vpop.f32.mrf.mxu0
    %v584 = vadd.f32 0.0, %v583
    %v585 = vpop.f32.mrf.mxu0
    %v586 = vpop.f32.mrf.mxu0
    %v587 = vadd.f32 0.0, %v586
    %v588 = vpop.f32.mrf.mxu0
    %589 = vmatprep.mubr.bf16.mxu0 0
    %590 = vmatmul.mubr.bf16.gmra.mxu0 %v389
    %v591 = vpop.f32.mrf.mxu0
    %v592 = vadd.f32 0.0, %v591
    %v593 = vpop.f32.mrf.mxu0
    %v594 = vpop.f32.mrf.mxu0
    %v595 = vadd.f32 0.0, %v594
    %v596 = vpop.f32.mrf.mxu0
    %597 = vmatprep.mubr.bf16.mxu0 0
    %598 = vmatmul.mubr.bf16.gmra.mxu0 %v390
    %v599 = vpop.f32.mrf.mxu0
    %v600 = vadd.f32 0.0, %v599
    %v601 = vpop.f32.mrf.mxu0
    %v602 = vpop.f32.mrf.mxu0
    %v603 = vadd.f32 0.0, %v602
    %v604 = vpop.f32.mrf.mxu0
    %605 = vmatprep.mubr.bf16.mxu0 0
    %606 = vmatmul.mubr.bf16.gmra.mxu0 %v391
    %v607 = vpop.f32.mrf.mxu0
    %v608 = vadd.f32 0.0, %v607
    %v609 = vpop.f32.mrf.mxu0
    %v610 = vpop.f32.mrf.mxu0
    %v611 = vadd.f32 0.0, %v610
    %v612 = vpop.f32.mrf.mxu0
    %613 = vmatprep.mubr.bf16.mxu0 0
    %614 = vmatmul.mubr.bf16.gmra.mxu0 %v392
    %v615 = vpop.f32.mrf.mxu0
    %v616 = vadd.f32 0.0, %v615
    %v617 = vpop.f32.mrf.mxu0
    %v618 = vpop.f32.mrf.mxu0
    %v619 = vadd.f32 0.0, %v618
    %v620 = vpop.f32.mrf.mxu0
    %621 = vmatprep.mubr.bf16.mxu0 0
    %622 = vmatmul.mubr.bf16.gmra.mxu0 %v393
    %v623 = vpop.f32.mrf.mxu0
    %v624 = vadd.f32 0.0, %v623
    %v625 = vpop.f32.mrf.mxu0
    %v626 = vpop.f32.mrf.mxu0
    %v627 = vadd.f32 0.0, %v626
    %v628 = vpop.f32.mrf.mxu0
    %629 = vmatprep.mubr.bf16.mxu0 0
    %630 = vmatmul.mubr.bf16.gmra.mxu0 %v394
    %v631 = vpop.f32.mrf.mxu0
    %v632 = vadd.f32 0.0, %v631
    %v633 = vpop.f32.mrf.mxu0
    %v634 = vpop.f32.mrf.mxu0
    %v635 = vadd.f32 0.0, %v634
    %v636 = vpop.f32.mrf.mxu0
    %637 = vmatprep.mubr.bf16.mxu0 0
    %638 = vmatmul.mubr.bf16.gmra.mxu0 %v395
    %v639 = vpop.f32.mrf.mxu0
    %v640 = vadd.f32 0.0, %v639
    %v641 = vpop.f32.mrf.mxu0
    %v642 = vpop.f32.mrf.mxu0
    %v643 = vadd.f32 0.0, %v642
    %v644 = vpop.f32.mrf.mxu0
    %645 = vmatprep.mubr.bf16.mxu0 0
    %646 = vmatmul.mubr.bf16.gmra.mxu0 %v396
    %v647 = vpop.f32.mrf.mxu0
    %v648 = vadd.f32 0.0, %v647
    %v649 = vpop.f32.mrf.mxu0
    %v650 = vpop.f32.mrf.mxu0
    %v651 = vadd.f32 0.0, %v650
    %v652 = vpop.f32.mrf.mxu0
    %653 = vmatprep.mubr.bf16.mxu0 0
    %654 = vmatmul.mubr.bf16.gmra.mxu0 %v397
    %v655 = vpop.f32.mrf.mxu0
    %v656 = vadd.f32 0.0, %v655
    %v657 = vpop.f32.mrf.mxu0
    %v658 = vpop.f32.mrf.mxu0
    %v659 = vadd.f32 0.0, %v658
    %v660 = vpop.f32.mrf.mxu0
    %661 = vmatprep.mubr.bf16.mxu0 0
    %662 = vmatmul.mubr.bf16.gmra.mxu0 %v398
    %v663 = vpop.f32.mrf.mxu0
    %v664 = vadd.f32 0.0, %v663
    %v665 = vpop.f32.mrf.mxu0
    %v666 = vpop.f32.mrf.mxu0
    %v667 = vadd.f32 0.0, %v666
    %v668 = vpop.f32.mrf.mxu0
    %669 = vmatprep.mubr.bf16.mxu0 0
    %670 = vmatmul.mubr.bf16.gmra.mxu0 %v399
    %v671 = vpop.f32.mrf.mxu0
    %v672 = vadd.f32 0.0, %v671
    %v673 = vpop.f32.mrf.mxu0
    %v674 = vpop.f32.mrf.mxu0
    %v675 = vadd.f32 0.0, %v674
    %v676 = vpop.f32.mrf.mxu0
    %677 = vmatprep.mubr.bf16.mxu0 0
    %678 = vmatmul.mubr.bf16.gmra.mxu0 %v400
    %v679 = vpop.f32.mrf.mxu0
    %v680 = vadd.f32 0.0, %v679
    %v681 = vpop.f32.mrf.mxu0
    %v682 = vpop.f32.mrf.mxu0
    %v683 = vadd.f32 0.0, %v682
    %v684 = vpop.f32.mrf.mxu0
    %685 = vmatprep.mubr.bf16.mxu0 0
    %686 = vmatmul.mubr.bf16.gmra.mxu0 %v401
    %v687 = vpop.f32.mrf.mxu0
    %v688 = vadd.f32 0.0, %v687
    %v689 = vpop.f32.mrf.mxu0
    %v690 = vpop.f32.mrf.mxu0
    %v691 = vadd.f32 0.0, %v690
    %v692 = vpop.f32.mrf.mxu0
    %693 = vmatprep.mubr.bf16.mxu0 0
    %694 = vmatmul.mubr.bf16.gmra.mxu0 %v402
    %v695 = vpop.f32.mrf.mxu0
    %v696 = vadd.f32 0.0, %v695
    %v697 = vpop.f32.mrf.mxu0
    %v698 = vpop.f32.mrf.mxu0
    %v699 = vadd.f32 0.0, %v698
    %v700 = vpop.f32.mrf.mxu0
    %701 = vmatprep.mubr.bf16.mxu0 0
    %702 = vmatmul.mubr.bf16.gmra.mxu0 %v403
    %v703 = vpop.f32.mrf.mxu0
    %v704 = vadd.f32 0.0, %v703
    %v705 = vpop.f32.mrf.mxu0
    %v706 = vpop.f32.mrf.mxu0
    %v707 = vadd.f32 0.0, %v706
    %v708 = vpop.f32.mrf.mxu0
    %709 = vmatprep.mubr.bf16.mxu0 0
    %710 = vmatmul.mubr.bf16.gmra.mxu0 %v404
    %v711 = vpop.f32.mrf.mxu0
    %v712 = vadd.f32 0.0, %v711
    %v713 = vpop.f32.mrf.mxu0
    %v714 = vpop.f32.mrf.mxu0
    %v715 = vadd.f32 0.0, %v714
    %v716 = vpop.f32.mrf.mxu0
    %717 = vmatprep.mubr.bf16.mxu0 0
    %718 = vmatmul.mubr.bf16.gmra.mxu0 %v405
    %v719 = vpop.f32.mrf.mxu0
    %v720 = vadd.f32 0.0, %v719
    %v721 = vpop.f32.mrf.mxu0
    %v722 = vpop.f32.mrf.mxu0
    %v723 = vadd.f32 0.0, %v722
    %v724 = vpop.f32.mrf.mxu0
    %725 = vmatprep.mubr.bf16.mxu0 0
    %726 = vmatmul.mubr.bf16.gmra.mxu0 %v406
    %v727 = vpop.f32.mrf.mxu0
    %v728 = vadd.f32 0.0, %v727
    %v729 = vpop.f32.mrf.mxu0
    %v730 = vpop.f32.mrf.mxu0
    %v731 = vadd.f32 0.0, %v730
    %v732 = vpop.f32.mrf.mxu0
    %733 = vmatprep.mubr.bf16.mxu0 0
    %734 = vmatmul.mubr.bf16.gmra.mxu0 %v407
    %v735 = vpop.f32.mrf.mxu0
    %v736 = vadd.f32 0.0, %v735
    %v737 = vpop.f32.mrf.mxu0
    %v738 = vpop.f32.mrf.mxu0
    %v739 = vadd.f32 0.0, %v738
    %v740 = vpop.f32.mrf.mxu0
    %741 = vmatprep.mubr.bf16.mxu0 0
    %742 = vmatmul.mubr.bf16.gmra.mxu0 %v408
    %v743 = vpop.f32.mrf.mxu0
    %v744 = vadd.f32 0.0, %v743
    %v745 = vpop.f32.mrf.mxu0
    %v746 = vpop.f32.mrf.mxu0
    %v747 = vadd.f32 0.0, %v746
    %v748 = vpop.f32.mrf.mxu0
    %749 = vmatprep.mubr.bf16.mxu0 0
    %750 = vmatmul.mubr.bf16.gmra.mxu0 %v409
    %v751 = vpop.f32.mrf.mxu0
    %v752 = vadd.f32 0.0, %v751
    %v753 = vpop.f32.mrf.mxu0
    %v754 = vpop.f32.mrf.mxu0
    %v755 = vadd.f32 0.0, %v754
    %v756 = vpop.f32.mrf.mxu0
    %757 = vmatprep.mubr.bf16.mxu0 0
    %758 = vmatmul.mubr.bf16.gmra.mxu0 %v410
    %v759 = vpop.f32.mrf.mxu0
    %v760 = vadd.f32 0.0, %v759
    %v761 = vpop.f32.mrf.mxu0
    %v762 = vpop.f32.mrf.mxu0
    %v763 = vadd.f32 0.0, %v762
    %v764 = vpop.f32.mrf.mxu0
    %765 = vmatprep.mubr.bf16.mxu0 0
    %766 = vmatmul.mubr.bf16.gmra.mxu0 %v411
    %v767 = vpop.f32.mrf.mxu0
    %v768 = vadd.f32 0.0, %v767
    %v769 = vpop.f32.mrf.mxu0
    %v770 = vpop.f32.mrf.mxu0
    %v771 = vadd.f32 0.0, %v770
    %v772 = vpop.f32.mrf.mxu0
    %773 = vmatprep.mubr.bf16.mxu0 0
    %774 = vmatmul.mubr.bf16.gmra.mxu0 %v412
    %v775 = vpop.f32.mrf.mxu0
    %v776 = vadd.f32 0.0, %v775
    %v777 = vpop.f32.mrf.mxu0
    %v778 = vpop.f32.mrf.mxu0
    %v779 = vadd.f32 0.0, %v778
    %v780 = vpop.f32.mrf.mxu0
    %781 = vdwg.mxu0
    %v782 = vadd.f32 %v109, %v528
    %v783 = vadd.f32 %v110, %v531
    %v784 = vadd.f32 %v111, %v536
    %v785 = vadd.f32 %v112, %v539
    %v786 = vadd.f32 %v113, %v544
    %v787 = vadd.f32 %v114, %v547
    %v788 = vadd.f32 %v115, %v552
    %v789 = vadd.f32 %v116, %v555
    %v790 = vadd.f32 %v117, %v560
    %v791 = vadd.f32 %v118, %v563
    %v792 = vadd.f32 %v119, %v568
    %v793 = vadd.f32 %v120, %v571
    %v794 = vadd.f32 %v121, %v576
    %v795 = vadd.f32 %v122, %v579
    %v796 = vadd.f32 %v123, %v584
    %v797 = vadd.f32 %v124, %v587
    %v798 = vadd.f32 %v125, %v592
    %v799 = vadd.f32 %v126, %v595
    %v800 = vadd.f32 %v127, %v600
    %v801 = vadd.f32 %v128, %v603
    %v802 = vadd.f32 %v129, %v608
    %v803 = vadd.f32 %v130, %v611
    %v804 = vadd.f32 %v131, %v616
    %v805 = vadd.f32 %v132, %v619
    %v806 = vadd.f32 %v133, %v624
    %v807 = vadd.f32 %v134, %v627
    %v808 = vadd.f32 %v135, %v632
    %v809 = vadd.f32 %v136, %v635
    %v810 = vadd.f32 %v137, %v640
    %v811 = vadd.f32 %v138, %v643
    %v812 = vadd.f32 %v139, %v648
    %v813 = vadd.f32 %v140, %v651
    %v814 = vadd.f32 %v141, %v656
    %v815 = vadd.f32 %v142, %v659
    %v816 = vadd.f32 %v143, %v664
    %v817 = vadd.f32 %v144, %v667
    %v818 = vadd.f32 %v145, %v672
    %v819 = vadd.f32 %v146, %v675
    %v820 = vadd.f32 %v147, %v680
    %v821 = vadd.f32 %v148, %v683
    %v822 = vadd.f32 %v149, %v688
    %v823 = vadd.f32 %v150, %v691
    %v824 = vadd.f32 %v151, %v696
    %v825 = vadd.f32 %v152, %v699
    %v826 = vadd.f32 %v153, %v704
    %v827 = vadd.f32 %v154, %v707
    %v828 = vadd.f32 %v155, %v712
    %v829 = vadd.f32 %v156, %v715
    %v830 = vadd.f32 %v157, %v720
    %v831 = vadd.f32 %v158, %v723
    %v832 = vadd.f32 %v159, %v728
    %v833 = vadd.f32 %v160, %v731
    %v834 = vadd.f32 %v161, %v736
    %v835 = vadd.f32 %v162, %v739
    %v836 = vadd.f32 %v163, %v744
    %v837 = vadd.f32 %v164, %v747
    %v838 = vadd.f32 %v165, %v752
    %v839 = vadd.f32 %v166, %v755
    %v840 = vadd.f32 %v167, %v760
    %v841 = vadd.f32 %v168, %v763
    %v842 = vadd.f32 %v169, %v768
    %v843 = vadd.f32 %v170, %v771
    %v844 = vadd.f32 %v171, %v776
    %v845 = vadd.f32 %v172, %v779
    %846 = vst [vmem:[#allocation2] sm:$0xff] %v782
    %847 = vst [vmem:[#allocation2 + $0x8] sm:$0xff] %v783
    %848 = vst [vmem:[#allocation2 + $0x10] sm:$0xff] %v784
    %849 = vst [vmem:[#allocation2 + $0x18] sm:$0xff] %v785
    %850 = vst [vmem:[#allocation2 + $0x20] sm:$0xff] %v786
    %851 = vst [vmem:[#allocation2 + $0x28] sm:$0xff] %v787
    %852 = vst [vmem:[#allocation2 + $0x30] sm:$0xff] %v788
    %853 = vst [vmem:[#allocation2 + $0x38] sm:$0xff] %v789
    %854 = vst [vmem:[#allocation2 + $0x40] sm:$0xff] %v790
    %855 = vst [vmem:[#allocation2 + $0x48] sm:$0xff] %v791
    %856 = vst [vmem:[#allocation2 + $0x50] sm:$0xff] %v792
    %857 = vst [vmem:[#allocation2 + $0x58] sm:$0xff] %v793
    %858 = vst [vmem:[#allocation2 + $0x60] sm:$0xff] %v794
    %859 = vst [vmem:[#allocation2 + $0x68] sm:$0xff] %v795
    %860 = vst [vmem:[#allocation2 + $0x70] sm:$0xff] %v796
    %861 = vst [vmem:[#allocation2 + $0x78] sm:$0xff] %v797
    %862 = vst [vmem:[#allocation2 + $0x80] sm:$0xff] %v798
    %863 = vst [vmem:[#allocation2 + $0x88] sm:$0xff] %v799
    %864 = vst [vmem:[#allocation2 + $0x90] sm:$0xff] %v800
    %865 = vst [vmem:[#allocation2 + $0x98] sm:$0xff] %v801
    %866 = vst [vmem:[#allocation2 + $0xa0] sm:$0xff] %v802
    %867 = vst [vmem:[#allocation2 + $0xa8] sm:$0xff] %v803
    %868 = vst [vmem:[#allocation2 + $0xb0] sm:$0xff] %v804
    %869 = vst [vmem:[#allocation2 + $0xb8] sm:$0xff] %v805
    %870 = vst [vmem:[#allocation2 + $0xc0] sm:$0xff] %v806
    %871 = vst [vmem:[#allocation2 + $0xc8] sm:$0xff] %v807
    %872 = vst [vmem:[#allocation2 + $0xd0] sm:$0xff] %v808
    %873 = vst [vmem:[#allocation2 + $0xd8] sm:$0xff] %v809
    %874 = vst [vmem:[#allocation2 + $0xe0] sm:$0xff] %v810
    %875 = vst [vmem:[#allocation2 + $0xe8] sm:$0xff] %v811
    %876 = vst [vmem:[#allocation2 + $0xf0] sm:$0xff] %v812
    %877 = vst [vmem:[#allocation2 + $0xf8] sm:$0xff] %v813
    %878 = vst [vmem:[#allocation2 + $0x100] sm:$0xff] %v814
    %879 = vst [vmem:[#allocation2 + $0x108] sm:$0xff] %v815
    %880 = vst [vmem:[#allocation2 + $0x110] sm:$0xff] %v816
    %881 = vst [vmem:[#allocation2 + $0x118] sm:$0xff] %v817
    %882 = vst [vmem:[#allocation2 + $0x120] sm:$0xff] %v818
    %883 = vst [vmem:[#allocation2 + $0x128] sm:$0xff] %v819
    %884 = vst [vmem:[#allocation2 + $0x130] sm:$0xff] %v820
    %885 = vst [vmem:[#allocation2 + $0x138] sm:$0xff] %v821
    %886 = vst [vmem:[#allocation2 + $0x140] sm:$0xff] %v822
    %887 = vst [vmem:[#allocation2 + $0x148] sm:$0xff] %v823
    %888 = vst [vmem:[#allocation2 + $0x150] sm:$0xff] %v824
    %889 = vst [vmem:[#allocation2 + $0x158] sm:$0xff] %v825
    %890 = vst [vmem:[#allocation2 + $0x160] sm:$0xff] %v826
    %891 = vst [vmem:[#allocation2 + $0x168] sm:$0xff] %v827
    %892 = vst [vmem:[#allocation2 + $0x170] sm:$0xff] %v828
    %893 = vst [vmem:[#allocation2 + $0x178] sm:$0xff] %v829
    %894 = vst [vmem:[#allocation2 + $0x180] sm:$0xff] %v830
    %895 = vst [vmem:[#allocation2 + $0x188] sm:$0xff] %v831
    %896 = vst [vmem:[#allocation2 + $0x190] sm:$0xff] %v832
    %897 = vst [vmem:[#allocation2 + $0x198] sm:$0xff] %v833
    %898 = vst [vmem:[#allocation2 + $0x1a0] sm:$0xff] %v834
    %899 = vst [vmem:[#allocation2 + $0x1a8] sm:$0xff] %v835
    %900 = vst [vmem:[#allocation2 + $0x1b0] sm:$0xff] %v836
    %901 = vst [vmem:[#allocation2 + $0x1b8] sm:$0xff] %v837
    %902 = vst [vmem:[#allocation2 + $0x1c0] sm:$0xff] %v838
    %903 = vst [vmem:[#allocation2 + $0x1c8] sm:$0xff] %v839
    %904 = vst [vmem:[#allocation2 + $0x1d0] sm:$0xff] %v840
    %905 = vst [vmem:[#allocation2 + $0x1d8] sm:$0xff] %v841
    %906 = vst [vmem:[#allocation2 + $0x1e0] sm:$0xff] %v842
    %907 = vst [vmem:[#allocation2 + $0x1e8] sm:$0xff] %v843
    %908 = vst [vmem:[#allocation2 + $0x1f0] sm:$0xff] %v844
    %909 = vst [vmem:[#allocation2 + $0x1f8] sm:$0xff] %v845
    // Predicated region
    $region26: #{_lambda_.16} parent=1 // pred_check
      %p910 = pneg %p41
    $region27: #{_lambda_.16} parent=1 // pred_check_branch
      %912 = sbr.rel (%p910) target = $region29
    $region28: #{_lambda_.16} parent=1 // pred_region
      %v913 = vld [vmem:[#allocation2] sm:$0xff]
      %v914 = vld [vmem:[#allocation2 + $0x8] sm:$0xff]
      %v915 = vld [vmem:[#allocation2 + $0x10] sm:$0xff]
      %v916 = vld [vmem:[#allocation2 + $0x18] sm:$0xff]
      %v917 = vld [vmem:[#allocation2 + $0x20] sm:$0xff]
      %v918 = vld [vmem:[#allocation2 + $0x28] sm:$0xff]
      %v919 = vld [vmem:[#allocation2 + $0x30] sm:$0xff]
      %v920 = vld [vmem:[#allocation2 + $0x38] sm:$0xff]
      %v921 = vld [vmem:[#allocation2 + $0x40] sm:$0xff]
      %v922 = vld [vmem:[#allocation2 + $0x48] sm:$0xff]
      %v923 = vld [vmem:[#allocation2 + $0x50] sm:$0xff]
      %v924 = vld [vmem:[#allocation2 + $0x58] sm:$0xff]
      %v925 = vld [vmem:[#allocation2 + $0x60] sm:$0xff]
      %v926 = vld [vmem:[#allocation2 + $0x68] sm:$0xff]
      %v927 = vld [vmem:[#allocation2 + $0x70] sm:$0xff]
      %v928 = vld [vmem:[#allocation2 + $0x78] sm:$0xff]
      %v929 = vld [vmem:[#allocation2 + $0x80] sm:$0xff]
      %v930 = vld [vmem:[#allocation2 + $0x88] sm:$0xff]
      %v931 = vld [vmem:[#allocation2 + $0x90] sm:$0xff]
      %v932 = vld [vmem:[#allocation2 + $0x98] sm:$0xff]
      %v933 = vld [vmem:[#allocation2 + $0xa0] sm:$0xff]
      %v934 = vld [vmem:[#allocation2 + $0xa8] sm:$0xff]
      %v935 = vld [vmem:[#allocation2 + $0xb0] sm:$0xff]
      %v936 = vld [vmem:[#allocation2 + $0xb8] sm:$0xff]
      %v937 = vld [vmem:[#allocation2 + $0xc0] sm:$0xff]
      %v938 = vld [vmem:[#allocation2 + $0xc8] sm:$0xff]
      %v939 = vld [vmem:[#allocation2 + $0xd0] sm:$0xff]
      %v940 = vld [vmem:[#allocation2 + $0xd8] sm:$0xff]
      %v941 = vld [vmem:[#allocation2 + $0xe0] sm:$0xff]
      %v942 = vld [vmem:[#allocation2 + $0xe8] sm:$0xff]
      %v943 = vld [vmem:[#allocation2 + $0xf0] sm:$0xff]
      %v944 = vld [vmem:[#allocation2 + $0xf8] sm:$0xff]
      %v945 = vld [vmem:[#allocation2 + $0x100] sm:$0xff]
      %v946 = vld [vmem:[#allocation2 + $0x108] sm:$0xff]
      %v947 = vld [vmem:[#allocation2 + $0x110] sm:$0xff]
      %v948 = vld [vmem:[#allocation2 + $0x118] sm:$0xff]
      %v949 = vld [vmem:[#allocation2 + $0x120] sm:$0xff]
      %v950 = vld [vmem:[#allocation2 + $0x128] sm:$0xff]
      %v951 = vld [vmem:[#allocation2 + $0x130] sm:$0xff]
      %v952 = vld [vmem:[#allocation2 + $0x138] sm:$0xff]
      %v953 = vld [vmem:[#allocation2 + $0x140] sm:$0xff]
      %v954 = vld [vmem:[#allocation2 + $0x148] sm:$0xff]
      %v955 = vld [vmem:[#allocation2 + $0x150] sm:$0xff]
      %v956 = vld [vmem:[#allocation2 + $0x158] sm:$0xff]
      %v957 = vld [vmem:[#allocation2 + $0x160] sm:$0xff]
      %v958 = vld [vmem:[#allocation2 + $0x168] sm:$0xff]
      %v959 = vld [vmem:[#allocation2 + $0x170] sm:$0xff]
      %v960 = vld [vmem:[#allocation2 + $0x178] sm:$0xff]
      %v961 = vld [vmem:[#allocation2 + $0x180] sm:$0xff]
      %v962 = vld [vmem:[#allocation2 + $0x188] sm:$0xff]
      %v963 = vld [vmem:[#allocation2 + $0x190] sm:$0xff]
      %v964 = vld [vmem:[#allocation2 + $0x198] sm:$0xff]
      %v965 = vld [vmem:[#allocation2 + $0x1a0] sm:$0xff]
      %v966 = vld [vmem:[#allocation2 + $0x1a8] sm:$0xff]
      %v967 = vld [vmem:[#allocation2 + $0x1b0] sm:$0xff]
      %v968 = vld [vmem:[#allocation2 + $0x1b8] sm:$0xff]
      %v969 = vld [vmem:[#allocation2 + $0x1c0] sm:$0xff]
      %v970 = vld [vmem:[#allocation2 + $0x1c8] sm:$0xff]
      %v971 = vld [vmem:[#allocation2 + $0x1d0] sm:$0xff]
      %v972 = vld [vmem:[#allocation2 + $0x1d8] sm:$0xff]
      %v973 = vld [vmem:[#allocation2 + $0x1e0] sm:$0xff]
      %v974 = vld [vmem:[#allocation2 + $0x1e8] sm:$0xff]
      %v975 = vld [vmem:[#allocation2 + $0x1f0] sm:$0xff]
      %v976 = vld [vmem:[#allocation2 + $0x1f8] sm:$0xff]
      %v977 = vld [vmem:[#allocation5] sm:$0x1]
      %v979 = vlaneseq
      %v980 = vshrl.u32 %v979, 7
      %v981 = vsub.s32 0, %v980
      %v982 = vrot.slane %v977, %v981
      %v984 = vadd.f32 %v913, %v982
      %v985 = vadd.f32 %v914, %v982
      %v986 = vadd.f32 %v915, %v982
      %v987 = vadd.f32 %v916, %v982
      %v988 = vadd.f32 %v917, %v982
      %v989 = vadd.f32 %v918, %v982
      %v990 = vadd.f32 %v919, %v982
      %v991 = vadd.f32 %v920, %v982
      %v992 = vadd.f32 %v921, %v982
      %v993 = vadd.f32 %v922, %v982
      %v994 = vadd.f32 %v923, %v982
      %v995 = vadd.f32 %v924, %v982
      %v996 = vadd.f32 %v925, %v982
      %v997 = vadd.f32 %v926, %v982
      %v998 = vadd.f32 %v927, %v982
      %v999 = vadd.f32 %v928, %v982
      %v1000 = vadd.f32 %v929, %v982
      %v1001 = vadd.f32 %v930, %v982
      %v1002 = vadd.f32 %v931, %v982
      %v1003 = vadd.f32 %v932, %v982
      %v1004 = vadd.f32 %v933, %v982
      %v1005 = vadd.f32 %v934, %v982
      %v1006 = vadd.f32 %v935, %v982
      %v1007 = vadd.f32 %v936, %v982
      %v1008 = vadd.f32 %v937, %v982
      %v1009 = vadd.f32 %v938, %v982
      %v1010 = vadd.f32 %v939, %v982
      %v1011 = vadd.f32 %v940, %v982
      %v1012 = vadd.f32 %v941, %v982
      %v1013 = vadd.f32 %v942, %v982
      %v1014 = vadd.f32 %v943, %v982
      %v1015 = vadd.f32 %v944, %v982
      %v1016 = vadd.f32 %v945, %v982
      %v1017 = vadd.f32 %v946, %v982
      %v1018 = vadd.f32 %v947, %v982
      %v1019 = vadd.f32 %v948, %v982
      %v1020 = vadd.f32 %v949, %v982
      %v1021 = vadd.f32 %v950, %v982
      %v1022 = vadd.f32 %v951, %v982
      %v1023 = vadd.f32 %v952, %v982
      %v1024 = vadd.f32 %v953, %v982
      %v1025 = vadd.f32 %v954, %v982
      %v1026 = vadd.f32 %v955, %v982
      %v1027 = vadd.f32 %v956, %v982
      %v1028 = vadd.f32 %v957, %v982
      %v1029 = vadd.f32 %v958, %v982
      %v1030 = vadd.f32 %v959, %v982
      %v1031 = vadd.f32 %v960, %v982
      %v1032 = vadd.f32 %v961, %v982
      %v1033 = vadd.f32 %v962, %v982
      %v1034 = vadd.f32 %v963, %v982
      %v1035 = vadd.f32 %v964, %v982
      %v1036 = vadd.f32 %v965, %v982
      %v1037 = vadd.f32 %v966, %v982
      %v1038 = vadd.f32 %v967, %v982
      %v1039 = vadd.f32 %v968, %v982
      %v1040 = vadd.f32 %v969, %v982
      %v1041 = vadd.f32 %v970, %v982
      %v1042 = vadd.f32 %v971, %v982
      %v1043 = vadd.f32 %v972, %v982
      %v1044 = vadd.f32 %v973, %v982
      %v1045 = vadd.f32 %v974, %v982
      %v1046 = vadd.f32 %v975, %v982
      %v1047 = vadd.f32 %v976, %v982
      %v1048 = vmax.f32 %v984, 0.0
      %v1049 = vmax.f32 %v985, 0.0
      %v1050 = vmax.f32 %v986, 0.0
      %v1051 = vmax.f32 %v987, 0.0
      %v1052 = vmax.f32 %v988, 0.0
      %v1053 = vmax.f32 %v989, 0.0
      %v1054 = vmax.f32 %v990, 0.0
      %v1055 = vmax.f32 %v991, 0.0
      %v1056 = vmax.f32 %v992, 0.0
      %v1057 = vmax.f32 %v993, 0.0
      %v1058 = vmax.f32 %v994, 0.0
      %v1059 = vmax.f32 %v995, 0.0
      %v1060 = vmax.f32 %v996, 0.0
      %v1061 = vmax.f32 %v997, 0.0
      %v1062 = vmax.f32 %v998, 0.0
      %v1063 = vmax.f32 %v999, 0.0
      %v1064 = vmax.f32 %v1000, 0.0
      %v1065 = vmax.f32 %v1001, 0.0
      %v1066 = vmax.f32 %v1002, 0.0
      %v1067 = vmax.f32 %v1003, 0.0
      %v1068 = vmax.f32 %v1004, 0.0
      %v1069 = vmax.f32 %v1005, 0.0
      %v1070 = vmax.f32 %v1006, 0.0
      %v1071 = vmax.f32 %v1007, 0.0
      %v1072 = vmax.f32 %v1008, 0.0
      %v1073 = vmax.f32 %v1009, 0.0
      %v1074 = vmax.f32 %v1010, 0.0
      %v1075 = vmax.f32 %v1011, 0.0
      %v1076 = vmax.f32 %v1012, 0.0
      %v1077 = vmax.f32 %v1013, 0.0
      %v1078 = vmax.f32 %v1014, 0.0
      %v1079 = vmax.f32 %v1015, 0.0
      %v1080 = vmax.f32 %v1016, 0.0
      %v1081 = vmax.f32 %v1017, 0.0
      %v1082 = vmax.f32 %v1018, 0.0
      %v1083 = vmax.f32 %v1019, 0.0
      %v1084 = vmax.f32 %v1020, 0.0
      %v1085 = vmax.f32 %v1021, 0.0
      %v1086 = vmax.f32 %v1022, 0.0
      %v1087 = vmax.f32 %v1023, 0.0
      %v1088 = vmax.f32 %v1024, 0.0
      %v1089 = vmax.f32 %v1025, 0.0
      %v1090 = vmax.f32 %v1026, 0.0
      %v1091 = vmax.f32 %v1027, 0.0
      %v1092 = vmax.f32 %v1028, 0.0
      %v1093 = vmax.f32 %v1029, 0.0
      %v1094 = vmax.f32 %v1030, 0.0
      %v1095 = vmax.f32 %v1031, 0.0
      %v1096 = vmax.f32 %v1032, 0.0
      %v1097 = vmax.f32 %v1033, 0.0
      %v1098 = vmax.f32 %v1034, 0.0
      %v1099 = vmax.f32 %v1035, 0.0
      %v1100 = vmax.f32 %v1036, 0.0
      %v1101 = vmax.f32 %v1037, 0.0
      %v1102 = vmax.f32 %v1038, 0.0
      %v1103 = vmax.f32 %v1039, 0.0
      %v1104 = vmax.f32 %v1040, 0.0
      %v1105 = vmax.f32 %v1041, 0.0
      %v1106 = vmax.f32 %v1042, 0.0
      %v1107 = vmax.f32 %v1043, 0.0
      %v1108 = vmax.f32 %v1044, 0.0
      %v1109 = vmax.f32 %v1045, 0.0
      %v1110 = vmax.f32 %v1046, 0.0
      %v1111 = vmax.f32 %v1047, 0.0
      %v1112 = vpack.c.bf16 %v1049, %v1048
      %v1113 = vpack.c.bf16 %v1051, %v1050
      %v1114 = vpack.c.bf16 %v1053, %v1052
      %v1115 = vpack.c.bf16 %v1055, %v1054
      %v1116 = vpack.c.bf16 %v1057, %v1056
      %v1117 = vpack.c.bf16 %v1059, %v1058
      %v1118 = vpack.c.bf16 %v1061, %v1060
      %v1119 = vpack.c.bf16 %v1063, %v1062
      %v1120 = vpack.c.bf16 %v1065, %v1064
      %v1121 = vpack.c.bf16 %v1067, %v1066
      %v1122 = vpack.c.bf16 %v1069, %v1068
      %v1123 = vpack.c.bf16 %v1071, %v1070
      %v1124 = vpack.c.bf16 %v1073, %v1072
      %v1125 = vpack.c.bf16 %v1075, %v1074
      %v1126 = vpack.c.bf16 %v1077, %v1076
      %v1127 = vpack.c.bf16 %v1079, %v1078
      %v1128 = vpack.c.bf16 %v1081, %v1080
      %v1129 = vpack.c.bf16 %v1083, %v1082
      %v1130 = vpack.c.bf16 %v1085, %v1084
      %v1131 = vpack.c.bf16 %v1087, %v1086
      %v1132 = vpack.c.bf16 %v1089, %v1088
      %v1133 = vpack.c.bf16 %v1091, %v1090
      %v1134 = vpack.c.bf16 %v1093, %v1092
      %v1135 = vpack.c.bf16 %v1095, %v1094
      %v1136 = vpack.c.bf16 %v1097, %v1096
      %v1137 = vpack.c.bf16 %v1099, %v1098
      %v1138 = vpack.c.bf16 %v1101, %v1100
      %v1139 = vpack.c.bf16 %v1103, %v1102
      %v1140 = vpack.c.bf16 %v1105, %v1104
      %v1141 = vpack.c.bf16 %v1107, %v1106
      %v1142 = vpack.c.bf16 %v1109, %v1108
      %v1143 = vpack.c.bf16 %v1111, %v1110
      %v1176 = vunpack.c.l.b16 %v1112
      %v1177 = vunpack.c.h.b16 %v1112
      %v1178 = vunpack.c.l.b16 %v1113
      %v1179 = vunpack.c.h.b16 %v1113
      %v1180 = vunpack.c.l.b16 %v1114
      %v1181 = vunpack.c.h.b16 %v1114
      %v1182 = vunpack.c.l.b16 %v1115
      %v1183 = vunpack.c.h.b16 %v1115
      %v1184 = vunpack.c.l.b16 %v1116
      %v1185 = vunpack.c.h.b16 %v1116
      %v1186 = vunpack.c.l.b16 %v1117
      %v1187 = vunpack.c.h.b16 %v1117
      %v1188 = vunpack.c.l.b16 %v1118
      %v1189 = vunpack.c.h.b16 %v1118
      %v1190 = vunpack.c.l.b16 %v1119
      %v1191 = vunpack.c.h.b16 %v1119
      %v1192 = vunpack.c.l.b16 %v1120
      %v1193 = vunpack.c.h.b16 %v1120
      %v1194 = vunpack.c.l.b16 %v1121
      %v1195 = vunpack.c.h.b16 %v1121
      %v1196 = vunpack.c.l.b16 %v1122
      %v1197 = vunpack.c.h.b16 %v1122
      %v1198 = vunpack.c.l.b16 %v1123
      %v1199 = vunpack.c.h.b16 %v1123
      %v1200 = vunpack.c.l.b16 %v1124
      %v1201 = vunpack.c.h.b16 %v1124
      %v1202 = vunpack.c.l.b16 %v1125
      %v1203 = vunpack.c.h.b16 %v1125
      %v1204 = vunpack.c.l.b16 %v1126
      %v1205 = vunpack.c.h.b16 %v1126
      %v1206 = vunpack.c.l.b16 %v1127
      %v1207 = vunpack.c.h.b16 %v1127
      %v1208 = vunpack.c.l.b16 %v1128
      %v1209 = vunpack.c.h.b16 %v1128
      %v1210 = vunpack.c.l.b16 %v1129
      %v1211 = vunpack.c.h.b16 %v1129
      %v1212 = vunpack.c.l.b16 %v1130
      %v1213 = vunpack.c.h.b16 %v1130
      %v1214 = vunpack.c.l.b16 %v1131
      %v1215 = vunpack.c.h.b16 %v1131
      %v1216 = vunpack.c.l.b16 %v1132
      %v1217 = vunpack.c.h.b16 %v1132
      %v1218 = vunpack.c.l.b16 %v1133
      %v1219 = vunpack.c.h.b16 %v1133
      %v1220 = vunpack.c.l.b16 %v1134
      %v1221 = vunpack.c.h.b16 %v1134
      %v1222 = vunpack.c.l.b16 %v1135
      %v1223 = vunpack.c.h.b16 %v1135
      %v1224 = vunpack.c.l.b16 %v1136
      %v1225 = vunpack.c.h.b16 %v1136
      %v1226 = vunpack.c.l.b16 %v1137
      %v1227 = vunpack.c.h.b16 %v1137
      %v1228 = vunpack.c.l.b16 %v1138
      %v1229 = vunpack.c.h.b16 %v1138
      %v1230 = vunpack.c.l.b16 %v1139
      %v1231 = vunpack.c.h.b16 %v1139
      %v1232 = vunpack.c.l.b16 %v1140
      %v1233 = vunpack.c.h.b16 %v1140
      %v1234 = vunpack.c.l.b16 %v1141
      %v1235 = vunpack.c.h.b16 %v1141
      %v1236 = vunpack.c.l.b16 %v1142
      %v1237 = vunpack.c.h.b16 %v1142
      %v1238 = vunpack.c.l.b16 %v1143
      %v1239 = vunpack.c.h.b16 %v1143
      %v1240 = vpack.c.b16 %v1176, %v1176
      %v1241 = vpack.c.b16 %v1177, %v1177
      %v1242 = vpack.c.b16 %v1178, %v1178
      %v1243 = vpack.c.b16 %v1179, %v1179
      %v1244 = vpack.c.b16 %v1180, %v1180
      %v1245 = vpack.c.b16 %v1181, %v1181
      %v1246 = vpack.c.b16 %v1182, %v1182
      %v1247 = vpack.c.b16 %v1183, %v1183
      %v1248 = vpack.c.b16 %v1184, %v1184
      %v1249 = vpack.c.b16 %v1185, %v1185
      %v1250 = vpack.c.b16 %v1186, %v1186
      %v1251 = vpack.c.b16 %v1187, %v1187
      %v1252 = vpack.c.b16 %v1188, %v1188
      %v1253 = vpack.c.b16 %v1189, %v1189
      %v1254 = vpack.c.b16 %v1190, %v1190
      %v1255 = vpack.c.b16 %v1191, %v1191
      %v1256 = vpack.c.b16 %v1192, %v1192
      %v1257 = vpack.c.b16 %v1193, %v1193
      %v1258 = vpack.c.b16 %v1194, %v1194
      %v1259 = vpack.c.b16 %v1195, %v1195
      %v1260 = vpack.c.b16 %v1196, %v1196
      %v1261 = vpack.c.b16 %v1197, %v1197
      %v1262 = vpack.c.b16 %v1198, %v1198
      %v1263 = vpack.c.b16 %v1199, %v1199
      %v1264 = vpack.c.b16 %v1200, %v1200
      %v1265 = vpack.c.b16 %v1201, %v1201
      %v1266 = vpack.c.b16 %v1202, %v1202
      %v1267 = vpack.c.b16 %v1203, %v1203
      %v1268 = vpack.c.b16 %v1204, %v1204
      %v1269 = vpack.c.b16 %v1205, %v1205
      %v1270 = vpack.c.b16 %v1206, %v1206
      %v1271 = vpack.c.b16 %v1207, %v1207
      %v1272 = vpack.c.b16 %v1208, %v1208
      %v1273 = vpack.c.b16 %v1209, %v1209
      %v1274 = vpack.c.b16 %v1210, %v1210
      %v1275 = vpack.c.b16 %v1211, %v1211
      %v1276 = vpack.c.b16 %v1212, %v1212
      %v1277 = vpack.c.b16 %v1213, %v1213
      %v1278 = vpack.c.b16 %v1214, %v1214
      %v1279 = vpack.c.b16 %v1215, %v1215
      %v1280 = vpack.c.b16 %v1216, %v1216
      %v1281 = vpack.c.b16 %v1217, %v1217
      %v1282 = vpack.c.b16 %v1218, %v1218
      %v1283 = vpack.c.b16 %v1219, %v1219
      %v1284 = vpack.c.b16 %v1220, %v1220
      %v1285 = vpack.c.b16 %v1221, %v1221
      %v1286 = vpack.c.b16 %v1222, %v1222
      %v1287 = vpack.c.b16 %v1223, %v1223
      %v1288 = vpack.c.b16 %v1224, %v1224
      %v1289 = vpack.c.b16 %v1225, %v1225
      %v1290 = vpack.c.b16 %v1226, %v1226
      %v1291 = vpack.c.b16 %v1227, %v1227
      %v1292 = vpack.c.b16 %v1228, %v1228
      %v1293 = vpack.c.b16 %v1229, %v1229
      %v1294 = vpack.c.b16 %v1230, %v1230
      %v1295 = vpack.c.b16 %v1231, %v1231
      %v1296 = vpack.c.b16 %v1232, %v1232
      %v1297 = vpack.c.b16 %v1233, %v1233
      %v1298 = vpack.c.b16 %v1234, %v1234
      %v1299 = vpack.c.b16 %v1235, %v1235
      %v1300 = vpack.c.b16 %v1236, %v1236
      %v1301 = vpack.c.b16 %v1237, %v1237
      %v1302 = vpack.c.b16 %v1238, %v1238
      %v1303 = vpack.c.b16 %v1239, %v1239
      %1368 = vst [vmem:[%s3] sm:$0xf] %v1240
      %1369 = vst [vmem:[%s3 + $0x4] sm:$0xf] %v1241
      %1370 = vst [vmem:[%s3 + $0x8] sm:$0xf] %v1242
      %1371 = vst [vmem:[%s3 + $0xc] sm:$0xf] %v1243
      %1372 = vst [vmem:[%s3 + $0x10] sm:$0xf] %v1244
      %1373 = vst [vmem:[%s3 + $0x14] sm:$0xf] %v1245
      %1374 = vst [vmem:[%s3 + $0x18] sm:$0xf] %v1246
      %1375 = vst [vmem:[%s3 + $0x1c] sm:$0xf] %v1247
      %1376 = vst [vmem:[%s3 + $0x20] sm:$0xf] %v1248
      %1377 = vst [vmem:[%s3 + $0x24] sm:$0xf] %v1249
      %1378 = vst [vmem:[%s3 + $0x28] sm:$0xf] %v1250
      %1379 = vst [vmem:[%s3 + $0x2c] sm:$0xf] %v1251
      %1380 = vst [vmem:[%s3 + $0x30] sm:$0xf] %v1252
      %1381 = vst [vmem:[%s3 + $0x34] sm:$0xf] %v1253
      %1382 = vst [vmem:[%s3 + $0x38] sm:$0xf] %v1254
      %1383 = vst [vmem:[%s3 + $0x3c] sm:$0xf] %v1255
      %1384 = vst [vmem:[%s3 + $0x40] sm:$0xf] %v1256
      %1385 = vst [vmem:[%s3 + $0x44] sm:$0xf] %v1257
      %1386 = vst [vmem:[%s3 + $0x48] sm:$0xf] %v1258
      %1387 = vst [vmem:[%s3 + $0x4c] sm:$0xf] %v1259
      %1388 = vst [vmem:[%s3 + $0x50] sm:$0xf] %v1260
      %1389 = vst [vmem:[%s3 + $0x54] sm:$0xf] %v1261
      %1390 = vst [vmem:[%s3 + $0x58] sm:$0xf] %v1262
      %1391 = vst [vmem:[%s3 + $0x5c] sm:$0xf] %v1263
      %1392 = vst [vmem:[%s3 + $0x60] sm:$0xf] %v1264
      %1393 = vst [vmem:[%s3 + $0x64] sm:$0xf] %v1265
      %1394 = vst [vmem:[%s3 + $0x68] sm:$0xf] %v1266
      %1395 = vst [vmem:[%s3 + $0x6c] sm:$0xf] %v1267
      %1396 = vst [vmem:[%s3 + $0x70] sm:$0xf] %v1268
      %1397 = vst [vmem:[%s3 + $0x74] sm:$0xf] %v1269
      %1398 = vst [vmem:[%s3 + $0x78] sm:$0xf] %v1270
      %1399 = vst [vmem:[%s3 + $0x7c] sm:$0xf] %v1271
      %1400 = vst [vmem:[%s3 + $0x80] sm:$0xf] %v1272
      %1401 = vst [vmem:[%s3 + $0x84] sm:$0xf] %v1273
      %1402 = vst [vmem:[%s3 + $0x88] sm:$0xf] %v1274
      %1403 = vst [vmem:[%s3 + $0x8c] sm:$0xf] %v1275
      %1404 = vst [vmem:[%s3 + $0x90] sm:$0xf] %v1276
      %1405 = vst [vmem:[%s3 + $0x94] sm:$0xf] %v1277
      %1406 = vst [vmem:[%s3 + $0x98] sm:$0xf] %v1278
      %1407 = vst [vmem:[%s3 + $0x9c] sm:$0xf] %v1279
      %1408 = vst [vmem:[%s3 + $0xa0] sm:$0xf] %v1280
      %1409 = vst [vmem:[%s3 + $0xa4] sm:$0xf] %v1281
      %1410 = vst [vmem:[%s3 + $0xa8] sm:$0xf] %v1282
      %1411 = vst [vmem:[%s3 + $0xac] sm:$0xf] %v1283
      %1412 = vst [vmem:[%s3 + $0xb0] sm:$0xf] %v1284
      %1413 = vst [vmem:[%s3 + $0xb4] sm:$0xf] %v1285
      %1414 = vst [vmem:[%s3 + $0xb8] sm:$0xf] %v1286
      %1415 = vst [vmem:[%s3 + $0xbc] sm:$0xf] %v1287
      %1416 = vst [vmem:[%s3 + $0xc0] sm:$0xf] %v1288
      %1417 = vst [vmem:[%s3 + $0xc4] sm:$0xf] %v1289
      %1418 = vst [vmem:[%s3 + $0xc8] sm:$0xf] %v1290
      %1419 = vst [vmem:[%s3 + $0xcc] sm:$0xf] %v1291
      %1420 = vst [vmem:[%s3 + $0xd0] sm:$0xf] %v1292
      %1421 = vst [vmem:[%s3 + $0xd4] sm:$0xf] %v1293
      %1422 = vst [vmem:[%s3 + $0xd8] sm:$0xf] %v1294
      %1423 = vst [vmem:[%s3 + $0xdc] sm:$0xf] %v1295
      %1424 = vst [vmem:[%s3 + $0xe0] sm:$0xf] %v1296
      %1425 = vst [vmem:[%s3 + $0xe4] sm:$0xf] %v1297
      %1426 = vst [vmem:[%s3 + $0xe8] sm:$0xf] %v1298
      %1427 = vst [vmem:[%s3 + $0xec] sm:$0xf] %v1299
      %1428 = vst [vmem:[%s3 + $0xf0] sm:$0xf] %v1300
      %1429 = vst [vmem:[%s3 + $0xf4] sm:$0xf] %v1301
      %1430 = vst [vmem:[%s3 + $0xf8] sm:$0xf] %v1302
      %1431 = vst [vmem:[%s3 + $0xfc] sm:$0xf] %v1303
    $region29: #{_lambda_.16} parent=1 // pred_fallthru
      _
    // Predicated region
    $region30: #{_lambda_.16} parent=1 // pred_check
      _
    $region31: #{_lambda_.16} parent=1 // pred_check_branch
      %1433 = sbr.rel (0) target = $region33
    $region32: #{_lambda_.16} parent=1 // pred_region
      _
    $region33: #{_lambda_.16} parent=1 // pred_fallthru
      _
    // Predicated region
    $region34: #{_lambda_.16} parent=1 // pred_check
      _
    $region35: #{_lambda_.16} parent=1 // pred_check_branch
      %1435 = sbr.rel (0) target = $region37
    $region36: #{_lambda_.16} parent=1 // pred_region
      _
    $region37: #{_lambda_.16} parent=1 // pred_fallthru
      _
    %1436 = vsyncpa [#allocation4], 1
    %1437 = vsyncpa [#allocation6], 1

// kernel: _lambda_.18
$region0: #{_lambda_.18}
  #allocation0 [shape = 'u32[]', space=smem, size = 0x4, offset = 0x4, fixed_abs, tag = 'smem constant byte address 0x4 - core index']
  #allocation1 [shape = 'u32[144,128]{1,0:T(1,128)}', space=vmem, size = 0x12000, scoped, tag = 'internal scratch']
  #allocation2 [shape = 'f32[128,128]{1,0:T(8,128)}', space=vmem, size = 0x10000, scoped, tag = 'scratch operand']
  %s0 = inlined_call_operand.vmem [shape: bf16[128,256], index: 0, kind: input, shape index: {}]
  %s1 = inlined_call_operand.vmem [shape: bf16[256,128], index: 1, kind: input, shape index: {}]
  %s2 = inlined_call_operand.vmem [shape: f32[1,128], index: 2, kind: input, shape index: {}]
  %s3 = inlined_call_operand.vmem [shape: bf16[128,128], index: 3, kind: output, shape index: {}]
  %s4 = sld [smem:[#allocation0]]
  $region30: #{_lambda_.18} parent=0
    _
  %s6 = ssub.s32 1, %s4
  %s7 = scalar_select 0, %s6, %s4
  // Predicated region
  $region2: #{_lambda_.18} parent=0 // pred_check
    _
  $region3: #{_lambda_.18} parent=0 // pred_check_branch
    %9 = sbr.rel (0) target = $region5
  $region4: #{_lambda_.18} parent=0 // pred_region
    _
  $region5: #{_lambda_.18} parent=0 // pred_fallthru
    _
  // Predicated region
  $region6: #{_lambda_.18} parent=0 // pred_check
    _
  $region7: #{_lambda_.18} parent=0 // pred_check_branch
    %11 = sbr.rel (0) target = $region9
  $region8: #{_lambda_.18} parent=0 // pred_region
    _
  $region9: #{_lambda_.18} parent=0 // pred_fallthru
    _
  // Predicated region
  $region10: #{_lambda_.18} parent=0 // pred_check
    _
  $region11: #{_lambda_.18} parent=0 // pred_check_branch
    %13 = sbr.rel (0) target = $region13
  $region12: #{_lambda_.18} parent=0 // pred_region
    _
  $region13: #{_lambda_.18} parent=0 // pred_fallthru
    _
  %p15 = scmp.eq.s32.totalorder 0, 0
  // Predicated region
  $region14: #{_lambda_.18} parent=0 // pred_check
    %p16 = pneg %p15
  $region15: #{_lambda_.18} parent=0 // pred_check_branch
    %18 = sbr.rel (%p16) target = $region17
  $region16: #{_lambda_.18} parent=0 // pred_region
    %19 = vst [vmem:[#allocation2] sm:$0xff] 0.0
    %20 = vst [vmem:[#allocation2 + $0x8] sm:$0xff] 0.0
    %21 = vst [vmem:[#allocation2 + $0x10] sm:$0xff] 0.0
    %22 = vst [vmem:[#allocation2 + $0x18] sm:$0xff] 0.0
    %23 = vst [vmem:[#allocation2 + $0x20] sm:$0xff] 0.0
    %24 = vst [vmem:[#allocation2 + $0x28] sm:$0xff] 0.0
    %25 = vst [vmem:[#allocation2 + $0x30] sm:$0xff] 0.0
    %26 = vst [vmem:[#allocation2 + $0x38] sm:$0xff] 0.0
    %27 = vst [vmem:[#allocation2 + $0x40] sm:$0xff] 0.0
    %28 = vst [vmem:[#allocation2 + $0x48] sm:$0xff] 0.0
    %29 = vst [vmem:[#allocation2 + $0x50] sm:$0xff] 0.0
    %30 = vst [vmem:[#allocation2 + $0x58] sm:$0xff] 0.0
    %31 = vst [vmem:[#allocation2 + $0x60] sm:$0xff] 0.0
    %32 = vst [vmem:[#allocation2 + $0x68] sm:$0xff] 0.0
    %33 = vst [vmem:[#allocation2 + $0x70] sm:$0xff] 0.0
    %34 = vst [vmem:[#allocation2 + $0x78] sm:$0xff] 0.0
  $region17: #{_lambda_.18} parent=0 // pred_fallthru
    _
  %v35 = vld [vmem:[#allocation2] sm:$0xff]
  %v36 = vld [vmem:[#allocation2 + $0x8] sm:$0xff]
  %v37 = vld [vmem:[#allocation2 + $0x10] sm:$0xff]
  %v38 = vld [vmem:[#allocation2 + $0x18] sm:$0xff]
  %v39 = vld [vmem:[#allocation2 + $0x20] sm:$0xff]
  %v40 = vld [vmem:[#allocation2 + $0x28] sm:$0xff]
  %v41 = vld [vmem:[#allocation2 + $0x30] sm:$0xff]
  %v42 = vld [vmem:[#allocation2 + $0x38] sm:$0xff]
  %v43 = vld [vmem:[#allocation2 + $0x40] sm:$0xff]
  %v44 = vld [vmem:[#allocation2 + $0x48] sm:$0xff]
  %v45 = vld [vmem:[#allocation2 + $0x50] sm:$0xff]
  %v46 = vld [vmem:[#allocation2 + $0x58] sm:$0xff]
  %v47 = vld [vmem:[#allocation2 + $0x60] sm:$0xff]
  %v48 = vld [vmem:[#allocation2 + $0x68] sm:$0xff]
  %v49 = vld [vmem:[#allocation2 + $0x70] sm:$0xff]
  %v50 = vld [vmem:[#allocation2 + $0x78] sm:$0xff]
  %v51 = vld [vmem:[%s0] sm:$0xff]
  %v52 = vld [vmem:[%s0 + $0x8] sm:$0xff]
  %v53 = vld [vmem:[%s0 + $0x10] sm:$0xff]
  %v54 = vld [vmem:[%s0 + $0x18] sm:$0xff]
  %v55 = vld [vmem:[%s0 + $0x20] sm:$0xff]
  %v56 = vld [vmem:[%s0 + $0x28] sm:$0xff]
  %v57 = vld [vmem:[%s0 + $0x30] sm:$0xff]
  %v58 = vld [vmem:[%s0 + $0x38] sm:$0xff]
  %v59 = vld [vmem:[%s0 + $0x40] sm:$0xff]
  %v60 = vld [vmem:[%s0 + $0x48] sm:$0xff]
  %v61 = vld [vmem:[%s0 + $0x50] sm:$0xff]
  %v62 = vld [vmem:[%s0 + $0x58] sm:$0xff]
  %v63 = vld [vmem:[%s0 + $0x60] sm:$0xff]
  %v64 = vld [vmem:[%s0 + $0x68] sm:$0xff]
  %v65 = vld [vmem:[%s0 + $0x70] sm:$0xff]
  %v66 = vld [vmem:[%s0 + $0x78] sm:$0xff]
  %v67 = vld [vmem:[%s1] sm:$0xf]
  %v68 = vld [vmem:[%s1 + $0x4] sm:$0xf]
  %v69 = vld [vmem:[%s1 + $0x8] sm:$0xf]
  %v70 = vld [vmem:[%s1 + $0xc] sm:$0xf]
  %v71 = vld [vmem:[%s1 + $0x10] sm:$0xf]
  %v72 = vld [vmem:[%s1 + $0x14] sm:$0xf]
  %v73 = vld [vmem:[%s1 + $0x18] sm:$0xf]
  %v74 = vld [vmem:[%s1 + $0x1c] sm:$0xf]
  %v75 = vld [vmem:[%s1 + $0x20] sm:$0xf]
  %v76 = vld [vmem:[%s1 + $0x24] sm:$0xf]
  %v77 = vld [vmem:[%s1 + $0x28] sm:$0xf]
  %v78 = vld [vmem:[%s1 + $0x2c] sm:$0xf]
  %v79 = vld [vmem:[%s1 + $0x30] sm:$0xf]
  %v80 = vld [vmem:[%s1 + $0x34] sm:$0xf]
  %v81 = vld [vmem:[%s1 + $0x38] sm:$0xf]
  %v82 = vld [vmem:[%s1 + $0x3c] sm:$0xf]
  %v83 = vld [vmem:[%s1 + $0x40] sm:$0xf]
  %v84 = vld [vmem:[%s1 + $0x44] sm:$0xf]
  %v85 = vld [vmem:[%s1 + $0x48] sm:$0xf]
  %v86 = vld [vmem:[%s1 + $0x4c] sm:$0xf]
  %v87 = vld [vmem:[%s1 + $0x50] sm:$0xf]
  %v88 = vld [vmem:[%s1 + $0x54] sm:$0xf]
  %v89 = vld [vmem:[%s1 + $0x58] sm:$0xf]
  %v90 = vld [vmem:[%s1 + $0x5c] sm:$0xf]
  %v91 = vld [vmem:[%s1 + $0x60] sm:$0xf]
  %v92 = vld [vmem:[%s1 + $0x64] sm:$0xf]
  %v93 = vld [vmem:[%s1 + $0x68] sm:$0xf]
  %v94 = vld [vmem:[%s1 + $0x6c] sm:$0xf]
  %v95 = vld [vmem:[%s1 + $0x70] sm:$0xf]
  %v96 = vld [vmem:[%s1 + $0x74] sm:$0xf]
  %v97 = vld [vmem:[%s1 + $0x78] sm:$0xf]
  %v98 = vld [vmem:[%s1 + $0x7c] sm:$0xf]
  %v115 = vunpack.c.l.b16 %v51
  %v116 = vunpack.c.h.b16 %v51
  %v117 = vunpack.c.l.b16 %v52
  %v118 = vunpack.c.h.b16 %v52
  %v119 = vunpack.c.l.b16 %v53
  %v120 = vunpack.c.h.b16 %v53
  %v121 = vunpack.c.l.b16 %v54
  %v122 = vunpack.c.h.b16 %v54
  %v123 = vunpack.c.l.b16 %v55
  %v124 = vunpack.c.h.b16 %v55
  %v125 = vunpack.c.l.b16 %v56
  %v126 = vunpack.c.h.b16 %v56
  %v127 = vunpack.c.l.b16 %v57
  %v128 = vunpack.c.h.b16 %v57
  %v129 = vunpack.c.l.b16 %v58
  %v130 = vunpack.c.h.b16 %v58
  %v131 = vunpack.c.l.b16 %v59
  %v132 = vunpack.c.h.b16 %v59
  %v133 = vunpack.c.l.b16 %v60
  %v134 = vunpack.c.h.b16 %v60
  %v135 = vunpack.c.l.b16 %v61
  %v136 = vunpack.c.h.b16 %v61
  %v137 = vunpack.c.l.b16 %v62
  %v138 = vunpack.c.h.b16 %v62
  %v139 = vunpack.c.l.b16 %v63
  %v140 = vunpack.c.h.b16 %v63
  %v141 = vunpack.c.l.b16 %v64
  %v142 = vunpack.c.h.b16 %v64
  %v143 = vunpack.c.l.b16 %v65
  %v144 = vunpack.c.h.b16 %v65
  %v145 = vunpack.c.l.b16 %v66
  %v146 = vunpack.c.h.b16 %v66
  %v147 = vpack.c.b16 %v117, %v115
  %v148 = vpack.c.b16 %v118, %v116
  %v149 = vpack.c.b16 %v121, %v119
  %v150 = vpack.c.b16 %v122, %v120
  %v151 = vpack.c.b16 %v125, %v123
  %v152 = vpack.c.b16 %v126, %v124
  %v153 = vpack.c.b16 %v129, %v127
  %v154 = vpack.c.b16 %v130, %v128
  %v155 = vpack.c.b16 %v133, %v131
  %v156 = vpack.c.b16 %v134, %v132
  %v157 = vpack.c.b16 %v137, %v135
  %v158 = vpack.c.b16 %v138, %v136
  %v159 = vpack.c.b16 %v141, %v139
  %v160 = vpack.c.b16 %v142, %v140
  %v161 = vpack.c.b16 %v145, %v143
  %v162 = vpack.c.b16 %v146, %v144
  %v211 = vunpack.c.l.b16 %v67
  %v212 = vunpack.c.l.b16 %v68
  %v213 = vunpack.c.l.b16 %v69
  %v214 = vunpack.c.l.b16 %v70
  %v215 = vunpack.c.l.b16 %v71
  %v216 = vunpack.c.l.b16 %v72
  %v217 = vunpack.c.l.b16 %v73
  %v218 = vunpack.c.l.b16 %v74
  %v219 = vunpack.c.l.b16 %v75
  %v220 = vunpack.c.l.b16 %v76
  %v221 = vunpack.c.l.b16 %v77
  %v222 = vunpack.c.l.b16 %v78
  %v223 = vunpack.c.l.b16 %v79
  %v224 = vunpack.c.l.b16 %v80
  %v225 = vunpack.c.l.b16 %v81
  %v226 = vunpack.c.l.b16 %v82
  %v227 = vunpack.c.l.b16 %v83
  %v228 = vunpack.c.l.b16 %v84
  %v229 = vunpack.c.l.b16 %v85
  %v230 = vunpack.c.l.b16 %v86
  %v231 = vunpack.c.l.b16 %v87
  %v232 = vunpack.c.l.b16 %v88
  %v233 = vunpack.c.l.b16 %v89
  %v234 = vunpack.c.l.b16 %v90
  %v235 = vunpack.c.l.b16 %v91
  %v236 = vunpack.c.l.b16 %v92
  %v237 = vunpack.c.l.b16 %v93
  %v238 = vunpack.c.l.b16 %v94
  %v239 = vunpack.c.l.b16 %v95
  %v240 = vunpack.c.l.b16 %v96
  %v241 = vunpack.c.l.b16 %v97
  %v242 = vunpack.c.l.b16 %v98
  %v243 = vpack.c.b16 %v212, %v211
  %v244 = vpack.c.b16 %v214, %v213
  %v245 = vpack.c.b16 %v216, %v215
  %v246 = vpack.c.b16 %v218, %v217
  %v247 = vpack.c.b16 %v220, %v219
  %v248 = vpack.c.b16 %v222, %v221
  %v249 = vpack.c.b16 %v224, %v223
  %v250 = vpack.c.b16 %v226, %v225
  %v251 = vpack.c.b16 %v228, %v227
  %v252 = vpack.c.b16 %v230, %v229
  %v253 = vpack.c.b16 %v232, %v231
  %v254 = vpack.c.b16 %v234, %v233
  %v255 = vpack.c.b16 %v236, %v235
  %v256 = vpack.c.b16 %v238, %v237
  %v257 = vpack.c.b16 %v240, %v239
  %v258 = vpack.c.b16 %v242, %v241
  %275 = vmatprep.subr.bf16.mxu0 0
  %276 = vmatpush1.bf16.msra.mxu0 %v250
  %277 = vmatprep.subr.bf16.mxu0 0
  %278 = vmatpush1.bf16.msra.mxu0 %v249
  %279 = vmatprep.subr.bf16.mxu0 0
  %280 = vmatpush1.bf16.msra.mxu0 %v248
  %281 = vmatprep.subr.bf16.mxu0 0
  %282 = vmatpush1.bf16.msra.mxu0 %v247
  %283 = vmatprep.subr.bf16.mxu0 0
  %284 = vmatpush1.bf16.msra.mxu0 %v246
  %285 = vmatprep.subr.bf16.mxu0 0
  %286 = vmatpush1.bf16.msra.mxu0 %v245
  %287 = vmatprep.subr.bf16.mxu0 0
  %288 = vmatpush1.bf16.msra.mxu0 %v244
  %289 = vmatprep.subr.bf16.mxu0 0
  %290 = vmatpush1.bf16.msra.mxu0 %v243
  %291 = vmatprep.subr.bf16.mxu0 0
  %292 = vmatpush2.bf16.msra.mxu0 %v258
  %293 = vmatprep.subr.bf16.mxu0 0
  %294 = vmatpush2.bf16.msra.mxu0 %v257
  %295 = vmatprep.subr.bf16.mxu0 0
  %296 = vmatpush2.bf16.msra.mxu0 %v256
  %297 = vmatprep.subr.bf16.mxu0 0
  %298 = vmatpush2.bf16.msra.mxu0 %v255
  %299 = vmatprep.subr.bf16.mxu0 0
  %300 = vmatpush2.bf16.msra.mxu0 %v254
  %301 = vmatprep.subr.bf16.mxu0 0
  %302 = vmatpush2.bf16.msra.mxu0 %v253
  %303 = vmatprep.subr.bf16.mxu0 0
  %304 = vmatpush2.bf16.msra.mxu0 %v252
  %305 = vmatprep.subr.bf16.mxu0 0
  %306 = vmatpush2.bf16.msra.mxu0 %v251
  %307 = vmatprep.mubr.bf16.mxu0 %v148
  %308 = vmatmul.mubr.bf16.gmra.mxu0 %v147
  %v309 = vpop.f32.mrf.mxu0
  %v310 = vadd.f32 0.0, %v309
  %v311 = vpop.f32.mrf.mxu0
  %v312 = vpop.f32.mrf.mxu0
  %v313 = vadd.f32 0.0, %v312
  %v314 = vpop.f32.mrf.mxu0
  %315 = vmatprep.mubr.bf16.mxu0 %v150
  %316 = vmatmul.mubr.bf16.gmra.mxu0 %v149
  %v317 = vpop.f32.mrf.mxu0
  %v318 = vadd.f32 0.0, %v317
  %v319 = vpop.f32.mrf.mxu0
  %v320 = vpop.f32.mrf.mxu0
  %v321 = vadd.f32 0.0, %v320
  %v322 = vpop.f32.mrf.mxu0
  %323 = vmatprep.mubr.bf16.mxu0 %v152
  %324 = vmatmul.mubr.bf16.gmra.mxu0 %v151
  %v325 = vpop.f32.mrf.mxu0
  %v326 = vadd.f32 0.0, %v325
  %v327 = vpop.f32.mrf.mxu0
  %v328 = vpop.f32.mrf.mxu0
  %v329 = vadd.f32 0.0, %v328
  %v330 = vpop.f32.mrf.mxu0
  %331 = vmatprep.mubr.bf16.mxu0 %v154
  %332 = vmatmul.mubr.bf16.gmra.mxu0 %v153
  %v333 = vpop.f32.mrf.mxu0
  %v334 = vadd.f32 0.0, %v333
  %v335 = vpop.f32.mrf.mxu0
  %v336 = vpop.f32.mrf.mxu0
  %v337 = vadd.f32 0.0, %v336
  %v338 = vpop.f32.mrf.mxu0
  %339 = vmatprep.mubr.bf16.mxu0 %v156
  %340 = vmatmul.mubr.bf16.gmra.mxu0 %v155
  %v341 = vpop.f32.mrf.mxu0
  %v342 = vadd.f32 0.0, %v341
  %v343 = vpop.f32.mrf.mxu0
  %v344 = vpop.f32.mrf.mxu0
  %v345 = vadd.f32 0.0, %v344
  %v346 = vpop.f32.mrf.mxu0
  %347 = vmatprep.mubr.bf16.mxu0 %v158
  %348 = vmatmul.mubr.bf16.gmra.mxu0 %v157
  %v349 = vpop.f32.mrf.mxu0
  %v350 = vadd.f32 0.0, %v349
  %v351 = vpop.f32.mrf.mxu0
  %v352 = vpop.f32.mrf.mxu0
  %v353 = vadd.f32 0.0, %v352
  %v354 = vpop.f32.mrf.mxu0
  %355 = vmatprep.mubr.bf16.mxu0 %v160
  %356 = vmatmul.mubr.bf16.gmra.mxu0 %v159
  %v357 = vpop.f32.mrf.mxu0
  %v358 = vadd.f32 0.0, %v357
  %v359 = vpop.f32.mrf.mxu0
  %v360 = vpop.f32.mrf.mxu0
  %v361 = vadd.f32 0.0, %v360
  %v362 = vpop.f32.mrf.mxu0
  %363 = vmatprep.mubr.bf16.mxu0 %v162
  %364 = vmatmul.mubr.bf16.gmra.mxu0 %v161
  %v365 = vpop.f32.mrf.mxu0
  %v366 = vadd.f32 0.0, %v365
  %v367 = vpop.f32.mrf.mxu0
  %v368 = vpop.f32.mrf.mxu0
  %v369 = vadd.f32 0.0, %v368
  %v370 = vpop.f32.mrf.mxu0
  %371 = vdwg.mxu0
  %v372 = vadd.f32 %v35, %v310
  %v373 = vadd.f32 %v36, %v313
  %v374 = vadd.f32 %v37, %v318
  %v375 = vadd.f32 %v38, %v321
  %v376 = vadd.f32 %v39, %v326
  %v377 = vadd.f32 %v40, %v329
  %v378 = vadd.f32 %v41, %v334
  %v379 = vadd.f32 %v42, %v337
  %v380 = vadd.f32 %v43, %v342
  %v381 = vadd.f32 %v44, %v345
  %v382 = vadd.f32 %v45, %v350
  %v383 = vadd.f32 %v46, %v353
  %v384 = vadd.f32 %v47, %v358
  %v385 = vadd.f32 %v48, %v361
  %v386 = vadd.f32 %v49, %v366
  %v387 = vadd.f32 %v50, %v369
  %388 = vst [vmem:[#allocation2] sm:$0xff] %v372
  %389 = vst [vmem:[#allocation2 + $0x8] sm:$0xff] %v373
  %390 = vst [vmem:[#allocation2 + $0x10] sm:$0xff] %v374
  %391 = vst [vmem:[#allocation2 + $0x18] sm:$0xff] %v375
  %392 = vst [vmem:[#allocation2 + $0x20] sm:$0xff] %v376
  %393 = vst [vmem:[#allocation2 + $0x28] sm:$0xff] %v377
  %394 = vst [vmem:[#allocation2 + $0x30] sm:$0xff] %v378
  %395 = vst [vmem:[#allocation2 + $0x38] sm:$0xff] %v379
  %396 = vst [vmem:[#allocation2 + $0x40] sm:$0xff] %v380
  %397 = vst [vmem:[#allocation2 + $0x48] sm:$0xff] %v381
  %398 = vst [vmem:[#allocation2 + $0x50] sm:$0xff] %v382
  %399 = vst [vmem:[#allocation2 + $0x58] sm:$0xff] %v383
  %400 = vst [vmem:[#allocation2 + $0x60] sm:$0xff] %v384
  %401 = vst [vmem:[#allocation2 + $0x68] sm:$0xff] %v385
  %402 = vst [vmem:[#allocation2 + $0x70] sm:$0xff] %v386
  %403 = vst [vmem:[#allocation2 + $0x78] sm:$0xff] %v387
  // Predicated region
  $region18: #{_lambda_.18} parent=0 // pred_check
    %p404 = pneg %p15
  $region19: #{_lambda_.18} parent=0 // pred_check_branch
    %406 = sbr.rel (%p404) target = $region21
  $region20: #{_lambda_.18} parent=0 // pred_region
    %v407 = vld [vmem:[#allocation2] sm:$0xff]
    %v408 = vld [vmem:[#allocation2 + $0x8] sm:$0xff]
    %v409 = vld [vmem:[#allocation2 + $0x10] sm:$0xff]
    %v410 = vld [vmem:[#allocation2 + $0x18] sm:$0xff]
    %v411 = vld [vmem:[#allocation2 + $0x20] sm:$0xff]
    %v412 = vld [vmem:[#allocation2 + $0x28] sm:$0xff]
    %v413 = vld [vmem:[#allocation2 + $0x30] sm:$0xff]
    %v414 = vld [vmem:[#allocation2 + $0x38] sm:$0xff]
    %v415 = vld [vmem:[#allocation2 + $0x40] sm:$0xff]
    %v416 = vld [vmem:[#allocation2 + $0x48] sm:$0xff]
    %v417 = vld [vmem:[#allocation2 + $0x50] sm:$0xff]
    %v418 = vld [vmem:[#allocation2 + $0x58] sm:$0xff]
    %v419 = vld [vmem:[#allocation2 + $0x60] sm:$0xff]
    %v420 = vld [vmem:[#allocation2 + $0x68] sm:$0xff]
    %v421 = vld [vmem:[#allocation2 + $0x70] sm:$0xff]
    %v422 = vld [vmem:[#allocation2 + $0x78] sm:$0xff]
    %v423 = vld [vmem:[%s2] sm:$0x1]
    %v425 = vlaneseq
    %v426 = vshrl.u32 %v425, 7
    %v427 = vsub.s32 0, %v426
    %v428 = vrot.slane %v423, %v427
    %v430 = vadd.f32 %v407, %v428
    %v431 = vadd.f32 %v408, %v428
    %v432 = vadd.f32 %v409, %v428
    %v433 = vadd.f32 %v410, %v428
    %v434 = vadd.f32 %v411, %v428
    %v435 = vadd.f32 %v412, %v428
    %v436 = vadd.f32 %v413, %v428
    %v437 = vadd.f32 %v414, %v428
    %v438 = vadd.f32 %v415, %v428
    %v439 = vadd.f32 %v416, %v428
    %v440 = vadd.f32 %v417, %v428
    %v441 = vadd.f32 %v418, %v428
    %v442 = vadd.f32 %v419, %v428
    %v443 = vadd.f32 %v420, %v428
    %v444 = vadd.f32 %v421, %v428
    %v445 = vadd.f32 %v422, %v428
    %v446 = vmax.f32 %v430, 0.0
    %v447 = vmax.f32 %v431, 0.0
    %v448 = vmax.f32 %v432, 0.0
    %v449 = vmax.f32 %v433, 0.0
    %v450 = vmax.f32 %v434, 0.0
    %v451 = vmax.f32 %v435, 0.0
    %v452 = vmax.f32 %v436, 0.0
    %v453 = vmax.f32 %v437, 0.0
    %v454 = vmax.f32 %v438, 0.0
    %v455 = vmax.f32 %v439, 0.0
    %v456 = vmax.f32 %v440, 0.0
    %v457 = vmax.f32 %v441, 0.0
    %v458 = vmax.f32 %v442, 0.0
    %v459 = vmax.f32 %v443, 0.0
    %v460 = vmax.f32 %v444, 0.0
    %v461 = vmax.f32 %v445, 0.0
    %v462 = vpack.c.bf16 %v447, %v446
    %v463 = vpack.c.bf16 %v449, %v448
    %v464 = vpack.c.bf16 %v451, %v450
    %v465 = vpack.c.bf16 %v453, %v452
    %v466 = vpack.c.bf16 %v455, %v454
    %v467 = vpack.c.bf16 %v457, %v456
    %v468 = vpack.c.bf16 %v459, %v458
    %v469 = vpack.c.bf16 %v461, %v460
    %v478 = vunpack.c.l.b16 %v462
    %v479 = vunpack.c.h.b16 %v462
    %v480 = vunpack.c.l.b16 %v463
    %v481 = vunpack.c.h.b16 %v463
    %v482 = vunpack.c.l.b16 %v464
    %v483 = vunpack.c.h.b16 %v464
    %v484 = vunpack.c.l.b16 %v465
    %v485 = vunpack.c.h.b16 %v465
    %v486 = vunpack.c.l.b16 %v466
    %v487 = vunpack.c.h.b16 %v466
    %v488 = vunpack.c.l.b16 %v467
    %v489 = vunpack.c.h.b16 %v467
    %v490 = vunpack.c.l.b16 %v468
    %v491 = vunpack.c.h.b16 %v468
    %v492 = vunpack.c.l.b16 %v469
    %v493 = vunpack.c.h.b16 %v469
    %v494 = vpack.c.b16 %v478, %v478
    %v495 = vpack.c.b16 %v479, %v479
    %v496 = vpack.c.b16 %v480, %v480
    %v497 = vpack.c.b16 %v481, %v481
    %v498 = vpack.c.b16 %v482, %v482
    %v499 = vpack.c.b16 %v483, %v483
    %v500 = vpack.c.b16 %v484, %v484
    %v501 = vpack.c.b16 %v485, %v485
    %v502 = vpack.c.b16 %v486, %v486
    %v503 = vpack.c.b16 %v487, %v487
    %v504 = vpack.c.b16 %v488, %v488
    %v505 = vpack.c.b16 %v489, %v489
    %v506 = vpack.c.b16 %v490, %v490
    %v507 = vpack.c.b16 %v491, %v491
    %v508 = vpack.c.b16 %v492, %v492
    %v509 = vpack.c.b16 %v493, %v493
    %526 = vst [vmem:[%s3] sm:$0xf] %v494
    %527 = vst [vmem:[%s3 + $0x4] sm:$0xf] %v495
    %528 = vst [vmem:[%s3 + $0x8] sm:$0xf] %v496
    %529 = vst [vmem:[%s3 + $0xc] sm:$0xf] %v497
    %530 = vst [vmem:[%s3 + $0x10] sm:$0xf] %v498
    %531 = vst [vmem:[%s3 + $0x14] sm:$0xf] %v499
    %532 = vst [vmem:[%s3 + $0x18] sm:$0xf] %v500
    %533 = vst [vmem:[%s3 + $0x1c] sm:$0xf] %v501
    %534 = vst [vmem:[%s3 + $0x20] sm:$0xf] %v502
    %535 = vst [vmem:[%s3 + $0x24] sm:$0xf] %v503
    %536 = vst [vmem:[%s3 + $0x28] sm:$0xf] %v504
    %537 = vst [vmem:[%s3 + $0x2c] sm:$0xf] %v505
    %538 = vst [vmem:[%s3 + $0x30] sm:$0xf] %v506
    %539 = vst [vmem:[%s3 + $0x34] sm:$0xf] %v507
    %540 = vst [vmem:[%s3 + $0x38] sm:$0xf] %v508
    %541 = vst [vmem:[%s3 + $0x3c] sm:$0xf] %v509
  $region21: #{_lambda_.18} parent=0 // pred_fallthru
    _
  // Predicated region
  $region22: #{_lambda_.18} parent=0 // pred_check
    _
  $region23: #{_lambda_.18} parent=0 // pred_check_branch
    %543 = sbr.rel (0) target = $region25
  $region24: #{_lambda_.18} parent=0 // pred_region
    _
  $region25: #{_lambda_.18} parent=0 // pred_fallthru
    _
  // Predicated region
  $region26: #{_lambda_.18} parent=0 // pred_check
    _
  $region27: #{_lambda_.18} parent=0 // pred_check_branch
    %545 = sbr.rel (0) target = $region29
  $region28: #{_lambda_.18} parent=0 // pred_region
    _
  $region29: #{_lambda_.18} parent=0 // pred_fallthru
    _

// kernel: _lambda_.19
$region0: #{_lambda_.19}
  #allocation0 [shape = 'u32[]', space=smem, size = 0x4, offset = 0x4, fixed_abs, tag = 'smem constant byte address 0x4 - core index']
  #allocation1 [shape = 'u32[144,128]{1,0:T(1,128)}', space=vmem, size = 0x12000, scoped, tag = 'internal scratch']
  #allocation2 [shape = 'f32[32,128]{1,0:T(8,128)}', space=vmem, size = 0x4000, scoped, tag = 'scratch operand']
  %s0 = inlined_call_operand.vmem [shape: bf16[32,384], index: 0, kind: input, shape index: {}]
  %s1 = inlined_call_operand.vmem [shape: bf16[384,128], index: 1, kind: input, shape index: {}]
  %s2 = inlined_call_operand.vmem [shape: f32[1,128], index: 2, kind: input, shape index: {}]
  %s3 = inlined_call_operand.vmem [shape: bf16[32,128], index: 3, kind: output, shape index: {}]
  %s4 = sld [smem:[#allocation0]]
  $region30: #{_lambda_.19} parent=0
    _
  %s6 = ssub.s32 1, %s4
  %s7 = scalar_select 0, %s6, %s4
  // Predicated region
  $region2: #{_lambda_.19} parent=0 // pred_check
    _
  $region3: #{_lambda_.19} parent=0 // pred_check_branch
    %9 = sbr.rel (0) target = $region5
  $region4: #{_lambda_.19} parent=0 // pred_region
    _
  $region5: #{_lambda_.19} parent=0 // pred_fallthru
    _
  // Predicated region
  $region6: #{_lambda_.19} parent=0 // pred_check
    _
  $region7: #{_lambda_.19} parent=0 // pred_check_branch
    %11 = sbr.rel (0) target = $region9
  $region8: #{_lambda_.19} parent=0 // pred_region
    _
  $region9: #{_lambda_.19} parent=0 // pred_fallthru
    _
  // Predicated region
  $region10: #{_lambda_.19} parent=0 // pred_check
    _
  $region11: #{_lambda_.19} parent=0 // pred_check_branch
    %13 = sbr.rel (0) target = $region13
  $region12: #{_lambda_.19} parent=0 // pred_region
    _
  $region13: #{_lambda_.19} parent=0 // pred_fallthru
    _
  %p15 = scmp.eq.s32.totalorder 0, 0
  // Predicated region
  $region14: #{_lambda_.19} parent=0 // pred_check
    %p16 = pneg %p15
  $region15: #{_lambda_.19} parent=0 // pred_check_branch
    %18 = sbr.rel (%p16) target = $region17
  $region16: #{_lambda_.19} parent=0 // pred_region
    %19 = vst [vmem:[#allocation2] sm:$0xff] 0.0
    %20 = vst [vmem:[#allocation2 + $0x8] sm:$0xff] 0.0
    %21 = vst [vmem:[#allocation2 + $0x10] sm:$0xff] 0.0
    %22 = vst [vmem:[#allocation2 + $0x18] sm:$0xff] 0.0
  $region17: #{_lambda_.19} parent=0 // pred_fallthru
    _
  %v23 = vld [vmem:[#allocation2] sm:$0xff]
  %v24 = vld [vmem:[#allocation2 + $0x8] sm:$0xff]
  %v25 = vld [vmem:[#allocation2 + $0x10] sm:$0xff]
  %v26 = vld [vmem:[#allocation2 + $0x18] sm:$0xff]
  %v27 = vld [vmem:[%s0] sm:$0xff]
  %v28 = vld [vmem:[%s0 + $0x8] sm:$0xf]
  %v29 = vld [vmem:[%s0 + $0xc] sm:$0xff]
  %v30 = vld [vmem:[%s0 + $0x14] sm:$0xf]
  %v31 = vld [vmem:[%s0 + $0x18] sm:$0xff]
  %v32 = vld [vmem:[%s0 + $0x20] sm:$0xf]
  %v33 = vld [vmem:[%s0 + $0x24] sm:$0xff]
  %v34 = vld [vmem:[%s0 + $0x2c] sm:$0xf]
  %v35 = vld [vmem:[%s1] sm:$0xf]
  %v36 = vld [vmem:[%s1 + $0x4] sm:$0xf]
  %v37 = vld [vmem:[%s1 + $0x8] sm:$0xf]
  %v38 = vld [vmem:[%s1 + $0xc] sm:$0xf]
  %v39 = vld [vmem:[%s1 + $0x10] sm:$0xf]
  %v40 = vld [vmem:[%s1 + $0x14] sm:$0xf]
  %v41 = vld [vmem:[%s1 + $0x18] sm:$0xf]
  %v42 = vld [vmem:[%s1 + $0x1c] sm:$0xf]
  %v43 = vld [vmem:[%s1 + $0x20] sm:$0xf]
  %v44 = vld [vmem:[%s1 + $0x24] sm:$0xf]
  %v45 = vld [vmem:[%s1 + $0x28] sm:$0xf]
  %v46 = vld [vmem:[%s1 + $0x2c] sm:$0xf]
  %v47 = vld [vmem:[%s1 + $0x30] sm:$0xf]
  %v48 = vld [vmem:[%s1 + $0x34] sm:$0xf]
  %v49 = vld [vmem:[%s1 + $0x38] sm:$0xf]
  %v50 = vld [vmem:[%s1 + $0x3c] sm:$0xf]
  %v51 = vld [vmem:[%s1 + $0x40] sm:$0xf]
  %v52 = vld [vmem:[%s1 + $0x44] sm:$0xf]
  %v53 = vld [vmem:[%s1 + $0x48] sm:$0xf]
  %v54 = vld [vmem:[%s1 + $0x4c] sm:$0xf]
  %v55 = vld [vmem:[%s1 + $0x50] sm:$0xf]
  %v56 = vld [vmem:[%s1 + $0x54] sm:$0xf]
  %v57 = vld [vmem:[%s1 + $0x58] sm:$0xf]
  %v58 = vld [vmem:[%s1 + $0x5c] sm:$0xf]
  %v59 = vld [vmem:[%s1 + $0x60] sm:$0xf]
  %v60 = vld [vmem:[%s1 + $0x64] sm:$0xf]
  %v61 = vld [vmem:[%s1 + $0x68] sm:$0xf]
  %v62 = vld [vmem:[%s1 + $0x6c] sm:$0xf]
  %v63 = vld [vmem:[%s1 + $0x70] sm:$0xf]
  %v64 = vld [vmem:[%s1 + $0x74] sm:$0xf]
  %v65 = vld [vmem:[%s1 + $0x78] sm:$0xf]
  %v66 = vld [vmem:[%s1 + $0x7c] sm:$0xf]
  %v67 = vld [vmem:[%s1 + $0x80] sm:$0xf]
  %v68 = vld [vmem:[%s1 + $0x84] sm:$0xf]
  %v69 = vld [vmem:[%s1 + $0x88] sm:$0xf]
  %v70 = vld [vmem:[%s1 + $0x8c] sm:$0xf]
  %v71 = vld [vmem:[%s1 + $0x90] sm:$0xf]
  %v72 = vld [vmem:[%s1 + $0x94] sm:$0xf]
  %v73 = vld [vmem:[%s1 + $0x98] sm:$0xf]
  %v74 = vld [vmem:[%s1 + $0x9c] sm:$0xf]
  %v75 = vld [vmem:[%s1 + $0xa0] sm:$0xf]
  %v76 = vld [vmem:[%s1 + $0xa4] sm:$0xf]
  %v77 = vld [vmem:[%s1 + $0xa8] sm:$0xf]
  %v78 = vld [vmem:[%s1 + $0xac] sm:$0xf]
  %v79 = vld [vmem:[%s1 + $0xb0] sm:$0xf]
  %v80 = vld [vmem:[%s1 + $0xb4] sm:$0xf]
  %v81 = vld [vmem:[%s1 + $0xb8] sm:$0xf]
  %v82 = vld [vmem:[%s1 + $0xbc] sm:$0xf]
  %v91 = vunpack.c.l.b16 %v27
  %v92 = vunpack.c.h.b16 %v27
  %v93 = vunpack.c.l.b16 %v28
  %v94 = vunpack.c.l.b16 %v29
  %v95 = vunpack.c.h.b16 %v29
  %v96 = vunpack.c.l.b16 %v30
  %v97 = vunpack.c.l.b16 %v31
  %v98 = vunpack.c.h.b16 %v31
  %v99 = vunpack.c.l.b16 %v32
  %v100 = vunpack.c.l.b16 %v33
  %v101 = vunpack.c.h.b16 %v33
  %v102 = vunpack.c.l.b16 %v34
  %v103 = vpack.c.b16 %v94, %v91
  %v104 = vpack.c.b16 %v95, %v92
  %v105 = vpack.c.b16 %v96, %v93
  %v106 = vpack.c.b16 %v100, %v97
  %v107 = vpack.c.b16 %v101, %v98
  %v108 = vpack.c.b16 %v102, %v99
  %v163 = vunpack.c.l.b16 %v35
  %v164 = vunpack.c.l.b16 %v36
  %v165 = vunpack.c.l.b16 %v37
  %v166 = vunpack.c.l.b16 %v38
  %v167 = vunpack.c.l.b16 %v39
  %v168 = vunpack.c.l.b16 %v40
  %v169 = vunpack.c.l.b16 %v41
  %v170 = vunpack.c.l.b16 %v42
  %v171 = vunpack.c.l.b16 %v43
  %v172 = vunpack.c.l.b16 %v44
  %v173 = vunpack.c.l.b16 %v45
  %v174 = vunpack.c.l.b16 %v46
  %v175 = vunpack.c.l.b16 %v47
  %v176 = vunpack.c.l.b16 %v48
  %v177 = vunpack.c.l.b16 %v49
  %v178 = vunpack.c.l.b16 %v50
  %v179 = vunpack.c.l.b16 %v51
  %v180 = vunpack.c.l.b16 %v52
  %v181 = vunpack.c.l.b16 %v53
  %v182 = vunpack.c.l.b16 %v54
  %v183 = vunpack.c.l.b16 %v55
  %v184 = vunpack.c.l.b16 %v56
  %v185 = vunpack.c.l.b16 %v57
  %v186 = vunpack.c.l.b16 %v58
  %v187 = vunpack.c.l.b16 %v59
  %v188 = vunpack.c.l.b16 %v60
  %v189 = vunpack.c.l.b16 %v61
  %v190 = vunpack.c.l.b16 %v62
  %v191 = vunpack.c.l.b16 %v63
  %v192 = vunpack.c.l.b16 %v64
  %v193 = vunpack.c.l.b16 %v65
  %v194 = vunpack.c.l.b16 %v66
  %v195 = vunpack.c.l.b16 %v67
  %v196 = vunpack.c.l.b16 %v68
  %v197 = vunpack.c.l.b16 %v69
  %v198 = vunpack.c.l.b16 %v70
  %v199 = vunpack.c.l.b16 %v71
  %v200 = vunpack.c.l.b16 %v72
  %v201 = vunpack.c.l.b16 %v73
  %v202 = vunpack.c.l.b16 %v74
  %v203 = vunpack.c.l.b16 %v75
  %v204 = vunpack.c.l.b16 %v76
  %v205 = vunpack.c.l.b16 %v77
  %v206 = vunpack.c.l.b16 %v78
  %v207 = vunpack.c.l.b16 %v79
  %v208 = vunpack.c.l.b16 %v80
  %v209 = vunpack.c.l.b16 %v81
  %v210 = vunpack.c.l.b16 %v82
  %v211 = vpack.c.b16 %v164, %v163
  %v212 = vpack.c.b16 %v166, %v165
  %v213 = vpack.c.b16 %v168, %v167
  %v214 = vpack.c.b16 %v170, %v169
  %v215 = vpack.c.b16 %v172, %v171
  %v216 = vpack.c.b16 %v174, %v173
  %v217 = vpack.c.b16 %v176, %v175
  %v218 = vpack.c.b16 %v178, %v177
  %v219 = vpack.c.b16 %v180, %v179
  %v220 = vpack.c.b16 %v182, %v181
  %v221 = vpack.c.b16 %v184, %v183
  %v222 = vpack.c.b16 %v186, %v185
  %v223 = vpack.c.b16 %v188, %v187
  %v224 = vpack.c.b16 %v190, %v189
  %v225 = vpack.c.b16 %v192, %v191
  %v226 = vpack.c.b16 %v194, %v193
  %v227 = vpack.c.b16 %v196, %v195
  %v228 = vpack.c.b16 %v198, %v197
  %v229 = vpack.c.b16 %v200, %v199
  %v230 = vpack.c.b16 %v202, %v201
  %v231 = vpack.c.b16 %v204, %v203
  %v232 = vpack.c.b16 %v206, %v205
  %v233 = vpack.c.b16 %v208, %v207
  %v234 = vpack.c.b16 %v210, %v209
  %259 = vmatprep.subr.bf16.mxu0 0
  %260 = vmatpush1.bf16.msra.mxu0 %v218
  %261 = vmatprep.subr.bf16.mxu0 0
  %262 = vmatpush1.bf16.msra.mxu0 %v217
  %263 = vmatprep.subr.bf16.mxu0 0
  %264 = vmatpush1.bf16.msra.mxu0 %v216
  %265 = vmatprep.subr.bf16.mxu0 0
  %266 = vmatpush1.bf16.msra.mxu0 %v215
  %267 = vmatprep.subr.bf16.mxu0 0
  %268 = vmatpush1.bf16.msra.mxu0 %v214
  %269 = vmatprep.subr.bf16.mxu0 0
  %270 = vmatpush1.bf16.msra.mxu0 %v213
  %271 = vmatprep.subr.bf16.mxu0 0
  %272 = vmatpush1.bf16.msra.mxu0 %v212
  %273 = vmatprep.subr.bf16.mxu0 0
  %274 = vmatpush1.bf16.msra.mxu0 %v211
  %275 = vmatprep.subr.bf16.mxu0 0
  %276 = vmatpush2.bf16.msra.mxu0 %v226
  %277 = vmatprep.subr.bf16.mxu0 0
  %278 = vmatpush2.bf16.msra.mxu0 %v225
  %279 = vmatprep.subr.bf16.mxu0 0
  %280 = vmatpush2.bf16.msra.mxu0 %v224
  %281 = vmatprep.subr.bf16.mxu0 0
  %282 = vmatpush2.bf16.msra.mxu0 %v223
  %283 = vmatprep.subr.bf16.mxu0 0
  %284 = vmatpush2.bf16.msra.mxu0 %v222
  %285 = vmatprep.subr.bf16.mxu0 0
  %286 = vmatpush2.bf16.msra.mxu0 %v221
  %287 = vmatprep.subr.bf16.mxu0 0
  %288 = vmatpush2.bf16.msra.mxu0 %v220
  %289 = vmatprep.subr.bf16.mxu0 0
  %290 = vmatpush2.bf16.msra.mxu0 %v219
  %291 = vmatprep.mubr.bf16.mxu0 %v104
  %292 = vmatmul.mubr.bf16.gmra.mxu0 %v103
  %v293 = vpop.f32.mrf.mxu0
  %v294 = vadd.f32 0.0, %v293
  %v295 = vpop.f32.mrf.mxu0
  %v296 = vpop.f32.mrf.mxu0
  %v297 = vadd.f32 0.0, %v296
  %v298 = vpop.f32.mrf.mxu0
  %299 = vmatprep.mubr.bf16.mxu0 %v107
  %300 = vmatmul.mubr.bf16.gmra.mxu0 %v106
  %v301 = vpop.f32.mrf.mxu0
  %v302 = vadd.f32 0.0, %v301
  %v303 = vpop.f32.mrf.mxu0
  %v304 = vpop.f32.mrf.mxu0
  %v305 = vadd.f32 0.0, %v304
  %v306 = vpop.f32.mrf.mxu0
  %307 = vdwg.mxu0
  %308 = vmatprep.subr.bf16.mxu0 0
  %309 = vmatpush1.bf16.msra.mxu0 %v234
  %310 = vmatprep.subr.bf16.mxu0 0
  %311 = vmatpush1.bf16.msra.mxu0 %v233
  %312 = vmatprep.subr.bf16.mxu0 0
  %313 = vmatpush1.bf16.msra.mxu0 %v232
  %314 = vmatprep.subr.bf16.mxu0 0
  %315 = vmatpush1.bf16.msra.mxu0 %v231
  %316 = vmatprep.subr.bf16.mxu0 0
  %317 = vmatpush1.bf16.msra.mxu0 %v230
  %318 = vmatprep.subr.bf16.mxu0 0
  %319 = vmatpush1.bf16.msra.mxu0 %v229
  %320 = vmatprep.subr.bf16.mxu0 0
  %321 = vmatpush1.bf16.msra.mxu0 %v228
  %322 = vmatprep.subr.bf16.mxu0 0
  %323 = vmatpush1.bf16.msra.mxu0 %v227
  %324 = vmatprep.subr.bf16.mxu0 0
  %325 = vmatpush2.bf16.msra.mxu0 0
  %326 = vmatprep.subr.bf16.mxu0 0
  %327 = vmatpush2.bf16.msra.mxu0 0
  %328 = vmatprep.subr.bf16.mxu0 0
  %329 = vmatpush2.bf16.msra.mxu0 0
  %330 = vmatprep.subr.bf16.mxu0 0
  %331 = vmatpush2.bf16.msra.mxu0 0
  %332 = vmatprep.subr.bf16.mxu0 0
  %333 = vmatpush2.bf16.msra.mxu0 0
  %334 = vmatprep.subr.bf16.mxu0 0
  %335 = vmatpush2.bf16.msra.mxu0 0
  %336 = vmatprep.subr.bf16.mxu0 0
  %337 = vmatpush2.bf16.msra.mxu0 0
  %338 = vmatprep.subr.bf16.mxu0 0
  %339 = vmatpush2.bf16.msra.mxu0 0
  %340 = vmatprep.mubr.bf16.mxu0 0
  %341 = vmatmul.mubr.bf16.gmra.mxu0 %v105
  %v342 = vpop.f32.mrf.mxu0
  %v343 = vadd.f32 %v294, %v342
  %v344 = vpop.f32.mrf.mxu0
  %v345 = vpop.f32.mrf.mxu0
  %v346 = vadd.f32 %v297, %v345
  %v347 = vpop.f32.mrf.mxu0
  %348 = vmatprep.mubr.bf16.mxu0 0
  %349 = vmatmul.mubr.bf16.gmra.mxu0 %v108
  %v350 = vpop.f32.mrf.mxu0
  %v351 = vadd.f32 %v302, %v350
  %v352 = vpop.f32.mrf.mxu0
  %v353 = vpop.f32.mrf.mxu0
  %v354 = vadd.f32 %v305, %v353
  %v355 = vpop.f32.mrf.mxu0
  %356 = vdwg.mxu0
  %v357 = vadd.f32 %v23, %v343
  %v358 = vadd.f32 %v24, %v346
  %v359 = vadd.f32 %v25, %v351
  %v360 = vadd.f32 %v26, %v354
  %361 = vst [vmem:[#allocation2] sm:$0xff] %v357
  %362 = vst [vmem:[#allocation2 + $0x8] sm:$0xff] %v358
  %363 = vst [vmem:[#allocation2 + $0x10] sm:$0xff] %v359
  %364 = vst [vmem:[#allocation2 + $0x18] sm:$0xff] %v360
  // Predicated region
  $region18: #{_lambda_.19} parent=0 // pred_check
    %p365 = pneg %p15
  $region19: #{_lambda_.19} parent=0 // pred_check_branch
    %367 = sbr.rel (%p365) target = $region21
  $region20: #{_lambda_.19} parent=0 // pred_region
    %v368 = vld [vmem:[#allocation2] sm:$0xff]
    %v369 = vld [vmem:[#allocation2 + $0x8] sm:$0xff]
    %v370 = vld [vmem:[#allocation2 + $0x10] sm:$0xff]
    %v371 = vld [vmem:[#allocation2 + $0x18] sm:$0xff]
    %v372 = vld [vmem:[%s2] sm:$0x1]
    %v374 = vlaneseq
    %v375 = vshrl.u32 %v374, 7
    %v376 = vsub.s32 0, %v375
    %v377 = vrot.slane %v372, %v376
    %v379 = vadd.f32 %v368, %v377
    %v380 = vadd.f32 %v369, %v377
    %v381 = vadd.f32 %v370, %v377
    %v382 = vadd.f32 %v371, %v377
    %v383 = vmax.f32 %v379, 0.0
    %v384 = vmax.f32 %v380, 0.0
    %v385 = vmax.f32 %v381, 0.0
    %v386 = vmax.f32 %v382, 0.0
    %v387 = vpack.c.bf16 %v384, %v383
    %v388 = vpack.c.bf16 %v386, %v385
    %v391 = vunpack.c.l.b16 %v387
    %v392 = vunpack.c.h.b16 %v387
    %v393 = vunpack.c.l.b16 %v388
    %v394 = vunpack.c.h.b16 %v388
    %v395 = vpack.c.b16 %v391, %v391
    %v396 = vpack.c.b16 %v392, %v392
    %v397 = vpack.c.b16 %v393, %v393
    %v398 = vpack.c.b16 %v394, %v394
    %403 = vst [vmem:[%s3] sm:$0xf] %v395
    %404 = vst [vmem:[%s3 + $0x4] sm:$0xf] %v396
    %405 = vst [vmem:[%s3 + $0x8] sm:$0xf] %v397
    %406 = vst [vmem:[%s3 + $0xc] sm:$0xf] %v398
  $region21: #{_lambda_.19} parent=0 // pred_fallthru
    _
  // Predicated region
  $region22: #{_lambda_.19} parent=0 // pred_check
    _
  $region23: #{_lambda_.19} parent=0 // pred_check_branch
    %408 = sbr.rel (0) target = $region25
  $region24: #{_lambda_.19} parent=0 // pred_region
    _
  $region25: #{_lambda_.19} parent=0 // pred_fallthru
    _
  // Predicated region
  $region26: #{_lambda_.19} parent=0 // pred_check
    _
  $region27: #{_lambda_.19} parent=0 // pred_check_branch
    %410 = sbr.rel (0) target = $region29
  $region28: #{_lambda_.19} parent=0 // pred_region
    _
  $region29: #{_lambda_.19} parent=0 // pred_fallthru
    _

// kernel: _lambda_.20
$region0: #{_lambda_.20}
  #allocation0 [shape = 'u32[]', space=smem, size = 0x4, offset = 0x4, fixed_abs, tag = 'smem constant byte address 0x4 - core index']
  #allocation1 [shape = 'u32[144,128]{1,0:T(1,128)}', space=vmem, size = 0x12000, scoped, tag = 'internal scratch']
  #allocation2 [shape = 'f32[8,128]{1,0:T(8,128)}', space=vmem, size = 0x1000, scoped, tag = 'scratch operand']
  %s0 = inlined_call_operand.vmem [shape: bf16[8,640], index: 0, kind: input, shape index: {}]
  %s1 = inlined_call_operand.vmem [shape: bf16[640,128], index: 1, kind: input, shape index: {}]
  %s2 = inlined_call_operand.vmem [shape: f32[1,128], index: 2, kind: input, shape index: {}]
  %s3 = inlined_call_operand.vmem [shape: bf16[8,128], index: 3, kind: output, shape index: {}]
  %s4 = sld [smem:[#allocation0]]
  $region30: #{_lambda_.20} parent=0
    _
  %s6 = ssub.s32 1, %s4
  %s7 = scalar_select 0, %s6, %s4
  // Predicated region
  $region2: #{_lambda_.20} parent=0 // pred_check
    _
  $region3: #{_lambda_.20} parent=0 // pred_check_branch
    %9 = sbr.rel (0) target = $region5
  $region4: #{_lambda_.20} parent=0 // pred_region
    _
  $region5: #{_lambda_.20} parent=0 // pred_fallthru
    _
  // Predicated region
  $region6: #{_lambda_.20} parent=0 // pred_check
    _
  $region7: #{_lambda_.20} parent=0 // pred_check_branch
    %11 = sbr.rel (0) target = $region9
  $region8: #{_lambda_.20} parent=0 // pred_region
    _
  $region9: #{_lambda_.20} parent=0 // pred_fallthru
    _
  // Predicated region
  $region10: #{_lambda_.20} parent=0 // pred_check
    _
  $region11: #{_lambda_.20} parent=0 // pred_check_branch
    %13 = sbr.rel (0) target = $region13
  $region12: #{_lambda_.20} parent=0 // pred_region
    _
  $region13: #{_lambda_.20} parent=0 // pred_fallthru
    _
  %p15 = scmp.eq.s32.totalorder 0, 0
  // Predicated region
  $region14: #{_lambda_.20} parent=0 // pred_check
    %p16 = pneg %p15
  $region15: #{_lambda_.20} parent=0 // pred_check_branch
    %18 = sbr.rel (%p16) target = $region17
  $region16: #{_lambda_.20} parent=0 // pred_region
    %19 = vst [vmem:[#allocation2] sm:$0xff] 0.0
  $region17: #{_lambda_.20} parent=0 // pred_fallthru
    _
  %v20 = vld [vmem:[#allocation2] sm:$0xff]
  %v21 = vld [vmem:[%s0] sm:$0xff]
  %v22 = vld [vmem:[%s0 + $0x8] sm:$0xff]
  %v23 = vld [vmem:[%s0 + $0x10] sm:$0xf]
  %v24 = vld [vmem:[%s1] sm:$0xf]
  %v25 = vld [vmem:[%s1 + $0x4] sm:$0xf]
  %v26 = vld [vmem:[%s1 + $0x8] sm:$0xf]
  %v27 = vld [vmem:[%s1 + $0xc] sm:$0xf]
  %v28 = vld [vmem:[%s1 + $0x10] sm:$0xf]
  %v29 = vld [vmem:[%s1 + $0x14] sm:$0xf]
  %v30 = vld [vmem:[%s1 + $0x18] sm:$0xf]
  %v31 = vld [vmem:[%s1 + $0x1c] sm:$0xf]
  %v32 = vld [vmem:[%s1 + $0x20] sm:$0xf]
  %v33 = vld [vmem:[%s1 + $0x24] sm:$0xf]
  %v34 = vld [vmem:[%s1 + $0x28] sm:$0xf]
  %v35 = vld [vmem:[%s1 + $0x2c] sm:$0xf]
  %v36 = vld [vmem:[%s1 + $0x30] sm:$0xf]
  %v37 = vld [vmem:[%s1 + $0x34] sm:$0xf]
  %v38 = vld [vmem:[%s1 + $0x38] sm:$0xf]
  %v39 = vld [vmem:[%s1 + $0x3c] sm:$0xf]
  %v40 = vld [vmem:[%s1 + $0x40] sm:$0xf]
  %v41 = vld [vmem:[%s1 + $0x44] sm:$0xf]
  %v42 = vld [vmem:[%s1 + $0x48] sm:$0xf]
  %v43 = vld [vmem:[%s1 + $0x4c] sm:$0xf]
  %v44 = vld [vmem:[%s1 + $0x50] sm:$0xf]
  %v45 = vld [vmem:[%s1 + $0x54] sm:$0xf]
  %v46 = vld [vmem:[%s1 + $0x58] sm:$0xf]
  %v47 = vld [vmem:[%s1 + $0x5c] sm:$0xf]
  %v48 = vld [vmem:[%s1 + $0x60] sm:$0xf]
  %v49 = vld [vmem:[%s1 + $0x64] sm:$0xf]
  %v50 = vld [vmem:[%s1 + $0x68] sm:$0xf]
  %v51 = vld [vmem:[%s1 + $0x6c] sm:$0xf]
  %v52 = vld [vmem:[%s1 + $0x70] sm:$0xf]
  %v53 = vld [vmem:[%s1 + $0x74] sm:$0xf]
  %v54 = vld [vmem:[%s1 + $0x78] sm:$0xf]
  %v55 = vld [vmem:[%s1 + $0x7c] sm:$0xf]
  %v56 = vld [vmem:[%s1 + $0x80] sm:$0xf]
  %v57 = vld [vmem:[%s1 + $0x84] sm:$0xf]
  %v58 = vld [vmem:[%s1 + $0x88] sm:$0xf]
  %v59 = vld [vmem:[%s1 + $0x8c] sm:$0xf]
  %v60 = vld [vmem:[%s1 + $0x90] sm:$0xf]
  %v61 = vld [vmem:[%s1 + $0x94] sm:$0xf]
  %v62 = vld [vmem:[%s1 + $0x98] sm:$0xf]
  %v63 = vld [vmem:[%s1 + $0x9c] sm:$0xf]
  %v64 = vld [vmem:[%s1 + $0xa0] sm:$0xf]
  %v65 = vld [vmem:[%s1 + $0xa4] sm:$0xf]
  %v66 = vld [vmem:[%s1 + $0xa8] sm:$0xf]
  %v67 = vld [vmem:[%s1 + $0xac] sm:$0xf]
  %v68 = vld [vmem:[%s1 + $0xb0] sm:$0xf]
  %v69 = vld [vmem:[%s1 + $0xb4] sm:$0xf]
  %v70 = vld [vmem:[%s1 + $0xb8] sm:$0xf]
  %v71 = vld [vmem:[%s1 + $0xbc] sm:$0xf]
  %v72 = vld [vmem:[%s1 + $0xc0] sm:$0xf]
  %v73 = vld [vmem:[%s1 + $0xc4] sm:$0xf]
  %v74 = vld [vmem:[%s1 + $0xc8] sm:$0xf]
  %v75 = vld [vmem:[%s1 + $0xcc] sm:$0xf]
  %v76 = vld [vmem:[%s1 + $0xd0] sm:$0xf]
  %v77 = vld [vmem:[%s1 + $0xd4] sm:$0xf]
  %v78 = vld [vmem:[%s1 + $0xd8] sm:$0xf]
  %v79 = vld [vmem:[%s1 + $0xdc] sm:$0xf]
  %v80 = vld [vmem:[%s1 + $0xe0] sm:$0xf]
  %v81 = vld [vmem:[%s1 + $0xe4] sm:$0xf]
  %v82 = vld [vmem:[%s1 + $0xe8] sm:$0xf]
  %v83 = vld [vmem:[%s1 + $0xec] sm:$0xf]
  %v84 = vld [vmem:[%s1 + $0xf0] sm:$0xf]
  %v85 = vld [vmem:[%s1 + $0xf4] sm:$0xf]
  %v86 = vld [vmem:[%s1 + $0xf8] sm:$0xf]
  %v87 = vld [vmem:[%s1 + $0xfc] sm:$0xf]
  %v88 = vld [vmem:[%s1 + $0x100] sm:$0xf]
  %v89 = vld [vmem:[%s1 + $0x104] sm:$0xf]
  %v90 = vld [vmem:[%s1 + $0x108] sm:$0xf]
  %v91 = vld [vmem:[%s1 + $0x10c] sm:$0xf]
  %v92 = vld [vmem:[%s1 + $0x110] sm:$0xf]
  %v93 = vld [vmem:[%s1 + $0x114] sm:$0xf]
  %v94 = vld [vmem:[%s1 + $0x118] sm:$0xf]
  %v95 = vld [vmem:[%s1 + $0x11c] sm:$0xf]
  %v96 = vld [vmem:[%s1 + $0x120] sm:$0xf]
  %v97 = vld [vmem:[%s1 + $0x124] sm:$0xf]
  %v98 = vld [vmem:[%s1 + $0x128] sm:$0xf]
  %v99 = vld [vmem:[%s1 + $0x12c] sm:$0xf]
  %v100 = vld [vmem:[%s1 + $0x130] sm:$0xf]
  %v101 = vld [vmem:[%s1 + $0x134] sm:$0xf]
  %v102 = vld [vmem:[%s1 + $0x138] sm:$0xf]
  %v103 = vld [vmem:[%s1 + $0x13c] sm:$0xf]
  %v107 = vunpack.c.l.b16 %v21
  %v108 = vunpack.c.h.b16 %v21
  %v109 = vunpack.c.l.b16 %v22
  %v110 = vunpack.c.h.b16 %v22
  %v111 = vunpack.c.l.b16 %v23
  %v112 = vpack.c.b16 %v107, %v107
  %v113 = vpack.c.b16 %v108, %v108
  %v114 = vpack.c.b16 %v109, %v109
  %v115 = vpack.c.b16 %v110, %v110
  %v116 = vpack.c.b16 %v111, %v111
  %v202 = vunpack.c.l.b16 %v24
  %v203 = vunpack.c.l.b16 %v25
  %v204 = vunpack.c.l.b16 %v26
  %v205 = vunpack.c.l.b16 %v27
  %v206 = vunpack.c.l.b16 %v28
  %v207 = vunpack.c.l.b16 %v29
  %v208 = vunpack.c.l.b16 %v30
  %v209 = vunpack.c.l.b16 %v31
  %v210 = vunpack.c.l.b16 %v32
  %v211 = vunpack.c.l.b16 %v33
  %v212 = vunpack.c.l.b16 %v34
  %v213 = vunpack.c.l.b16 %v35
  %v214 = vunpack.c.l.b16 %v36
  %v215 = vunpack.c.l.b16 %v37
  %v216 = vunpack.c.l.b16 %v38
  %v217 = vunpack.c.l.b16 %v39
  %v218 = vunpack.c.l.b16 %v40
  %v219 = vunpack.c.l.b16 %v41
  %v220 = vunpack.c.l.b16 %v42
  %v221 = vunpack.c.l.b16 %v43
  %v222 = vunpack.c.l.b16 %v44
  %v223 = vunpack.c.l.b16 %v45
  %v224 = vunpack.c.l.b16 %v46
  %v225 = vunpack.c.l.b16 %v47
  %v226 = vunpack.c.l.b16 %v48
  %v227 = vunpack.c.l.b16 %v49
  %v228 = vunpack.c.l.b16 %v50
  %v229 = vunpack.c.l.b16 %v51
  %v230 = vunpack.c.l.b16 %v52
  %v231 = vunpack.c.l.b16 %v53
  %v232 = vunpack.c.l.b16 %v54
  %v233 = vunpack.c.l.b16 %v55
  %v234 = vunpack.c.l.b16 %v56
  %v235 = vunpack.c.l.b16 %v57
  %v236 = vunpack.c.l.b16 %v58
  %v237 = vunpack.c.l.b16 %v59
  %v238 = vunpack.c.l.b16 %v60
  %v239 = vunpack.c.l.b16 %v61
  %v240 = vunpack.c.l.b16 %v62
  %v241 = vunpack.c.l.b16 %v63
  %v242 = vunpack.c.l.b16 %v64
  %v243 = vunpack.c.l.b16 %v65
  %v244 = vunpack.c.l.b16 %v66
  %v245 = vunpack.c.l.b16 %v67
  %v246 = vunpack.c.l.b16 %v68
  %v247 = vunpack.c.l.b16 %v69
  %v248 = vunpack.c.l.b16 %v70
  %v249 = vunpack.c.l.b16 %v71
  %v250 = vunpack.c.l.b16 %v72
  %v251 = vunpack.c.l.b16 %v73
  %v252 = vunpack.c.l.b16 %v74
  %v253 = vunpack.c.l.b16 %v75
  %v254 = vunpack.c.l.b16 %v76
  %v255 = vunpack.c.l.b16 %v77
  %v256 = vunpack.c.l.b16 %v78
  %v257 = vunpack.c.l.b16 %v79
  %v258 = vunpack.c.l.b16 %v80
  %v259 = vunpack.c.l.b16 %v81
  %v260 = vunpack.c.l.b16 %v82
  %v261 = vunpack.c.l.b16 %v83
  %v262 = vunpack.c.l.b16 %v84
  %v263 = vunpack.c.l.b16 %v85
  %v264 = vunpack.c.l.b16 %v86
  %v265 = vunpack.c.l.b16 %v87
  %v266 = vunpack.c.l.b16 %v88
  %v267 = vunpack.c.l.b16 %v89
  %v268 = vunpack.c.l.b16 %v90
  %v269 = vunpack.c.l.b16 %v91
  %v270 = vunpack.c.l.b16 %v92
  %v271 = vunpack.c.l.b16 %v93
  %v272 = vunpack.c.l.b16 %v94
  %v273 = vunpack.c.l.b16 %v95
  %v274 = vunpack.c.l.b16 %v96
  %v275 = vunpack.c.l.b16 %v97
  %v276 = vunpack.c.l.b16 %v98
  %v277 = vunpack.c.l.b16 %v99
  %v278 = vunpack.c.l.b16 %v100
  %v279 = vunpack.c.l.b16 %v101
  %v280 = vunpack.c.l.b16 %v102
  %v281 = vunpack.c.l.b16 %v103
  %v282 = vpack.c.b16 %v203, %v202
  %v283 = vpack.c.b16 %v205, %v204
  %v284 = vpack.c.b16 %v207, %v206
  %v285 = vpack.c.b16 %v209, %v208
  %v286 = vpack.c.b16 %v211, %v210
  %v287 = vpack.c.b16 %v213, %v212
  %v288 = vpack.c.b16 %v215, %v214
  %v289 = vpack.c.b16 %v217, %v216
  %v290 = vpack.c.b16 %v219, %v218
  %v291 = vpack.c.b16 %v221, %v220
  %v292 = vpack.c.b16 %v223, %v222
  %v293 = vpack.c.b16 %v225, %v224
  %v294 = vpack.c.b16 %v227, %v226
  %v295 = vpack.c.b16 %v229, %v228
  %v296 = vpack.c.b16 %v231, %v230
  %v297 = vpack.c.b16 %v233, %v232
  %v298 = vpack.c.b16 %v235, %v234
  %v299 = vpack.c.b16 %v237, %v236
  %v300 = vpack.c.b16 %v239, %v238
  %v301 = vpack.c.b16 %v241, %v240
  %v302 = vpack.c.b16 %v243, %v242
  %v303 = vpack.c.b16 %v245, %v244
  %v304 = vpack.c.b16 %v247, %v246
  %v305 = vpack.c.b16 %v249, %v248
  %v306 = vpack.c.b16 %v251, %v250
  %v307 = vpack.c.b16 %v253, %v252
  %v308 = vpack.c.b16 %v255, %v254
  %v309 = vpack.c.b16 %v257, %v256
  %v310 = vpack.c.b16 %v259, %v258
  %v311 = vpack.c.b16 %v261, %v260
  %v312 = vpack.c.b16 %v263, %v262
  %v313 = vpack.c.b16 %v265, %v264
  %v314 = vpack.c.b16 %v267, %v266
  %v315 = vpack.c.b16 %v269, %v268
  %v316 = vpack.c.b16 %v271, %v270
  %v317 = vpack.c.b16 %v273, %v272
  %v318 = vpack.c.b16 %v275, %v274
  %v319 = vpack.c.b16 %v277, %v276
  %v320 = vpack.c.b16 %v279, %v278
  %v321 = vpack.c.b16 %v281, %v280
  %362 = vmatprep.subr.bf16.mxu0 0
  %363 = vmatpush1.bf16.msra.mxu0 %v289
  %364 = vmatprep.subr.bf16.mxu0 0
  %365 = vmatpush1.bf16.msra.mxu0 %v288
  %366 = vmatprep.subr.bf16.mxu0 0
  %367 = vmatpush1.bf16.msra.mxu0 %v287
  %368 = vmatprep.subr.bf16.mxu0 0
  %369 = vmatpush1.bf16.msra.mxu0 %v286
  %370 = vmatprep.subr.bf16.mxu0 0
  %371 = vmatpush1.bf16.msra.mxu0 %v285
  %372 = vmatprep.subr.bf16.mxu0 0
  %373 = vmatpush1.bf16.msra.mxu0 %v284
  %374 = vmatprep.subr.bf16.mxu0 0
  %375 = vmatpush1.bf16.msra.mxu0 %v283
  %376 = vmatprep.subr.bf16.mxu0 0
  %377 = vmatpush1.bf16.msra.mxu0 %v282
  %378 = vmatprep.subr.bf16.mxu0 0
  %379 = vmatpush2.bf16.msra.mxu0 %v297
  %380 = vmatprep.subr.bf16.mxu0 0
  %381 = vmatpush2.bf16.msra.mxu0 %v296
  %382 = vmatprep.subr.bf16.mxu0 0
  %383 = vmatpush2.bf16.msra.mxu0 %v295
  %384 = vmatprep.subr.bf16.mxu0 0
  %385 = vmatpush2.bf16.msra.mxu0 %v294
  %386 = vmatprep.subr.bf16.mxu0 0
  %387 = vmatpush2.bf16.msra.mxu0 %v293
  %388 = vmatprep.subr.bf16.mxu0 0
  %389 = vmatpush2.bf16.msra.mxu0 %v292
  %390 = vmatprep.subr.bf16.mxu0 0
  %391 = vmatpush2.bf16.msra.mxu0 %v291
  %392 = vmatprep.subr.bf16.mxu0 0
  %393 = vmatpush2.bf16.msra.mxu0 %v290
  %394 = vmatprep.mubr.bf16.mxu0 %v113
  %395 = vmatmul.mubr.bf16.gmra.mxu0 %v112
  %v396 = vpop.f32.mrf.mxu0
  %v397 = vadd.f32 0.0, %v396
  %v398 = vpop.f32.mrf.mxu0
  %v399 = vpop.f32.mrf.mxu0
  %v400 = vpop.f32.mrf.mxu0
  %401 = vdwg.mxu0
  %402 = vmatprep.subr.bf16.mxu0 0
  %403 = vmatpush1.bf16.msra.mxu0 %v305
  %404 = vmatprep.subr.bf16.mxu0 0
  %405 = vmatpush1.bf16.msra.mxu0 %v304
  %406 = vmatprep.subr.bf16.mxu0 0
  %407 = vmatpush1.bf16.msra.mxu0 %v303
  %408 = vmatprep.subr.bf16.mxu0 0
  %409 = vmatpush1.bf16.msra.mxu0 %v302
  %410 = vmatprep.subr.bf16.mxu0 0
  %411 = vmatpush1.bf16.msra.mxu0 %v301
  %412 = vmatprep.subr.bf16.mxu0 0
  %413 = vmatpush1.bf16.msra.mxu0 %v300
  %414 = vmatprep.subr.bf16.mxu0 0
  %415 = vmatpush1.bf16.msra.mxu0 %v299
  %416 = vmatprep.subr.bf16.mxu0 0
  %417 = vmatpush1.bf16.msra.mxu0 %v298
  %418 = vmatprep.subr.bf16.mxu0 0
  %419 = vmatpush2.bf16.msra.mxu0 %v313
  %420 = vmatprep.subr.bf16.mxu0 0
  %421 = vmatpush2.bf16.msra.mxu0 %v312
  %422 = vmatprep.subr.bf16.mxu0 0
  %423 = vmatpush2.bf16.msra.mxu0 %v311
  %424 = vmatprep.subr.bf16.mxu0 0
  %425 = vmatpush2.bf16.msra.mxu0 %v310
  %426 = vmatprep.subr.bf16.mxu0 0
  %427 = vmatpush2.bf16.msra.mxu0 %v309
  %428 = vmatprep.subr.bf16.mxu0 0
  %429 = vmatpush2.bf16.msra.mxu0 %v308
  %430 = vmatprep.subr.bf16.mxu0 0
  %431 = vmatpush2.bf16.msra.mxu0 %v307
  %432 = vmatprep.subr.bf16.mxu0 0
  %433 = vmatpush2.bf16.msra.mxu0 %v306
  %434 = vmatprep.mubr.bf16.mxu0 %v115
  %435 = vmatmul.mubr.bf16.gmra.mxu0 %v114
  %v436 = vpop.f32.mrf.mxu0
  %v437 = vadd.f32 %v397, %v436
  %v438 = vpop.f32.mrf.mxu0
  %v439 = vpop.f32.mrf.mxu0
  %v440 = vpop.f32.mrf.mxu0
  %441 = vdwg.mxu0
  %442 = vmatprep.subr.bf16.mxu0 0
  %443 = vmatpush1.bf16.msra.mxu0 %v321
  %444 = vmatprep.subr.bf16.mxu0 0
  %445 = vmatpush1.bf16.msra.mxu0 %v320
  %446 = vmatprep.subr.bf16.mxu0 0
  %447 = vmatpush1.bf16.msra.mxu0 %v319
  %448 = vmatprep.subr.bf16.mxu0 0
  %449 = vmatpush1.bf16.msra.mxu0 %v318
  %450 = vmatprep.subr.bf16.mxu0 0
  %451 = vmatpush1.bf16.msra.mxu0 %v317
  %452 = vmatprep.subr.bf16.mxu0 0
  %453 = vmatpush1.bf16.msra.mxu0 %v316
  %454 = vmatprep.subr.bf16.mxu0 0
  %455 = vmatpush1.bf16.msra.mxu0 %v315
  %456 = vmatprep.subr.bf16.mxu0 0
  %457 = vmatpush1.bf16.msra.mxu0 %v314
  %458 = vmatprep.subr.bf16.mxu0 0
  %459 = vmatpush2.bf16.msra.mxu0 0
  %460 = vmatprep.subr.bf16.mxu0 0
  %461 = vmatpush2.bf16.msra.mxu0 0
  %462 = vmatprep.subr.bf16.mxu0 0
  %463 = vmatpush2.bf16.msra.mxu0 0
  %464 = vmatprep.subr.bf16.mxu0 0
  %465 = vmatpush2.bf16.msra.mxu0 0
  %466 = vmatprep.subr.bf16.mxu0 0
  %467 = vmatpush2.bf16.msra.mxu0 0
  %468 = vmatprep.subr.bf16.mxu0 0
  %469 = vmatpush2.bf16.msra.mxu0 0
  %470 = vmatprep.subr.bf16.mxu0 0
  %471 = vmatpush2.bf16.msra.mxu0 0
  %472 = vmatprep.subr.bf16.mxu0 0
  %473 = vmatpush2.bf16.msra.mxu0 0
  %474 = vmatprep.mubr.bf16.mxu0 0
  %475 = vmatmul.mubr.bf16.gmra.mxu0 %v116
  %v476 = vpop.f32.mrf.mxu0
  %v477 = vadd.f32 %v437, %v476
  %v478 = vpop.f32.mrf.mxu0
  %v479 = vpop.f32.mrf.mxu0
  %v480 = vpop.f32.mrf.mxu0
  %481 = vdwg.mxu0
  %v482 = vadd.f32 %v20, %v477
  %483 = vst [vmem:[#allocation2] sm:$0xff] %v482
  // Predicated region
  $region18: #{_lambda_.20} parent=0 // pred_check
    %p484 = pneg %p15
  $region19: #{_lambda_.20} parent=0 // pred_check_branch
    %486 = sbr.rel (%p484) target = $region21
  $region20: #{_lambda_.20} parent=0 // pred_region
    %v487 = vld [vmem:[#allocation2] sm:$0xff]
    %v488 = vld [vmem:[%s2] sm:$0x1]
    %v490 = vlaneseq
    %v491 = vshrl.u32 %v490, 7
    %v492 = vsub.s32 0, %v491
    %v493 = vrot.slane %v488, %v492
    %v495 = vadd.f32 %v487, %v493
    %v496 = vmax.f32 %v495, 0.0
    %v497 = vpack.c.bf16 %v496, %v496
    %498 = vst [vmem:[%s3] sm:$0xf] %v497
  $region21: #{_lambda_.20} parent=0 // pred_fallthru
    _
  // Predicated region
  $region22: #{_lambda_.20} parent=0 // pred_check
    _
  $region23: #{_lambda_.20} parent=0 // pred_check_branch
    %500 = sbr.rel (0) target = $region25
  $region24: #{_lambda_.20} parent=0 // pred_region
    _
  $region25: #{_lambda_.20} parent=0 // pred_fallthru
    _
  // Predicated region
  $region26: #{_lambda_.20} parent=0 // pred_check
    _
  $region27: #{_lambda_.20} parent=0 // pred_check_branch
    %502 = sbr.rel (0) target = $region29
  $region28: #{_lambda_.20} parent=0 // pred_region
    _
  $region29: #{_lambda_.20} parent=0 // pred_fallthru
    _

// kernel: _lambda_.26
$region0: #{_lambda_.26}
  #allocation0 [shape = 'u32[]', space=smem, size = 0x4, offset = 0x4, fixed_abs, tag = 'smem constant byte address 0x4 - core index']
  #allocation1 [shape = 'u32[144,128]{1,0:T(1,128)}', space=vmem, size = 0x12000, scoped, tag = 'internal scratch']
  #allocation2 [shape = 'f32[8,256]{1,0:T(8,128)}', space=vmem, size = 0x2000, scoped, tag = 'scratch operand']
  %s0 = inlined_call_operand.vmem [shape: bf16[8,4608], index: 0, kind: input, shape index: {}]
  %s1 = inlined_call_operand.vmem [shape: bf16[4608,256], index: 1, kind: input, shape index: {}]
  %s2 = inlined_call_operand.vmem [shape: f32[1,256], index: 2, kind: input, shape index: {}]
  %s3 = inlined_call_operand.vmem [shape: bf16[8,256], index: 3, kind: output, shape index: {}]
  %s4 = sld [smem:[#allocation0]]
  $region53: #{_lambda_.26} parent=0
    _
  %s6 = ssub.s32 1, %s4
  %s7 = scalar_select 0, %s6, %s4
  loop: start=0, step=1, limit=11
  $region2: #{_lambda_.26} parent=0 // loop_pre_header
    _
  $region3: #{_lambda_.26} parent=0 // loop_header
    %s9 = sphi 0, %s13
    %p10 = scmp.ge.s32.totalorder %s9, 11
    %s16 = sphi 0, %s35
    %s17 = sphi 0, %s31
    %s18 = sphi 0, %s27
    %s19 = sphi 0, %s16
    %s20 = sphi 0, %s17
    %s21 = sphi 0, %s18
    %s22 = sphi 0, %s19
    %s23 = sphi 0, %s20
    %s24 = sphi 0, %s21
    %s40 = sphi 0, %s42
    %s43 = sphi 0, %s40
    %s44 = sphi 0, %s43
    %s60 = sphi 0, %s44
    %s68 = sphi 0, %s70
    %s71 = sphi 0, %s68
    %s72 = sphi 0, %s71
    %s88 = sphi 0, %s72
    %s94 = sphi 0, %s96
    %s97 = sphi 0, %s94
    %s98 = sphi 0, %s97
    %s114 = sphi 0, %s98
    %s122 = sphi 0, %s124
    %s125 = sphi 0, %s122
    %s126 = sphi 0, %s125
    %s142 = sphi 0, %s126
  $region4: #{_lambda_.26} parent=0 // loop_header_branch
    %12 = sbr.rel (%p10) target = $region8
  $region5: #{_lambda_.26} parent=0 // loop_body
    %s14 = ssub.s32 %s9, 1
    %s15 = ssub.s32 %s9, 2
    %s25 = sadd.s32 1, %s18
    %p26 = scmp.ge.s32.totalorder %s25, 9
    %s27 = scalar_select %p26, 0, %s25
    %s28 = sadd.s32 1, %s17
    %s29 = scalar_select %p26, %s28, %s17
    %p30 = scmp.ge.s32.totalorder %s29, 1
    %s31 = scalar_select %p30, 0, %s29
    %s32 = sadd.s32 1, %s16
    %s33 = scalar_select %p30, %s32, %s16
    %p34 = scmp.ge.s32.totalorder %s33, 1
    %s35 = scalar_select %p34, 0, %s33
    %s36 = ssub.s32 %s16, %s35
    %s37 = ssub.s32 %s18, %s27
    %s38 = sor.u32 %s36, %s37
    %p39 = scmp.eq.s32.totalorder %s38, 0
    %s41 = sadd.s32 %s40, 1
    %s42 = scalar_select %p39, %s40, %s41
    %p45 = pneg %p39
    %p46 = scmp.eq.s32.totalorder %s9, 8
    %p47 = por %p45, %p46
    %p48 = scmp.ne.s32.totalorder %s40, %s43
    %p49 = scmp.eq.s32.totalorder %s9, 0
    %p50 = por %p48, %p49
    %p51 = scmp.ne.s32.totalorder %s40, %s43
    %p52 = scmp.eq.s32.totalorder %s14, 8
    %p53 = por %p51, %p52
    %p54 = scmp.ne.s32.totalorder %s43, %s44
    %p55 = scmp.eq.s32.totalorder %s14, 0
    %p56 = por %p54, %p55
    %p57 = scmp.ne.s32.totalorder %s43, %s44
    %p58 = scmp.eq.s32.totalorder %s15, 8
    %p59 = por %p57, %p58
    %p61 = scmp.ne.s32.totalorder %s44, %s60
    %p62 = scmp.eq.s32.totalorder %s15, 0
    %p63 = por %p61, %p62
    %s64 = ssub.s32 %s18, %s27
    %s65 = ssub.s32 %s17, %s31
    %s66 = sor.u32 %s64, %s65
    %p67 = scmp.eq.s32.totalorder %s66, 0
    %s69 = sadd.s32 %s68, 1
    %s70 = scalar_select %p67, %s68, %s69
    %p73 = pneg %p67
    %p74 = scmp.eq.s32.totalorder %s9, 8
    %p75 = por %p73, %p74
    %p76 = scmp.ne.s32.totalorder %s68, %s71
    %p77 = scmp.eq.s32.totalorder %s9, 0
    %p78 = por %p76, %p77
    %p79 = scmp.ne.s32.totalorder %s68, %s71
    %p80 = scmp.eq.s32.totalorder %s14, 8
    %p81 = por %p79, %p80
    %p82 = scmp.ne.s32.totalorder %s71, %s72
    %p83 = scmp.eq.s32.totalorder %s14, 0
    %p84 = por %p82, %p83
    %p85 = scmp.ne.s32.totalorder %s71, %s72
    %p86 = scmp.eq.s32.totalorder %s15, 8
    %p87 = por %p85, %p86
    %p89 = scmp.ne.s32.totalorder %s72, %s88
    %p90 = scmp.eq.s32.totalorder %s15, 0
    %p91 = por %p89, %p90
    %s92 = ssub.s32 %s17, %s31
    %p93 = scmp.eq.s32.totalorder %s92, 0
    %s95 = sadd.s32 %s94, 1
    %s96 = scalar_select %p93, %s94, %s95
    %p99 = pneg %p93
    %p100 = scmp.eq.s32.totalorder %s9, 8
    %p101 = por %p99, %p100
    %p102 = scmp.ne.s32.totalorder %s94, %s97
    %p103 = scmp.eq.s32.totalorder %s9, 0
    %p104 = por %p102, %p103
    %p105 = scmp.ne.s32.totalorder %s94, %s97
    %p106 = scmp.eq.s32.totalorder %s14, 8
    %p107 = por %p105, %p106
    %p108 = scmp.ne.s32.totalorder %s97, %s98
    %p109 = scmp.eq.s32.totalorder %s14, 0
    %p110 = por %p108, %p109
    %p111 = scmp.ne.s32.totalorder %s97, %s98
    %p112 = scmp.eq.s32.totalorder %s15, 8
    %p113 = por %p111, %p112
    %p115 = scmp.ne.s32.totalorder %s98, %s114
    %p116 = scmp.eq.s32.totalorder %s15, 0
    %p117 = por %p115, %p116
    %s118 = ssub.s32 %s16, %s35
    %s119 = ssub.s32 %s17, %s31
    %s120 = sor.u32 %s118, %s119
    %p121 = scmp.eq.s32.totalorder %s120, 0
    %s123 = sadd.s32 %s122, 1
    %s124 = scalar_select %p121, %s122, %s123
    %p127 = pneg %p121
    %p128 = scmp.eq.s32.totalorder %s9, 8
    %p129 = por %p127, %p128
    %p130 = scmp.ne.s32.totalorder %s122, %s125
    %p131 = scmp.eq.s32.totalorder %s9, 0
    %p132 = por %p130, %p131
    %p133 = scmp.ne.s32.totalorder %s122, %s125
    %p134 = scmp.eq.s32.totalorder %s14, 8
    %p135 = por %p133, %p134
    %p136 = scmp.ne.s32.totalorder %s125, %s126
    %p137 = scmp.eq.s32.totalorder %s14, 0
    %p138 = por %p136, %p137
    %p139 = scmp.ne.s32.totalorder %s125, %s126
    %p140 = scmp.eq.s32.totalorder %s15, 8
    %p141 = por %p139, %p140
    %p143 = scmp.ne.s32.totalorder %s126, %s142
    %p144 = scmp.eq.s32.totalorder %s15, 0
    %p145 = por %p143, %p144
    %p146 = scmp.le.s32.totalorder 1, %s9
    %p147 = scmp.lt.s32.totalorder %s9, 10
    %p148 = pnand %p146, %p147
    %p149 = pneg %p148
    // Predicated region
    $region9: #{_lambda_.26} parent=5 // pred_check
      _
    $region10: #{_lambda_.26} parent=5 // pred_check_branch
      %151 = sbr.rel (%p148) target = $region12
    $region11: #{_lambda_.26} parent=5 // pred_region
      %s152 = ssub.s32 %s9, 1
      // Predicated region
      $region13: #{_lambda_.26} parent=11 // pred_check
        %p153 = pneg %p110
      $region14: #{_lambda_.26} parent=11 // pred_check_branch
        %155 = sbr.rel (%p153) target = $region16
      $region15: #{_lambda_.26} parent=11 // pred_region
        %s156 = smul.u32 2, %s20
        %p157 = scmp.lt.s32.totalorder %s156, 1
        %s158 = scalar_select %p157, %s156, 1
        %s159 = scalar_lea.vmem %s2, %s158
        %s160 = smul.u32 2, %s20
      $region16: #{_lambda_.26} parent=11 // pred_fallthru
        _
    $region12: #{_lambda_.26} parent=5 // pred_fallthru
      _
    %p161 = scmp.lt.s32.totalorder %s9, 9
    // Predicated region
    $region17: #{_lambda_.26} parent=5 // pred_check
      %p162 = pneg %p161
    $region18: #{_lambda_.26} parent=5 // pred_check_branch
      %164 = sbr.rel (%p162) target = $region20
    $region19: #{_lambda_.26} parent=5 // pred_region
      // Predicated region
      $region21: #{_lambda_.26} parent=19 // pred_check
        %p165 = pneg %p50
      $region22: #{_lambda_.26} parent=19 // pred_check_branch
        %167 = sbr.rel (%p165) target = $region24
      $region23: #{_lambda_.26} parent=19 // pred_region
        %s168 = smul.u32 4, %s18
        %p169 = scmp.lt.s32.totalorder %s16, 0
        %s170 = scalar_select %p169, %s16, 0
        %p171 = scmp.lt.s32.totalorder %s168, 35
        %s172 = scalar_select %p171, %s168, 35
        %s173 = smul.addr %s170, 36
        %s174 = sadd.s32 %s172, %s173
        %s175 = smul.addr %s174, 4
        %s176 = scalar_lea.vmem %s0, %s175
        %s177 = smul.u32 4, %s18
      $region24: #{_lambda_.26} parent=19 // pred_fallthru
        _
      // Predicated region
      $region25: #{_lambda_.26} parent=19 // pred_check
        %p178 = pneg %p78
      $region26: #{_lambda_.26} parent=19 // pred_check_branch
        %180 = sbr.rel (%p178) target = $region28
      $region27: #{_lambda_.26} parent=19 // pred_region
        %s181 = smul.u32 64, %s18
        %s182 = smul.u32 2, %s17
        %p183 = scmp.lt.s32.totalorder %s181, 575
        %s184 = scalar_select %p183, %s181, 575
        %p185 = scmp.lt.s32.totalorder %s182, 1
        %s186 = scalar_select %p185, %s182, 1
        %s187 = smul.addr %s184, 2
        %s188 = sadd.s32 %s186, %s187
        %s189 = smul.addr %s188, 4
        %s190 = scalar_lea.vmem %s1, %s189
        %s191 = smul.u32 64, %s18
        %s192 = smul.u32 2, %s17
      $region28: #{_lambda_.26} parent=19 // pred_fallthru
        _
    $region20: #{_lambda_.26} parent=5 // pred_fallthru
      _
    %p193 = scmp.le.s32.totalorder 1, %s9
    %p194 = scmp.lt.s32.totalorder %s9, 10
    %p195 = pnand %p193, %p194
    %p196 = pneg %p195
    // Predicated region
    $region29: #{_lambda_.26} parent=5 // pred_check
      _
    $region30: #{_lambda_.26} parent=5 // pred_check_branch
      %198 = sbr.rel (%p195) target = $region32
    $region31: #{_lambda_.26} parent=5 // pred_region
      %s199 = ssub.s32 %s9, 1
      %s200 = smul.u32 4, %s21
      %p201 = scmp.lt.s32.totalorder %s19, 0
      %s202 = scalar_select %p201, %s19, 0
      %p203 = scmp.lt.s32.totalorder %s200, 35
      %s204 = scalar_select %p203, %s200, 35
      %s205 = smul.addr %s202, 36
      %s206 = sadd.s32 %s204, %s205
      %s207 = smul.addr %s206, 4
      %s208 = scalar_lea.vmem %s0, %s207
      %p209 = pneg %p56
      %p210 = pneg %p53
      %s211 = smul.u32 64, %s21
      %s212 = smul.u32 2, %s20
      %p213 = scmp.lt.s32.totalorder %s211, 575
      %s214 = scalar_select %p213, %s211, 575
      %p215 = scmp.lt.s32.totalorder %s212, 1
      %s216 = scalar_select %p215, %s212, 1
      %s217 = smul.addr %s214, 2
      %s218 = sadd.s32 %s216, %s217
      %s219 = smul.addr %s218, 4
      %s220 = scalar_lea.vmem %s1, %s219
      %p221 = pneg %p84
      %p222 = pneg %p81
      %s223 = smul.u32 2, %s20
      %p224 = scmp.lt.s32.totalorder %s223, 1
      %s225 = scalar_select %p224, %s223, 1
      %s226 = scalar_lea.vmem %s2, %s225
      %p227 = pneg %p110
      %p228 = pneg %p107
      %p229 = pneg %p138
      %p230 = pneg %p135
      %s231 = smul.u32 2, %s20
      %p232 = scmp.lt.s32.totalorder %s19, 0
      %s233 = scalar_select %p232, %s19, 0
      %p234 = scmp.lt.s32.totalorder %s231, 1
      %s235 = scalar_select %p234, %s231, 1
      %s236 = smul.addr %s233, 2
      %s237 = sadd.s32 %s235, %s236
      %s238 = smul.addr %s237, 4
      %s239 = scalar_lea.vmem %s3, %s238
      %s240 = smul.u32 4, %s21
      %p241 = scmp.lt.s32.totalorder %s19, 0
      %s242 = scalar_select %p241, %s19, 0
      %p243 = scmp.lt.s32.totalorder %s240, 35
      %s244 = scalar_select %p243, %s240, 35
      %s245 = smul.addr %s242, 36
      %s246 = sadd.s32 %s244, %s245
      %s247 = smul.addr %s246, 4
      %s248 = scalar_lea.vmem %s0, %s247
      %s249 = smul.u32 4, %s21
      %s250 = smul.u32 64, %s21
      %s251 = smul.u32 2, %s20
      %p252 = scmp.lt.s32.totalorder %s250, 575
      %s253 = scalar_select %p252, %s250, 575
      %p254 = scmp.lt.s32.totalorder %s251, 1
      %s255 = scalar_select %p254, %s251, 1
      %s256 = smul.addr %s253, 2
      %s257 = sadd.s32 %s255, %s256
      %s258 = smul.addr %s257, 4
      %s259 = scalar_lea.vmem %s1, %s258
      %s260 = smul.u32 64, %s21
      %s261 = smul.u32 2, %s20
      %s262 = smul.u32 2, %s20
      %p263 = scmp.lt.s32.totalorder %s262, 1
      %s264 = scalar_select %p263, %s262, 1
      %s265 = scalar_lea.vmem %s2, %s264
      %s266 = smul.u32 2, %s20
      %s267 = smul.u32 2, %s20
      %p268 = scmp.lt.s32.totalorder %s19, 0
      %s269 = scalar_select %p268, %s19, 0
      %p270 = scmp.lt.s32.totalorder %s267, 1
      %s271 = scalar_select %p270, %s267, 1
      %s272 = smul.addr %s269, 2
      %s273 = sadd.s32 %s271, %s272
      %s274 = smul.addr %s273, 4
      %s275 = scalar_lea.vmem %s3, %s274
      %s276 = smul.u32 2, %s20
      %p277 = scmp.eq.s32.totalorder %s21, 0
      // Predicated region
      $region33: #{_lambda_.26} parent=31 // pred_check
        %p278 = pneg %p277
      $region34: #{_lambda_.26} parent=31 // pred_check_branch
        %280 = sbr.rel (%p278) target = $region36
      $region35: #{_lambda_.26} parent=31 // pred_region
        %281 = vst [vmem:[#allocation2] sm:$0xff] 0.0
        %282 = vst [vmem:[#allocation2 + $0x8] sm:$0xff] 0.0
      $region36: #{_lambda_.26} parent=31 // pred_fallthru
        _
      %v283 = vld [vmem:[#allocation2] sm:$0xff]
      %v284 = vld [vmem:[#allocation2 + $0x8] sm:$0xff]
      %v285 = vld [vmem:[%s248] sm:$0xff]
      %v286 = vld [vmem:[%s248 + $0x8] sm:$0xff]
      %v287 = vld [vmem:[%s259] sm:$0xff]
      %v288 = vld [vmem:[%s259 + $0x8] sm:$0xff]
      %v289 = vld [vmem:[%s259 + $0x10] sm:$0xff]
      %v290 = vld [vmem:[%s259 + $0x18] sm:$0xff]
      %v291 = vld [vmem:[%s259 + $0x20] sm:$0xff]
      %v292 = vld [vmem:[%s259 + $0x28] sm:$0xff]
      %v293 = vld [vmem:[%s259 + $0x30] sm:$0xff]
      %v294 = vld [vmem:[%s259 + $0x38] sm:$0xff]
      %v295 = vld [vmem:[%s259 + $0x40] sm:$0xff]
      %v296 = vld [vmem:[%s259 + $0x48] sm:$0xff]
      %v297 = vld [vmem:[%s259 + $0x50] sm:$0xff]
      %v298 = vld [vmem:[%s259 + $0x58] sm:$0xff]
      %v299 = vld [vmem:[%s259 + $0x60] sm:$0xff]
      %v300 = vld [vmem:[%s259 + $0x68] sm:$0xff]
      %v301 = vld [vmem:[%s259 + $0x70] sm:$0xff]
      %v302 = vld [vmem:[%s259 + $0x78] sm:$0xff]
      %v303 = vld [vmem:[%s259 + $0x80] sm:$0xff]
      %v304 = vld [vmem:[%s259 + $0x88] sm:$0xff]
      %v305 = vld [vmem:[%s259 + $0x90] sm:$0xff]
      %v306 = vld [vmem:[%s259 + $0x98] sm:$0xff]
      %v307 = vld [vmem:[%s259 + $0xa0] sm:$0xff]
      %v308 = vld [vmem:[%s259 + $0xa8] sm:$0xff]
      %v309 = vld [vmem:[%s259 + $0xb0] sm:$0xff]
      %v310 = vld [vmem:[%s259 + $0xb8] sm:$0xff]
      %v311 = vld [vmem:[%s259 + $0xc0] sm:$0xff]
      %v312 = vld [vmem:[%s259 + $0xc8] sm:$0xff]
      %v313 = vld [vmem:[%s259 + $0xd0] sm:$0xff]
      %v314 = vld [vmem:[%s259 + $0xd8] sm:$0xff]
      %v315 = vld [vmem:[%s259 + $0xe0] sm:$0xff]
      %v316 = vld [vmem:[%s259 + $0xe8] sm:$0xff]
      %v317 = vld [vmem:[%s259 + $0xf0] sm:$0xff]
      %v318 = vld [vmem:[%s259 + $0xf8] sm:$0xff]
      %v319 = vld [vmem:[%s259 + $0x100] sm:$0xff]
      %v320 = vld [vmem:[%s259 + $0x108] sm:$0xff]
      %v321 = vld [vmem:[%s259 + $0x110] sm:$0xff]
      %v322 = vld [vmem:[%s259 + $0x118] sm:$0xff]
      %v323 = vld [vmem:[%s259 + $0x120] sm:$0xff]
      %v324 = vld [vmem:[%s259 + $0x128] sm:$0xff]
      %v325 = vld [vmem:[%s259 + $0x130] sm:$0xff]
      %v326 = vld [vmem:[%s259 + $0x138] sm:$0xff]
      %v327 = vld [vmem:[%s259 + $0x140] sm:$0xff]
      %v328 = vld [vmem:[%s259 + $0x148] sm:$0xff]
      %v329 = vld [vmem:[%s259 + $0x150] sm:$0xff]
      %v330 = vld [vmem:[%s259 + $0x158] sm:$0xff]
      %v331 = vld [vmem:[%s259 + $0x160] sm:$0xff]
      %v332 = vld [vmem:[%s259 + $0x168] sm:$0xff]
      %v333 = vld [vmem:[%s259 + $0x170] sm:$0xff]
      %v334 = vld [vmem:[%s259 + $0x178] sm:$0xff]
      %v335 = vld [vmem:[%s259 + $0x180] sm:$0xff]
      %v336 = vld [vmem:[%s259 + $0x188] sm:$0xff]
      %v337 = vld [vmem:[%s259 + $0x190] sm:$0xff]
      %v338 = vld [vmem:[%s259 + $0x198] sm:$0xff]
      %v339 = vld [vmem:[%s259 + $0x1a0] sm:$0xff]
      %v340 = vld [vmem:[%s259 + $0x1a8] sm:$0xff]
      %v341 = vld [vmem:[%s259 + $0x1b0] sm:$0xff]
      %v342 = vld [vmem:[%s259 + $0x1b8] sm:$0xff]
      %v343 = vld [vmem:[%s259 + $0x1c0] sm:$0xff]
      %v344 = vld [vmem:[%s259 + $0x1c8] sm:$0xff]
      %v345 = vld [vmem:[%s259 + $0x1d0] sm:$0xff]
      %v346 = vld [vmem:[%s259 + $0x1d8] sm:$0xff]
      %v347 = vld [vmem:[%s259 + $0x1e0] sm:$0xff]
      %v348 = vld [vmem:[%s259 + $0x1e8] sm:$0xff]
      %v349 = vld [vmem:[%s259 + $0x1f0] sm:$0xff]
      %v350 = vld [vmem:[%s259 + $0x1f8] sm:$0xff]
      %v353 = vunpack.c.l.b16 %v285
      %v354 = vunpack.c.h.b16 %v285
      %v355 = vunpack.c.l.b16 %v286
      %v356 = vunpack.c.h.b16 %v286
      %v357 = vpack.c.b16 %v353, %v353
      %v358 = vpack.c.b16 %v354, %v354
      %v359 = vpack.c.b16 %v355, %v355
      %v360 = vpack.c.b16 %v356, %v356
      %v429 = vunpack.c.l.b16 %v287
      %v430 = vunpack.c.h.b16 %v287
      %v431 = vunpack.c.l.b16 %v288
      %v432 = vunpack.c.h.b16 %v288
      %v433 = vunpack.c.l.b16 %v289
      %v434 = vunpack.c.h.b16 %v289
      %v435 = vunpack.c.l.b16 %v290
      %v436 = vunpack.c.h.b16 %v290
      %v437 = vunpack.c.l.b16 %v291
      %v438 = vunpack.c.h.b16 %v291
      %v439 = vunpack.c.l.b16 %v292
      %v440 = vunpack.c.h.b16 %v292
      %v441 = vunpack.c.l.b16 %v293
      %v442 = vunpack.c.h.b16 %v293
      %v443 = vunpack.c.l.b16 %v294
      %v444 = vunpack.c.h.b16 %v294
      %v445 = vunpack.c.l.b16 %v295
      %v446 = vunpack.c.h.b16 %v295
      %v447 = vunpack.c.l.b16 %v296
      %v448 = vunpack.c.h.b16 %v296
      %v449 = vunpack.c.l.b16 %v297
      %v450 = vunpack.c.h.b16 %v297
      %v451 = vunpack.c.l.b16 %v298
      %v452 = vunpack.c.h.b16 %v298
      %v453 = vunpack.c.l.b16 %v299
      %v454 = vunpack.c.h.b16 %v299
      %v455 = vunpack.c.l.b16 %v300
      %v456 = vunpack.c.h.b16 %v300
      %v457 = vunpack.c.l.b16 %v301
      %v458 = vunpack.c.h.b16 %v301
      %v459 = vunpack.c.l.b16 %v302
      %v460 = vunpack.c.h.b16 %v302
      %v461 = vunpack.c.l.b16 %v303
      %v462 = vunpack.c.h.b16 %v303
      %v463 = vunpack.c.l.b16 %v304
      %v464 = vunpack.c.h.b16 %v304
      %v465 = vunpack.c.l.b16 %v305
      %v466 = vunpack.c.h.b16 %v305
      %v467 = vunpack.c.l.b16 %v306
      %v468 = vunpack.c.h.b16 %v306
      %v469 = vunpack.c.l.b16 %v307
      %v470 = vunpack.c.h.b16 %v307
      %v471 = vunpack.c.l.b16 %v308
      %v472 = vunpack.c.h.b16 %v308
      %v473 = vunpack.c.l.b16 %v309
      %v474 = vunpack.c.h.b16 %v309
      %v475 = vunpack.c.l.b16 %v310
      %v476 = vunpack.c.h.b16 %v310
      %v477 = vunpack.c.l.b16 %v311
      %v478 = vunpack.c.h.b16 %v311
      %v479 = vunpack.c.l.b16 %v312
      %v480 = vunpack.c.h.b16 %v312
      %v481 = vunpack.c.l.b16 %v313
      %v482 = vunpack.c.h.b16 %v313
      %v483 = vunpack.c.l.b16 %v314
      %v484 = vunpack.c.h.b16 %v314
      %v485 = vunpack.c.l.b16 %v315
      %v486 = vunpack.c.h.b16 %v315
      %v487 = vunpack.c.l.b16 %v316
      %v488 = vunpack.c.h.b16 %v316
      %v489 = vunpack.c.l.b16 %v317
      %v490 = vunpack.c.h.b16 %v317
      %v491 = vunpack.c.l.b16 %v318
      %v492 = vunpack.c.h.b16 %v318
      %v493 = vunpack.c.l.b16 %v319
      %v494 = vunpack.c.h.b16 %v319
      %v495 = vunpack.c.l.b16 %v320
      %v496 = vunpack.c.h.b16 %v320
      %v497 = vunpack.c.l.b16 %v321
      %v498 = vunpack.c.h.b16 %v321
      %v499 = vunpack.c.l.b16 %v322
      %v500 = vunpack.c.h.b16 %v322
      %v501 = vunpack.c.l.b16 %v323
      %v502 = vunpack.c.h.b16 %v323
      %v503 = vunpack.c.l.b16 %v324
      %v504 = vunpack.c.h.b16 %v324
      %v505 = vunpack.c.l.b16 %v325
      %v506 = vunpack.c.h.b16 %v325
      %v507 = vunpack.c.l.b16 %v326
      %v508 = vunpack.c.h.b16 %v326
      %v509 = vunpack.c.l.b16 %v327
      %v510 = vunpack.c.h.b16 %v327
      %v511 = vunpack.c.l.b16 %v328
      %v512 = vunpack.c.h.b16 %v328
      %v513 = vunpack.c.l.b16 %v329
      %v514 = vunpack.c.h.b16 %v329
      %v515 = vunpack.c.l.b16 %v330
      %v516 = vunpack.c.h.b16 %v330
      %v517 = vunpack.c.l.b16 %v331
      %v518 = vunpack.c.h.b16 %v331
      %v519 = vunpack.c.l.b16 %v332
      %v520 = vunpack.c.h.b16 %v332
      %v521 = vunpack.c.l.b16 %v333
      %v522 = vunpack.c.h.b16 %v333
      %v523 = vunpack.c.l.b16 %v334
      %v524 = vunpack.c.h.b16 %v334
      %v525 = vunpack.c.l.b16 %v335
      %v526 = vunpack.c.h.b16 %v335
      %v527 = vunpack.c.l.b16 %v336
      %v528 = vunpack.c.h.b16 %v336
      %v529 = vunpack.c.l.b16 %v337
      %v530 = vunpack.c.h.b16 %v337
      %v531 = vunpack.c.l.b16 %v338
      %v532 = vunpack.c.h.b16 %v338
      %v533 = vunpack.c.l.b16 %v339
      %v534 = vunpack.c.h.b16 %v339
      %v535 = vunpack.c.l.b16 %v340
      %v536 = vunpack.c.h.b16 %v340
      %v537 = vunpack.c.l.b16 %v341
      %v538 = vunpack.c.h.b16 %v341
      %v539 = vunpack.c.l.b16 %v342
      %v540 = vunpack.c.h.b16 %v342
      %v541 = vunpack.c.l.b16 %v343
      %v542 = vunpack.c.h.b16 %v343
      %v543 = vunpack.c.l.b16 %v344
      %v544 = vunpack.c.h.b16 %v344
      %v545 = vunpack.c.l.b16 %v345
      %v546 = vunpack.c.h.b16 %v345
      %v547 = vunpack.c.l.b16 %v346
      %v548 = vunpack.c.h.b16 %v346
      %v549 = vunpack.c.l.b16 %v347
      %v550 = vunpack.c.h.b16 %v347
      %v551 = vunpack.c.l.b16 %v348
      %v552 = vunpack.c.h.b16 %v348
      %v553 = vunpack.c.l.b16 %v349
      %v554 = vunpack.c.h.b16 %v349
      %v555 = vunpack.c.l.b16 %v350
      %v556 = vunpack.c.h.b16 %v350
      %v557 = vpack.c.b16 %v431, %v429
      %v558 = vpack.c.b16 %v432, %v430
      %v559 = vpack.c.b16 %v435, %v433
      %v560 = vpack.c.b16 %v436, %v434
      %v561 = vpack.c.b16 %v439, %v437
      %v562 = vpack.c.b16 %v440, %v438
      %v563 = vpack.c.b16 %v443, %v441
      %v564 = vpack.c.b16 %v444, %v442
      %v565 = vpack.c.b16 %v447, %v445
      %v566 = vpack.c.b16 %v448, %v446
      %v567 = vpack.c.b16 %v451, %v449
      %v568 = vpack.c.b16 %v452, %v450
      %v569 = vpack.c.b16 %v455, %v453
      %v570 = vpack.c.b16 %v456, %v454
      %v571 = vpack.c.b16 %v459, %v457
      %v572 = vpack.c.b16 %v460, %v458
      %v573 = vpack.c.b16 %v463, %v461
      %v574 = vpack.c.b16 %v464, %v462
      %v575 = vpack.c.b16 %v467, %v465
      %v576 = vpack.c.b16 %v468, %v466
      %v577 = vpack.c.b16 %v471, %v469
      %v578 = vpack.c.b16 %v472, %v470
      %v579 = vpack.c.b16 %v475, %v473
      %v580 = vpack.c.b16 %v476, %v474
      %v581 = vpack.c.b16 %v479, %v477
      %v582 = vpack.c.b16 %v480, %v478
      %v583 = vpack.c.b16 %v483, %v481
      %v584 = vpack.c.b16 %v484, %v482
      %v585 = vpack.c.b16 %v487, %v485
      %v586 = vpack.c.b16 %v488, %v486
      %v587 = vpack.c.b16 %v491, %v489
      %v588 = vpack.c.b16 %v492, %v490
      %v589 = vpack.c.b16 %v495, %v493
      %v590 = vpack.c.b16 %v496, %v494
      %v591 = vpack.c.b16 %v499, %v497
      %v592 = vpack.c.b16 %v500, %v498
      %v593 = vpack.c.b16 %v503, %v501
      %v594 = vpack.c.b16 %v504, %v502
      %v595 = vpack.c.b16 %v507, %v505
      %v596 = vpack.c.b16 %v508, %v506
      %v597 = vpack.c.b16 %v511, %v509
      %v598 = vpack.c.b16 %v512, %v510
      %v599 = vpack.c.b16 %v515, %v513
      %v600 = vpack.c.b16 %v516, %v514
      %v601 = vpack.c.b16 %v519, %v517
      %v602 = vpack.c.b16 %v520, %v518
      %v603 = vpack.c.b16 %v523, %v521
      %v604 = vpack.c.b16 %v524, %v522
      %v605 = vpack.c.b16 %v527, %v525
      %v606 = vpack.c.b16 %v528, %v526
      %v607 = vpack.c.b16 %v531, %v529
      %v608 = vpack.c.b16 %v532, %v530
      %v609 = vpack.c.b16 %v535, %v533
      %v610 = vpack.c.b16 %v536, %v534
      %v611 = vpack.c.b16 %v539, %v537
      %v612 = vpack.c.b16 %v540, %v538
      %v613 = vpack.c.b16 %v543, %v541
      %v614 = vpack.c.b16 %v544, %v542
      %v615 = vpack.c.b16 %v547, %v545
      %v616 = vpack.c.b16 %v548, %v546
      %v617 = vpack.c.b16 %v551, %v549
      %v618 = vpack.c.b16 %v552, %v550
      %v619 = vpack.c.b16 %v555, %v553
      %v620 = vpack.c.b16 %v556, %v554
      %685 = vmatprep.subr.bf16.mxu0 %v572
      %686 = vmatpush1.bf16.msra.mxu0 %v571
      %687 = vmatprep.subr.bf16.mxu0 %v570
      %688 = vmatpush1.bf16.msra.mxu0 %v569
      %689 = vmatprep.subr.bf16.mxu0 %v568
      %690 = vmatpush1.bf16.msra.mxu0 %v567
      %691 = vmatprep.subr.bf16.mxu0 %v566
      %692 = vmatpush1.bf16.msra.mxu0 %v565
      %693 = vmatprep.subr.bf16.mxu0 %v564
      %694 = vmatpush1.bf16.msra.mxu0 %v563
      %695 = vmatprep.subr.bf16.mxu0 %v562
      %696 = vmatpush1.bf16.msra.mxu0 %v561
      %697 = vmatprep.subr.bf16.mxu0 %v560
      %698 = vmatpush1.bf16.msra.mxu0 %v559
      %699 = vmatprep.subr.bf16.mxu0 %v558
      %700 = vmatpush1.bf16.msra.mxu0 %v557
      %701 = vmatprep.subr.bf16.mxu0 %v588
      %702 = vmatpush2.bf16.msra.mxu0 %v587
      %703 = vmatprep.subr.bf16.mxu0 %v586
      %704 = vmatpush2.bf16.msra.mxu0 %v585
      %705 = vmatprep.subr.bf16.mxu0 %v584
      %706 = vmatpush2.bf16.msra.mxu0 %v583
      %707 = vmatprep.subr.bf16.mxu0 %v582
      %708 = vmatpush2.bf16.msra.mxu0 %v581
      %709 = vmatprep.subr.bf16.mxu0 %v580
      %710 = vmatpush2.bf16.msra.mxu0 %v579
      %711 = vmatprep.subr.bf16.mxu0 %v578
      %712 = vmatpush2.bf16.msra.mxu0 %v577
      %713 = vmatprep.subr.bf16.mxu0 %v576
      %714 = vmatpush2.bf16.msra.mxu0 %v575
      %715 = vmatprep.subr.bf16.mxu0 %v574
      %716 = vmatpush2.bf16.msra.mxu0 %v573
      %717 = vmatprep.mubr.bf16.mxu0 %v358
      %718 = vmatmul.mubr.bf16.gmra.mxu0 %v357
      %v719 = vpop.f32.mrf.mxu0
      %v720 = vadd.f32 0.0, %v719
      %v721 = vpop.f32.mrf.mxu0
      %v722 = vadd.f32 0.0, %v721
      %v723 = vpop.f32.mrf.mxu0
      %v724 = vpop.f32.mrf.mxu0
      %725 = vdwg.mxu0
      %726 = vmatprep.subr.bf16.mxu0 %v604
      %727 = vmatpush1.bf16.msra.mxu0 %v603
      %728 = vmatprep.subr.bf16.mxu0 %v602
      %729 = vmatpush1.bf16.msra.mxu0 %v601
      %730 = vmatprep.subr.bf16.mxu0 %v600
      %731 = vmatpush1.bf16.msra.mxu0 %v599
      %732 = vmatprep.subr.bf16.mxu0 %v598
      %733 = vmatpush1.bf16.msra.mxu0 %v597
      %734 = vmatprep.subr.bf16.mxu0 %v596
      %735 = vmatpush1.bf16.msra.mxu0 %v595
      %736 = vmatprep.subr.bf16.mxu0 %v594
      %737 = vmatpush1.bf16.msra.mxu0 %v593
      %738 = vmatprep.subr.bf16.mxu0 %v592
      %739 = vmatpush1.bf16.msra.mxu0 %v591
      %740 = vmatprep.subr.bf16.mxu0 %v590
      %741 = vmatpush1.bf16.msra.mxu0 %v589
      %742 = vmatprep.subr.bf16.mxu0 %v620
      %743 = vmatpush2.bf16.msra.mxu0 %v619
      %744 = vmatprep.subr.bf16.mxu0 %v618
      %745 = vmatpush2.bf16.msra.mxu0 %v617
      %746 = vmatprep.subr.bf16.mxu0 %v616
      %747 = vmatpush2.bf16.msra.mxu0 %v615
      %748 = vmatprep.subr.bf16.mxu0 %v614
      %749 = vmatpush2.bf16.msra.mxu0 %v613
      %750 = vmatprep.subr.bf16.mxu0 %v612
      %751 = vmatpush2.bf16.msra.mxu0 %v611
      %752 = vmatprep.subr.bf16.mxu0 %v610
      %753 = vmatpush2.bf16.msra.mxu0 %v609
      %754 = vmatprep.subr.bf16.mxu0 %v608
      %755 = vmatpush2.bf16.msra.mxu0 %v607
      %756 = vmatprep.subr.bf16.mxu0 %v606
      %757 = vmatpush2.bf16.msra.mxu0 %v605
      %758 = vmatprep.mubr.bf16.mxu0 %v360
      %759 = vmatmul.mubr.bf16.gmra.mxu0 %v359
      %v760 = vpop.f32.mrf.mxu0
      %v761 = vadd.f32 %v720, %v760
      %v762 = vpop.f32.mrf.mxu0
      %v763 = vadd.f32 %v722, %v762
      %v764 = vpop.f32.mrf.mxu0
      %v765 = vpop.f32.mrf.mxu0
      %766 = vdwg.mxu0
      %v767 = vadd.f32 %v283, %v761
      %v768 = vadd.f32 %v284, %v763
      %769 = vst [vmem:[#allocation2] sm:$0xff] %v767
      %770 = vst [vmem:[#allocation2 + $0x8] sm:$0xff] %v768
      %p771 = scmp.eq.s32.totalorder %s21, 8
      // Predicated region
      $region37: #{_lambda_.26} parent=31 // pred_check
        %p772 = pneg %p771
      $region38: #{_lambda_.26} parent=31 // pred_check_branch
        %774 = sbr.rel (%p772) target = $region40
      $region39: #{_lambda_.26} parent=31 // pred_region
        %v775 = vld [vmem:[#allocation2] sm:$0xff]
        %v776 = vld [vmem:[#allocation2 + $0x8] sm:$0xff]
        %v777 = vld [vmem:[%s265] sm:$0x3]
        %v779 = vlaneseq
        %v780 = vshrl.u32 %v779, 7
        %v781 = vsub.s32 0, %v780
        %v782 = vrot.slane %v777, %v781
        %v783 = vlaneseq
        %v784 = vshrl.u32 %v783, 7
        %v785 = vsub.s32 1, %v784
        %v786 = vrot.slane %v777, %v785
        %v789 = vadd.f32 %v775, %v782
        %v790 = vadd.f32 %v776, %v786
        %v791 = vmax.f32 %v789, 0.0
        %v792 = vmax.f32 %v790, 0.0
        %v793 = vpack.c.bf16 %v791, %v791
        %v794 = vpack.c.bf16 %v792, %v792
        %v797 = vunpack.c.l.b16 %v793
        %v798 = vunpack.c.l.b16 %v794
        %v799 = vpack.c.b16 %v798, %v797
        %801 = vst [vmem:[%s275] sm:$0xff] %v799
      $region40: #{_lambda_.26} parent=31 // pred_fallthru
        _
      %s802 = smul.u32 2, %s20
      %p803 = scmp.lt.s32.totalorder %s19, 0
      %s804 = scalar_select %p803, %s19, 0
      %p805 = scmp.lt.s32.totalorder %s802, 1
      %s806 = scalar_select %p805, %s802, 1
      %s807 = smul.addr %s804, 2
      %s808 = sadd.s32 %s806, %s807
      %s809 = smul.addr %s808, 4
      %s810 = scalar_lea.vmem %s3, %s809
      // Predicated region
      $region41: #{_lambda_.26} parent=31 // pred_check
        %p811 = pneg %p135
      $region42: #{_lambda_.26} parent=31 // pred_check_branch
        %813 = sbr.rel (%p811) target = $region44
      $region43: #{_lambda_.26} parent=31 // pred_region
        %s814 = smul.u32 2, %s20
      $region44: #{_lambda_.26} parent=31 // pred_fallthru
        _
      // Predicated region
      $region45: #{_lambda_.26} parent=31 // pred_check
        %p815 = pneg %p135
      $region46: #{_lambda_.26} parent=31 // pred_check_branch
        %817 = sbr.rel (%p815) target = $region48
      $region47: #{_lambda_.26} parent=31 // pred_region
        %s818 = smul.u32 2, %s20
        %p819 = scmp.lt.s32.totalorder %s19, 0
        %s820 = scalar_select %p819, %s19, 0
        %p821 = scmp.lt.s32.totalorder %s818, 1
        %s822 = scalar_select %p821, %s818, 1
        %s823 = smul.addr %s820, 2
        %s824 = sadd.s32 %s822, %s823
        %s825 = smul.addr %s824, 4
        %s826 = scalar_lea.vmem %s3, %s825
      $region48: #{_lambda_.26} parent=31 // pred_fallthru
        _
    $region32: #{_lambda_.26} parent=5 // pred_fallthru
      _
    %p827 = scmp.le.s32.totalorder 2, %s9
    // Predicated region
    $region49: #{_lambda_.26} parent=5 // pred_check
      %p828 = pneg %p827
    $region50: #{_lambda_.26} parent=5 // pred_check_branch
      %830 = sbr.rel (%p828) target = $region52
    $region51: #{_lambda_.26} parent=5 // pred_region
      %s831 = ssub.s32 %s9, 2
    $region52: #{_lambda_.26} parent=5 // pred_fallthru
      _
  $region6: #{_lambda_.26} parent=0 // loop_footer
    %s13 = sadd.s32 1, %s9
  $region7: #{_lambda_.26} parent=0 // loop_footer_branch
    %8 = sbr.rel target = $region3
  $region8: #{_lambda_.26} parent=0 // loop_exit
    _

// kernel: _lambda_.22
$region0: #{_lambda_.22}
  #allocation0 [shape = 'u32[]', space=smem, size = 0x4, offset = 0x4, fixed_abs, tag = 'smem constant byte address 0x4 - core index']
  #allocation1 [shape = 'u32[144,128]{1,0:T(1,128)}', space=vmem, size = 0x12000, scoped, tag = 'internal scratch']
  #allocation2 [shape = 'f32[8,512]{1,0:T(8,128)}', space=vmem, size = 0x4000, scoped, tag = 'scratch operand']
  %s0 = inlined_call_operand.vmem [shape: bf16[8,2048], index: 0, kind: input, shape index: {}]
  %s1 = inlined_call_operand.vmem [shape: bf16[2048,512], index: 1, kind: input, shape index: {}]
  %s2 = inlined_call_operand.vmem [shape: f32[1,512], index: 2, kind: input, shape index: {}]
  %s3 = inlined_call_operand.vmem [shape: bf16[8,512], index: 3, kind: output, shape index: {}]
  %s4 = sld [smem:[#allocation0]]
  $region53: #{_lambda_.22} parent=0
    _
  %s6 = ssub.s32 1, %s4
  %s7 = scalar_select 0, %s6, %s4
  loop: start=0, step=1, limit=6
  $region2: #{_lambda_.22} parent=0 // loop_pre_header
    _
  $region3: #{_lambda_.22} parent=0 // loop_header
    %s9 = sphi 0, %s13
    %p10 = scmp.ge.s32.totalorder %s9, 6
    %s16 = sphi 0, %s35
    %s17 = sphi 0, %s31
    %s18 = sphi 0, %s27
    %s19 = sphi 0, %s16
    %s20 = sphi 0, %s17
    %s21 = sphi 0, %s18
    %s22 = sphi 0, %s19
    %s23 = sphi 0, %s20
    %s24 = sphi 0, %s21
    %s40 = sphi 0, %s42
    %s43 = sphi 0, %s40
    %s44 = sphi 0, %s43
    %s60 = sphi 0, %s44
    %s68 = sphi 0, %s70
    %s71 = sphi 0, %s68
    %s72 = sphi 0, %s71
    %s88 = sphi 0, %s72
    %s94 = sphi 0, %s96
    %s97 = sphi 0, %s94
    %s98 = sphi 0, %s97
    %s114 = sphi 0, %s98
    %s122 = sphi 0, %s124
    %s125 = sphi 0, %s122
    %s126 = sphi 0, %s125
    %s142 = sphi 0, %s126
  $region4: #{_lambda_.22} parent=0 // loop_header_branch
    %12 = sbr.rel (%p10) target = $region8
  $region5: #{_lambda_.22} parent=0 // loop_body
    %s14 = ssub.s32 %s9, 1
    %s15 = ssub.s32 %s9, 2
    %s25 = sadd.s32 1, %s18
    %p26 = scmp.ge.s32.totalorder %s25, 4
    %s27 = scalar_select %p26, 0, %s25
    %s28 = sadd.s32 1, %s17
    %s29 = scalar_select %p26, %s28, %s17
    %p30 = scmp.ge.s32.totalorder %s29, 1
    %s31 = scalar_select %p30, 0, %s29
    %s32 = sadd.s32 1, %s16
    %s33 = scalar_select %p30, %s32, %s16
    %p34 = scmp.ge.s32.totalorder %s33, 1
    %s35 = scalar_select %p34, 0, %s33
    %s36 = ssub.s32 %s16, %s35
    %s37 = ssub.s32 %s18, %s27
    %s38 = sor.u32 %s36, %s37
    %p39 = scmp.eq.s32.totalorder %s38, 0
    %s41 = sadd.s32 %s40, 1
    %s42 = scalar_select %p39, %s40, %s41
    %p45 = pneg %p39
    %p46 = scmp.eq.s32.totalorder %s9, 3
    %p47 = por %p45, %p46
    %p48 = scmp.ne.s32.totalorder %s40, %s43
    %p49 = scmp.eq.s32.totalorder %s9, 0
    %p50 = por %p48, %p49
    %p51 = scmp.ne.s32.totalorder %s40, %s43
    %p52 = scmp.eq.s32.totalorder %s14, 3
    %p53 = por %p51, %p52
    %p54 = scmp.ne.s32.totalorder %s43, %s44
    %p55 = scmp.eq.s32.totalorder %s14, 0
    %p56 = por %p54, %p55
    %p57 = scmp.ne.s32.totalorder %s43, %s44
    %p58 = scmp.eq.s32.totalorder %s15, 3
    %p59 = por %p57, %p58
    %p61 = scmp.ne.s32.totalorder %s44, %s60
    %p62 = scmp.eq.s32.totalorder %s15, 0
    %p63 = por %p61, %p62
    %s64 = ssub.s32 %s18, %s27
    %s65 = ssub.s32 %s17, %s31
    %s66 = sor.u32 %s64, %s65
    %p67 = scmp.eq.s32.totalorder %s66, 0
    %s69 = sadd.s32 %s68, 1
    %s70 = scalar_select %p67, %s68, %s69
    %p73 = pneg %p67
    %p74 = scmp.eq.s32.totalorder %s9, 3
    %p75 = por %p73, %p74
    %p76 = scmp.ne.s32.totalorder %s68, %s71
    %p77 = scmp.eq.s32.totalorder %s9, 0
    %p78 = por %p76, %p77
    %p79 = scmp.ne.s32.totalorder %s68, %s71
    %p80 = scmp.eq.s32.totalorder %s14, 3
    %p81 = por %p79, %p80
    %p82 = scmp.ne.s32.totalorder %s71, %s72
    %p83 = scmp.eq.s32.totalorder %s14, 0
    %p84 = por %p82, %p83
    %p85 = scmp.ne.s32.totalorder %s71, %s72
    %p86 = scmp.eq.s32.totalorder %s15, 3
    %p87 = por %p85, %p86
    %p89 = scmp.ne.s32.totalorder %s72, %s88
    %p90 = scmp.eq.s32.totalorder %s15, 0
    %p91 = por %p89, %p90
    %s92 = ssub.s32 %s17, %s31
    %p93 = scmp.eq.s32.totalorder %s92, 0
    %s95 = sadd.s32 %s94, 1
    %s96 = scalar_select %p93, %s94, %s95
    %p99 = pneg %p93
    %p100 = scmp.eq.s32.totalorder %s9, 3
    %p101 = por %p99, %p100
    %p102 = scmp.ne.s32.totalorder %s94, %s97
    %p103 = scmp.eq.s32.totalorder %s9, 0
    %p104 = por %p102, %p103
    %p105 = scmp.ne.s32.totalorder %s94, %s97
    %p106 = scmp.eq.s32.totalorder %s14, 3
    %p107 = por %p105, %p106
    %p108 = scmp.ne.s32.totalorder %s97, %s98
    %p109 = scmp.eq.s32.totalorder %s14, 0
    %p110 = por %p108, %p109
    %p111 = scmp.ne.s32.totalorder %s97, %s98
    %p112 = scmp.eq.s32.totalorder %s15, 3
    %p113 = por %p111, %p112
    %p115 = scmp.ne.s32.totalorder %s98, %s114
    %p116 = scmp.eq.s32.totalorder %s15, 0
    %p117 = por %p115, %p116
    %s118 = ssub.s32 %s16, %s35
    %s119 = ssub.s32 %s17, %s31
    %s120 = sor.u32 %s118, %s119
    %p121 = scmp.eq.s32.totalorder %s120, 0
    %s123 = sadd.s32 %s122, 1
    %s124 = scalar_select %p121, %s122, %s123
    %p127 = pneg %p121
    %p128 = scmp.eq.s32.totalorder %s9, 3
    %p129 = por %p127, %p128
    %p130 = scmp.ne.s32.totalorder %s122, %s125
    %p131 = scmp.eq.s32.totalorder %s9, 0
    %p132 = por %p130, %p131
    %p133 = scmp.ne.s32.totalorder %s122, %s125
    %p134 = scmp.eq.s32.totalorder %s14, 3
    %p135 = por %p133, %p134
    %p136 = scmp.ne.s32.totalorder %s125, %s126
    %p137 = scmp.eq.s32.totalorder %s14, 0
    %p138 = por %p136, %p137
    %p139 = scmp.ne.s32.totalorder %s125, %s126
    %p140 = scmp.eq.s32.totalorder %s15, 3
    %p141 = por %p139, %p140
    %p143 = scmp.ne.s32.totalorder %s126, %s142
    %p144 = scmp.eq.s32.totalorder %s15, 0
    %p145 = por %p143, %p144
    %p146 = scmp.le.s32.totalorder 1, %s9
    %p147 = scmp.lt.s32.totalorder %s9, 5
    %p148 = pnand %p146, %p147
    %p149 = pneg %p148
    // Predicated region
    $region9: #{_lambda_.22} parent=5 // pred_check
      _
    $region10: #{_lambda_.22} parent=5 // pred_check_branch
      %151 = sbr.rel (%p148) target = $region12
    $region11: #{_lambda_.22} parent=5 // pred_region
      %s152 = ssub.s32 %s9, 1
      // Predicated region
      $region13: #{_lambda_.22} parent=11 // pred_check
        %p153 = pneg %p110
      $region14: #{_lambda_.22} parent=11 // pred_check_branch
        %155 = sbr.rel (%p153) target = $region16
      $region15: #{_lambda_.22} parent=11 // pred_region
        %s156 = smul.u32 4, %s20
        %p157 = scmp.lt.s32.totalorder %s156, 3
        %s158 = scalar_select %p157, %s156, 3
        %s159 = scalar_lea.vmem %s2, %s158
        %s160 = smul.u32 4, %s20
      $region16: #{_lambda_.22} parent=11 // pred_fallthru
        _
    $region12: #{_lambda_.22} parent=5 // pred_fallthru
      _
    %p161 = scmp.lt.s32.totalorder %s9, 4
    // Predicated region
    $region17: #{_lambda_.22} parent=5 // pred_check
      %p162 = pneg %p161
    $region18: #{_lambda_.22} parent=5 // pred_check_branch
      %164 = sbr.rel (%p162) target = $region20
    $region19: #{_lambda_.22} parent=5 // pred_region
      // Predicated region
      $region21: #{_lambda_.22} parent=19 // pred_check
        %p165 = pneg %p50
      $region22: #{_lambda_.22} parent=19 // pred_check_branch
        %167 = sbr.rel (%p165) target = $region24
      $region23: #{_lambda_.22} parent=19 // pred_region
        %s168 = smul.u32 4, %s18
        %p169 = scmp.lt.s32.totalorder %s16, 0
        %s170 = scalar_select %p169, %s16, 0
        %p171 = scmp.lt.s32.totalorder %s168, 15
        %s172 = scalar_select %p171, %s168, 15
        %s173 = smul.addr %s170, 16
        %s174 = sadd.s32 %s172, %s173
        %s175 = smul.addr %s174, 4
        %s176 = scalar_lea.vmem %s0, %s175
        %s177 = smul.u32 4, %s18
      $region24: #{_lambda_.22} parent=19 // pred_fallthru
        _
      // Predicated region
      $region25: #{_lambda_.22} parent=19 // pred_check
        %p178 = pneg %p78
      $region26: #{_lambda_.22} parent=19 // pred_check_branch
        %180 = sbr.rel (%p178) target = $region28
      $region27: #{_lambda_.22} parent=19 // pred_region
        %s181 = smul.u32 64, %s18
        %s182 = smul.u32 4, %s17
        %p183 = scmp.lt.s32.totalorder %s181, 255
        %s184 = scalar_select %p183, %s181, 255
        %p185 = scmp.lt.s32.totalorder %s182, 3
        %s186 = scalar_select %p185, %s182, 3
        %s187 = smul.addr %s184, 4
        %s188 = sadd.s32 %s186, %s187
        %s189 = smul.addr %s188, 4
        %s190 = scalar_lea.vmem %s1, %s189
        %s191 = smul.u32 64, %s18
        %s192 = smul.u32 4, %s17
      $region28: #{_lambda_.22} parent=19 // pred_fallthru
        _
    $region20: #{_lambda_.22} parent=5 // pred_fallthru
      _
    %p193 = scmp.le.s32.totalorder 1, %s9
    %p194 = scmp.lt.s32.totalorder %s9, 5
    %p195 = pnand %p193, %p194
    %p196 = pneg %p195
    // Predicated region
    $region29: #{_lambda_.22} parent=5 // pred_check
      _
    $region30: #{_lambda_.22} parent=5 // pred_check_branch
      %198 = sbr.rel (%p195) target = $region32
    $region31: #{_lambda_.22} parent=5 // pred_region
      %s199 = ssub.s32 %s9, 1
      %s200 = smul.u32 4, %s21
      %p201 = scmp.lt.s32.totalorder %s19, 0
      %s202 = scalar_select %p201, %s19, 0
      %p203 = scmp.lt.s32.totalorder %s200, 15
      %s204 = scalar_select %p203, %s200, 15
      %s205 = smul.addr %s202, 16
      %s206 = sadd.s32 %s204, %s205
      %s207 = smul.addr %s206, 4
      %s208 = scalar_lea.vmem %s0, %s207
      %p209 = pneg %p56
      %p210 = pneg %p53
      %s211 = smul.u32 64, %s21
      %s212 = smul.u32 4, %s20
      %p213 = scmp.lt.s32.totalorder %s211, 255
      %s214 = scalar_select %p213, %s211, 255
      %p215 = scmp.lt.s32.totalorder %s212, 3
      %s216 = scalar_select %p215, %s212, 3
      %s217 = smul.addr %s214, 4
      %s218 = sadd.s32 %s216, %s217
      %s219 = smul.addr %s218, 4
      %s220 = scalar_lea.vmem %s1, %s219
      %p221 = pneg %p84
      %p222 = pneg %p81
      %s223 = smul.u32 4, %s20
      %p224 = scmp.lt.s32.totalorder %s223, 3
      %s225 = scalar_select %p224, %s223, 3
      %s226 = scalar_lea.vmem %s2, %s225
      %p227 = pneg %p110
      %p228 = pneg %p107
      %p229 = pneg %p138
      %p230 = pneg %p135
      %s231 = smul.u32 4, %s20
      %p232 = scmp.lt.s32.totalorder %s19, 0
      %s233 = scalar_select %p232, %s19, 0
      %p234 = scmp.lt.s32.totalorder %s231, 3
      %s235 = scalar_select %p234, %s231, 3
      %s236 = smul.addr %s233, 4
      %s237 = sadd.s32 %s235, %s236
      %s238 = smul.addr %s237, 4
      %s239 = scalar_lea.vmem %s3, %s238
      %s240 = smul.u32 4, %s21
      %p241 = scmp.lt.s32.totalorder %s19, 0
      %s242 = scalar_select %p241, %s19, 0
      %p243 = scmp.lt.s32.totalorder %s240, 15
      %s244 = scalar_select %p243, %s240, 15
      %s245 = smul.addr %s242, 16
      %s246 = sadd.s32 %s244, %s245
      %s247 = smul.addr %s246, 4
      %s248 = scalar_lea.vmem %s0, %s247
      %s249 = smul.u32 4, %s21
      %s250 = smul.u32 64, %s21
      %s251 = smul.u32 4, %s20
      %p252 = scmp.lt.s32.totalorder %s250, 255
      %s253 = scalar_select %p252, %s250, 255
      %p254 = scmp.lt.s32.totalorder %s251, 3
      %s255 = scalar_select %p254, %s251, 3
      %s256 = smul.addr %s253, 4
      %s257 = sadd.s32 %s255, %s256
      %s258 = smul.addr %s257, 4
      %s259 = scalar_lea.vmem %s1, %s258
      %s260 = smul.u32 64, %s21
      %s261 = smul.u32 4, %s20
      %s262 = smul.u32 4, %s20
      %p263 = scmp.lt.s32.totalorder %s262, 3
      %s264 = scalar_select %p263, %s262, 3
      %s265 = scalar_lea.vmem %s2, %s264
      %s266 = smul.u32 4, %s20
      %s267 = smul.u32 4, %s20
      %p268 = scmp.lt.s32.totalorder %s19, 0
      %s269 = scalar_select %p268, %s19, 0
      %p270 = scmp.lt.s32.totalorder %s267, 3
      %s271 = scalar_select %p270, %s267, 3
      %s272 = smul.addr %s269, 4
      %s273 = sadd.s32 %s271, %s272
      %s274 = smul.addr %s273, 4
      %s275 = scalar_lea.vmem %s3, %s274
      %s276 = smul.u32 4, %s20
      %p277 = scmp.eq.s32.totalorder %s21, 0
      // Predicated region
      $region33: #{_lambda_.22} parent=31 // pred_check
        %p278 = pneg %p277
      $region34: #{_lambda_.22} parent=31 // pred_check_branch
        %280 = sbr.rel (%p278) target = $region36
      $region35: #{_lambda_.22} parent=31 // pred_region
        %281 = vst [vmem:[#allocation2] sm:$0xff] 0.0
        %282 = vst [vmem:[#allocation2 + $0x8] sm:$0xff] 0.0
        %283 = vst [vmem:[#allocation2 + $0x10] sm:$0xff] 0.0
        %284 = vst [vmem:[#allocation2 + $0x18] sm:$0xff] 0.0
      $region36: #{_lambda_.22} parent=31 // pred_fallthru
        _
      %v285 = vld [vmem:[#allocation2] sm:$0xff]
      %v286 = vld [vmem:[#allocation2 + $0x8] sm:$0xff]
      %v287 = vld [vmem:[#allocation2 + $0x10] sm:$0xff]
      %v288 = vld [vmem:[#allocation2 + $0x18] sm:$0xff]
      %v289 = vld [vmem:[%s248] sm:$0xff]
      %v290 = vld [vmem:[%s248 + $0x8] sm:$0xff]
      %v291 = vld [vmem:[%s259] sm:$0xff]
      %v292 = vld [vmem:[%s259 + $0x8] sm:$0xff]
      %v293 = vld [vmem:[%s259 + $0x10] sm:$0xff]
      %v294 = vld [vmem:[%s259 + $0x18] sm:$0xff]
      %v295 = vld [vmem:[%s259 + $0x20] sm:$0xff]
      %v296 = vld [vmem:[%s259 + $0x28] sm:$0xff]
      %v297 = vld [vmem:[%s259 + $0x30] sm:$0xff]
      %v298 = vld [vmem:[%s259 + $0x38] sm:$0xff]
      %v299 = vld [vmem:[%s259 + $0x40] sm:$0xff]
      %v300 = vld [vmem:[%s259 + $0x48] sm:$0xff]
      %v301 = vld [vmem:[%s259 + $0x50] sm:$0xff]
      %v302 = vld [vmem:[%s259 + $0x58] sm:$0xff]
      %v303 = vld [vmem:[%s259 + $0x60] sm:$0xff]
      %v304 = vld [vmem:[%s259 + $0x68] sm:$0xff]
      %v305 = vld [vmem:[%s259 + $0x70] sm:$0xff]
      %v306 = vld [vmem:[%s259 + $0x78] sm:$0xff]
      %v307 = vld [vmem:[%s259 + $0x80] sm:$0xff]
      %v308 = vld [vmem:[%s259 + $0x88] sm:$0xff]
      %v309 = vld [vmem:[%s259 + $0x90] sm:$0xff]
      %v310 = vld [vmem:[%s259 + $0x98] sm:$0xff]
      %v311 = vld [vmem:[%s259 + $0xa0] sm:$0xff]
      %v312 = vld [vmem:[%s259 + $0xa8] sm:$0xff]
      %v313 = vld [vmem:[%s259 + $0xb0] sm:$0xff]
      %v314 = vld [vmem:[%s259 + $0xb8] sm:$0xff]
      %v315 = vld [vmem:[%s259 + $0xc0] sm:$0xff]
      %v316 = vld [vmem:[%s259 + $0xc8] sm:$0xff]
      %v317 = vld [vmem:[%s259 + $0xd0] sm:$0xff]
      %v318 = vld [vmem:[%s259 + $0xd8] sm:$0xff]
      %v319 = vld [vmem:[%s259 + $0xe0] sm:$0xff]
      %v320 = vld [vmem:[%s259 + $0xe8] sm:$0xff]
      %v321 = vld [vmem:[%s259 + $0xf0] sm:$0xff]
      %v322 = vld [vmem:[%s259 + $0xf8] sm:$0xff]
      %v323 = vld [vmem:[%s259 + $0x100] sm:$0xff]
      %v324 = vld [vmem:[%s259 + $0x108] sm:$0xff]
      %v325 = vld [vmem:[%s259 + $0x110] sm:$0xff]
      %v326 = vld [vmem:[%s259 + $0x118] sm:$0xff]
      %v327 = vld [vmem:[%s259 + $0x120] sm:$0xff]
      %v328 = vld [vmem:[%s259 + $0x128] sm:$0xff]
      %v329 = vld [vmem:[%s259 + $0x130] sm:$0xff]
      %v330 = vld [vmem:[%s259 + $0x138] sm:$0xff]
      %v331 = vld [vmem:[%s259 + $0x140] sm:$0xff]
      %v332 = vld [vmem:[%s259 + $0x148] sm:$0xff]
      %v333 = vld [vmem:[%s259 + $0x150] sm:$0xff]
      %v334 = vld [vmem:[%s259 + $0x158] sm:$0xff]
      %v335 = vld [vmem:[%s259 + $0x160] sm:$0xff]
      %v336 = vld [vmem:[%s259 + $0x168] sm:$0xff]
      %v337 = vld [vmem:[%s259 + $0x170] sm:$0xff]
      %v338 = vld [vmem:[%s259 + $0x178] sm:$0xff]
      %v339 = vld [vmem:[%s259 + $0x180] sm:$0xff]
      %v340 = vld [vmem:[%s259 + $0x188] sm:$0xff]
      %v341 = vld [vmem:[%s259 + $0x190] sm:$0xff]
      %v342 = vld [vmem:[%s259 + $0x198] sm:$0xff]
      %v343 = vld [vmem:[%s259 + $0x1a0] sm:$0xff]
      %v344 = vld [vmem:[%s259 + $0x1a8] sm:$0xff]
      %v345 = vld [vmem:[%s259 + $0x1b0] sm:$0xff]
      %v346 = vld [vmem:[%s259 + $0x1b8] sm:$0xff]
      %v347 = vld [vmem:[%s259 + $0x1c0] sm:$0xff]
      %v348 = vld [vmem:[%s259 + $0x1c8] sm:$0xff]
      %v349 = vld [vmem:[%s259 + $0x1d0] sm:$0xff]
      %v350 = vld [vmem:[%s259 + $0x1d8] sm:$0xff]
      %v351 = vld [vmem:[%s259 + $0x1e0] sm:$0xff]
      %v352 = vld [vmem:[%s259 + $0x1e8] sm:$0xff]
      %v353 = vld [vmem:[%s259 + $0x1f0] sm:$0xff]
      %v354 = vld [vmem:[%s259 + $0x1f8] sm:$0xff]
      %v355 = vld [vmem:[%s259 + $0x200] sm:$0xff]
      %v356 = vld [vmem:[%s259 + $0x208] sm:$0xff]
      %v357 = vld [vmem:[%s259 + $0x210] sm:$0xff]
      %v358 = vld [vmem:[%s259 + $0x218] sm:$0xff]
      %v359 = vld [vmem:[%s259 + $0x220] sm:$0xff]
      %v360 = vld [vmem:[%s259 + $0x228] sm:$0xff]
      %v361 = vld [vmem:[%s259 + $0x230] sm:$0xff]
      %v362 = vld [vmem:[%s259 + $0x238] sm:$0xff]
      %v363 = vld [vmem:[%s259 + $0x240] sm:$0xff]
      %v364 = vld [vmem:[%s259 + $0x248] sm:$0xff]
      %v365 = vld [vmem:[%s259 + $0x250] sm:$0xff]
      %v366 = vld [vmem:[%s259 + $0x258] sm:$0xff]
      %v367 = vld [vmem:[%s259 + $0x260] sm:$0xff]
      %v368 = vld [vmem:[%s259 + $0x268] sm:$0xff]
      %v369 = vld [vmem:[%s259 + $0x270] sm:$0xff]
      %v370 = vld [vmem:[%s259 + $0x278] sm:$0xff]
      %v371 = vld [vmem:[%s259 + $0x280] sm:$0xff]
      %v372 = vld [vmem:[%s259 + $0x288] sm:$0xff]
      %v373 = vld [vmem:[%s259 + $0x290] sm:$0xff]
      %v374 = vld [vmem:[%s259 + $0x298] sm:$0xff]
      %v375 = vld [vmem:[%s259 + $0x2a0] sm:$0xff]
      %v376 = vld [vmem:[%s259 + $0x2a8] sm:$0xff]
      %v377 = vld [vmem:[%s259 + $0x2b0] sm:$0xff]
      %v378 = vld [vmem:[%s259 + $0x2b8] sm:$0xff]
      %v379 = vld [vmem:[%s259 + $0x2c0] sm:$0xff]
      %v380 = vld [vmem:[%s259 + $0x2c8] sm:$0xff]
      %v381 = vld [vmem:[%s259 + $0x2d0] sm:$0xff]
      %v382 = vld [vmem:[%s259 + $0x2d8] sm:$0xff]
      %v383 = vld [vmem:[%s259 + $0x2e0] sm:$0xff]
      %v384 = vld [vmem:[%s259 + $0x2e8] sm:$0xff]
      %v385 = vld [vmem:[%s259 + $0x2f0] sm:$0xff]
      %v386 = vld [vmem:[%s259 + $0x2f8] sm:$0xff]
      %v387 = vld [vmem:[%s259 + $0x300] sm:$0xff]
      %v388 = vld [vmem:[%s259 + $0x308] sm:$0xff]
      %v389 = vld [vmem:[%s259 + $0x310] sm:$0xff]
      %v390 = vld [vmem:[%s259 + $0x318] sm:$0xff]
      %v391 = vld [vmem:[%s259 + $0x320] sm:$0xff]
      %v392 = vld [vmem:[%s259 + $0x328] sm:$0xff]
      %v393 = vld [vmem:[%s259 + $0x330] sm:$0xff]
      %v394 = vld [vmem:[%s259 + $0x338] sm:$0xff]
      %v395 = vld [vmem:[%s259 + $0x340] sm:$0xff]
      %v396 = vld [vmem:[%s259 + $0x348] sm:$0xff]
      %v397 = vld [vmem:[%s259 + $0x350] sm:$0xff]
      %v398 = vld [vmem:[%s259 + $0x358] sm:$0xff]
      %v399 = vld [vmem:[%s259 + $0x360] sm:$0xff]
      %v400 = vld [vmem:[%s259 + $0x368] sm:$0xff]
      %v401 = vld [vmem:[%s259 + $0x370] sm:$0xff]
      %v402 = vld [vmem:[%s259 + $0x378] sm:$0xff]
      %v403 = vld [vmem:[%s259 + $0x380] sm:$0xff]
      %v404 = vld [vmem:[%s259 + $0x388] sm:$0xff]
      %v405 = vld [vmem:[%s259 + $0x390] sm:$0xff]
      %v406 = vld [vmem:[%s259 + $0x398] sm:$0xff]
      %v407 = vld [vmem:[%s259 + $0x3a0] sm:$0xff]
      %v408 = vld [vmem:[%s259 + $0x3a8] sm:$0xff]
      %v409 = vld [vmem:[%s259 + $0x3b0] sm:$0xff]
      %v410 = vld [vmem:[%s259 + $0x3b8] sm:$0xff]
      %v411 = vld [vmem:[%s259 + $0x3c0] sm:$0xff]
      %v412 = vld [vmem:[%s259 + $0x3c8] sm:$0xff]
      %v413 = vld [vmem:[%s259 + $0x3d0] sm:$0xff]
      %v414 = vld [vmem:[%s259 + $0x3d8] sm:$0xff]
      %v415 = vld [vmem:[%s259 + $0x3e0] sm:$0xff]
      %v416 = vld [vmem:[%s259 + $0x3e8] sm:$0xff]
      %v417 = vld [vmem:[%s259 + $0x3f0] sm:$0xff]
      %v418 = vld [vmem:[%s259 + $0x3f8] sm:$0xff]
      %v421 = vunpack.c.l.b16 %v289
      %v422 = vunpack.c.h.b16 %v289
      %v423 = vunpack.c.l.b16 %v290
      %v424 = vunpack.c.h.b16 %v290
      %v425 = vpack.c.b16 %v421, %v421
      %v426 = vpack.c.b16 %v422, %v422
      %v427 = vpack.c.b16 %v423, %v423
      %v428 = vpack.c.b16 %v424, %v424
      %v561 = vunpack.c.l.b16 %v291
      %v562 = vunpack.c.h.b16 %v291
      %v563 = vunpack.c.l.b16 %v292
      %v564 = vunpack.c.h.b16 %v292
      %v565 = vunpack.c.l.b16 %v293
      %v566 = vunpack.c.h.b16 %v293
      %v567 = vunpack.c.l.b16 %v294
      %v568 = vunpack.c.h.b16 %v294
      %v569 = vunpack.c.l.b16 %v295
      %v570 = vunpack.c.h.b16 %v295
      %v571 = vunpack.c.l.b16 %v296
      %v572 = vunpack.c.h.b16 %v296
      %v573 = vunpack.c.l.b16 %v297
      %v574 = vunpack.c.h.b16 %v297
      %v575 = vunpack.c.l.b16 %v298
      %v576 = vunpack.c.h.b16 %v298
      %v577 = vunpack.c.l.b16 %v299
      %v578 = vunpack.c.h.b16 %v299
      %v579 = vunpack.c.l.b16 %v300
      %v580 = vunpack.c.h.b16 %v300
      %v581 = vunpack.c.l.b16 %v301
      %v582 = vunpack.c.h.b16 %v301
      %v583 = vunpack.c.l.b16 %v302
      %v584 = vunpack.c.h.b16 %v302
      %v585 = vunpack.c.l.b16 %v303
      %v586 = vunpack.c.h.b16 %v303
      %v587 = vunpack.c.l.b16 %v304
      %v588 = vunpack.c.h.b16 %v304
      %v589 = vunpack.c.l.b16 %v305
      %v590 = vunpack.c.h.b16 %v305
      %v591 = vunpack.c.l.b16 %v306
      %v592 = vunpack.c.h.b16 %v306
      %v593 = vunpack.c.l.b16 %v307
      %v594 = vunpack.c.h.b16 %v307
      %v595 = vunpack.c.l.b16 %v308
      %v596 = vunpack.c.h.b16 %v308
      %v597 = vunpack.c.l.b16 %v309
      %v598 = vunpack.c.h.b16 %v309
      %v599 = vunpack.c.l.b16 %v310
      %v600 = vunpack.c.h.b16 %v310
      %v601 = vunpack.c.l.b16 %v311
      %v602 = vunpack.c.h.b16 %v311
      %v603 = vunpack.c.l.b16 %v312
      %v604 = vunpack.c.h.b16 %v312
      %v605 = vunpack.c.l.b16 %v313
      %v606 = vunpack.c.h.b16 %v313
      %v607 = vunpack.c.l.b16 %v314
      %v608 = vunpack.c.h.b16 %v314
      %v609 = vunpack.c.l.b16 %v315
      %v610 = vunpack.c.h.b16 %v315
      %v611 = vunpack.c.l.b16 %v316
      %v612 = vunpack.c.h.b16 %v316
      %v613 = vunpack.c.l.b16 %v317
      %v614 = vunpack.c.h.b16 %v317
      %v615 = vunpack.c.l.b16 %v318
      %v616 = vunpack.c.h.b16 %v318
      %v617 = vunpack.c.l.b16 %v319
      %v618 = vunpack.c.h.b16 %v319
      %v619 = vunpack.c.l.b16 %v320
      %v620 = vunpack.c.h.b16 %v320
      %v621 = vunpack.c.l.b16 %v321
      %v622 = vunpack.c.h.b16 %v321
      %v623 = vunpack.c.l.b16 %v322
      %v624 = vunpack.c.h.b16 %v322
      %v625 = vunpack.c.l.b16 %v323
      %v626 = vunpack.c.h.b16 %v323
      %v627 = vunpack.c.l.b16 %v324
      %v628 = vunpack.c.h.b16 %v324
      %v629 = vunpack.c.l.b16 %v325
      %v630 = vunpack.c.h.b16 %v325
      %v631 = vunpack.c.l.b16 %v326
      %v632 = vunpack.c.h.b16 %v326
      %v633 = vunpack.c.l.b16 %v327
      %v634 = vunpack.c.h.b16 %v327
      %v635 = vunpack.c.l.b16 %v328
      %v636 = vunpack.c.h.b16 %v328
      %v637 = vunpack.c.l.b16 %v329
      %v638 = vunpack.c.h.b16 %v329
      %v639 = vunpack.c.l.b16 %v330
      %v640 = vunpack.c.h.b16 %v330
      %v641 = vunpack.c.l.b16 %v331
      %v642 = vunpack.c.h.b16 %v331
      %v643 = vunpack.c.l.b16 %v332
      %v644 = vunpack.c.h.b16 %v332
      %v645 = vunpack.c.l.b16 %v333
      %v646 = vunpack.c.h.b16 %v333
      %v647 = vunpack.c.l.b16 %v334
      %v648 = vunpack.c.h.b16 %v334
      %v649 = vunpack.c.l.b16 %v335
      %v650 = vunpack.c.h.b16 %v335
      %v651 = vunpack.c.l.b16 %v336
      %v652 = vunpack.c.h.b16 %v336
      %v653 = vunpack.c.l.b16 %v337
      %v654 = vunpack.c.h.b16 %v337
      %v655 = vunpack.c.l.b16 %v338
      %v656 = vunpack.c.h.b16 %v338
      %v657 = vunpack.c.l.b16 %v339
      %v658 = vunpack.c.h.b16 %v339
      %v659 = vunpack.c.l.b16 %v340
      %v660 = vunpack.c.h.b16 %v340
      %v661 = vunpack.c.l.b16 %v341
      %v662 = vunpack.c.h.b16 %v341
      %v663 = vunpack.c.l.b16 %v342
      %v664 = vunpack.c.h.b16 %v342
      %v665 = vunpack.c.l.b16 %v343
      %v666 = vunpack.c.h.b16 %v343
      %v667 = vunpack.c.l.b16 %v344
      %v668 = vunpack.c.h.b16 %v344
      %v669 = vunpack.c.l.b16 %v345
      %v670 = vunpack.c.h.b16 %v345
      %v671 = vunpack.c.l.b16 %v346
      %v672 = vunpack.c.h.b16 %v346
      %v673 = vunpack.c.l.b16 %v347
      %v674 = vunpack.c.h.b16 %v347
      %v675 = vunpack.c.l.b16 %v348
      %v676 = vunpack.c.h.b16 %v348
      %v677 = vunpack.c.l.b16 %v349
      %v678 = vunpack.c.h.b16 %v349
      %v679 = vunpack.c.l.b16 %v350
      %v680 = vunpack.c.h.b16 %v350
      %v681 = vunpack.c.l.b16 %v351
      %v682 = vunpack.c.h.b16 %v351
      %v683 = vunpack.c.l.b16 %v352
      %v684 = vunpack.c.h.b16 %v352
      %v685 = vunpack.c.l.b16 %v353
      %v686 = vunpack.c.h.b16 %v353
      %v687 = vunpack.c.l.b16 %v354
      %v688 = vunpack.c.h.b16 %v354
      %v689 = vunpack.c.l.b16 %v355
      %v690 = vunpack.c.h.b16 %v355
      %v691 = vunpack.c.l.b16 %v356
      %v692 = vunpack.c.h.b16 %v356
      %v693 = vunpack.c.l.b16 %v357
      %v694 = vunpack.c.h.b16 %v357
      %v695 = vunpack.c.l.b16 %v358
      %v696 = vunpack.c.h.b16 %v358
      %v697 = vunpack.c.l.b16 %v359
      %v698 = vunpack.c.h.b16 %v359
      %v699 = vunpack.c.l.b16 %v360
      %v700 = vunpack.c.h.b16 %v360
      %v701 = vunpack.c.l.b16 %v361
      %v702 = vunpack.c.h.b16 %v361
      %v703 = vunpack.c.l.b16 %v362
      %v704 = vunpack.c.h.b16 %v362
      %v705 = vunpack.c.l.b16 %v363
      %v706 = vunpack.c.h.b16 %v363
      %v707 = vunpack.c.l.b16 %v364
      %v708 = vunpack.c.h.b16 %v364
      %v709 = vunpack.c.l.b16 %v365
      %v710 = vunpack.c.h.b16 %v365
      %v711 = vunpack.c.l.b16 %v366
      %v712 = vunpack.c.h.b16 %v366
      %v713 = vunpack.c.l.b16 %v367
      %v714 = vunpack.c.h.b16 %v367
      %v715 = vunpack.c.l.b16 %v368
      %v716 = vunpack.c.h.b16 %v368
      %v717 = vunpack.c.l.b16 %v369
      %v718 = vunpack.c.h.b16 %v369
      %v719 = vunpack.c.l.b16 %v370
      %v720 = vunpack.c.h.b16 %v370
      %v721 = vunpack.c.l.b16 %v371
      %v722 = vunpack.c.h.b16 %v371
      %v723 = vunpack.c.l.b16 %v372
      %v724 = vunpack.c.h.b16 %v372
      %v725 = vunpack.c.l.b16 %v373
      %v726 = vunpack.c.h.b16 %v373
      %v727 = vunpack.c.l.b16 %v374
      %v728 = vunpack.c.h.b16 %v374
      %v729 = vunpack.c.l.b16 %v375
      %v730 = vunpack.c.h.b16 %v375
      %v731 = vunpack.c.l.b16 %v376
      %v732 = vunpack.c.h.b16 %v376
      %v733 = vunpack.c.l.b16 %v377
      %v734 = vunpack.c.h.b16 %v377
      %v735 = vunpack.c.l.b16 %v378
      %v736 = vunpack.c.h.b16 %v378
      %v737 = vunpack.c.l.b16 %v379
      %v738 = vunpack.c.h.b16 %v379
      %v739 = vunpack.c.l.b16 %v380
      %v740 = vunpack.c.h.b16 %v380
      %v741 = vunpack.c.l.b16 %v381
      %v742 = vunpack.c.h.b16 %v381
      %v743 = vunpack.c.l.b16 %v382
      %v744 = vunpack.c.h.b16 %v382
      %v745 = vunpack.c.l.b16 %v383
      %v746 = vunpack.c.h.b16 %v383
      %v747 = vunpack.c.l.b16 %v384
      %v748 = vunpack.c.h.b16 %v384
      %v749 = vunpack.c.l.b16 %v385
      %v750 = vunpack.c.h.b16 %v385
      %v751 = vunpack.c.l.b16 %v386
      %v752 = vunpack.c.h.b16 %v386
      %v753 = vunpack.c.l.b16 %v387
      %v754 = vunpack.c.h.b16 %v387
      %v755 = vunpack.c.l.b16 %v388
      %v756 = vunpack.c.h.b16 %v388
      %v757 = vunpack.c.l.b16 %v389
      %v758 = vunpack.c.h.b16 %v389
      %v759 = vunpack.c.l.b16 %v390
      %v760 = vunpack.c.h.b16 %v390
      %v761 = vunpack.c.l.b16 %v391
      %v762 = vunpack.c.h.b16 %v391
      %v763 = vunpack.c.l.b16 %v392
      %v764 = vunpack.c.h.b16 %v392
      %v765 = vunpack.c.l.b16 %v393
      %v766 = vunpack.c.h.b16 %v393
      %v767 = vunpack.c.l.b16 %v394
      %v768 = vunpack.c.h.b16 %v394
      %v769 = vunpack.c.l.b16 %v395
      %v770 = vunpack.c.h.b16 %v395
      %v771 = vunpack.c.l.b16 %v396
      %v772 = vunpack.c.h.b16 %v396
      %v773 = vunpack.c.l.b16 %v397
      %v774 = vunpack.c.h.b16 %v397
      %v775 = vunpack.c.l.b16 %v398
      %v776 = vunpack.c.h.b16 %v398
      %v777 = vunpack.c.l.b16 %v399
      %v778 = vunpack.c.h.b16 %v399
      %v779 = vunpack.c.l.b16 %v400
      %v780 = vunpack.c.h.b16 %v400
      %v781 = vunpack.c.l.b16 %v401
      %v782 = vunpack.c.h.b16 %v401
      %v783 = vunpack.c.l.b16 %v402
      %v784 = vunpack.c.h.b16 %v402
      %v785 = vunpack.c.l.b16 %v403
      %v786 = vunpack.c.h.b16 %v403
      %v787 = vunpack.c.l.b16 %v404
      %v788 = vunpack.c.h.b16 %v404
      %v789 = vunpack.c.l.b16 %v405
      %v790 = vunpack.c.h.b16 %v405
      %v791 = vunpack.c.l.b16 %v406
      %v792 = vunpack.c.h.b16 %v406
      %v793 = vunpack.c.l.b16 %v407
      %v794 = vunpack.c.h.b16 %v407
      %v795 = vunpack.c.l.b16 %v408
      %v796 = vunpack.c.h.b16 %v408
      %v797 = vunpack.c.l.b16 %v409
      %v798 = vunpack.c.h.b16 %v409
      %v799 = vunpack.c.l.b16 %v410
      %v800 = vunpack.c.h.b16 %v410
      %v801 = vunpack.c.l.b16 %v411
      %v802 = vunpack.c.h.b16 %v411
      %v803 = vunpack.c.l.b16 %v412
      %v804 = vunpack.c.h.b16 %v412
      %v805 = vunpack.c.l.b16 %v413
      %v806 = vunpack.c.h.b16 %v413
      %v807 = vunpack.c.l.b16 %v414
      %v808 = vunpack.c.h.b16 %v414
      %v809 = vunpack.c.l.b16 %v415
      %v810 = vunpack.c.h.b16 %v415
      %v811 = vunpack.c.l.b16 %v416
      %v812 = vunpack.c.h.b16 %v416
      %v813 = vunpack.c.l.b16 %v417
      %v814 = vunpack.c.h.b16 %v417
      %v815 = vunpack.c.l.b16 %v418
      %v816 = vunpack.c.h.b16 %v418
      %v817 = vpack.c.b16 %v565, %v561
      %v818 = vpack.c.b16 %v566, %v562
      %v819 = vpack.c.b16 %v567, %v563
      %v820 = vpack.c.b16 %v568, %v564
      %v821 = vpack.c.b16 %v573, %v569
      %v822 = vpack.c.b16 %v574, %v570
      %v823 = vpack.c.b16 %v575, %v571
      %v824 = vpack.c.b16 %v576, %v572
      %v825 = vpack.c.b16 %v581, %v577
      %v826 = vpack.c.b16 %v582, %v578
      %v827 = vpack.c.b16 %v583, %v579
      %v828 = vpack.c.b16 %v584, %v580
      %v829 = vpack.c.b16 %v589, %v585
      %v830 = vpack.c.b16 %v590, %v586
      %v831 = vpack.c.b16 %v591, %v587
      %v832 = vpack.c.b16 %v592, %v588
      %v833 = vpack.c.b16 %v597, %v593
      %v834 = vpack.c.b16 %v598, %v594
      %v835 = vpack.c.b16 %v599, %v595
      %v836 = vpack.c.b16 %v600, %v596
      %v837 = vpack.c.b16 %v605, %v601
      %v838 = vpack.c.b16 %v606, %v602
      %v839 = vpack.c.b16 %v607, %v603
      %v840 = vpack.c.b16 %v608, %v604
      %v841 = vpack.c.b16 %v613, %v609
      %v842 = vpack.c.b16 %v614, %v610
      %v843 = vpack.c.b16 %v615, %v611
      %v844 = vpack.c.b16 %v616, %v612
      %v845 = vpack.c.b16 %v621, %v617
      %v846 = vpack.c.b16 %v622, %v618
      %v847 = vpack.c.b16 %v623, %v619
      %v848 = vpack.c.b16 %v624, %v620
      %v849 = vpack.c.b16 %v629, %v625
      %v850 = vpack.c.b16 %v630, %v626
      %v851 = vpack.c.b16 %v631, %v627
      %v852 = vpack.c.b16 %v632, %v628
      %v853 = vpack.c.b16 %v637, %v633
      %v854 = vpack.c.b16 %v638, %v634
      %v855 = vpack.c.b16 %v639, %v635
      %v856 = vpack.c.b16 %v640, %v636
      %v857 = vpack.c.b16 %v645, %v641
      %v858 = vpack.c.b16 %v646, %v642
      %v859 = vpack.c.b16 %v647, %v643
      %v860 = vpack.c.b16 %v648, %v644
      %v861 = vpack.c.b16 %v653, %v649
      %v862 = vpack.c.b16 %v654, %v650
      %v863 = vpack.c.b16 %v655, %v651
      %v864 = vpack.c.b16 %v656, %v652
      %v865 = vpack.c.b16 %v661, %v657
      %v866 = vpack.c.b16 %v662, %v658
      %v867 = vpack.c.b16 %v663, %v659
      %v868 = vpack.c.b16 %v664, %v660
      %v869 = vpack.c.b16 %v669, %v665
      %v870 = vpack.c.b16 %v670, %v666
      %v871 = vpack.c.b16 %v671, %v667
      %v872 = vpack.c.b16 %v672, %v668
      %v873 = vpack.c.b16 %v677, %v673
      %v874 = vpack.c.b16 %v678, %v674
      %v875 = vpack.c.b16 %v679, %v675
      %v876 = vpack.c.b16 %v680, %v676
      %v877 = vpack.c.b16 %v685, %v681
      %v878 = vpack.c.b16 %v686, %v682
      %v879 = vpack.c.b16 %v687, %v683
      %v880 = vpack.c.b16 %v688, %v684
      %v881 = vpack.c.b16 %v693, %v689
      %v882 = vpack.c.b16 %v694, %v690
      %v883 = vpack.c.b16 %v695, %v691
      %v884 = vpack.c.b16 %v696, %v692
      %v885 = vpack.c.b16 %v701, %v697
      %v886 = vpack.c.b16 %v702, %v698
      %v887 = vpack.c.b16 %v703, %v699
      %v888 = vpack.c.b16 %v704, %v700
      %v889 = vpack.c.b16 %v709, %v705
      %v890 = vpack.c.b16 %v710, %v706
      %v891 = vpack.c.b16 %v711, %v707
      %v892 = vpack.c.b16 %v712, %v708
      %v893 = vpack.c.b16 %v717, %v713
      %v894 = vpack.c.b16 %v718, %v714
      %v895 = vpack.c.b16 %v719, %v715
      %v896 = vpack.c.b16 %v720, %v716
      %v897 = vpack.c.b16 %v725, %v721
      %v898 = vpack.c.b16 %v726, %v722
      %v899 = vpack.c.b16 %v727, %v723
      %v900 = vpack.c.b16 %v728, %v724
      %v901 = vpack.c.b16 %v733, %v729
      %v902 = vpack.c.b16 %v734, %v730
      %v903 = vpack.c.b16 %v735, %v731
      %v904 = vpack.c.b16 %v736, %v732
      %v905 = vpack.c.b16 %v741, %v737
      %v906 = vpack.c.b16 %v742, %v738
      %v907 = vpack.c.b16 %v743, %v739
      %v908 = vpack.c.b16 %v744, %v740
      %v909 = vpack.c.b16 %v749, %v745
      %v910 = vpack.c.b16 %v750, %v746
      %v911 = vpack.c.b16 %v751, %v747
      %v912 = vpack.c.b16 %v752, %v748
      %v913 = vpack.c.b16 %v757, %v753
      %v914 = vpack.c.b16 %v758, %v754
      %v915 = vpack.c.b16 %v759, %v755
      %v916 = vpack.c.b16 %v760, %v756
      %v917 = vpack.c.b16 %v765, %v761
      %v918 = vpack.c.b16 %v766, %v762
      %v919 = vpack.c.b16 %v767, %v763
      %v920 = vpack.c.b16 %v768, %v764
      %v921 = vpack.c.b16 %v773, %v769
      %v922 = vpack.c.b16 %v774, %v770
      %v923 = vpack.c.b16 %v775, %v771
      %v924 = vpack.c.b16 %v776, %v772
      %v925 = vpack.c.b16 %v781, %v777
      %v926 = vpack.c.b16 %v782, %v778
      %v927 = vpack.c.b16 %v783, %v779
      %v928 = vpack.c.b16 %v784, %v780
      %v929 = vpack.c.b16 %v789, %v785
      %v930 = vpack.c.b16 %v790, %v786
      %v931 = vpack.c.b16 %v791, %v787
      %v932 = vpack.c.b16 %v792, %v788
      %v933 = vpack.c.b16 %v797, %v793
      %v934 = vpack.c.b16 %v798, %v794
      %v935 = vpack.c.b16 %v799, %v795
      %v936 = vpack.c.b16 %v800, %v796
      %v937 = vpack.c.b16 %v805, %v801
      %v938 = vpack.c.b16 %v806, %v802
      %v939 = vpack.c.b16 %v807, %v803
      %v940 = vpack.c.b16 %v808, %v804
      %v941 = vpack.c.b16 %v813, %v809
      %v942 = vpack.c.b16 %v814, %v810
      %v943 = vpack.c.b16 %v815, %v811
      %v944 = vpack.c.b16 %v816, %v812
      %1073 = vmatprep.subr.bf16.mxu0 %v846
      %1074 = vmatpush1.bf16.msra.mxu0 %v845
      %1075 = vmatprep.subr.bf16.mxu0 %v842
      %1076 = vmatpush1.bf16.msra.mxu0 %v841
      %1077 = vmatprep.subr.bf16.mxu0 %v838
      %1078 = vmatpush1.bf16.msra.mxu0 %v837
      %1079 = vmatprep.subr.bf16.mxu0 %v834
      %1080 = vmatpush1.bf16.msra.mxu0 %v833
      %1081 = vmatprep.subr.bf16.mxu0 %v830
      %1082 = vmatpush1.bf16.msra.mxu0 %v829
      %1083 = vmatprep.subr.bf16.mxu0 %v826
      %1084 = vmatpush1.bf16.msra.mxu0 %v825
      %1085 = vmatprep.subr.bf16.mxu0 %v822
      %1086 = vmatpush1.bf16.msra.mxu0 %v821
      %1087 = vmatprep.subr.bf16.mxu0 %v818
      %1088 = vmatpush1.bf16.msra.mxu0 %v817
      %1089 = vmatprep.subr.bf16.mxu0 %v878
      %1090 = vmatpush2.bf16.msra.mxu0 %v877
      %1091 = vmatprep.subr.bf16.mxu0 %v874
      %1092 = vmatpush2.bf16.msra.mxu0 %v873
      %1093 = vmatprep.subr.bf16.mxu0 %v870
      %1094 = vmatpush2.bf16.msra.mxu0 %v869
      %1095 = vmatprep.subr.bf16.mxu0 %v866
      %1096 = vmatpush2.bf16.msra.mxu0 %v865
      %1097 = vmatprep.subr.bf16.mxu0 %v862
      %1098 = vmatpush2.bf16.msra.mxu0 %v861
      %1099 = vmatprep.subr.bf16.mxu0 %v858
      %1100 = vmatpush2.bf16.msra.mxu0 %v857
      %1101 = vmatprep.subr.bf16.mxu0 %v854
      %1102 = vmatpush2.bf16.msra.mxu0 %v853
      %1103 = vmatprep.subr.bf16.mxu0 %v850
      %1104 = vmatpush2.bf16.msra.mxu0 %v849
      %1105 = vmatprep.mubr.bf16.mxu0 %v426
      %1106 = vmatmul.mubr.bf16.gmra.mxu0 %v425
      %v1107 = vpop.f32.mrf.mxu0
      %v1108 = vadd.f32 0.0, %v1107
      %v1109 = vpop.f32.mrf.mxu0
      %v1110 = vadd.f32 0.0, %v1109
      %v1111 = vpop.f32.mrf.mxu0
      %v1112 = vpop.f32.mrf.mxu0
      %1113 = vdwg.mxu0
      %1114 = vmatprep.subr.bf16.mxu0 %v910
      %1115 = vmatpush1.bf16.msra.mxu0 %v909
      %1116 = vmatprep.subr.bf16.mxu0 %v906
      %1117 = vmatpush1.bf16.msra.mxu0 %v905
      %1118 = vmatprep.subr.bf16.mxu0 %v902
      %1119 = vmatpush1.bf16.msra.mxu0 %v901
      %1120 = vmatprep.subr.bf16.mxu0 %v898
      %1121 = vmatpush1.bf16.msra.mxu0 %v897
      %1122 = vmatprep.subr.bf16.mxu0 %v894
      %1123 = vmatpush1.bf16.msra.mxu0 %v893
      %1124 = vmatprep.subr.bf16.mxu0 %v890
      %1125 = vmatpush1.bf16.msra.mxu0 %v889
      %1126 = vmatprep.subr.bf16.mxu0 %v886
      %1127 = vmatpush1.bf16.msra.mxu0 %v885
      %1128 = vmatprep.subr.bf16.mxu0 %v882
      %1129 = vmatpush1.bf16.msra.mxu0 %v881
      %1130 = vmatprep.subr.bf16.mxu0 %v942
      %1131 = vmatpush2.bf16.msra.mxu0 %v941
      %1132 = vmatprep.subr.bf16.mxu0 %v938
      %1133 = vmatpush2.bf16.msra.mxu0 %v937
      %1134 = vmatprep.subr.bf16.mxu0 %v934
      %1135 = vmatpush2.bf16.msra.mxu0 %v933
      %1136 = vmatprep.subr.bf16.mxu0 %v930
      %1137 = vmatpush2.bf16.msra.mxu0 %v929
      %1138 = vmatprep.subr.bf16.mxu0 %v926
      %1139 = vmatpush2.bf16.msra.mxu0 %v925
      %1140 = vmatprep.subr.bf16.mxu0 %v922
      %1141 = vmatpush2.bf16.msra.mxu0 %v921
      %1142 = vmatprep.subr.bf16.mxu0 %v918
      %1143 = vmatpush2.bf16.msra.mxu0 %v917
      %1144 = vmatprep.subr.bf16.mxu0 %v914
      %1145 = vmatpush2.bf16.msra.mxu0 %v913
      %1146 = vmatprep.mubr.bf16.mxu0 %v428
      %1147 = vmatmul.mubr.bf16.gmra.mxu0 %v427
      %v1148 = vpop.f32.mrf.mxu0
      %v1149 = vadd.f32 %v1108, %v1148
      %v1150 = vpop.f32.mrf.mxu0
      %v1151 = vadd.f32 %v1110, %v1150
      %v1152 = vpop.f32.mrf.mxu0
      %v1153 = vpop.f32.mrf.mxu0
      %1154 = vdwg.mxu0
      %1155 = vmatprep.subr.bf16.mxu0 %v848
      %1156 = vmatpush1.bf16.msra.mxu0 %v847
      %1157 = vmatprep.subr.bf16.mxu0 %v844
      %1158 = vmatpush1.bf16.msra.mxu0 %v843
      %1159 = vmatprep.subr.bf16.mxu0 %v840
      %1160 = vmatpush1.bf16.msra.mxu0 %v839
      %1161 = vmatprep.subr.bf16.mxu0 %v836
      %1162 = vmatpush1.bf16.msra.mxu0 %v835
      %1163 = vmatprep.subr.bf16.mxu0 %v832
      %1164 = vmatpush1.bf16.msra.mxu0 %v831
      %1165 = vmatprep.subr.bf16.mxu0 %v828
      %1166 = vmatpush1.bf16.msra.mxu0 %v827
      %1167 = vmatprep.subr.bf16.mxu0 %v824
      %1168 = vmatpush1.bf16.msra.mxu0 %v823
      %1169 = vmatprep.subr.bf16.mxu0 %v820
      %1170 = vmatpush1.bf16.msra.mxu0 %v819
      %1171 = vmatprep.subr.bf16.mxu0 %v880
      %1172 = vmatpush2.bf16.msra.mxu0 %v879
      %1173 = vmatprep.subr.bf16.mxu0 %v876
      %1174 = vmatpush2.bf16.msra.mxu0 %v875
      %1175 = vmatprep.subr.bf16.mxu0 %v872
      %1176 = vmatpush2.bf16.msra.mxu0 %v871
      %1177 = vmatprep.subr.bf16.mxu0 %v868
      %1178 = vmatpush2.bf16.msra.mxu0 %v867
      %1179 = vmatprep.subr.bf16.mxu0 %v864
      %1180 = vmatpush2.bf16.msra.mxu0 %v863
      %1181 = vmatprep.subr.bf16.mxu0 %v860
      %1182 = vmatpush2.bf16.msra.mxu0 %v859
      %1183 = vmatprep.subr.bf16.mxu0 %v856
      %1184 = vmatpush2.bf16.msra.mxu0 %v855
      %1185 = vmatprep.subr.bf16.mxu0 %v852
      %1186 = vmatpush2.bf16.msra.mxu0 %v851
      %1187 = vmatprep.mubr.bf16.mxu0 %v426
      %1188 = vmatmul.mubr.bf16.gmra.mxu0 %v425
      %v1189 = vpop.f32.mrf.mxu0
      %v1190 = vadd.f32 0.0, %v1189
      %v1191 = vpop.f32.mrf.mxu0
      %v1192 = vadd.f32 0.0, %v1191
      %v1193 = vpop.f32.mrf.mxu0
      %v1194 = vpop.f32.mrf.mxu0
      %1195 = vdwg.mxu0
      %1196 = vmatprep.subr.bf16.mxu0 %v912
      %1197 = vmatpush1.bf16.msra.mxu0 %v911
      %1198 = vmatprep.subr.bf16.mxu0 %v908
      %1199 = vmatpush1.bf16.msra.mxu0 %v907
      %1200 = vmatprep.subr.bf16.mxu0 %v904
      %1201 = vmatpush1.bf16.msra.mxu0 %v903
      %1202 = vmatprep.subr.bf16.mxu0 %v900
      %1203 = vmatpush1.bf16.msra.mxu0 %v899
      %1204 = vmatprep.subr.bf16.mxu0 %v896
      %1205 = vmatpush1.bf16.msra.mxu0 %v895
      %1206 = vmatprep.subr.bf16.mxu0 %v892
      %1207 = vmatpush1.bf16.msra.mxu0 %v891
      %1208 = vmatprep.subr.bf16.mxu0 %v888
      %1209 = vmatpush1.bf16.msra.mxu0 %v887
      %1210 = vmatprep.subr.bf16.mxu0 %v884
      %1211 = vmatpush1.bf16.msra.mxu0 %v883
      %1212 = vmatprep.subr.bf16.mxu0 %v944
      %1213 = vmatpush2.bf16.msra.mxu0 %v943
      %1214 = vmatprep.subr.bf16.mxu0 %v940
      %1215 = vmatpush2.bf16.msra.mxu0 %v939
      %1216 = vmatprep.subr.bf16.mxu0 %v936
      %1217 = vmatpush2.bf16.msra.mxu0 %v935
      %1218 = vmatprep.subr.bf16.mxu0 %v932
      %1219 = vmatpush2.bf16.msra.mxu0 %v931
      %1220 = vmatprep.subr.bf16.mxu0 %v928
      %1221 = vmatpush2.bf16.msra.mxu0 %v927
      %1222 = vmatprep.subr.bf16.mxu0 %v924
      %1223 = vmatpush2.bf16.msra.mxu0 %v923
      %1224 = vmatprep.subr.bf16.mxu0 %v920
      %1225 = vmatpush2.bf16.msra.mxu0 %v919
      %1226 = vmatprep.subr.bf16.mxu0 %v916
      %1227 = vmatpush2.bf16.msra.mxu0 %v915
      %1228 = vmatprep.mubr.bf16.mxu0 %v428
      %1229 = vmatmul.mubr.bf16.gmra.mxu0 %v427
      %v1230 = vpop.f32.mrf.mxu0
      %v1231 = vadd.f32 %v1190, %v1230
      %v1232 = vpop.f32.mrf.mxu0
      %v1233 = vadd.f32 %v1192, %v1232
      %v1234 = vpop.f32.mrf.mxu0
      %v1235 = vpop.f32.mrf.mxu0
      %1236 = vdwg.mxu0
      %v1237 = vadd.f32 %v285, %v1149
      %v1238 = vadd.f32 %v286, %v1151
      %v1239 = vadd.f32 %v287, %v1231
      %v1240 = vadd.f32 %v288, %v1233
      %1241 = vst [vmem:[#allocation2] sm:$0xff] %v1237
      %1242 = vst [vmem:[#allocation2 + $0x8] sm:$0xff] %v1238
      %1243 = vst [vmem:[#allocation2 + $0x10] sm:$0xff] %v1239
      %1244 = vst [vmem:[#allocation2 + $0x18] sm:$0xff] %v1240
      %p1245 = scmp.eq.s32.totalorder %s21, 3
      // Predicated region
      $region37: #{_lambda_.22} parent=31 // pred_check
        %p1246 = pneg %p1245
      $region38: #{_lambda_.22} parent=31 // pred_check_branch
        %1248 = sbr.rel (%p1246) target = $region40
      $region39: #{_lambda_.22} parent=31 // pred_region
        %v1249 = vld [vmem:[#allocation2] sm:$0xff]
        %v1250 = vld [vmem:[#allocation2 + $0x8] sm:$0xff]
        %v1251 = vld [vmem:[#allocation2 + $0x10] sm:$0xff]
        %v1252 = vld [vmem:[#allocation2 + $0x18] sm:$0xff]
        %v1253 = vld [vmem:[%s265] sm:$0xf]
        %v1255 = vlaneseq
        %v1256 = vshrl.u32 %v1255, 7
        %v1257 = vsub.s32 0, %v1256
        %v1258 = vrot.slane %v1253, %v1257
        %v1259 = vlaneseq
        %v1260 = vshrl.u32 %v1259, 7
        %v1261 = vsub.s32 1, %v1260
        %v1262 = vrot.slane %v1253, %v1261
        %v1263 = vlaneseq
        %v1264 = vshrl.u32 %v1263, 7
        %v1265 = vsub.s32 2, %v1264
        %v1266 = vrot.slane %v1253, %v1265
        %v1267 = vlaneseq
        %v1268 = vshrl.u32 %v1267, 7
        %v1269 = vsub.s32 3, %v1268
        %v1270 = vrot.slane %v1253, %v1269
        %v1275 = vadd.f32 %v1249, %v1258
        %v1276 = vadd.f32 %v1250, %v1262
        %v1277 = vadd.f32 %v1251, %v1266
        %v1278 = vadd.f32 %v1252, %v1270
        %v1279 = vmax.f32 %v1275, 0.0
        %v1280 = vmax.f32 %v1276, 0.0
        %v1281 = vmax.f32 %v1277, 0.0
        %v1282 = vmax.f32 %v1278, 0.0
        %v1283 = vpack.c.bf16 %v1279, %v1279
        %v1284 = vpack.c.bf16 %v1280, %v1280
        %v1285 = vpack.c.bf16 %v1281, %v1281
        %v1286 = vpack.c.bf16 %v1282, %v1282
        %v1291 = vunpack.c.l.b16 %v1283
        %v1292 = vunpack.c.l.b16 %v1284
        %v1293 = vunpack.c.l.b16 %v1285
        %v1294 = vunpack.c.l.b16 %v1286
        %v1295 = vpack.c.b16 %v1292, %v1291
        %v1296 = vpack.c.b16 %v1294, %v1293
        %1299 = vst [vmem:[%s275] sm:$0xff] %v1295
        %1300 = vst [vmem:[%s275 + $0x8] sm:$0xff] %v1296
      $region40: #{_lambda_.22} parent=31 // pred_fallthru
        _
      %s1301 = smul.u32 4, %s20
      %p1302 = scmp.lt.s32.totalorder %s19, 0
      %s1303 = scalar_select %p1302, %s19, 0
      %p1304 = scmp.lt.s32.totalorder %s1301, 3
      %s1305 = scalar_select %p1304, %s1301, 3
      %s1306 = smul.addr %s1303, 4
      %s1307 = sadd.s32 %s1305, %s1306
      %s1308 = smul.addr %s1307, 4
      %s1309 = scalar_lea.vmem %s3, %s1308
      // Predicated region
      $region41: #{_lambda_.22} parent=31 // pred_check
        %p1310 = pneg %p135
      $region42: #{_lambda_.22} parent=31 // pred_check_branch
        %1312 = sbr.rel (%p1310) target = $region44
      $region43: #{_lambda_.22} parent=31 // pred_region
        %s1313 = smul.u32 4, %s20
      $region44: #{_lambda_.22} parent=31 // pred_fallthru
        _
      // Predicated region
      $region45: #{_lambda_.22} parent=31 // pred_check
        %p1314 = pneg %p135
      $region46: #{_lambda_.22} parent=31 // pred_check_branch
        %1316 = sbr.rel (%p1314) target = $region48
      $region47: #{_lambda_.22} parent=31 // pred_region
        %s1317 = smul.u32 4, %s20
        %p1318 = scmp.lt.s32.totalorder %s19, 0
        %s1319 = scalar_select %p1318, %s19, 0
        %p1320 = scmp.lt.s32.totalorder %s1317, 3
        %s1321 = scalar_select %p1320, %s1317, 3
        %s1322 = smul.addr %s1319, 4
        %s1323 = sadd.s32 %s1321, %s1322
        %s1324 = smul.addr %s1323, 4
        %s1325 = scalar_lea.vmem %s3, %s1324
      $region48: #{_lambda_.22} parent=31 // pred_fallthru
        _
    $region32: #{_lambda_.22} parent=5 // pred_fallthru
      _
    %p1326 = scmp.le.s32.totalorder 2, %s9
    // Predicated region
    $region49: #{_lambda_.22} parent=5 // pred_check
      %p1327 = pneg %p1326
    $region50: #{_lambda_.22} parent=5 // pred_check_branch
      %1329 = sbr.rel (%p1327) target = $region52
    $region51: #{_lambda_.22} parent=5 // pred_region
      %s1330 = ssub.s32 %s9, 2
    $region52: #{_lambda_.22} parent=5 // pred_fallthru
      _
  $region6: #{_lambda_.22} parent=0 // loop_footer
    %s13 = sadd.s32 1, %s9
  $region7: #{_lambda_.22} parent=0 // loop_footer_branch
    %8 = sbr.rel target = $region3
  $region8: #{_lambda_.22} parent=0 // loop_exit
    _

// kernel: _lambda_.23
$region0: #{_lambda_.23}
  #allocation0 [shape = 'u32[]', space=smem, size = 0x4, offset = 0x4, fixed_abs, tag = 'smem constant byte address 0x4 - core index']
  #allocation1 [shape = 'u32[144,128]{1,0:T(1,128)}', space=vmem, size = 0x12000, scoped, tag = 'internal scratch']
  #allocation2 [shape = 'f32[8,256]{1,0:T(8,128)}', space=vmem, size = 0x2000, scoped, tag = 'scratch operand']
  %s0 = inlined_call_operand.vmem [shape: bf16[8,512], index: 0, kind: input, shape index: {}]
  %s1 = inlined_call_operand.vmem [shape: bf16[512,256], index: 1, kind: input, shape index: {}]
  %s2 = inlined_call_operand.vmem [shape: f32[1,256], index: 2, kind: input, shape index: {}]
  %s3 = inlined_call_operand.vmem [shape: bf16[8,256], index: 3, kind: output, shape index: {}]
  %s4 = sld [smem:[#allocation0]]
  $region30: #{_lambda_.23} parent=0
    _
  %s6 = ssub.s32 1, %s4
  %s7 = scalar_select 0, %s6, %s4
  // Predicated region
  $region2: #{_lambda_.23} parent=0 // pred_check
    _
  $region3: #{_lambda_.23} parent=0 // pred_check_branch
    %9 = sbr.rel (0) target = $region5
  $region4: #{_lambda_.23} parent=0 // pred_region
    _
  $region5: #{_lambda_.23} parent=0 // pred_fallthru
    _
  // Predicated region
  $region6: #{_lambda_.23} parent=0 // pred_check
    _
  $region7: #{_lambda_.23} parent=0 // pred_check_branch
    %11 = sbr.rel (0) target = $region9
  $region8: #{_lambda_.23} parent=0 // pred_region
    _
  $region9: #{_lambda_.23} parent=0 // pred_fallthru
    _
  // Predicated region
  $region10: #{_lambda_.23} parent=0 // pred_check
    _
  $region11: #{_lambda_.23} parent=0 // pred_check_branch
    %13 = sbr.rel (0) target = $region13
  $region12: #{_lambda_.23} parent=0 // pred_region
    _
  $region13: #{_lambda_.23} parent=0 // pred_fallthru
    _
  %p14 = scmp.eq.s32.totalorder 0, 0
  // Predicated region
  $region14: #{_lambda_.23} parent=0 // pred_check
    %p15 = pneg %p14
  $region15: #{_lambda_.23} parent=0 // pred_check_branch
    %17 = sbr.rel (%p15) target = $region17
  $region16: #{_lambda_.23} parent=0 // pred_region
    %18 = vst [vmem:[#allocation2] sm:$0xff] 0.0
    %19 = vst [vmem:[#allocation2 + $0x8] sm:$0xff] 0.0
  $region17: #{_lambda_.23} parent=0 // pred_fallthru
    _
  %v20 = vld [vmem:[#allocation2] sm:$0xff]
  %v21 = vld [vmem:[#allocation2 + $0x8] sm:$0xff]
  %v22 = vld [vmem:[%s0] sm:$0xff]
  %v23 = vld [vmem:[%s0 + $0x8] sm:$0xff]
  %v24 = vld [vmem:[%s1] sm:$0xff]
  %v25 = vld [vmem:[%s1 + $0x8] sm:$0xff]
  %v26 = vld [vmem:[%s1 + $0x10] sm:$0xff]
  %v27 = vld [vmem:[%s1 + $0x18] sm:$0xff]
  %v28 = vld [vmem:[%s1 + $0x20] sm:$0xff]
  %v29 = vld [vmem:[%s1 + $0x28] sm:$0xff]
  %v30 = vld [vmem:[%s1 + $0x30] sm:$0xff]
  %v31 = vld [vmem:[%s1 + $0x38] sm:$0xff]
  %v32 = vld [vmem:[%s1 + $0x40] sm:$0xff]
  %v33 = vld [vmem:[%s1 + $0x48] sm:$0xff]
  %v34 = vld [vmem:[%s1 + $0x50] sm:$0xff]
  %v35 = vld [vmem:[%s1 + $0x58] sm:$0xff]
  %v36 = vld [vmem:[%s1 + $0x60] sm:$0xff]
  %v37 = vld [vmem:[%s1 + $0x68] sm:$0xff]
  %v38 = vld [vmem:[%s1 + $0x70] sm:$0xff]
  %v39 = vld [vmem:[%s1 + $0x78] sm:$0xff]
  %v40 = vld [vmem:[%s1 + $0x80] sm:$0xff]
  %v41 = vld [vmem:[%s1 + $0x88] sm:$0xff]
  %v42 = vld [vmem:[%s1 + $0x90] sm:$0xff]
  %v43 = vld [vmem:[%s1 + $0x98] sm:$0xff]
  %v44 = vld [vmem:[%s1 + $0xa0] sm:$0xff]
  %v45 = vld [vmem:[%s1 + $0xa8] sm:$0xff]
  %v46 = vld [vmem:[%s1 + $0xb0] sm:$0xff]
  %v47 = vld [vmem:[%s1 + $0xb8] sm:$0xff]
  %v48 = vld [vmem:[%s1 + $0xc0] sm:$0xff]
  %v49 = vld [vmem:[%s1 + $0xc8] sm:$0xff]
  %v50 = vld [vmem:[%s1 + $0xd0] sm:$0xff]
  %v51 = vld [vmem:[%s1 + $0xd8] sm:$0xff]
  %v52 = vld [vmem:[%s1 + $0xe0] sm:$0xff]
  %v53 = vld [vmem:[%s1 + $0xe8] sm:$0xff]
  %v54 = vld [vmem:[%s1 + $0xf0] sm:$0xff]
  %v55 = vld [vmem:[%s1 + $0xf8] sm:$0xff]
  %v56 = vld [vmem:[%s1 + $0x100] sm:$0xff]
  %v57 = vld [vmem:[%s1 + $0x108] sm:$0xff]
  %v58 = vld [vmem:[%s1 + $0x110] sm:$0xff]
  %v59 = vld [vmem:[%s1 + $0x118] sm:$0xff]
  %v60 = vld [vmem:[%s1 + $0x120] sm:$0xff]
  %v61 = vld [vmem:[%s1 + $0x128] sm:$0xff]
  %v62 = vld [vmem:[%s1 + $0x130] sm:$0xff]
  %v63 = vld [vmem:[%s1 + $0x138] sm:$0xff]
  %v64 = vld [vmem:[%s1 + $0x140] sm:$0xff]
  %v65 = vld [vmem:[%s1 + $0x148] sm:$0xff]
  %v66 = vld [vmem:[%s1 + $0x150] sm:$0xff]
  %v67 = vld [vmem:[%s1 + $0x158] sm:$0xff]
  %v68 = vld [vmem:[%s1 + $0x160] sm:$0xff]
  %v69 = vld [vmem:[%s1 + $0x168] sm:$0xff]
  %v70 = vld [vmem:[%s1 + $0x170] sm:$0xff]
  %v71 = vld [vmem:[%s1 + $0x178] sm:$0xff]
  %v72 = vld [vmem:[%s1 + $0x180] sm:$0xff]
  %v73 = vld [vmem:[%s1 + $0x188] sm:$0xff]
  %v74 = vld [vmem:[%s1 + $0x190] sm:$0xff]
  %v75 = vld [vmem:[%s1 + $0x198] sm:$0xff]
  %v76 = vld [vmem:[%s1 + $0x1a0] sm:$0xff]
  %v77 = vld [vmem:[%s1 + $0x1a8] sm:$0xff]
  %v78 = vld [vmem:[%s1 + $0x1b0] sm:$0xff]
  %v79 = vld [vmem:[%s1 + $0x1b8] sm:$0xff]
  %v80 = vld [vmem:[%s1 + $0x1c0] sm:$0xff]
  %v81 = vld [vmem:[%s1 + $0x1c8] sm:$0xff]
  %v82 = vld [vmem:[%s1 + $0x1d0] sm:$0xff]
  %v83 = vld [vmem:[%s1 + $0x1d8] sm:$0xff]
  %v84 = vld [vmem:[%s1 + $0x1e0] sm:$0xff]
  %v85 = vld [vmem:[%s1 + $0x1e8] sm:$0xff]
  %v86 = vld [vmem:[%s1 + $0x1f0] sm:$0xff]
  %v87 = vld [vmem:[%s1 + $0x1f8] sm:$0xff]
  %v90 = vunpack.c.l.b16 %v22
  %v91 = vunpack.c.h.b16 %v22
  %v92 = vunpack.c.l.b16 %v23
  %v93 = vunpack.c.h.b16 %v23
  %v94 = vpack.c.b16 %v90, %v90
  %v95 = vpack.c.b16 %v91, %v91
  %v96 = vpack.c.b16 %v92, %v92
  %v97 = vpack.c.b16 %v93, %v93
  %v166 = vunpack.c.l.b16 %v24
  %v167 = vunpack.c.h.b16 %v24
  %v168 = vunpack.c.l.b16 %v25
  %v169 = vunpack.c.h.b16 %v25
  %v170 = vunpack.c.l.b16 %v26
  %v171 = vunpack.c.h.b16 %v26
  %v172 = vunpack.c.l.b16 %v27
  %v173 = vunpack.c.h.b16 %v27
  %v174 = vunpack.c.l.b16 %v28
  %v175 = vunpack.c.h.b16 %v28
  %v176 = vunpack.c.l.b16 %v29
  %v177 = vunpack.c.h.b16 %v29
  %v178 = vunpack.c.l.b16 %v30
  %v179 = vunpack.c.h.b16 %v30
  %v180 = vunpack.c.l.b16 %v31
  %v181 = vunpack.c.h.b16 %v31
  %v182 = vunpack.c.l.b16 %v32
  %v183 = vunpack.c.h.b16 %v32
  %v184 = vunpack.c.l.b16 %v33
  %v185 = vunpack.c.h.b16 %v33
  %v186 = vunpack.c.l.b16 %v34
  %v187 = vunpack.c.h.b16 %v34
  %v188 = vunpack.c.l.b16 %v35
  %v189 = vunpack.c.h.b16 %v35
  %v190 = vunpack.c.l.b16 %v36
  %v191 = vunpack.c.h.b16 %v36
  %v192 = vunpack.c.l.b16 %v37
  %v193 = vunpack.c.h.b16 %v37
  %v194 = vunpack.c.l.b16 %v38
  %v195 = vunpack.c.h.b16 %v38
  %v196 = vunpack.c.l.b16 %v39
  %v197 = vunpack.c.h.b16 %v39
  %v198 = vunpack.c.l.b16 %v40
  %v199 = vunpack.c.h.b16 %v40
  %v200 = vunpack.c.l.b16 %v41
  %v201 = vunpack.c.h.b16 %v41
  %v202 = vunpack.c.l.b16 %v42
  %v203 = vunpack.c.h.b16 %v42
  %v204 = vunpack.c.l.b16 %v43
  %v205 = vunpack.c.h.b16 %v43
  %v206 = vunpack.c.l.b16 %v44
  %v207 = vunpack.c.h.b16 %v44
  %v208 = vunpack.c.l.b16 %v45
  %v209 = vunpack.c.h.b16 %v45
  %v210 = vunpack.c.l.b16 %v46
  %v211 = vunpack.c.h.b16 %v46
  %v212 = vunpack.c.l.b16 %v47
  %v213 = vunpack.c.h.b16 %v47
  %v214 = vunpack.c.l.b16 %v48
  %v215 = vunpack.c.h.b16 %v48
  %v216 = vunpack.c.l.b16 %v49
  %v217 = vunpack.c.h.b16 %v49
  %v218 = vunpack.c.l.b16 %v50
  %v219 = vunpack.c.h.b16 %v50
  %v220 = vunpack.c.l.b16 %v51
  %v221 = vunpack.c.h.b16 %v51
  %v222 = vunpack.c.l.b16 %v52
  %v223 = vunpack.c.h.b16 %v52
  %v224 = vunpack.c.l.b16 %v53
  %v225 = vunpack.c.h.b16 %v53
  %v226 = vunpack.c.l.b16 %v54
  %v227 = vunpack.c.h.b16 %v54
  %v228 = vunpack.c.l.b16 %v55
  %v229 = vunpack.c.h.b16 %v55
  %v230 = vunpack.c.l.b16 %v56
  %v231 = vunpack.c.h.b16 %v56
  %v232 = vunpack.c.l.b16 %v57
  %v233 = vunpack.c.h.b16 %v57
  %v234 = vunpack.c.l.b16 %v58
  %v235 = vunpack.c.h.b16 %v58
  %v236 = vunpack.c.l.b16 %v59
  %v237 = vunpack.c.h.b16 %v59
  %v238 = vunpack.c.l.b16 %v60
  %v239 = vunpack.c.h.b16 %v60
  %v240 = vunpack.c.l.b16 %v61
  %v241 = vunpack.c.h.b16 %v61
  %v242 = vunpack.c.l.b16 %v62
  %v243 = vunpack.c.h.b16 %v62
  %v244 = vunpack.c.l.b16 %v63
  %v245 = vunpack.c.h.b16 %v63
  %v246 = vunpack.c.l.b16 %v64
  %v247 = vunpack.c.h.b16 %v64
  %v248 = vunpack.c.l.b16 %v65
  %v249 = vunpack.c.h.b16 %v65
  %v250 = vunpack.c.l.b16 %v66
  %v251 = vunpack.c.h.b16 %v66
  %v252 = vunpack.c.l.b16 %v67
  %v253 = vunpack.c.h.b16 %v67
  %v254 = vunpack.c.l.b16 %v68
  %v255 = vunpack.c.h.b16 %v68
  %v256 = vunpack.c.l.b16 %v69
  %v257 = vunpack.c.h.b16 %v69
  %v258 = vunpack.c.l.b16 %v70
  %v259 = vunpack.c.h.b16 %v70
  %v260 = vunpack.c.l.b16 %v71
  %v261 = vunpack.c.h.b16 %v71
  %v262 = vunpack.c.l.b16 %v72
  %v263 = vunpack.c.h.b16 %v72
  %v264 = vunpack.c.l.b16 %v73
  %v265 = vunpack.c.h.b16 %v73
  %v266 = vunpack.c.l.b16 %v74
  %v267 = vunpack.c.h.b16 %v74
  %v268 = vunpack.c.l.b16 %v75
  %v269 = vunpack.c.h.b16 %v75
  %v270 = vunpack.c.l.b16 %v76
  %v271 = vunpack.c.h.b16 %v76
  %v272 = vunpack.c.l.b16 %v77
  %v273 = vunpack.c.h.b16 %v77
  %v274 = vunpack.c.l.b16 %v78
  %v275 = vunpack.c.h.b16 %v78
  %v276 = vunpack.c.l.b16 %v79
  %v277 = vunpack.c.h.b16 %v79
  %v278 = vunpack.c.l.b16 %v80
  %v279 = vunpack.c.h.b16 %v80
  %v280 = vunpack.c.l.b16 %v81
  %v281 = vunpack.c.h.b16 %v81
  %v282 = vunpack.c.l.b16 %v82
  %v283 = vunpack.c.h.b16 %v82
  %v284 = vunpack.c.l.b16 %v83
  %v285 = vunpack.c.h.b16 %v83
  %v286 = vunpack.c.l.b16 %v84
  %v287 = vunpack.c.h.b16 %v84
  %v288 = vunpack.c.l.b16 %v85
  %v289 = vunpack.c.h.b16 %v85
  %v290 = vunpack.c.l.b16 %v86
  %v291 = vunpack.c.h.b16 %v86
  %v292 = vunpack.c.l.b16 %v87
  %v293 = vunpack.c.h.b16 %v87
  %v294 = vpack.c.b16 %v168, %v166
  %v295 = vpack.c.b16 %v169, %v167
  %v296 = vpack.c.b16 %v172, %v170
  %v297 = vpack.c.b16 %v173, %v171
  %v298 = vpack.c.b16 %v176, %v174
  %v299 = vpack.c.b16 %v177, %v175
  %v300 = vpack.c.b16 %v180, %v178
  %v301 = vpack.c.b16 %v181, %v179
  %v302 = vpack.c.b16 %v184, %v182
  %v303 = vpack.c.b16 %v185, %v183
  %v304 = vpack.c.b16 %v188, %v186
  %v305 = vpack.c.b16 %v189, %v187
  %v306 = vpack.c.b16 %v192, %v190
  %v307 = vpack.c.b16 %v193, %v191
  %v308 = vpack.c.b16 %v196, %v194
  %v309 = vpack.c.b16 %v197, %v195
  %v310 = vpack.c.b16 %v200, %v198
  %v311 = vpack.c.b16 %v201, %v199
  %v312 = vpack.c.b16 %v204, %v202
  %v313 = vpack.c.b16 %v205, %v203
  %v314 = vpack.c.b16 %v208, %v206
  %v315 = vpack.c.b16 %v209, %v207
  %v316 = vpack.c.b16 %v212, %v210
  %v317 = vpack.c.b16 %v213, %v211
  %v318 = vpack.c.b16 %v216, %v214
  %v319 = vpack.c.b16 %v217, %v215
  %v320 = vpack.c.b16 %v220, %v218
  %v321 = vpack.c.b16 %v221, %v219
  %v322 = vpack.c.b16 %v224, %v222
  %v323 = vpack.c.b16 %v225, %v223
  %v324 = vpack.c.b16 %v228, %v226
  %v325 = vpack.c.b16 %v229, %v227
  %v326 = vpack.c.b16 %v232, %v230
  %v327 = vpack.c.b16 %v233, %v231
  %v328 = vpack.c.b16 %v236, %v234
  %v329 = vpack.c.b16 %v237, %v235
  %v330 = vpack.c.b16 %v240, %v238
  %v331 = vpack.c.b16 %v241, %v239
  %v332 = vpack.c.b16 %v244, %v242
  %v333 = vpack.c.b16 %v245, %v243
  %v334 = vpack.c.b16 %v248, %v246
  %v335 = vpack.c.b16 %v249, %v247
  %v336 = vpack.c.b16 %v252, %v250
  %v337 = vpack.c.b16 %v253, %v251
  %v338 = vpack.c.b16 %v256, %v254
  %v339 = vpack.c.b16 %v257, %v255
  %v340 = vpack.c.b16 %v260, %v258
  %v341 = vpack.c.b16 %v261, %v259
  %v342 = vpack.c.b16 %v264, %v262
  %v343 = vpack.c.b16 %v265, %v263
  %v344 = vpack.c.b16 %v268, %v266
  %v345 = vpack.c.b16 %v269, %v267
  %v346 = vpack.c.b16 %v272, %v270
  %v347 = vpack.c.b16 %v273, %v271
  %v348 = vpack.c.b16 %v276, %v274
  %v349 = vpack.c.b16 %v277, %v275
  %v350 = vpack.c.b16 %v280, %v278
  %v351 = vpack.c.b16 %v281, %v279
  %v352 = vpack.c.b16 %v284, %v282
  %v353 = vpack.c.b16 %v285, %v283
  %v354 = vpack.c.b16 %v288, %v286
  %v355 = vpack.c.b16 %v289, %v287
  %v356 = vpack.c.b16 %v292, %v290
  %v357 = vpack.c.b16 %v293, %v291
  %422 = vmatprep.subr.bf16.mxu0 %v309
  %423 = vmatpush1.bf16.msra.mxu0 %v308
  %424 = vmatprep.subr.bf16.mxu0 %v307
  %425 = vmatpush1.bf16.msra.mxu0 %v306
  %426 = vmatprep.subr.bf16.mxu0 %v305
  %427 = vmatpush1.bf16.msra.mxu0 %v304
  %428 = vmatprep.subr.bf16.mxu0 %v303
  %429 = vmatpush1.bf16.msra.mxu0 %v302
  %430 = vmatprep.subr.bf16.mxu0 %v301
  %431 = vmatpush1.bf16.msra.mxu0 %v300
  %432 = vmatprep.subr.bf16.mxu0 %v299
  %433 = vmatpush1.bf16.msra.mxu0 %v298
  %434 = vmatprep.subr.bf16.mxu0 %v297
  %435 = vmatpush1.bf16.msra.mxu0 %v296
  %436 = vmatprep.subr.bf16.mxu0 %v295
  %437 = vmatpush1.bf16.msra.mxu0 %v294
  %438 = vmatprep.subr.bf16.mxu0 %v325
  %439 = vmatpush2.bf16.msra.mxu0 %v324
  %440 = vmatprep.subr.bf16.mxu0 %v323
  %441 = vmatpush2.bf16.msra.mxu0 %v322
  %442 = vmatprep.subr.bf16.mxu0 %v321
  %443 = vmatpush2.bf16.msra.mxu0 %v320
  %444 = vmatprep.subr.bf16.mxu0 %v319
  %445 = vmatpush2.bf16.msra.mxu0 %v318
  %446 = vmatprep.subr.bf16.mxu0 %v317
  %447 = vmatpush2.bf16.msra.mxu0 %v316
  %448 = vmatprep.subr.bf16.mxu0 %v315
  %449 = vmatpush2.bf16.msra.mxu0 %v314
  %450 = vmatprep.subr.bf16.mxu0 %v313
  %451 = vmatpush2.bf16.msra.mxu0 %v312
  %452 = vmatprep.subr.bf16.mxu0 %v311
  %453 = vmatpush2.bf16.msra.mxu0 %v310
  %454 = vmatprep.mubr.bf16.mxu0 %v95
  %455 = vmatmul.mubr.bf16.gmra.mxu0 %v94
  %v456 = vpop.f32.mrf.mxu0
  %v457 = vadd.f32 0.0, %v456
  %v458 = vpop.f32.mrf.mxu0
  %v459 = vadd.f32 0.0, %v458
  %v460 = vpop.f32.mrf.mxu0
  %v461 = vpop.f32.mrf.mxu0
  %462 = vdwg.mxu0
  %463 = vmatprep.subr.bf16.mxu0 %v341
  %464 = vmatpush1.bf16.msra.mxu0 %v340
  %465 = vmatprep.subr.bf16.mxu0 %v339
  %466 = vmatpush1.bf16.msra.mxu0 %v338
  %467 = vmatprep.subr.bf16.mxu0 %v337
  %468 = vmatpush1.bf16.msra.mxu0 %v336
  %469 = vmatprep.subr.bf16.mxu0 %v335
  %470 = vmatpush1.bf16.msra.mxu0 %v334
  %471 = vmatprep.subr.bf16.mxu0 %v333
  %472 = vmatpush1.bf16.msra.mxu0 %v332
  %473 = vmatprep.subr.bf16.mxu0 %v331
  %474 = vmatpush1.bf16.msra.mxu0 %v330
  %475 = vmatprep.subr.bf16.mxu0 %v329
  %476 = vmatpush1.bf16.msra.mxu0 %v328
  %477 = vmatprep.subr.bf16.mxu0 %v327
  %478 = vmatpush1.bf16.msra.mxu0 %v326
  %479 = vmatprep.subr.bf16.mxu0 %v357
  %480 = vmatpush2.bf16.msra.mxu0 %v356
  %481 = vmatprep.subr.bf16.mxu0 %v355
  %482 = vmatpush2.bf16.msra.mxu0 %v354
  %483 = vmatprep.subr.bf16.mxu0 %v353
  %484 = vmatpush2.bf16.msra.mxu0 %v352
  %485 = vmatprep.subr.bf16.mxu0 %v351
  %486 = vmatpush2.bf16.msra.mxu0 %v350
  %487 = vmatprep.subr.bf16.mxu0 %v349
  %488 = vmatpush2.bf16.msra.mxu0 %v348
  %489 = vmatprep.subr.bf16.mxu0 %v347
  %490 = vmatpush2.bf16.msra.mxu0 %v346
  %491 = vmatprep.subr.bf16.mxu0 %v345
  %492 = vmatpush2.bf16.msra.mxu0 %v344
  %493 = vmatprep.subr.bf16.mxu0 %v343
  %494 = vmatpush2.bf16.msra.mxu0 %v342
  %495 = vmatprep.mubr.bf16.mxu0 %v97
  %496 = vmatmul.mubr.bf16.gmra.mxu0 %v96
  %v497 = vpop.f32.mrf.mxu0
  %v498 = vadd.f32 %v457, %v497
  %v499 = vpop.f32.mrf.mxu0
  %v500 = vadd.f32 %v459, %v499
  %v501 = vpop.f32.mrf.mxu0
  %v502 = vpop.f32.mrf.mxu0
  %503 = vdwg.mxu0
  %v504 = vadd.f32 %v20, %v498
  %v505 = vadd.f32 %v21, %v500
  %506 = vst [vmem:[#allocation2] sm:$0xff] %v504
  %507 = vst [vmem:[#allocation2 + $0x8] sm:$0xff] %v505
  // Predicated region
  $region18: #{_lambda_.23} parent=0 // pred_check
    %p508 = pneg %p14
  $region19: #{_lambda_.23} parent=0 // pred_check_branch
    %510 = sbr.rel (%p508) target = $region21
  $region20: #{_lambda_.23} parent=0 // pred_region
    %v511 = vld [vmem:[#allocation2] sm:$0xff]
    %v512 = vld [vmem:[#allocation2 + $0x8] sm:$0xff]
    %v513 = vld [vmem:[%s2] sm:$0x3]
    %v515 = vlaneseq
    %v516 = vshrl.u32 %v515, 7
    %v517 = vsub.s32 0, %v516
    %v518 = vrot.slane %v513, %v517
    %v519 = vlaneseq
    %v520 = vshrl.u32 %v519, 7
    %v521 = vsub.s32 1, %v520
    %v522 = vrot.slane %v513, %v521
    %v525 = vadd.f32 %v511, %v518
    %v526 = vadd.f32 %v512, %v522
    %v527 = vmax.f32 %v525, 0.0
    %v528 = vmax.f32 %v526, 0.0
    %v529 = vpack.c.bf16 %v527, %v527
    %v530 = vpack.c.bf16 %v528, %v528
    %v533 = vunpack.c.l.b16 %v529
    %v534 = vunpack.c.l.b16 %v530
    %v535 = vpack.c.b16 %v534, %v533
    %537 = vst [vmem:[%s3] sm:$0xff] %v535
  $region21: #{_lambda_.23} parent=0 // pred_fallthru
    _
  // Predicated region
  $region22: #{_lambda_.23} parent=0 // pred_check
    _
  $region23: #{_lambda_.23} parent=0 // pred_check_branch
    %539 = sbr.rel (0) target = $region25
  $region24: #{_lambda_.23} parent=0 // pred_region
    _
  $region25: #{_lambda_.23} parent=0 // pred_fallthru
    _
  // Predicated region
  $region26: #{_lambda_.23} parent=0 // pred_check
    _
  $region27: #{_lambda_.23} parent=0 // pred_check_branch
    %541 = sbr.rel (0) target = $region29
  $region28: #{_lambda_.23} parent=0 // pred_region
    _
  $region29: #{_lambda_.23} parent=0 // pred_fallthru
    _

// kernel: _lambda_.21
$region0: #{_lambda_.21}
  #allocation0 [shape = 'u32[]', space=smem, size = 0x4, offset = 0x4, fixed_abs, tag = 'smem constant byte address 0x4 - core index']
  #allocation1 [shape = 'u32[144,128]{1,0:T(1,128)}', space=vmem, size = 0x12000, scoped, tag = 'internal scratch']
  #allocation2 [shape = 'f32[8,512]{1,0:T(8,128)}', space=vmem, size = 0x4000, scoped, tag = 'scratch operand']
  %s0 = inlined_call_operand.vmem [shape: bf16[8,640], index: 0, kind: input, shape index: {}]
  %s1 = inlined_call_operand.vmem [shape: bf16[640,2048], index: 1, kind: input, shape index: {}]
  %s2 = inlined_call_operand.vmem [shape: f32[1,2048], index: 2, kind: input, shape index: {}]
  %s3 = inlined_call_operand.vmem [shape: bf16[8,2048], index: 3, kind: output, shape index: {}]
  %s4 = sld [smem:[#allocation0]]
  $region76: #{_lambda_.21} parent=0
    _
  %s6 = ssub.s32 1, %s4
  %s7 = scalar_select 0, %s6, %s4
  $region1: #{_lambda_.21} parent=0
    #allocation3 [shape = 'u8[1310720]{0}', space=vmem, size = 0x140000, scoped, tag = 'input window, operand 1']
    loop: start=0, step=1, limit=6
    $region2: #{_lambda_.21} parent=1 // loop_pre_header
      _
    $region3: #{_lambda_.21} parent=1 // loop_header
      %s9 = sphi 0, %s13
      %p10 = scmp.ge.s32.totalorder %s9, 6
      %s16 = sphi 0, %s35
      %s17 = sphi 0, %s31
      %s18 = sphi 0, %s27
      %s19 = sphi 0, %s16
      %s20 = sphi 0, %s17
      %s21 = sphi 0, %s18
      %s22 = sphi 0, %s19
      %s23 = sphi 0, %s20
      %s24 = sphi 0, %s21
      %s40 = sphi 0, %s42
      %s43 = sphi 0, %s40
      %s44 = sphi 0, %s43
      %s60 = sphi 0, %s44
      %s68 = sphi 0, %s70
      %s71 = sphi 0, %s68
      %s72 = sphi 0, %s71
      %s88 = sphi 0, %s72
      %s94 = sphi 0, %s96
      %s97 = sphi 0, %s94
      %s98 = sphi 0, %s97
      %s114 = sphi 0, %s98
      %s122 = sphi 0, %s124
      %s125 = sphi 0, %s122
      %s126 = sphi 0, %s125
      %s142 = sphi 0, %s126
    $region4: #{_lambda_.21} parent=1 // loop_header_branch
      %12 = sbr.rel (%p10) target = $region8
    $region5: #{_lambda_.21} parent=1 // loop_body
      %s14 = ssub.s32 %s9, 1
      %s15 = ssub.s32 %s9, 2
      %s25 = sadd.s32 1, %s18
      %p26 = scmp.ge.s32.totalorder %s25, 1
      %s27 = scalar_select %p26, 0, %s25
      %s28 = sadd.s32 1, %s17
      %s29 = scalar_select %p26, %s28, %s17
      %p30 = scmp.ge.s32.totalorder %s29, 4
      %s31 = scalar_select %p30, 0, %s29
      %s32 = sadd.s32 1, %s16
      %s33 = scalar_select %p30, %s32, %s16
      %p34 = scmp.ge.s32.totalorder %s33, 1
      %s35 = scalar_select %p34, 0, %s33
      %s36 = ssub.s32 %s16, %s35
      %s37 = ssub.s32 %s18, %s27
      %s38 = sor.u32 %s36, %s37
      %p39 = scmp.eq.s32.totalorder %s38, 0
      %s41 = sadd.s32 %s40, 1
      %s42 = scalar_select %p39, %s40, %s41
      %p45 = pneg %p39
      %p46 = scmp.eq.s32.totalorder %s9, 3
      %p47 = por %p45, %p46
      %p48 = scmp.ne.s32.totalorder %s40, %s43
      %p49 = scmp.eq.s32.totalorder %s9, 0
      %p50 = por %p48, %p49
      %p51 = scmp.ne.s32.totalorder %s40, %s43
      %p52 = scmp.eq.s32.totalorder %s14, 3
      %p53 = por %p51, %p52
      %p54 = scmp.ne.s32.totalorder %s43, %s44
      %p55 = scmp.eq.s32.totalorder %s14, 0
      %p56 = por %p54, %p55
      %p57 = scmp.ne.s32.totalorder %s43, %s44
      %p58 = scmp.eq.s32.totalorder %s15, 3
      %p59 = por %p57, %p58
      %p61 = scmp.ne.s32.totalorder %s44, %s60
      %p62 = scmp.eq.s32.totalorder %s15, 0
      %p63 = por %p61, %p62
      %s64 = ssub.s32 %s18, %s27
      %s65 = ssub.s32 %s17, %s31
      %s66 = sor.u32 %s64, %s65
      %p67 = scmp.eq.s32.totalorder %s66, 0
      %s69 = sadd.s32 %s68, 1
      %s70 = scalar_select %p67, %s68, %s69
      %p73 = pneg %p67
      %p74 = scmp.eq.s32.totalorder %s9, 3
      %p75 = por %p73, %p74
      %p76 = scmp.ne.s32.totalorder %s68, %s71
      %p77 = scmp.eq.s32.totalorder %s9, 0
      %p78 = por %p76, %p77
      %p79 = scmp.ne.s32.totalorder %s68, %s71
      %p80 = scmp.eq.s32.totalorder %s14, 3
      %p81 = por %p79, %p80
      %p82 = scmp.ne.s32.totalorder %s71, %s72
      %p83 = scmp.eq.s32.totalorder %s14, 0
      %p84 = por %p82, %p83
      %p85 = scmp.ne.s32.totalorder %s71, %s72
      %p86 = scmp.eq.s32.totalorder %s15, 3
      %p87 = por %p85, %p86
      %p89 = scmp.ne.s32.totalorder %s72, %s88
      %p90 = scmp.eq.s32.totalorder %s15, 0
      %p91 = por %p89, %p90
      %s92 = ssub.s32 %s17, %s31
      %p93 = scmp.eq.s32.totalorder %s92, 0
      %s95 = sadd.s32 %s94, 1
      %s96 = scalar_select %p93, %s94, %s95
      %p99 = pneg %p93
      %p100 = scmp.eq.s32.totalorder %s9, 3
      %p101 = por %p99, %p100
      %p102 = scmp.ne.s32.totalorder %s94, %s97
      %p103 = scmp.eq.s32.totalorder %s9, 0
      %p104 = por %p102, %p103
      %p105 = scmp.ne.s32.totalorder %s94, %s97
      %p106 = scmp.eq.s32.totalorder %s14, 3
      %p107 = por %p105, %p106
      %p108 = scmp.ne.s32.totalorder %s97, %s98
      %p109 = scmp.eq.s32.totalorder %s14, 0
      %p110 = por %p108, %p109
      %p111 = scmp.ne.s32.totalorder %s97, %s98
      %p112 = scmp.eq.s32.totalorder %s15, 3
      %p113 = por %p111, %p112
      %p115 = scmp.ne.s32.totalorder %s98, %s114
      %p116 = scmp.eq.s32.totalorder %s15, 0
      %p117 = por %p115, %p116
      %s118 = ssub.s32 %s16, %s35
      %s119 = ssub.s32 %s17, %s31
      %s120 = sor.u32 %s118, %s119
      %p121 = scmp.eq.s32.totalorder %s120, 0
      %s123 = sadd.s32 %s122, 1
      %s124 = scalar_select %p121, %s122, %s123
      %p127 = pneg %p121
      %p128 = scmp.eq.s32.totalorder %s9, 3
      %p129 = por %p127, %p128
      %p130 = scmp.ne.s32.totalorder %s122, %s125
      %p131 = scmp.eq.s32.totalorder %s9, 0
      %p132 = por %p130, %p131
      %p133 = scmp.ne.s32.totalorder %s122, %s125
      %p134 = scmp.eq.s32.totalorder %s14, 3
      %p135 = por %p133, %p134
      %p136 = scmp.ne.s32.totalorder %s125, %s126
      %p137 = scmp.eq.s32.totalorder %s14, 0
      %p138 = por %p136, %p137
      %p139 = scmp.ne.s32.totalorder %s125, %s126
      %p140 = scmp.eq.s32.totalorder %s15, 3
      %p141 = por %p139, %p140
      %p143 = scmp.ne.s32.totalorder %s126, %s142
      %p144 = scmp.eq.s32.totalorder %s15, 0
      %p145 = por %p143, %p144
      %p146 = scmp.le.s32.totalorder 1, %s9
      %p147 = scmp.lt.s32.totalorder %s9, 5
      %p148 = pnand %p146, %p147
      %p149 = pneg %p148
      // Predicated region
      $region9: #{_lambda_.21} parent=5 // pred_check
        _
      $region10: #{_lambda_.21} parent=5 // pred_check_branch
        %151 = sbr.rel (%p148) target = $region12
      $region11: #{_lambda_.21} parent=5 // pred_region
        %s152 = ssub.s32 %s9, 1
        // Predicated region
        $region13: #{_lambda_.21} parent=11 // pred_check
          %p153 = pneg %p56
        $region14: #{_lambda_.21} parent=11 // pred_check_branch
          %155 = sbr.rel (%p153) target = $region16
        $region15: #{_lambda_.21} parent=11 // pred_region
          %s156 = smul.u32 5, %s21
          %p157 = scmp.lt.s32.totalorder %s19, 0
          %s158 = scalar_select %p157, %s19, 0
          %p159 = scmp.lt.s32.totalorder %s156, 4
          %s160 = scalar_select %p159, %s156, 4
          %s161 = smul.addr %s158, 5
          %s162 = sadd.s32 %s160, %s161
          %s163 = smul.addr %s162, 4
          %s164 = scalar_lea.vmem %s0, %s163
          %s165 = smul.u32 5, %s21
        $region16: #{_lambda_.21} parent=11 // pred_fallthru
          _
      $region12: #{_lambda_.21} parent=5 // pred_fallthru
        _
      %p166 = scmp.lt.s32.totalorder %s9, 4
      // Predicated region
      $region17: #{_lambda_.21} parent=5 // pred_check
        %p167 = pneg %p166
      $region18: #{_lambda_.21} parent=5 // pred_check_branch
        %169 = sbr.rel (%p167) target = $region20
      $region19: #{_lambda_.21} parent=5 // pred_region
        // Predicated region
        $region21: #{_lambda_.21} parent=19 // pred_check
          %p170 = pneg %p78
        $region22: #{_lambda_.21} parent=19 // pred_check_branch
          %172 = sbr.rel (%p170) target = $region24
        $region23: #{_lambda_.21} parent=19 // pred_region
          %s173 = sand.u32 %s68, 1
          %s174 = sand.u32 %s68, 1
          %s175 = smul.addr %s174, 1280
          %s176 = scalar_lea.vmem [#allocation3], %s175
          %s177 = smul.u32 80, %s18
          %s178 = smul.u32 4, %s17
          %s179 = smul.addr %s177, 16
          %s180 = sadd.s32 %s178, %s179
          %s181 = smul.addr %s180, 4
          %s182 = scalar_lea.vmem %s1, %s181
          // Predicated region
          $region25: #{_lambda_.21} parent=23 // pred_check
            _
          $region26: #{_lambda_.21} parent=23 // pred_check_branch
            %184 = sbr.rel (0) target = $region28
          $region27: #{_lambda_.21} parent=23 // pred_region
            // Predicated region
            $region29: #{_lambda_.21} parent=27 // pred_check
              _
            $region30: #{_lambda_.21} parent=27 // pred_check_branch
              %186 = sbr.rel (0) target = $region32
            $region31: #{_lambda_.21} parent=27 // pred_region
              loop: start=0, step=1, limit=1
              $region33: #{_lambda_.21} parent=31 // loop_pre_header
                _
              $region34: #{_lambda_.21} parent=31 // loop_header
                %s188 = sphi 0, %s192
                %p189 = scmp.ge.s32.totalorder %s188, 1
                %s193 = sphi %s182, %s182
                %s194 = sphi %s176, %s176
              $region35: #{_lambda_.21} parent=31 // loop_header_branch
                %191 = sbr.rel (%p189) target = $region39
              $region36: #{_lambda_.21} parent=31 // loop_body
                %v195 = vld [vmem:[%s193] sm:$0xff]
                %196 = vst [vmem:[%s194] sm:$0xff] %v195
                %v197 = vld [vmem:[%s193 + $0x8] sm:$0xff]
                %198 = vst [vmem:[%s194 + $0x8] sm:$0xff] %v197
                %v199 = vld [vmem:[%s193 + $0x40] sm:$0xff]
                %200 = vst [vmem:[%s194 + $0x10] sm:$0xff] %v199
                %v201 = vld [vmem:[%s193 + $0x48] sm:$0xff]
                %202 = vst [vmem:[%s194 + $0x18] sm:$0xff] %v201
                %v203 = vld [vmem:[%s193 + $0x80] sm:$0xff]
                %204 = vst [vmem:[%s194 + $0x20] sm:$0xff] %v203
                %v205 = vld [vmem:[%s193 + $0x88] sm:$0xff]
                %206 = vst [vmem:[%s194 + $0x28] sm:$0xff] %v205
                %v207 = vld [vmem:[%s193 + $0xc0] sm:$0xff]
                %208 = vst [vmem:[%s194 + $0x30] sm:$0xff] %v207
                %v209 = vld [vmem:[%s193 + $0xc8] sm:$0xff]
                %210 = vst [vmem:[%s194 + $0x38] sm:$0xff] %v209
                %v211 = vld [vmem:[%s193 + $0x100] sm:$0xff]
                %212 = vst [vmem:[%s194 + $0x40] sm:$0xff] %v211
                %v213 = vld [vmem:[%s193 + $0x108] sm:$0xff]
                %214 = vst [vmem:[%s194 + $0x48] sm:$0xff] %v213
                %v215 = vld [vmem:[%s193 + $0x140] sm:$0xff]
                %216 = vst [vmem:[%s194 + $0x50] sm:$0xff] %v215
                %v217 = vld [vmem:[%s193 + $0x148] sm:$0xff]
                %218 = vst [vmem:[%s194 + $0x58] sm:$0xff] %v217
                %v219 = vld [vmem:[%s193 + $0x180] sm:$0xff]
                %220 = vst [vmem:[%s194 + $0x60] sm:$0xff] %v219
                %v221 = vld [vmem:[%s193 + $0x188] sm:$0xff]
                %222 = vst [vmem:[%s194 + $0x68] sm:$0xff] %v221
                %v223 = vld [vmem:[%s193 + $0x1c0] sm:$0xff]
                %224 = vst [vmem:[%s194 + $0x70] sm:$0xff] %v223
                %v225 = vld [vmem:[%s193 + $0x1c8] sm:$0xff]
                %226 = vst [vmem:[%s194 + $0x78] sm:$0xff] %v225
                %v227 = vld [vmem:[%s193 + $0x200] sm:$0xff]
                %228 = vst [vmem:[%s194 + $0x80] sm:$0xff] %v227
                %v229 = vld [vmem:[%s193 + $0x208] sm:$0xff]
                %230 = vst [vmem:[%s194 + $0x88] sm:$0xff] %v229
                %v231 = vld [vmem:[%s193 + $0x240] sm:$0xff]
                %232 = vst [vmem:[%s194 + $0x90] sm:$0xff] %v231
                %v233 = vld [vmem:[%s193 + $0x248] sm:$0xff]
                %234 = vst [vmem:[%s194 + $0x98] sm:$0xff] %v233
                %v235 = vld [vmem:[%s193 + $0x280] sm:$0xff]
                %236 = vst [vmem:[%s194 + $0xa0] sm:$0xff] %v235
                %v237 = vld [vmem:[%s193 + $0x288] sm:$0xff]
                %238 = vst [vmem:[%s194 + $0xa8] sm:$0xff] %v237
                %v239 = vld [vmem:[%s193 + $0x2c0] sm:$0xff]
                %240 = vst [vmem:[%s194 + $0xb0] sm:$0xff] %v239
                %v241 = vld [vmem:[%s193 + $0x2c8] sm:$0xff]
                %242 = vst [vmem:[%s194 + $0xb8] sm:$0xff] %v241
                %v243 = vld [vmem:[%s193 + $0x300] sm:$0xff]
                %244 = vst [vmem:[%s194 + $0xc0] sm:$0xff] %v243
                %v245 = vld [vmem:[%s193 + $0x308] sm:$0xff]
                %246 = vst [vmem:[%s194 + $0xc8] sm:$0xff] %v245
                %v247 = vld [vmem:[%s193 + $0x340] sm:$0xff]
                %248 = vst [vmem:[%s194 + $0xd0] sm:$0xff] %v247
                %v249 = vld [vmem:[%s193 + $0x348] sm:$0xff]
                %250 = vst [vmem:[%s194 + $0xd8] sm:$0xff] %v249
                %v251 = vld [vmem:[%s193 + $0x380] sm:$0xff]
                %252 = vst [vmem:[%s194 + $0xe0] sm:$0xff] %v251
                %v253 = vld [vmem:[%s193 + $0x388] sm:$0xff]
                %254 = vst [vmem:[%s194 + $0xe8] sm:$0xff] %v253
                %v255 = vld [vmem:[%s193 + $0x3c0] sm:$0xff]
                %256 = vst [vmem:[%s194 + $0xf0] sm:$0xff] %v255
                %v257 = vld [vmem:[%s193 + $0x3c8] sm:$0xff]
                %258 = vst [vmem:[%s194 + $0xf8] sm:$0xff] %v257
                %v259 = vld [vmem:[%s193 + $0x400] sm:$0xff]
                %260 = vst [vmem:[%s194 + $0x100] sm:$0xff] %v259
                %v261 = vld [vmem:[%s193 + $0x408] sm:$0xff]
                %262 = vst [vmem:[%s194 + $0x108] sm:$0xff] %v261
                %v263 = vld [vmem:[%s193 + $0x440] sm:$0xff]
                %264 = vst [vmem:[%s194 + $0x110] sm:$0xff] %v263
                %v265 = vld [vmem:[%s193 + $0x448] sm:$0xff]
                %266 = vst [vmem:[%s194 + $0x118] sm:$0xff] %v265
                %v267 = vld [vmem:[%s193 + $0x480] sm:$0xff]
                %268 = vst [vmem:[%s194 + $0x120] sm:$0xff] %v267
                %v269 = vld [vmem:[%s193 + $0x488] sm:$0xff]
                %270 = vst [vmem:[%s194 + $0x128] sm:$0xff] %v269
                %v271 = vld [vmem:[%s193 + $0x4c0] sm:$0xff]
                %272 = vst [vmem:[%s194 + $0x130] sm:$0xff] %v271
                %v273 = vld [vmem:[%s193 + $0x4c8] sm:$0xff]
                %274 = vst [vmem:[%s194 + $0x138] sm:$0xff] %v273
                %v275 = vld [vmem:[%s193 + $0x500] sm:$0xff]
                %276 = vst [vmem:[%s194 + $0x140] sm:$0xff] %v275
                %v277 = vld [vmem:[%s193 + $0x508] sm:$0xff]
                %278 = vst [vmem:[%s194 + $0x148] sm:$0xff] %v277
                %v279 = vld [vmem:[%s193 + $0x540] sm:$0xff]
                %280 = vst [vmem:[%s194 + $0x150] sm:$0xff] %v279
                %v281 = vld [vmem:[%s193 + $0x548] sm:$0xff]
                %282 = vst [vmem:[%s194 + $0x158] sm:$0xff] %v281
                %v283 = vld [vmem:[%s193 + $0x580] sm:$0xff]
                %284 = vst [vmem:[%s194 + $0x160] sm:$0xff] %v283
                %v285 = vld [vmem:[%s193 + $0x588] sm:$0xff]
                %286 = vst [vmem:[%s194 + $0x168] sm:$0xff] %v285
                %v287 = vld [vmem:[%s193 + $0x5c0] sm:$0xff]
                %288 = vst [vmem:[%s194 + $0x170] sm:$0xff] %v287
                %v289 = vld [vmem:[%s193 + $0x5c8] sm:$0xff]
                %290 = vst [vmem:[%s194 + $0x178] sm:$0xff] %v289
                %v291 = vld [vmem:[%s193 + $0x600] sm:$0xff]
                %292 = vst [vmem:[%s194 + $0x180] sm:$0xff] %v291
                %v293 = vld [vmem:[%s193 + $0x608] sm:$0xff]
                %294 = vst [vmem:[%s194 + $0x188] sm:$0xff] %v293
                %v295 = vld [vmem:[%s193 + $0x640] sm:$0xff]
                %296 = vst [vmem:[%s194 + $0x190] sm:$0xff] %v295
                %v297 = vld [vmem:[%s193 + $0x648] sm:$0xff]
                %298 = vst [vmem:[%s194 + $0x198] sm:$0xff] %v297
                %v299 = vld [vmem:[%s193 + $0x680] sm:$0xff]
                %300 = vst [vmem:[%s194 + $0x1a0] sm:$0xff] %v299
                %v301 = vld [vmem:[%s193 + $0x688] sm:$0xff]
                %302 = vst [vmem:[%s194 + $0x1a8] sm:$0xff] %v301
                %v303 = vld [vmem:[%s193 + $0x6c0] sm:$0xff]
                %304 = vst [vmem:[%s194 + $0x1b0] sm:$0xff] %v303
                %v305 = vld [vmem:[%s193 + $0x6c8] sm:$0xff]
                %306 = vst [vmem:[%s194 + $0x1b8] sm:$0xff] %v305
                %v307 = vld [vmem:[%s193 + $0x700] sm:$0xff]
                %308 = vst [vmem:[%s194 + $0x1c0] sm:$0xff] %v307
                %v309 = vld [vmem:[%s193 + $0x708] sm:$0xff]
                %310 = vst [vmem:[%s194 + $0x1c8] sm:$0xff] %v309
                %v311 = vld [vmem:[%s193 + $0x740] sm:$0xff]
                %312 = vst [vmem:[%s194 + $0x1d0] sm:$0xff] %v311
                %v313 = vld [vmem:[%s193 + $0x748] sm:$0xff]
                %314 = vst [vmem:[%s194 + $0x1d8] sm:$0xff] %v313
                %v315 = vld [vmem:[%s193 + $0x780] sm:$0xff]
                %316 = vst [vmem:[%s194 + $0x1e0] sm:$0xff] %v315
                %v317 = vld [vmem:[%s193 + $0x788] sm:$0xff]
                %318 = vst [vmem:[%s194 + $0x1e8] sm:$0xff] %v317
                %v319 = vld [vmem:[%s193 + $0x7c0] sm:$0xff]
                %320 = vst [vmem:[%s194 + $0x1f0] sm:$0xff] %v319
                %v321 = vld [vmem:[%s193 + $0x7c8] sm:$0xff]
                %322 = vst [vmem:[%s194 + $0x1f8] sm:$0xff] %v321
                %v323 = vld [vmem:[%s193 + $0x800] sm:$0xff]
                %324 = vst [vmem:[%s194 + $0x200] sm:$0xff] %v323
                %v325 = vld [vmem:[%s193 + $0x808] sm:$0xff]
                %326 = vst [vmem:[%s194 + $0x208] sm:$0xff] %v325
                %v327 = vld [vmem:[%s193 + $0x840] sm:$0xff]
                %328 = vst [vmem:[%s194 + $0x210] sm:$0xff] %v327
                %v329 = vld [vmem:[%s193 + $0x848] sm:$0xff]
                %330 = vst [vmem:[%s194 + $0x218] sm:$0xff] %v329
                %v331 = vld [vmem:[%s193 + $0x880] sm:$0xff]
                %332 = vst [vmem:[%s194 + $0x220] sm:$0xff] %v331
                %v333 = vld [vmem:[%s193 + $0x888] sm:$0xff]
                %334 = vst [vmem:[%s194 + $0x228] sm:$0xff] %v333
                %v335 = vld [vmem:[%s193 + $0x8c0] sm:$0xff]
                %336 = vst [vmem:[%s194 + $0x230] sm:$0xff] %v335
                %v337 = vld [vmem:[%s193 + $0x8c8] sm:$0xff]
                %338 = vst [vmem:[%s194 + $0x238] sm:$0xff] %v337
                %v339 = vld [vmem:[%s193 + $0x900] sm:$0xff]
                %340 = vst [vmem:[%s194 + $0x240] sm:$0xff] %v339
                %v341 = vld [vmem:[%s193 + $0x908] sm:$0xff]
                %342 = vst [vmem:[%s194 + $0x248] sm:$0xff] %v341
                %v343 = vld [vmem:[%s193 + $0x940] sm:$0xff]
                %344 = vst [vmem:[%s194 + $0x250] sm:$0xff] %v343
                %v345 = vld [vmem:[%s193 + $0x948] sm:$0xff]
                %346 = vst [vmem:[%s194 + $0x258] sm:$0xff] %v345
                %v347 = vld [vmem:[%s193 + $0x980] sm:$0xff]
                %348 = vst [vmem:[%s194 + $0x260] sm:$0xff] %v347
                %v349 = vld [vmem:[%s193 + $0x988] sm:$0xff]
                %350 = vst [vmem:[%s194 + $0x268] sm:$0xff] %v349
                %v351 = vld [vmem:[%s193 + $0x9c0] sm:$0xff]
                %352 = vst [vmem:[%s194 + $0x270] sm:$0xff] %v351
                %v353 = vld [vmem:[%s193 + $0x9c8] sm:$0xff]
                %354 = vst [vmem:[%s194 + $0x278] sm:$0xff] %v353
                %v355 = vld [vmem:[%s193 + $0xa00] sm:$0xff]
                %356 = vst [vmem:[%s194 + $0x280] sm:$0xff] %v355
                %v357 = vld [vmem:[%s193 + $0xa08] sm:$0xff]
                %358 = vst [vmem:[%s194 + $0x288] sm:$0xff] %v357
                %v359 = vld [vmem:[%s193 + $0xa40] sm:$0xff]
                %360 = vst [vmem:[%s194 + $0x290] sm:$0xff] %v359
                %v361 = vld [vmem:[%s193 + $0xa48] sm:$0xff]
                %362 = vst [vmem:[%s194 + $0x298] sm:$0xff] %v361
                %v363 = vld [vmem:[%s193 + $0xa80] sm:$0xff]
                %364 = vst [vmem:[%s194 + $0x2a0] sm:$0xff] %v363
                %v365 = vld [vmem:[%s193 + $0xa88] sm:$0xff]
                %366 = vst [vmem:[%s194 + $0x2a8] sm:$0xff] %v365
                %v367 = vld [vmem:[%s193 + $0xac0] sm:$0xff]
                %368 = vst [vmem:[%s194 + $0x2b0] sm:$0xff] %v367
                %v369 = vld [vmem:[%s193 + $0xac8] sm:$0xff]
                %370 = vst [vmem:[%s194 + $0x2b8] sm:$0xff] %v369
                %v371 = vld [vmem:[%s193 + $0xb00] sm:$0xff]
                %372 = vst [vmem:[%s194 + $0x2c0] sm:$0xff] %v371
                %v373 = vld [vmem:[%s193 + $0xb08] sm:$0xff]
                %374 = vst [vmem:[%s194 + $0x2c8] sm:$0xff] %v373
                %v375 = vld [vmem:[%s193 + $0xb40] sm:$0xff]
                %376 = vst [vmem:[%s194 + $0x2d0] sm:$0xff] %v375
                %v377 = vld [vmem:[%s193 + $0xb48] sm:$0xff]
                %378 = vst [vmem:[%s194 + $0x2d8] sm:$0xff] %v377
                %v379 = vld [vmem:[%s193 + $0xb80] sm:$0xff]
                %380 = vst [vmem:[%s194 + $0x2e0] sm:$0xff] %v379
                %v381 = vld [vmem:[%s193 + $0xb88] sm:$0xff]
                %382 = vst [vmem:[%s194 + $0x2e8] sm:$0xff] %v381
                %v383 = vld [vmem:[%s193 + $0xbc0] sm:$0xff]
                %384 = vst [vmem:[%s194 + $0x2f0] sm:$0xff] %v383
                %v385 = vld [vmem:[%s193 + $0xbc8] sm:$0xff]
                %386 = vst [vmem:[%s194 + $0x2f8] sm:$0xff] %v385
                %v387 = vld [vmem:[%s193 + $0xc00] sm:$0xff]
                %388 = vst [vmem:[%s194 + $0x300] sm:$0xff] %v387
                %v389 = vld [vmem:[%s193 + $0xc08] sm:$0xff]
                %390 = vst [vmem:[%s194 + $0x308] sm:$0xff] %v389
                %v391 = vld [vmem:[%s193 + $0xc40] sm:$0xff]
                %392 = vst [vmem:[%s194 + $0x310] sm:$0xff] %v391
                %v393 = vld [vmem:[%s193 + $0xc48] sm:$0xff]
                %394 = vst [vmem:[%s194 + $0x318] sm:$0xff] %v393
                %v395 = vld [vmem:[%s193 + $0xc80] sm:$0xff]
                %396 = vst [vmem:[%s194 + $0x320] sm:$0xff] %v395
                %v397 = vld [vmem:[%s193 + $0xc88] sm:$0xff]
                %398 = vst [vmem:[%s194 + $0x328] sm:$0xff] %v397
                %v399 = vld [vmem:[%s193 + $0xcc0] sm:$0xff]
                %400 = vst [vmem:[%s194 + $0x330] sm:$0xff] %v399
                %v401 = vld [vmem:[%s193 + $0xcc8] sm:$0xff]
                %402 = vst [vmem:[%s194 + $0x338] sm:$0xff] %v401
                %v403 = vld [vmem:[%s193 + $0xd00] sm:$0xff]
                %404 = vst [vmem:[%s194 + $0x340] sm:$0xff] %v403
                %v405 = vld [vmem:[%s193 + $0xd08] sm:$0xff]
                %406 = vst [vmem:[%s194 + $0x348] sm:$0xff] %v405
                %v407 = vld [vmem:[%s193 + $0xd40] sm:$0xff]
                %408 = vst [vmem:[%s194 + $0x350] sm:$0xff] %v407
                %v409 = vld [vmem:[%s193 + $0xd48] sm:$0xff]
                %410 = vst [vmem:[%s194 + $0x358] sm:$0xff] %v409
                %v411 = vld [vmem:[%s193 + $0xd80] sm:$0xff]
                %412 = vst [vmem:[%s194 + $0x360] sm:$0xff] %v411
                %v413 = vld [vmem:[%s193 + $0xd88] sm:$0xff]
                %414 = vst [vmem:[%s194 + $0x368] sm:$0xff] %v413
                %v415 = vld [vmem:[%s193 + $0xdc0] sm:$0xff]
                %416 = vst [vmem:[%s194 + $0x370] sm:$0xff] %v415
                %v417 = vld [vmem:[%s193 + $0xdc8] sm:$0xff]
                %418 = vst [vmem:[%s194 + $0x378] sm:$0xff] %v417
                %v419 = vld [vmem:[%s193 + $0xe00] sm:$0xff]
                %420 = vst [vmem:[%s194 + $0x380] sm:$0xff] %v419
                %v421 = vld [vmem:[%s193 + $0xe08] sm:$0xff]
                %422 = vst [vmem:[%s194 + $0x388] sm:$0xff] %v421
                %v423 = vld [vmem:[%s193 + $0xe40] sm:$0xff]
                %424 = vst [vmem:[%s194 + $0x390] sm:$0xff] %v423
                %v425 = vld [vmem:[%s193 + $0xe48] sm:$0xff]
                %426 = vst [vmem:[%s194 + $0x398] sm:$0xff] %v425
                %v427 = vld [vmem:[%s193 + $0xe80] sm:$0xff]
                %428 = vst [vmem:[%s194 + $0x3a0] sm:$0xff] %v427
                %v429 = vld [vmem:[%s193 + $0xe88] sm:$0xff]
                %430 = vst [vmem:[%s194 + $0x3a8] sm:$0xff] %v429
                %v431 = vld [vmem:[%s193 + $0xec0] sm:$0xff]
                %432 = vst [vmem:[%s194 + $0x3b0] sm:$0xff] %v431
                %v433 = vld [vmem:[%s193 + $0xec8] sm:$0xff]
                %434 = vst [vmem:[%s194 + $0x3b8] sm:$0xff] %v433
                %v435 = vld [vmem:[%s193 + $0xf00] sm:$0xff]
                %436 = vst [vmem:[%s194 + $0x3c0] sm:$0xff] %v435
                %v437 = vld [vmem:[%s193 + $0xf08] sm:$0xff]
                %438 = vst [vmem:[%s194 + $0x3c8] sm:$0xff] %v437
                %v439 = vld [vmem:[%s193 + $0xf40] sm:$0xff]
                %440 = vst [vmem:[%s194 + $0x3d0] sm:$0xff] %v439
                %v441 = vld [vmem:[%s193 + $0xf48] sm:$0xff]
                %442 = vst [vmem:[%s194 + $0x3d8] sm:$0xff] %v441
                %v443 = vld [vmem:[%s193 + $0xf80] sm:$0xff]
                %444 = vst [vmem:[%s194 + $0x3e0] sm:$0xff] %v443
                %v445 = vld [vmem:[%s193 + $0xf88] sm:$0xff]
                %446 = vst [vmem:[%s194 + $0x3e8] sm:$0xff] %v445
                %v447 = vld [vmem:[%s193 + $0xfc0] sm:$0xff]
                %448 = vst [vmem:[%s194 + $0x3f0] sm:$0xff] %v447
                %v449 = vld [vmem:[%s193 + $0xfc8] sm:$0xff]
                %450 = vst [vmem:[%s194 + $0x3f8] sm:$0xff] %v449
                %v451 = vld [vmem:[%s193 + $0x1000] sm:$0xff]
                %452 = vst [vmem:[%s194 + $0x400] sm:$0xff] %v451
                %v453 = vld [vmem:[%s193 + $0x1008] sm:$0xff]
                %454 = vst [vmem:[%s194 + $0x408] sm:$0xff] %v453
                %v455 = vld [vmem:[%s193 + $0x1040] sm:$0xff]
                %456 = vst [vmem:[%s194 + $0x410] sm:$0xff] %v455
                %v457 = vld [vmem:[%s193 + $0x1048] sm:$0xff]
                %458 = vst [vmem:[%s194 + $0x418] sm:$0xff] %v457
                %v459 = vld [vmem:[%s193 + $0x1080] sm:$0xff]
                %460 = vst [vmem:[%s194 + $0x420] sm:$0xff] %v459
                %v461 = vld [vmem:[%s193 + $0x1088] sm:$0xff]
                %462 = vst [vmem:[%s194 + $0x428] sm:$0xff] %v461
                %v463 = vld [vmem:[%s193 + $0x10c0] sm:$0xff]
                %464 = vst [vmem:[%s194 + $0x430] sm:$0xff] %v463
                %v465 = vld [vmem:[%s193 + $0x10c8] sm:$0xff]
                %466 = vst [vmem:[%s194 + $0x438] sm:$0xff] %v465
                %v467 = vld [vmem:[%s193 + $0x1100] sm:$0xff]
                %468 = vst [vmem:[%s194 + $0x440] sm:$0xff] %v467
                %v469 = vld [vmem:[%s193 + $0x1108] sm:$0xff]
                %470 = vst [vmem:[%s194 + $0x448] sm:$0xff] %v469
                %v471 = vld [vmem:[%s193 + $0x1140] sm:$0xff]
                %472 = vst [vmem:[%s194 + $0x450] sm:$0xff] %v471
                %v473 = vld [vmem:[%s193 + $0x1148] sm:$0xff]
                %474 = vst [vmem:[%s194 + $0x458] sm:$0xff] %v473
                %v475 = vld [vmem:[%s193 + $0x1180] sm:$0xff]
                %476 = vst [vmem:[%s194 + $0x460] sm:$0xff] %v475
                %v477 = vld [vmem:[%s193 + $0x1188] sm:$0xff]
                %478 = vst [vmem:[%s194 + $0x468] sm:$0xff] %v477
                %v479 = vld [vmem:[%s193 + $0x11c0] sm:$0xff]
                %480 = vst [vmem:[%s194 + $0x470] sm:$0xff] %v479
                %v481 = vld [vmem:[%s193 + $0x11c8] sm:$0xff]
                %482 = vst [vmem:[%s194 + $0x478] sm:$0xff] %v481
                %v483 = vld [vmem:[%s193 + $0x1200] sm:$0xff]
                %484 = vst [vmem:[%s194 + $0x480] sm:$0xff] %v483
                %v485 = vld [vmem:[%s193 + $0x1208] sm:$0xff]
                %486 = vst [vmem:[%s194 + $0x488] sm:$0xff] %v485
                %v487 = vld [vmem:[%s193 + $0x1240] sm:$0xff]
                %488 = vst [vmem:[%s194 + $0x490] sm:$0xff] %v487
                %v489 = vld [vmem:[%s193 + $0x1248] sm:$0xff]
                %490 = vst [vmem:[%s194 + $0x498] sm:$0xff] %v489
                %v491 = vld [vmem:[%s193 + $0x1280] sm:$0xff]
                %492 = vst [vmem:[%s194 + $0x4a0] sm:$0xff] %v491
                %v493 = vld [vmem:[%s193 + $0x1288] sm:$0xff]
                %494 = vst [vmem:[%s194 + $0x4a8] sm:$0xff] %v493
                %v495 = vld [vmem:[%s193 + $0x12c0] sm:$0xff]
                %496 = vst [vmem:[%s194 + $0x4b0] sm:$0xff] %v495
                %v497 = vld [vmem:[%s193 + $0x12c8] sm:$0xff]
                %498 = vst [vmem:[%s194 + $0x4b8] sm:$0xff] %v497
                %v499 = vld [vmem:[%s193 + $0x1300] sm:$0xff]
                %500 = vst [vmem:[%s194 + $0x4c0] sm:$0xff] %v499
                %v501 = vld [vmem:[%s193 + $0x1308] sm:$0xff]
                %502 = vst [vmem:[%s194 + $0x4c8] sm:$0xff] %v501
                %v503 = vld [vmem:[%s193 + $0x1340] sm:$0xff]
                %504 = vst [vmem:[%s194 + $0x4d0] sm:$0xff] %v503
                %v505 = vld [vmem:[%s193 + $0x1348] sm:$0xff]
                %506 = vst [vmem:[%s194 + $0x4d8] sm:$0xff] %v505
                %v507 = vld [vmem:[%s193 + $0x1380] sm:$0xff]
                %508 = vst [vmem:[%s194 + $0x4e0] sm:$0xff] %v507
                %v509 = vld [vmem:[%s193 + $0x1388] sm:$0xff]
                %510 = vst [vmem:[%s194 + $0x4e8] sm:$0xff] %v509
                %v511 = vld [vmem:[%s193 + $0x13c0] sm:$0xff]
                %512 = vst [vmem:[%s194 + $0x4f0] sm:$0xff] %v511
                %v513 = vld [vmem:[%s193 + $0x13c8] sm:$0xff]
                %514 = vst [vmem:[%s194 + $0x4f8] sm:$0xff] %v513
              $region37: #{_lambda_.21} parent=31 // loop_footer
                %s192 = sadd.s32 1, %s188
              $region38: #{_lambda_.21} parent=31 // loop_footer_branch
                %187 = sbr.rel target = $region34
              $region39: #{_lambda_.21} parent=31 // loop_exit
                _
            $region32: #{_lambda_.21} parent=27 // pred_fallthru
              _
            // Predicated region
            $region40: #{_lambda_.21} parent=27 // pred_check
              _
            $region41: #{_lambda_.21} parent=27 // pred_check_branch
              %516 = sbr.rel target = $region43
            $region42: #{_lambda_.21} parent=27 // pred_region
              _
            $region43: #{_lambda_.21} parent=27 // pred_fallthru
              _
          $region28: #{_lambda_.21} parent=23 // pred_fallthru
            _
          %517 = vnop
        $region24: #{_lambda_.21} parent=19 // pred_fallthru
          _
        // Predicated region
        $region44: #{_lambda_.21} parent=19 // pred_check
          %p518 = pneg %p104
        $region45: #{_lambda_.21} parent=19 // pred_check_branch
          %520 = sbr.rel (%p518) target = $region47
        $region46: #{_lambda_.21} parent=19 // pred_region
          %s521 = smul.u32 4, %s17
          %p522 = scmp.lt.s32.totalorder %s521, 15
          %s523 = scalar_select %p522, %s521, 15
          %s524 = scalar_lea.vmem %s2, %s523
          %s525 = smul.u32 4, %s17
        $region47: #{_lambda_.21} parent=19 // pred_fallthru
          _
      $region20: #{_lambda_.21} parent=5 // pred_fallthru
        _
      %p526 = scmp.le.s32.totalorder 1, %s9
      %p527 = scmp.lt.s32.totalorder %s9, 5
      %p528 = pnand %p526, %p527
      %p529 = pneg %p528
      // Predicated region
      $region48: #{_lambda_.21} parent=5 // pred_check
        _
      $region49: #{_lambda_.21} parent=5 // pred_check_branch
        %531 = sbr.rel (%p528) target = $region51
      $region50: #{_lambda_.21} parent=5 // pred_region
        %s532 = ssub.s32 %s9, 1
        %s533 = sand.u32 %s71, 1
        %s534 = sand.u32 %s71, 1
        %s535 = smul.addr %s534, 1280
        %s536 = scalar_lea.vmem [#allocation3], %s535
        // Predicated region
        $region52: #{_lambda_.21} parent=50 // pred_check
          %p537 = pneg %p84
        $region53: #{_lambda_.21} parent=50 // pred_check_branch
          %539 = sbr.rel (%p537) target = $region55
        $region54: #{_lambda_.21} parent=50 // pred_region
          _
        $region55: #{_lambda_.21} parent=50 // pred_fallthru
          _
        %s540 = smul.u32 5, %s21
        %p541 = scmp.lt.s32.totalorder %s19, 0
        %s542 = scalar_select %p541, %s19, 0
        %p543 = scmp.lt.s32.totalorder %s540, 4
        %s544 = scalar_select %p543, %s540, 4
        %s545 = smul.addr %s542, 5
        %s546 = sadd.s32 %s544, %s545
        %s547 = smul.addr %s546, 4
        %s548 = scalar_lea.vmem %s0, %s547
        %p549 = pneg %p56
        %p550 = pneg %p53
        %s551 = sand.u32 %s71, 1
        %s552 = sand.u32 %s71, 1
        %s553 = smul.addr %s552, 1280
        %s554 = scalar_lea.vmem [#allocation3], %s553
        %p555 = pneg %p84
        %p556 = pneg %p81
        %s557 = smul.u32 4, %s20
        %p558 = scmp.lt.s32.totalorder %s557, 15
        %s559 = scalar_select %p558, %s557, 15
        %s560 = scalar_lea.vmem %s2, %s559
        %p561 = pneg %p110
        %p562 = pneg %p107
        %p563 = pneg %p138
        %p564 = pneg %p135
        %s565 = smul.u32 4, %s20
        %p566 = scmp.lt.s32.totalorder %s19, 0
        %s567 = scalar_select %p566, %s19, 0
        %p568 = scmp.lt.s32.totalorder %s565, 15
        %s569 = scalar_select %p568, %s565, 15
        %s570 = smul.addr %s567, 16
        %s571 = sadd.s32 %s569, %s570
        %s572 = smul.addr %s571, 4
        %s573 = scalar_lea.vmem %s3, %s572
        %s574 = smul.u32 5, %s21
        %p575 = scmp.lt.s32.totalorder %s19, 0
        %s576 = scalar_select %p575, %s19, 0
        %p577 = scmp.lt.s32.totalorder %s574, 4
        %s578 = scalar_select %p577, %s574, 4
        %s579 = smul.addr %s576, 5
        %s580 = sadd.s32 %s578, %s579
        %s581 = smul.addr %s580, 4
        %s582 = scalar_lea.vmem %s0, %s581
        %s583 = smul.u32 5, %s21
        %s584 = smul.u32 80, %s21
        %s585 = smul.u32 4, %s20
        %s586 = smul.u32 4, %s20
        %p587 = scmp.lt.s32.totalorder %s586, 15
        %s588 = scalar_select %p587, %s586, 15
        %s589 = scalar_lea.vmem %s2, %s588
        %s590 = smul.u32 4, %s20
        %s591 = smul.u32 4, %s20
        %p592 = scmp.lt.s32.totalorder %s19, 0
        %s593 = scalar_select %p592, %s19, 0
        %p594 = scmp.lt.s32.totalorder %s591, 15
        %s595 = scalar_select %p594, %s591, 15
        %s596 = smul.addr %s593, 16
        %s597 = sadd.s32 %s595, %s596
        %s598 = smul.addr %s597, 4
        %s599 = scalar_lea.vmem %s3, %s598
        %s600 = smul.u32 4, %s20
        %p602 = scmp.eq.s32.totalorder %s21, 0
        // Predicated region
        $region56: #{_lambda_.21} parent=50 // pred_check
          %p603 = pneg %p602
        $region57: #{_lambda_.21} parent=50 // pred_check_branch
          %605 = sbr.rel (%p603) target = $region59
        $region58: #{_lambda_.21} parent=50 // pred_region
          %606 = vst [vmem:[#allocation2] sm:$0xff] 0.0
          %607 = vst [vmem:[#allocation2 + $0x8] sm:$0xff] 0.0
          %608 = vst [vmem:[#allocation2 + $0x10] sm:$0xff] 0.0
          %609 = vst [vmem:[#allocation2 + $0x18] sm:$0xff] 0.0
        $region59: #{_lambda_.21} parent=50 // pred_fallthru
          _
        %v610 = vld [vmem:[#allocation2] sm:$0xff]
        %v611 = vld [vmem:[#allocation2 + $0x8] sm:$0xff]
        %v612 = vld [vmem:[#allocation2 + $0x10] sm:$0xff]
        %v613 = vld [vmem:[#allocation2 + $0x18] sm:$0xff]
        %v614 = vld [vmem:[%s582] sm:$0xff]
        %v615 = vld [vmem:[%s582 + $0x8] sm:$0xff]
        %v616 = vld [vmem:[%s582 + $0x10] sm:$0xf]
        %v617 = vld [vmem:[%s536] sm:$0xff]
        %v618 = vld [vmem:[%s536 + $0x8] sm:$0xff]
        %v619 = vld [vmem:[%s536 + $0x10] sm:$0xff]
        %v620 = vld [vmem:[%s536 + $0x18] sm:$0xff]
        %v621 = vld [vmem:[%s536 + $0x20] sm:$0xff]
        %v622 = vld [vmem:[%s536 + $0x28] sm:$0xff]
        %v623 = vld [vmem:[%s536 + $0x30] sm:$0xff]
        %v624 = vld [vmem:[%s536 + $0x38] sm:$0xff]
        %v625 = vld [vmem:[%s536 + $0x40] sm:$0xff]
        %v626 = vld [vmem:[%s536 + $0x48] sm:$0xff]
        %v627 = vld [vmem:[%s536 + $0x50] sm:$0xff]
        %v628 = vld [vmem:[%s536 + $0x58] sm:$0xff]
        %v629 = vld [vmem:[%s536 + $0x60] sm:$0xff]
        %v630 = vld [vmem:[%s536 + $0x68] sm:$0xff]
        %v631 = vld [vmem:[%s536 + $0x70] sm:$0xff]
        %v632 = vld [vmem:[%s536 + $0x78] sm:$0xff]
        %v633 = vld [vmem:[%s536 + $0x80] sm:$0xff]
        %v634 = vld [vmem:[%s536 + $0x88] sm:$0xff]
        %v635 = vld [vmem:[%s536 + $0x90] sm:$0xff]
        %v636 = vld [vmem:[%s536 + $0x98] sm:$0xff]
        %v637 = vld [vmem:[%s536 + $0xa0] sm:$0xff]
        %v638 = vld [vmem:[%s536 + $0xa8] sm:$0xff]
        %v639 = vld [vmem:[%s536 + $0xb0] sm:$0xff]
        %v640 = vld [vmem:[%s536 + $0xb8] sm:$0xff]
        %v641 = vld [vmem:[%s536 + $0xc0] sm:$0xff]
        %v642 = vld [vmem:[%s536 + $0xc8] sm:$0xff]
        %v643 = vld [vmem:[%s536 + $0xd0] sm:$0xff]
        %v644 = vld [vmem:[%s536 + $0xd8] sm:$0xff]
        %v645 = vld [vmem:[%s536 + $0xe0] sm:$0xff]
        %v646 = vld [vmem:[%s536 + $0xe8] sm:$0xff]
        %v647 = vld [vmem:[%s536 + $0xf0] sm:$0xff]
        %v648 = vld [vmem:[%s536 + $0xf8] sm:$0xff]
        %v649 = vld [vmem:[%s536 + $0x100] sm:$0xff]
        %v650 = vld [vmem:[%s536 + $0x108] sm:$0xff]
        %v651 = vld [vmem:[%s536 + $0x110] sm:$0xff]
        %v652 = vld [vmem:[%s536 + $0x118] sm:$0xff]
        %v653 = vld [vmem:[%s536 + $0x120] sm:$0xff]
        %v654 = vld [vmem:[%s536 + $0x128] sm:$0xff]
        %v655 = vld [vmem:[%s536 + $0x130] sm:$0xff]
        %v656 = vld [vmem:[%s536 + $0x138] sm:$0xff]
        %v657 = vld [vmem:[%s536 + $0x140] sm:$0xff]
        %v658 = vld [vmem:[%s536 + $0x148] sm:$0xff]
        %v659 = vld [vmem:[%s536 + $0x150] sm:$0xff]
        %v660 = vld [vmem:[%s536 + $0x158] sm:$0xff]
        %v661 = vld [vmem:[%s536 + $0x160] sm:$0xff]
        %v662 = vld [vmem:[%s536 + $0x168] sm:$0xff]
        %v663 = vld [vmem:[%s536 + $0x170] sm:$0xff]
        %v664 = vld [vmem:[%s536 + $0x178] sm:$0xff]
        %v665 = vld [vmem:[%s536 + $0x180] sm:$0xff]
        %v666 = vld [vmem:[%s536 + $0x188] sm:$0xff]
        %v667 = vld [vmem:[%s536 + $0x190] sm:$0xff]
        %v668 = vld [vmem:[%s536 + $0x198] sm:$0xff]
        %v669 = vld [vmem:[%s536 + $0x1a0] sm:$0xff]
        %v670 = vld [vmem:[%s536 + $0x1a8] sm:$0xff]
        %v671 = vld [vmem:[%s536 + $0x1b0] sm:$0xff]
        %v672 = vld [vmem:[%s536 + $0x1b8] sm:$0xff]
        %v673 = vld [vmem:[%s536 + $0x1c0] sm:$0xff]
        %v674 = vld [vmem:[%s536 + $0x1c8] sm:$0xff]
        %v675 = vld [vmem:[%s536 + $0x1d0] sm:$0xff]
        %v676 = vld [vmem:[%s536 + $0x1d8] sm:$0xff]
        %v677 = vld [vmem:[%s536 + $0x1e0] sm:$0xff]
        %v678 = vld [vmem:[%s536 + $0x1e8] sm:$0xff]
        %v679 = vld [vmem:[%s536 + $0x1f0] sm:$0xff]
        %v680 = vld [vmem:[%s536 + $0x1f8] sm:$0xff]
        %v681 = vld [vmem:[%s536 + $0x200] sm:$0xff]
        %v682 = vld [vmem:[%s536 + $0x208] sm:$0xff]
        %v683 = vld [vmem:[%s536 + $0x210] sm:$0xff]
        %v684 = vld [vmem:[%s536 + $0x218] sm:$0xff]
        %v685 = vld [vmem:[%s536 + $0x220] sm:$0xff]
        %v686 = vld [vmem:[%s536 + $0x228] sm:$0xff]
        %v687 = vld [vmem:[%s536 + $0x230] sm:$0xff]
        %v688 = vld [vmem:[%s536 + $0x238] sm:$0xff]
        %v689 = vld [vmem:[%s536 + $0x240] sm:$0xff]
        %v690 = vld [vmem:[%s536 + $0x248] sm:$0xff]
        %v691 = vld [vmem:[%s536 + $0x250] sm:$0xff]
        %v692 = vld [vmem:[%s536 + $0x258] sm:$0xff]
        %v693 = vld [vmem:[%s536 + $0x260] sm:$0xff]
        %v694 = vld [vmem:[%s536 + $0x268] sm:$0xff]
        %v695 = vld [vmem:[%s536 + $0x270] sm:$0xff]
        %v696 = vld [vmem:[%s536 + $0x278] sm:$0xff]
        %v697 = vld [vmem:[%s536 + $0x280] sm:$0xff]
        %v698 = vld [vmem:[%s536 + $0x288] sm:$0xff]
        %v699 = vld [vmem:[%s536 + $0x290] sm:$0xff]
        %v700 = vld [vmem:[%s536 + $0x298] sm:$0xff]
        %v701 = vld [vmem:[%s536 + $0x2a0] sm:$0xff]
        %v702 = vld [vmem:[%s536 + $0x2a8] sm:$0xff]
        %v703 = vld [vmem:[%s536 + $0x2b0] sm:$0xff]
        %v704 = vld [vmem:[%s536 + $0x2b8] sm:$0xff]
        %v705 = vld [vmem:[%s536 + $0x2c0] sm:$0xff]
        %v706 = vld [vmem:[%s536 + $0x2c8] sm:$0xff]
        %v707 = vld [vmem:[%s536 + $0x2d0] sm:$0xff]
        %v708 = vld [vmem:[%s536 + $0x2d8] sm:$0xff]
        %v709 = vld [vmem:[%s536 + $0x2e0] sm:$0xff]
        %v710 = vld [vmem:[%s536 + $0x2e8] sm:$0xff]
        %v711 = vld [vmem:[%s536 + $0x2f0] sm:$0xff]
        %v712 = vld [vmem:[%s536 + $0x2f8] sm:$0xff]
        %v713 = vld [vmem:[%s536 + $0x300] sm:$0xff]
        %v714 = vld [vmem:[%s536 + $0x308] sm:$0xff]
        %v715 = vld [vmem:[%s536 + $0x310] sm:$0xff]
        %v716 = vld [vmem:[%s536 + $0x318] sm:$0xff]
        %v717 = vld [vmem:[%s536 + $0x320] sm:$0xff]
        %v718 = vld [vmem:[%s536 + $0x328] sm:$0xff]
        %v719 = vld [vmem:[%s536 + $0x330] sm:$0xff]
        %v720 = vld [vmem:[%s536 + $0x338] sm:$0xff]
        %v721 = vld [vmem:[%s536 + $0x340] sm:$0xff]
        %v722 = vld [vmem:[%s536 + $0x348] sm:$0xff]
        %v723 = vld [vmem:[%s536 + $0x350] sm:$0xff]
        %v724 = vld [vmem:[%s536 + $0x358] sm:$0xff]
        %v725 = vld [vmem:[%s536 + $0x360] sm:$0xff]
        %v726 = vld [vmem:[%s536 + $0x368] sm:$0xff]
        %v727 = vld [vmem:[%s536 + $0x370] sm:$0xff]
        %v728 = vld [vmem:[%s536 + $0x378] sm:$0xff]
        %v729 = vld [vmem:[%s536 + $0x380] sm:$0xff]
        %v730 = vld [vmem:[%s536 + $0x388] sm:$0xff]
        %v731 = vld [vmem:[%s536 + $0x390] sm:$0xff]
        %v732 = vld [vmem:[%s536 + $0x398] sm:$0xff]
        %v733 = vld [vmem:[%s536 + $0x3a0] sm:$0xff]
        %v734 = vld [vmem:[%s536 + $0x3a8] sm:$0xff]
        %v735 = vld [vmem:[%s536 + $0x3b0] sm:$0xff]
        %v736 = vld [vmem:[%s536 + $0x3b8] sm:$0xff]
        %v737 = vld [vmem:[%s536 + $0x3c0] sm:$0xff]
        %v738 = vld [vmem:[%s536 + $0x3c8] sm:$0xff]
        %v739 = vld [vmem:[%s536 + $0x3d0] sm:$0xff]
        %v740 = vld [vmem:[%s536 + $0x3d8] sm:$0xff]
        %v741 = vld [vmem:[%s536 + $0x3e0] sm:$0xff]
        %v742 = vld [vmem:[%s536 + $0x3e8] sm:$0xff]
        %v743 = vld [vmem:[%s536 + $0x3f0] sm:$0xff]
        %v744 = vld [vmem:[%s536 + $0x3f8] sm:$0xff]
        %v745 = vld [vmem:[%s536 + $0x400] sm:$0xff]
        %v746 = vld [vmem:[%s536 + $0x408] sm:$0xff]
        %v747 = vld [vmem:[%s536 + $0x410] sm:$0xff]
        %v748 = vld [vmem:[%s536 + $0x418] sm:$0xff]
        %v749 = vld [vmem:[%s536 + $0x420] sm:$0xff]
        %v750 = vld [vmem:[%s536 + $0x428] sm:$0xff]
        %v751 = vld [vmem:[%s536 + $0x430] sm:$0xff]
        %v752 = vld [vmem:[%s536 + $0x438] sm:$0xff]
        %v753 = vld [vmem:[%s536 + $0x440] sm:$0xff]
        %v754 = vld [vmem:[%s536 + $0x448] sm:$0xff]
        %v755 = vld [vmem:[%s536 + $0x450] sm:$0xff]
        %v756 = vld [vmem:[%s536 + $0x458] sm:$0xff]
        %v757 = vld [vmem:[%s536 + $0x460] sm:$0xff]
        %v758 = vld [vmem:[%s536 + $0x468] sm:$0xff]
        %v759 = vld [vmem:[%s536 + $0x470] sm:$0xff]
        %v760 = vld [vmem:[%s536 + $0x478] sm:$0xff]
        %v761 = vld [vmem:[%s536 + $0x480] sm:$0xff]
        %v762 = vld [vmem:[%s536 + $0x488] sm:$0xff]
        %v763 = vld [vmem:[%s536 + $0x490] sm:$0xff]
        %v764 = vld [vmem:[%s536 + $0x498] sm:$0xff]
        %v765 = vld [vmem:[%s536 + $0x4a0] sm:$0xff]
        %v766 = vld [vmem:[%s536 + $0x4a8] sm:$0xff]
        %v767 = vld [vmem:[%s536 + $0x4b0] sm:$0xff]
        %v768 = vld [vmem:[%s536 + $0x4b8] sm:$0xff]
        %v769 = vld [vmem:[%s536 + $0x4c0] sm:$0xff]
        %v770 = vld [vmem:[%s536 + $0x4c8] sm:$0xff]
        %v771 = vld [vmem:[%s536 + $0x4d0] sm:$0xff]
        %v772 = vld [vmem:[%s536 + $0x4d8] sm:$0xff]
        %v773 = vld [vmem:[%s536 + $0x4e0] sm:$0xff]
        %v774 = vld [vmem:[%s536 + $0x4e8] sm:$0xff]
        %v775 = vld [vmem:[%s536 + $0x4f0] sm:$0xff]
        %v776 = vld [vmem:[%s536 + $0x4f8] sm:$0xff]
        %v780 = vunpack.c.l.b16 %v614
        %v781 = vunpack.c.h.b16 %v614
        %v782 = vunpack.c.l.b16 %v615
        %v783 = vunpack.c.h.b16 %v615
        %v784 = vunpack.c.l.b16 %v616
        %v785 = vpack.c.b16 %v780, %v780
        %v786 = vpack.c.b16 %v781, %v781
        %v787 = vpack.c.b16 %v782, %v782
        %v788 = vpack.c.b16 %v783, %v783
        %v789 = vpack.c.b16 %v784, %v784
        %v955 = vunpack.c.l.b16 %v617
        %v956 = vunpack.c.h.b16 %v617
        %v957 = vunpack.c.l.b16 %v618
        %v958 = vunpack.c.h.b16 %v618
        %v959 = vunpack.c.l.b16 %v619
        %v960 = vunpack.c.h.b16 %v619
        %v961 = vunpack.c.l.b16 %v620
        %v962 = vunpack.c.h.b16 %v620
        %v963 = vunpack.c.l.b16 %v621
        %v964 = vunpack.c.h.b16 %v621
        %v965 = vunpack.c.l.b16 %v622
        %v966 = vunpack.c.h.b16 %v622
        %v967 = vunpack.c.l.b16 %v623
        %v968 = vunpack.c.h.b16 %v623
        %v969 = vunpack.c.l.b16 %v624
        %v970 = vunpack.c.h.b16 %v624
        %v971 = vunpack.c.l.b16 %v625
        %v972 = vunpack.c.h.b16 %v625
        %v973 = vunpack.c.l.b16 %v626
        %v974 = vunpack.c.h.b16 %v626
        %v975 = vunpack.c.l.b16 %v627
        %v976 = vunpack.c.h.b16 %v627
        %v977 = vunpack.c.l.b16 %v628
        %v978 = vunpack.c.h.b16 %v628
        %v979 = vunpack.c.l.b16 %v629
        %v980 = vunpack.c.h.b16 %v629
        %v981 = vunpack.c.l.b16 %v630
        %v982 = vunpack.c.h.b16 %v630
        %v983 = vunpack.c.l.b16 %v631
        %v984 = vunpack.c.h.b16 %v631
        %v985 = vunpack.c.l.b16 %v632
        %v986 = vunpack.c.h.b16 %v632
        %v987 = vunpack.c.l.b16 %v633
        %v988 = vunpack.c.h.b16 %v633
        %v989 = vunpack.c.l.b16 %v634
        %v990 = vunpack.c.h.b16 %v634
        %v991 = vunpack.c.l.b16 %v635
        %v992 = vunpack.c.h.b16 %v635
        %v993 = vunpack.c.l.b16 %v636
        %v994 = vunpack.c.h.b16 %v636
        %v995 = vunpack.c.l.b16 %v637
        %v996 = vunpack.c.h.b16 %v637
        %v997 = vunpack.c.l.b16 %v638
        %v998 = vunpack.c.h.b16 %v638
        %v999 = vunpack.c.l.b16 %v639
        %v1000 = vunpack.c.h.b16 %v639
        %v1001 = vunpack.c.l.b16 %v640
        %v1002 = vunpack.c.h.b16 %v640
        %v1003 = vunpack.c.l.b16 %v641
        %v1004 = vunpack.c.h.b16 %v641
        %v1005 = vunpack.c.l.b16 %v642
        %v1006 = vunpack.c.h.b16 %v642
        %v1007 = vunpack.c.l.b16 %v643
        %v1008 = vunpack.c.h.b16 %v643
        %v1009 = vunpack.c.l.b16 %v644
        %v1010 = vunpack.c.h.b16 %v644
        %v1011 = vunpack.c.l.b16 %v645
        %v1012 = vunpack.c.h.b16 %v645
        %v1013 = vunpack.c.l.b16 %v646
        %v1014 = vunpack.c.h.b16 %v646
        %v1015 = vunpack.c.l.b16 %v647
        %v1016 = vunpack.c.h.b16 %v647
        %v1017 = vunpack.c.l.b16 %v648
        %v1018 = vunpack.c.h.b16 %v648
        %v1019 = vunpack.c.l.b16 %v649
        %v1020 = vunpack.c.h.b16 %v649
        %v1021 = vunpack.c.l.b16 %v650
        %v1022 = vunpack.c.h.b16 %v650
        %v1023 = vunpack.c.l.b16 %v651
        %v1024 = vunpack.c.h.b16 %v651
        %v1025 = vunpack.c.l.b16 %v652
        %v1026 = vunpack.c.h.b16 %v652
        %v1027 = vunpack.c.l.b16 %v653
        %v1028 = vunpack.c.h.b16 %v653
        %v1029 = vunpack.c.l.b16 %v654
        %v1030 = vunpack.c.h.b16 %v654
        %v1031 = vunpack.c.l.b16 %v655
        %v1032 = vunpack.c.h.b16 %v655
        %v1033 = vunpack.c.l.b16 %v656
        %v1034 = vunpack.c.h.b16 %v656
        %v1035 = vunpack.c.l.b16 %v657
        %v1036 = vunpack.c.h.b16 %v657
        %v1037 = vunpack.c.l.b16 %v658
        %v1038 = vunpack.c.h.b16 %v658
        %v1039 = vunpack.c.l.b16 %v659
        %v1040 = vunpack.c.h.b16 %v659
        %v1041 = vunpack.c.l.b16 %v660
        %v1042 = vunpack.c.h.b16 %v660
        %v1043 = vunpack.c.l.b16 %v661
        %v1044 = vunpack.c.h.b16 %v661
        %v1045 = vunpack.c.l.b16 %v662
        %v1046 = vunpack.c.h.b16 %v662
        %v1047 = vunpack.c.l.b16 %v663
        %v1048 = vunpack.c.h.b16 %v663
        %v1049 = vunpack.c.l.b16 %v664
        %v1050 = vunpack.c.h.b16 %v664
        %v1051 = vunpack.c.l.b16 %v665
        %v1052 = vunpack.c.h.b16 %v665
        %v1053 = vunpack.c.l.b16 %v666
        %v1054 = vunpack.c.h.b16 %v666
        %v1055 = vunpack.c.l.b16 %v667
        %v1056 = vunpack.c.h.b16 %v667
        %v1057 = vunpack.c.l.b16 %v668
        %v1058 = vunpack.c.h.b16 %v668
        %v1059 = vunpack.c.l.b16 %v669
        %v1060 = vunpack.c.h.b16 %v669
        %v1061 = vunpack.c.l.b16 %v670
        %v1062 = vunpack.c.h.b16 %v670
        %v1063 = vunpack.c.l.b16 %v671
        %v1064 = vunpack.c.h.b16 %v671
        %v1065 = vunpack.c.l.b16 %v672
        %v1066 = vunpack.c.h.b16 %v672
        %v1067 = vunpack.c.l.b16 %v673
        %v1068 = vunpack.c.h.b16 %v673
        %v1069 = vunpack.c.l.b16 %v674
        %v1070 = vunpack.c.h.b16 %v674
        %v1071 = vunpack.c.l.b16 %v675
        %v1072 = vunpack.c.h.b16 %v675
        %v1073 = vunpack.c.l.b16 %v676
        %v1074 = vunpack.c.h.b16 %v676
        %v1075 = vunpack.c.l.b16 %v677
        %v1076 = vunpack.c.h.b16 %v677
        %v1077 = vunpack.c.l.b16 %v678
        %v1078 = vunpack.c.h.b16 %v678
        %v1079 = vunpack.c.l.b16 %v679
        %v1080 = vunpack.c.h.b16 %v679
        %v1081 = vunpack.c.l.b16 %v680
        %v1082 = vunpack.c.h.b16 %v680
        %v1083 = vunpack.c.l.b16 %v681
        %v1084 = vunpack.c.h.b16 %v681
        %v1085 = vunpack.c.l.b16 %v682
        %v1086 = vunpack.c.h.b16 %v682
        %v1087 = vunpack.c.l.b16 %v683
        %v1088 = vunpack.c.h.b16 %v683
        %v1089 = vunpack.c.l.b16 %v684
        %v1090 = vunpack.c.h.b16 %v684
        %v1091 = vunpack.c.l.b16 %v685
        %v1092 = vunpack.c.h.b16 %v685
        %v1093 = vunpack.c.l.b16 %v686
        %v1094 = vunpack.c.h.b16 %v686
        %v1095 = vunpack.c.l.b16 %v687
        %v1096 = vunpack.c.h.b16 %v687
        %v1097 = vunpack.c.l.b16 %v688
        %v1098 = vunpack.c.h.b16 %v688
        %v1099 = vunpack.c.l.b16 %v689
        %v1100 = vunpack.c.h.b16 %v689
        %v1101 = vunpack.c.l.b16 %v690
        %v1102 = vunpack.c.h.b16 %v690
        %v1103 = vunpack.c.l.b16 %v691
        %v1104 = vunpack.c.h.b16 %v691
        %v1105 = vunpack.c.l.b16 %v692
        %v1106 = vunpack.c.h.b16 %v692
        %v1107 = vunpack.c.l.b16 %v693
        %v1108 = vunpack.c.h.b16 %v693
        %v1109 = vunpack.c.l.b16 %v694
        %v1110 = vunpack.c.h.b16 %v694
        %v1111 = vunpack.c.l.b16 %v695
        %v1112 = vunpack.c.h.b16 %v695
        %v1113 = vunpack.c.l.b16 %v696
        %v1114 = vunpack.c.h.b16 %v696
        %v1115 = vunpack.c.l.b16 %v697
        %v1116 = vunpack.c.h.b16 %v697
        %v1117 = vunpack.c.l.b16 %v698
        %v1118 = vunpack.c.h.b16 %v698
        %v1119 = vunpack.c.l.b16 %v699
        %v1120 = vunpack.c.h.b16 %v699
        %v1121 = vunpack.c.l.b16 %v700
        %v1122 = vunpack.c.h.b16 %v700
        %v1123 = vunpack.c.l.b16 %v701
        %v1124 = vunpack.c.h.b16 %v701
        %v1125 = vunpack.c.l.b16 %v702
        %v1126 = vunpack.c.h.b16 %v702
        %v1127 = vunpack.c.l.b16 %v703
        %v1128 = vunpack.c.h.b16 %v703
        %v1129 = vunpack.c.l.b16 %v704
        %v1130 = vunpack.c.h.b16 %v704
        %v1131 = vunpack.c.l.b16 %v705
        %v1132 = vunpack.c.h.b16 %v705
        %v1133 = vunpack.c.l.b16 %v706
        %v1134 = vunpack.c.h.b16 %v706
        %v1135 = vunpack.c.l.b16 %v707
        %v1136 = vunpack.c.h.b16 %v707
        %v1137 = vunpack.c.l.b16 %v708
        %v1138 = vunpack.c.h.b16 %v708
        %v1139 = vunpack.c.l.b16 %v709
        %v1140 = vunpack.c.h.b16 %v709
        %v1141 = vunpack.c.l.b16 %v710
        %v1142 = vunpack.c.h.b16 %v710
        %v1143 = vunpack.c.l.b16 %v711
        %v1144 = vunpack.c.h.b16 %v711
        %v1145 = vunpack.c.l.b16 %v712
        %v1146 = vunpack.c.h.b16 %v712
        %v1147 = vunpack.c.l.b16 %v713
        %v1148 = vunpack.c.h.b16 %v713
        %v1149 = vunpack.c.l.b16 %v714
        %v1150 = vunpack.c.h.b16 %v714
        %v1151 = vunpack.c.l.b16 %v715
        %v1152 = vunpack.c.h.b16 %v715
        %v1153 = vunpack.c.l.b16 %v716
        %v1154 = vunpack.c.h.b16 %v716
        %v1155 = vunpack.c.l.b16 %v717
        %v1156 = vunpack.c.h.b16 %v717
        %v1157 = vunpack.c.l.b16 %v718
        %v1158 = vunpack.c.h.b16 %v718
        %v1159 = vunpack.c.l.b16 %v719
        %v1160 = vunpack.c.h.b16 %v719
        %v1161 = vunpack.c.l.b16 %v720
        %v1162 = vunpack.c.h.b16 %v720
        %v1163 = vunpack.c.l.b16 %v721
        %v1164 = vunpack.c.h.b16 %v721
        %v1165 = vunpack.c.l.b16 %v722
        %v1166 = vunpack.c.h.b16 %v722
        %v1167 = vunpack.c.l.b16 %v723
        %v1168 = vunpack.c.h.b16 %v723
        %v1169 = vunpack.c.l.b16 %v724
        %v1170 = vunpack.c.h.b16 %v724
        %v1171 = vunpack.c.l.b16 %v725
        %v1172 = vunpack.c.h.b16 %v725
        %v1173 = vunpack.c.l.b16 %v726
        %v1174 = vunpack.c.h.b16 %v726
        %v1175 = vunpack.c.l.b16 %v727
        %v1176 = vunpack.c.h.b16 %v727
        %v1177 = vunpack.c.l.b16 %v728
        %v1178 = vunpack.c.h.b16 %v728
        %v1179 = vunpack.c.l.b16 %v729
        %v1180 = vunpack.c.h.b16 %v729
        %v1181 = vunpack.c.l.b16 %v730
        %v1182 = vunpack.c.h.b16 %v730
        %v1183 = vunpack.c.l.b16 %v731
        %v1184 = vunpack.c.h.b16 %v731
        %v1185 = vunpack.c.l.b16 %v732
        %v1186 = vunpack.c.h.b16 %v732
        %v1187 = vunpack.c.l.b16 %v733
        %v1188 = vunpack.c.h.b16 %v733
        %v1189 = vunpack.c.l.b16 %v734
        %v1190 = vunpack.c.h.b16 %v734
        %v1191 = vunpack.c.l.b16 %v735
        %v1192 = vunpack.c.h.b16 %v735
        %v1193 = vunpack.c.l.b16 %v736
        %v1194 = vunpack.c.h.b16 %v736
        %v1195 = vunpack.c.l.b16 %v737
        %v1196 = vunpack.c.h.b16 %v737
        %v1197 = vunpack.c.l.b16 %v738
        %v1198 = vunpack.c.h.b16 %v738
        %v1199 = vunpack.c.l.b16 %v739
        %v1200 = vunpack.c.h.b16 %v739
        %v1201 = vunpack.c.l.b16 %v740
        %v1202 = vunpack.c.h.b16 %v740
        %v1203 = vunpack.c.l.b16 %v741
        %v1204 = vunpack.c.h.b16 %v741
        %v1205 = vunpack.c.l.b16 %v742
        %v1206 = vunpack.c.h.b16 %v742
        %v1207 = vunpack.c.l.b16 %v743
        %v1208 = vunpack.c.h.b16 %v743
        %v1209 = vunpack.c.l.b16 %v744
        %v1210 = vunpack.c.h.b16 %v744
        %v1211 = vunpack.c.l.b16 %v745
        %v1212 = vunpack.c.h.b16 %v745
        %v1213 = vunpack.c.l.b16 %v746
        %v1214 = vunpack.c.h.b16 %v746
        %v1215 = vunpack.c.l.b16 %v747
        %v1216 = vunpack.c.h.b16 %v747
        %v1217 = vunpack.c.l.b16 %v748
        %v1218 = vunpack.c.h.b16 %v748
        %v1219 = vunpack.c.l.b16 %v749
        %v1220 = vunpack.c.h.b16 %v749
        %v1221 = vunpack.c.l.b16 %v750
        %v1222 = vunpack.c.h.b16 %v750
        %v1223 = vunpack.c.l.b16 %v751
        %v1224 = vunpack.c.h.b16 %v751
        %v1225 = vunpack.c.l.b16 %v752
        %v1226 = vunpack.c.h.b16 %v752
        %v1227 = vunpack.c.l.b16 %v753
        %v1228 = vunpack.c.h.b16 %v753
        %v1229 = vunpack.c.l.b16 %v754
        %v1230 = vunpack.c.h.b16 %v754
        %v1231 = vunpack.c.l.b16 %v755
        %v1232 = vunpack.c.h.b16 %v755
        %v1233 = vunpack.c.l.b16 %v756
        %v1234 = vunpack.c.h.b16 %v756
        %v1235 = vunpack.c.l.b16 %v757
        %v1236 = vunpack.c.h.b16 %v757
        %v1237 = vunpack.c.l.b16 %v758
        %v1238 = vunpack.c.h.b16 %v758
        %v1239 = vunpack.c.l.b16 %v759
        %v1240 = vunpack.c.h.b16 %v759
        %v1241 = vunpack.c.l.b16 %v760
        %v1242 = vunpack.c.h.b16 %v760
        %v1243 = vunpack.c.l.b16 %v761
        %v1244 = vunpack.c.h.b16 %v761
        %v1245 = vunpack.c.l.b16 %v762
        %v1246 = vunpack.c.h.b16 %v762
        %v1247 = vunpack.c.l.b16 %v763
        %v1248 = vunpack.c.h.b16 %v763
        %v1249 = vunpack.c.l.b16 %v764
        %v1250 = vunpack.c.h.b16 %v764
        %v1251 = vunpack.c.l.b16 %v765
        %v1252 = vunpack.c.h.b16 %v765
        %v1253 = vunpack.c.l.b16 %v766
        %v1254 = vunpack.c.h.b16 %v766
        %v1255 = vunpack.c.l.b16 %v767
        %v1256 = vunpack.c.h.b16 %v767
        %v1257 = vunpack.c.l.b16 %v768
        %v1258 = vunpack.c.h.b16 %v768
        %v1259 = vunpack.c.l.b16 %v769
        %v1260 = vunpack.c.h.b16 %v769
        %v1261 = vunpack.c.l.b16 %v770
        %v1262 = vunpack.c.h.b16 %v770
        %v1263 = vunpack.c.l.b16 %v771
        %v1264 = vunpack.c.h.b16 %v771
        %v1265 = vunpack.c.l.b16 %v772
        %v1266 = vunpack.c.h.b16 %v772
        %v1267 = vunpack.c.l.b16 %v773
        %v1268 = vunpack.c.h.b16 %v773
        %v1269 = vunpack.c.l.b16 %v774
        %v1270 = vunpack.c.h.b16 %v774
        %v1271 = vunpack.c.l.b16 %v775
        %v1272 = vunpack.c.h.b16 %v775
        %v1273 = vunpack.c.l.b16 %v776
        %v1274 = vunpack.c.h.b16 %v776
        %v1275 = vpack.c.b16 %v959, %v955
        %v1276 = vpack.c.b16 %v960, %v956
        %v1277 = vpack.c.b16 %v961, %v957
        %v1278 = vpack.c.b16 %v962, %v958
        %v1279 = vpack.c.b16 %v967, %v963
        %v1280 = vpack.c.b16 %v968, %v964
        %v1281 = vpack.c.b16 %v969, %v965
        %v1282 = vpack.c.b16 %v970, %v966
        %v1283 = vpack.c.b16 %v975, %v971
        %v1284 = vpack.c.b16 %v976, %v972
        %v1285 = vpack.c.b16 %v977, %v973
        %v1286 = vpack.c.b16 %v978, %v974
        %v1287 = vpack.c.b16 %v983, %v979
        %v1288 = vpack.c.b16 %v984, %v980
        %v1289 = vpack.c.b16 %v985, %v981
        %v1290 = vpack.c.b16 %v986, %v982
        %v1291 = vpack.c.b16 %v991, %v987
        %v1292 = vpack.c.b16 %v992, %v988
        %v1293 = vpack.c.b16 %v993, %v989
        %v1294 = vpack.c.b16 %v994, %v990
        %v1295 = vpack.c.b16 %v999, %v995
        %v1296 = vpack.c.b16 %v1000, %v996
        %v1297 = vpack.c.b16 %v1001, %v997
        %v1298 = vpack.c.b16 %v1002, %v998
        %v1299 = vpack.c.b16 %v1007, %v1003
        %v1300 = vpack.c.b16 %v1008, %v1004
        %v1301 = vpack.c.b16 %v1009, %v1005
        %v1302 = vpack.c.b16 %v1010, %v1006
        %v1303 = vpack.c.b16 %v1015, %v1011
        %v1304 = vpack.c.b16 %v1016, %v1012
        %v1305 = vpack.c.b16 %v1017, %v1013
        %v1306 = vpack.c.b16 %v1018, %v1014
        %v1307 = vpack.c.b16 %v1023, %v1019
        %v1308 = vpack.c.b16 %v1024, %v1020
        %v1309 = vpack.c.b16 %v1025, %v1021
        %v1310 = vpack.c.b16 %v1026, %v1022
        %v1311 = vpack.c.b16 %v1031, %v1027
        %v1312 = vpack.c.b16 %v1032, %v1028
        %v1313 = vpack.c.b16 %v1033, %v1029
        %v1314 = vpack.c.b16 %v1034, %v1030
        %v1315 = vpack.c.b16 %v1039, %v1035
        %v1316 = vpack.c.b16 %v1040, %v1036
        %v1317 = vpack.c.b16 %v1041, %v1037
        %v1318 = vpack.c.b16 %v1042, %v1038
        %v1319 = vpack.c.b16 %v1047, %v1043
        %v1320 = vpack.c.b16 %v1048, %v1044
        %v1321 = vpack.c.b16 %v1049, %v1045
        %v1322 = vpack.c.b16 %v1050, %v1046
        %v1323 = vpack.c.b16 %v1055, %v1051
        %v1324 = vpack.c.b16 %v1056, %v1052
        %v1325 = vpack.c.b16 %v1057, %v1053
        %v1326 = vpack.c.b16 %v1058, %v1054
        %v1327 = vpack.c.b16 %v1063, %v1059
        %v1328 = vpack.c.b16 %v1064, %v1060
        %v1329 = vpack.c.b16 %v1065, %v1061
        %v1330 = vpack.c.b16 %v1066, %v1062
        %v1331 = vpack.c.b16 %v1071, %v1067
        %v1332 = vpack.c.b16 %v1072, %v1068
        %v1333 = vpack.c.b16 %v1073, %v1069
        %v1334 = vpack.c.b16 %v1074, %v1070
        %v1335 = vpack.c.b16 %v1079, %v1075
        %v1336 = vpack.c.b16 %v1080, %v1076
        %v1337 = vpack.c.b16 %v1081, %v1077
        %v1338 = vpack.c.b16 %v1082, %v1078
        %v1339 = vpack.c.b16 %v1087, %v1083
        %v1340 = vpack.c.b16 %v1088, %v1084
        %v1341 = vpack.c.b16 %v1089, %v1085
        %v1342 = vpack.c.b16 %v1090, %v1086
        %v1343 = vpack.c.b16 %v1095, %v1091
        %v1344 = vpack.c.b16 %v1096, %v1092
        %v1345 = vpack.c.b16 %v1097, %v1093
        %v1346 = vpack.c.b16 %v1098, %v1094
        %v1347 = vpack.c.b16 %v1103, %v1099
        %v1348 = vpack.c.b16 %v1104, %v1100
        %v1349 = vpack.c.b16 %v1105, %v1101
        %v1350 = vpack.c.b16 %v1106, %v1102
        %v1351 = vpack.c.b16 %v1111, %v1107
        %v1352 = vpack.c.b16 %v1112, %v1108
        %v1353 = vpack.c.b16 %v1113, %v1109
        %v1354 = vpack.c.b16 %v1114, %v1110
        %v1355 = vpack.c.b16 %v1119, %v1115
        %v1356 = vpack.c.b16 %v1120, %v1116
        %v1357 = vpack.c.b16 %v1121, %v1117
        %v1358 = vpack.c.b16 %v1122, %v1118
        %v1359 = vpack.c.b16 %v1127, %v1123
        %v1360 = vpack.c.b16 %v1128, %v1124
        %v1361 = vpack.c.b16 %v1129, %v1125
        %v1362 = vpack.c.b16 %v1130, %v1126
        %v1363 = vpack.c.b16 %v1135, %v1131
        %v1364 = vpack.c.b16 %v1136, %v1132
        %v1365 = vpack.c.b16 %v1137, %v1133
        %v1366 = vpack.c.b16 %v1138, %v1134
        %v1367 = vpack.c.b16 %v1143, %v1139
        %v1368 = vpack.c.b16 %v1144, %v1140
        %v1369 = vpack.c.b16 %v1145, %v1141
        %v1370 = vpack.c.b16 %v1146, %v1142
        %v1371 = vpack.c.b16 %v1151, %v1147
        %v1372 = vpack.c.b16 %v1152, %v1148
        %v1373 = vpack.c.b16 %v1153, %v1149
        %v1374 = vpack.c.b16 %v1154, %v1150
        %v1375 = vpack.c.b16 %v1159, %v1155
        %v1376 = vpack.c.b16 %v1160, %v1156
        %v1377 = vpack.c.b16 %v1161, %v1157
        %v1378 = vpack.c.b16 %v1162, %v1158
        %v1379 = vpack.c.b16 %v1167, %v1163
        %v1380 = vpack.c.b16 %v1168, %v1164
        %v1381 = vpack.c.b16 %v1169, %v1165
        %v1382 = vpack.c.b16 %v1170, %v1166
        %v1383 = vpack.c.b16 %v1175, %v1171
        %v1384 = vpack.c.b16 %v1176, %v1172
        %v1385 = vpack.c.b16 %v1177, %v1173
        %v1386 = vpack.c.b16 %v1178, %v1174
        %v1387 = vpack.c.b16 %v1183, %v1179
        %v1388 = vpack.c.b16 %v1184, %v1180
        %v1389 = vpack.c.b16 %v1185, %v1181
        %v1390 = vpack.c.b16 %v1186, %v1182
        %v1391 = vpack.c.b16 %v1191, %v1187
        %v1392 = vpack.c.b16 %v1192, %v1188
        %v1393 = vpack.c.b16 %v1193, %v1189
        %v1394 = vpack.c.b16 %v1194, %v1190
        %v1395 = vpack.c.b16 %v1199, %v1195
        %v1396 = vpack.c.b16 %v1200, %v1196
        %v1397 = vpack.c.b16 %v1201, %v1197
        %v1398 = vpack.c.b16 %v1202, %v1198
        %v1399 = vpack.c.b16 %v1207, %v1203
        %v1400 = vpack.c.b16 %v1208, %v1204
        %v1401 = vpack.c.b16 %v1209, %v1205
        %v1402 = vpack.c.b16 %v1210, %v1206
        %v1403 = vpack.c.b16 %v1215, %v1211
        %v1404 = vpack.c.b16 %v1216, %v1212
        %v1405 = vpack.c.b16 %v1217, %v1213
        %v1406 = vpack.c.b16 %v1218, %v1214
        %v1407 = vpack.c.b16 %v1223, %v1219
        %v1408 = vpack.c.b16 %v1224, %v1220
        %v1409 = vpack.c.b16 %v1225, %v1221
        %v1410 = vpack.c.b16 %v1226, %v1222
        %v1411 = vpack.c.b16 %v1231, %v1227
        %v1412 = vpack.c.b16 %v1232, %v1228
        %v1413 = vpack.c.b16 %v1233, %v1229
        %v1414 = vpack.c.b16 %v1234, %v1230
        %v1415 = vpack.c.b16 %v1239, %v1235
        %v1416 = vpack.c.b16 %v1240, %v1236
        %v1417 = vpack.c.b16 %v1241, %v1237
        %v1418 = vpack.c.b16 %v1242, %v1238
        %v1419 = vpack.c.b16 %v1247, %v1243
        %v1420 = vpack.c.b16 %v1248, %v1244
        %v1421 = vpack.c.b16 %v1249, %v1245
        %v1422 = vpack.c.b16 %v1250, %v1246
        %v1423 = vpack.c.b16 %v1255, %v1251
        %v1424 = vpack.c.b16 %v1256, %v1252
        %v1425 = vpack.c.b16 %v1257, %v1253
        %v1426 = vpack.c.b16 %v1258, %v1254
        %v1427 = vpack.c.b16 %v1263, %v1259
        %v1428 = vpack.c.b16 %v1264, %v1260
        %v1429 = vpack.c.b16 %v1265, %v1261
        %v1430 = vpack.c.b16 %v1266, %v1262
        %v1431 = vpack.c.b16 %v1271, %v1267
        %v1432 = vpack.c.b16 %v1272, %v1268
        %v1433 = vpack.c.b16 %v1273, %v1269
        %v1434 = vpack.c.b16 %v1274, %v1270
        %1595 = vmatprep.subr.bf16.mxu0 %v1304
        %1596 = vmatpush1.bf16.msra.mxu0 %v1303
        %1597 = vmatprep.subr.bf16.mxu0 %v1300
        %1598 = vmatpush1.bf16.msra.mxu0 %v1299
        %1599 = vmatprep.subr.bf16.mxu0 %v1296
        %1600 = vmatpush1.bf16.msra.mxu0 %v1295
        %1601 = vmatprep.subr.bf16.mxu0 %v1292
        %1602 = vmatpush1.bf16.msra.mxu0 %v1291
        %1603 = vmatprep.subr.bf16.mxu0 %v1288
        %1604 = vmatpush1.bf16.msra.mxu0 %v1287
        %1605 = vmatprep.subr.bf16.mxu0 %v1284
        %1606 = vmatpush1.bf16.msra.mxu0 %v1283
        %1607 = vmatprep.subr.bf16.mxu0 %v1280
        %1608 = vmatpush1.bf16.msra.mxu0 %v1279
        %1609 = vmatprep.subr.bf16.mxu0 %v1276
        %1610 = vmatpush1.bf16.msra.mxu0 %v1275
        %1611 = vmatprep.subr.bf16.mxu0 %v1336
        %1612 = vmatpush2.bf16.msra.mxu0 %v1335
        %1613 = vmatprep.subr.bf16.mxu0 %v1332
        %1614 = vmatpush2.bf16.msra.mxu0 %v1331
        %1615 = vmatprep.subr.bf16.mxu0 %v1328
        %1616 = vmatpush2.bf16.msra.mxu0 %v1327
        %1617 = vmatprep.subr.bf16.mxu0 %v1324
        %1618 = vmatpush2.bf16.msra.mxu0 %v1323
        %1619 = vmatprep.subr.bf16.mxu0 %v1320
        %1620 = vmatpush2.bf16.msra.mxu0 %v1319
        %1621 = vmatprep.subr.bf16.mxu0 %v1316
        %1622 = vmatpush2.bf16.msra.mxu0 %v1315
        %1623 = vmatprep.subr.bf16.mxu0 %v1312
        %1624 = vmatpush2.bf16.msra.mxu0 %v1311
        %1625 = vmatprep.subr.bf16.mxu0 %v1308
        %1626 = vmatpush2.bf16.msra.mxu0 %v1307
        %1627 = vmatprep.mubr.bf16.mxu0 %v786
        %1628 = vmatmul.mubr.bf16.gmra.mxu0 %v785
        %v1629 = vpop.f32.mrf.mxu0
        %v1630 = vadd.f32 0.0, %v1629
        %v1631 = vpop.f32.mrf.mxu0
        %v1632 = vadd.f32 0.0, %v1631
        %v1633 = vpop.f32.mrf.mxu0
        %v1634 = vpop.f32.mrf.mxu0
        %1635 = vdwg.mxu0
        %1636 = vmatprep.subr.bf16.mxu0 %v1368
        %1637 = vmatpush1.bf16.msra.mxu0 %v1367
        %1638 = vmatprep.subr.bf16.mxu0 %v1364
        %1639 = vmatpush1.bf16.msra.mxu0 %v1363
        %1640 = vmatprep.subr.bf16.mxu0 %v1360
        %1641 = vmatpush1.bf16.msra.mxu0 %v1359
        %1642 = vmatprep.subr.bf16.mxu0 %v1356
        %1643 = vmatpush1.bf16.msra.mxu0 %v1355
        %1644 = vmatprep.subr.bf16.mxu0 %v1352
        %1645 = vmatpush1.bf16.msra.mxu0 %v1351
        %1646 = vmatprep.subr.bf16.mxu0 %v1348
        %1647 = vmatpush1.bf16.msra.mxu0 %v1347
        %1648 = vmatprep.subr.bf16.mxu0 %v1344
        %1649 = vmatpush1.bf16.msra.mxu0 %v1343
        %1650 = vmatprep.subr.bf16.mxu0 %v1340
        %1651 = vmatpush1.bf16.msra.mxu0 %v1339
        %1652 = vmatprep.subr.bf16.mxu0 %v1400
        %1653 = vmatpush2.bf16.msra.mxu0 %v1399
        %1654 = vmatprep.subr.bf16.mxu0 %v1396
        %1655 = vmatpush2.bf16.msra.mxu0 %v1395
        %1656 = vmatprep.subr.bf16.mxu0 %v1392
        %1657 = vmatpush2.bf16.msra.mxu0 %v1391
        %1658 = vmatprep.subr.bf16.mxu0 %v1388
        %1659 = vmatpush2.bf16.msra.mxu0 %v1387
        %1660 = vmatprep.subr.bf16.mxu0 %v1384
        %1661 = vmatpush2.bf16.msra.mxu0 %v1383
        %1662 = vmatprep.subr.bf16.mxu0 %v1380
        %1663 = vmatpush2.bf16.msra.mxu0 %v1379
        %1664 = vmatprep.subr.bf16.mxu0 %v1376
        %1665 = vmatpush2.bf16.msra.mxu0 %v1375
        %1666 = vmatprep.subr.bf16.mxu0 %v1372
        %1667 = vmatpush2.bf16.msra.mxu0 %v1371
        %1668 = vmatprep.mubr.bf16.mxu0 %v788
        %1669 = vmatmul.mubr.bf16.gmra.mxu0 %v787
        %v1670 = vpop.f32.mrf.mxu0
        %v1671 = vadd.f32 %v1630, %v1670
        %v1672 = vpop.f32.mrf.mxu0
        %v1673 = vadd.f32 %v1632, %v1672
        %v1674 = vpop.f32.mrf.mxu0
        %v1675 = vpop.f32.mrf.mxu0
        %1676 = vdwg.mxu0
        %1677 = vmatprep.subr.bf16.mxu0 %v1432
        %1678 = vmatpush1.bf16.msra.mxu0 %v1431
        %1679 = vmatprep.subr.bf16.mxu0 %v1428
        %1680 = vmatpush1.bf16.msra.mxu0 %v1427
        %1681 = vmatprep.subr.bf16.mxu0 %v1424
        %1682 = vmatpush1.bf16.msra.mxu0 %v1423
        %1683 = vmatprep.subr.bf16.mxu0 %v1420
        %1684 = vmatpush1.bf16.msra.mxu0 %v1419
        %1685 = vmatprep.subr.bf16.mxu0 %v1416
        %1686 = vmatpush1.bf16.msra.mxu0 %v1415
        %1687 = vmatprep.subr.bf16.mxu0 %v1412
        %1688 = vmatpush1.bf16.msra.mxu0 %v1411
        %1689 = vmatprep.subr.bf16.mxu0 %v1408
        %1690 = vmatpush1.bf16.msra.mxu0 %v1407
        %1691 = vmatprep.subr.bf16.mxu0 %v1404
        %1692 = vmatpush1.bf16.msra.mxu0 %v1403
        %1693 = vmatprep.subr.bf16.mxu0 0
        %1694 = vmatpush2.bf16.msra.mxu0 0
        %1695 = vmatprep.subr.bf16.mxu0 0
        %1696 = vmatpush2.bf16.msra.mxu0 0
        %1697 = vmatprep.subr.bf16.mxu0 0
        %1698 = vmatpush2.bf16.msra.mxu0 0
        %1699 = vmatprep.subr.bf16.mxu0 0
        %1700 = vmatpush2.bf16.msra.mxu0 0
        %1701 = vmatprep.subr.bf16.mxu0 0
        %1702 = vmatpush2.bf16.msra.mxu0 0
        %1703 = vmatprep.subr.bf16.mxu0 0
        %1704 = vmatpush2.bf16.msra.mxu0 0
        %1705 = vmatprep.subr.bf16.mxu0 0
        %1706 = vmatpush2.bf16.msra.mxu0 0
        %1707 = vmatprep.subr.bf16.mxu0 0
        %1708 = vmatpush2.bf16.msra.mxu0 0
        %1709 = vmatprep.mubr.bf16.mxu0 0
        %1710 = vmatmul.mubr.bf16.gmra.mxu0 %v789
        %v1711 = vpop.f32.mrf.mxu0
        %v1712 = vadd.f32 %v1671, %v1711
        %v1713 = vpop.f32.mrf.mxu0
        %v1714 = vadd.f32 %v1673, %v1713
        %v1715 = vpop.f32.mrf.mxu0
        %v1716 = vpop.f32.mrf.mxu0
        %1717 = vdwg.mxu0
        %1718 = vmatprep.subr.bf16.mxu0 %v1306
        %1719 = vmatpush1.bf16.msra.mxu0 %v1305
        %1720 = vmatprep.subr.bf16.mxu0 %v1302
        %1721 = vmatpush1.bf16.msra.mxu0 %v1301
        %1722 = vmatprep.subr.bf16.mxu0 %v1298
        %1723 = vmatpush1.bf16.msra.mxu0 %v1297
        %1724 = vmatprep.subr.bf16.mxu0 %v1294
        %1725 = vmatpush1.bf16.msra.mxu0 %v1293
        %1726 = vmatprep.subr.bf16.mxu0 %v1290
        %1727 = vmatpush1.bf16.msra.mxu0 %v1289
        %1728 = vmatprep.subr.bf16.mxu0 %v1286
        %1729 = vmatpush1.bf16.msra.mxu0 %v1285
        %1730 = vmatprep.subr.bf16.mxu0 %v1282
        %1731 = vmatpush1.bf16.msra.mxu0 %v1281
        %1732 = vmatprep.subr.bf16.mxu0 %v1278
        %1733 = vmatpush1.bf16.msra.mxu0 %v1277
        %1734 = vmatprep.subr.bf16.mxu0 %v1338
        %1735 = vmatpush2.bf16.msra.mxu0 %v1337
        %1736 = vmatprep.subr.bf16.mxu0 %v1334
        %1737 = vmatpush2.bf16.msra.mxu0 %v1333
        %1738 = vmatprep.subr.bf16.mxu0 %v1330
        %1739 = vmatpush2.bf16.msra.mxu0 %v1329
        %1740 = vmatprep.subr.bf16.mxu0 %v1326
        %1741 = vmatpush2.bf16.msra.mxu0 %v1325
        %1742 = vmatprep.subr.bf16.mxu0 %v1322
        %1743 = vmatpush2.bf16.msra.mxu0 %v1321
        %1744 = vmatprep.subr.bf16.mxu0 %v1318
        %1745 = vmatpush2.bf16.msra.mxu0 %v1317
        %1746 = vmatprep.subr.bf16.mxu0 %v1314
        %1747 = vmatpush2.bf16.msra.mxu0 %v1313
        %1748 = vmatprep.subr.bf16.mxu0 %v1310
        %1749 = vmatpush2.bf16.msra.mxu0 %v1309
        %1750 = vmatprep.mubr.bf16.mxu0 %v786
        %1751 = vmatmul.mubr.bf16.gmra.mxu0 %v785
        %v1752 = vpop.f32.mrf.mxu0
        %v1753 = vadd.f32 0.0, %v1752
        %v1754 = vpop.f32.mrf.mxu0
        %v1755 = vadd.f32 0.0, %v1754
        %v1756 = vpop.f32.mrf.mxu0
        %v1757 = vpop.f32.mrf.mxu0
        %1758 = vdwg.mxu0
        %1759 = vmatprep.subr.bf16.mxu0 %v1370
        %1760 = vmatpush1.bf16.msra.mxu0 %v1369
        %1761 = vmatprep.subr.bf16.mxu0 %v1366
        %1762 = vmatpush1.bf16.msra.mxu0 %v1365
        %1763 = vmatprep.subr.bf16.mxu0 %v1362
        %1764 = vmatpush1.bf16.msra.mxu0 %v1361
        %1765 = vmatprep.subr.bf16.mxu0 %v1358
        %1766 = vmatpush1.bf16.msra.mxu0 %v1357
        %1767 = vmatprep.subr.bf16.mxu0 %v1354
        %1768 = vmatpush1.bf16.msra.mxu0 %v1353
        %1769 = vmatprep.subr.bf16.mxu0 %v1350
        %1770 = vmatpush1.bf16.msra.mxu0 %v1349
        %1771 = vmatprep.subr.bf16.mxu0 %v1346
        %1772 = vmatpush1.bf16.msra.mxu0 %v1345
        %1773 = vmatprep.subr.bf16.mxu0 %v1342
        %1774 = vmatpush1.bf16.msra.mxu0 %v1341
        %1775 = vmatprep.subr.bf16.mxu0 %v1402
        %1776 = vmatpush2.bf16.msra.mxu0 %v1401
        %1777 = vmatprep.subr.bf16.mxu0 %v1398
        %1778 = vmatpush2.bf16.msra.mxu0 %v1397
        %1779 = vmatprep.subr.bf16.mxu0 %v1394
        %1780 = vmatpush2.bf16.msra.mxu0 %v1393
        %1781 = vmatprep.subr.bf16.mxu0 %v1390
        %1782 = vmatpush2.bf16.msra.mxu0 %v1389
        %1783 = vmatprep.subr.bf16.mxu0 %v1386
        %1784 = vmatpush2.bf16.msra.mxu0 %v1385
        %1785 = vmatprep.subr.bf16.mxu0 %v1382
        %1786 = vmatpush2.bf16.msra.mxu0 %v1381
        %1787 = vmatprep.subr.bf16.mxu0 %v1378
        %1788 = vmatpush2.bf16.msra.mxu0 %v1377
        %1789 = vmatprep.subr.bf16.mxu0 %v1374
        %1790 = vmatpush2.bf16.msra.mxu0 %v1373
        %1791 = vmatprep.mubr.bf16.mxu0 %v788
        %1792 = vmatmul.mubr.bf16.gmra.mxu0 %v787
        %v1793 = vpop.f32.mrf.mxu0
        %v1794 = vadd.f32 %v1753, %v1793
        %v1795 = vpop.f32.mrf.mxu0
        %v1796 = vadd.f32 %v1755, %v1795
        %v1797 = vpop.f32.mrf.mxu0
        %v1798 = vpop.f32.mrf.mxu0
        %1799 = vdwg.mxu0
        %1800 = vmatprep.subr.bf16.mxu0 %v1434
        %1801 = vmatpush1.bf16.msra.mxu0 %v1433
        %1802 = vmatprep.subr.bf16.mxu0 %v1430
        %1803 = vmatpush1.bf16.msra.mxu0 %v1429
        %1804 = vmatprep.subr.bf16.mxu0 %v1426
        %1805 = vmatpush1.bf16.msra.mxu0 %v1425
        %1806 = vmatprep.subr.bf16.mxu0 %v1422
        %1807 = vmatpush1.bf16.msra.mxu0 %v1421
        %1808 = vmatprep.subr.bf16.mxu0 %v1418
        %1809 = vmatpush1.bf16.msra.mxu0 %v1417
        %1810 = vmatprep.subr.bf16.mxu0 %v1414
        %1811 = vmatpush1.bf16.msra.mxu0 %v1413
        %1812 = vmatprep.subr.bf16.mxu0 %v1410
        %1813 = vmatpush1.bf16.msra.mxu0 %v1409
        %1814 = vmatprep.subr.bf16.mxu0 %v1406
        %1815 = vmatpush1.bf16.msra.mxu0 %v1405
        %1816 = vmatprep.subr.bf16.mxu0 0
        %1817 = vmatpush2.bf16.msra.mxu0 0
        %1818 = vmatprep.subr.bf16.mxu0 0
        %1819 = vmatpush2.bf16.msra.mxu0 0
        %1820 = vmatprep.subr.bf16.mxu0 0
        %1821 = vmatpush2.bf16.msra.mxu0 0
        %1822 = vmatprep.subr.bf16.mxu0 0
        %1823 = vmatpush2.bf16.msra.mxu0 0
        %1824 = vmatprep.subr.bf16.mxu0 0
        %1825 = vmatpush2.bf16.msra.mxu0 0
        %1826 = vmatprep.subr.bf16.mxu0 0
        %1827 = vmatpush2.bf16.msra.mxu0 0
        %1828 = vmatprep.subr.bf16.mxu0 0
        %1829 = vmatpush2.bf16.msra.mxu0 0
        %1830 = vmatprep.subr.bf16.mxu0 0
        %1831 = vmatpush2.bf16.msra.mxu0 0
        %1832 = vmatprep.mubr.bf16.mxu0 0
        %1833 = vmatmul.mubr.bf16.gmra.mxu0 %v789
        %v1834 = vpop.f32.mrf.mxu0
        %v1835 = vadd.f32 %v1794, %v1834
        %v1836 = vpop.f32.mrf.mxu0
        %v1837 = vadd.f32 %v1796, %v1836
        %v1838 = vpop.f32.mrf.mxu0
        %v1839 = vpop.f32.mrf.mxu0
        %1840 = vdwg.mxu0
        %v1841 = vadd.f32 %v610, %v1712
        %v1842 = vadd.f32 %v611, %v1714
        %v1843 = vadd.f32 %v612, %v1835
        %v1844 = vadd.f32 %v613, %v1837
        %1845 = vst [vmem:[#allocation2] sm:$0xff] %v1841
        %1846 = vst [vmem:[#allocation2 + $0x8] sm:$0xff] %v1842
        %1847 = vst [vmem:[#allocation2 + $0x10] sm:$0xff] %v1843
        %1848 = vst [vmem:[#allocation2 + $0x18] sm:$0xff] %v1844
        // Predicated region
        $region60: #{_lambda_.21} parent=50 // pred_check
          %p1849 = pneg %p602
        $region61: #{_lambda_.21} parent=50 // pred_check_branch
          %1851 = sbr.rel (%p1849) target = $region63
        $region62: #{_lambda_.21} parent=50 // pred_region
          %v1852 = vld [vmem:[#allocation2] sm:$0xff]
          %v1853 = vld [vmem:[#allocation2 + $0x8] sm:$0xff]
          %v1854 = vld [vmem:[#allocation2 + $0x10] sm:$0xff]
          %v1855 = vld [vmem:[#allocation2 + $0x18] sm:$0xff]
          %v1856 = vld [vmem:[%s589] sm:$0xf]
          %v1858 = vlaneseq
          %v1859 = vshrl.u32 %v1858, 7
          %v1860 = vsub.s32 0, %v1859
          %v1861 = vrot.slane %v1856, %v1860
          %v1862 = vlaneseq
          %v1863 = vshrl.u32 %v1862, 7
          %v1864 = vsub.s32 1, %v1863
          %v1865 = vrot.slane %v1856, %v1864
          %v1866 = vlaneseq
          %v1867 = vshrl.u32 %v1866, 7
          %v1868 = vsub.s32 2, %v1867
          %v1869 = vrot.slane %v1856, %v1868
          %v1870 = vlaneseq
          %v1871 = vshrl.u32 %v1870, 7
          %v1872 = vsub.s32 3, %v1871
          %v1873 = vrot.slane %v1856, %v1872
          %v1878 = vadd.f32 %v1852, %v1861
          %v1879 = vadd.f32 %v1853, %v1865
          %v1880 = vadd.f32 %v1854, %v1869
          %v1881 = vadd.f32 %v1855, %v1873
          %v1882 = vmax.f32 %v1878, 0.0
          %v1883 = vmax.f32 %v1879, 0.0
          %v1884 = vmax.f32 %v1880, 0.0
          %v1885 = vmax.f32 %v1881, 0.0
          %v1886 = vpack.c.bf16 %v1882, %v1882
          %v1887 = vpack.c.bf16 %v1883, %v1883
          %v1888 = vpack.c.bf16 %v1884, %v1884
          %v1889 = vpack.c.bf16 %v1885, %v1885
          %v1894 = vunpack.c.l.b16 %v1886
          %v1895 = vunpack.c.l.b16 %v1887
          %v1896 = vunpack.c.l.b16 %v1888
          %v1897 = vunpack.c.l.b16 %v1889
          %v1898 = vpack.c.b16 %v1895, %v1894
          %v1899 = vpack.c.b16 %v1897, %v1896
          %1902 = vst [vmem:[%s599] sm:$0xff] %v1898
          %1903 = vst [vmem:[%s599 + $0x8] sm:$0xff] %v1899
        $region63: #{_lambda_.21} parent=50 // pred_fallthru
          _
        %s1904 = smul.u32 4, %s20
        %p1905 = scmp.lt.s32.totalorder %s19, 0
        %s1906 = scalar_select %p1905, %s19, 0
        %p1907 = scmp.lt.s32.totalorder %s1904, 15
        %s1908 = scalar_select %p1907, %s1904, 15
        %s1909 = smul.addr %s1906, 16
        %s1910 = sadd.s32 %s1908, %s1909
        %s1911 = smul.addr %s1910, 4
        %s1912 = scalar_lea.vmem %s3, %s1911
        // Predicated region
        $region64: #{_lambda_.21} parent=50 // pred_check
          %p1913 = pneg %p135
        $region65: #{_lambda_.21} parent=50 // pred_check_branch
          %1915 = sbr.rel (%p1913) target = $region67
        $region66: #{_lambda_.21} parent=50 // pred_region
          %s1916 = smul.u32 4, %s20
        $region67: #{_lambda_.21} parent=50 // pred_fallthru
          _
      $region51: #{_lambda_.21} parent=5 // pred_fallthru
        _
      %p1917 = scmp.le.s32.totalorder 2, %s9
      // Predicated region
      $region68: #{_lambda_.21} parent=5 // pred_check
        %p1918 = pneg %p1917
      $region69: #{_lambda_.21} parent=5 // pred_check_branch
        %1920 = sbr.rel (%p1918) target = $region71
      $region70: #{_lambda_.21} parent=5 // pred_region
        %s1921 = ssub.s32 %s9, 2
        // Predicated region
        $region72: #{_lambda_.21} parent=70 // pred_check
          %p1922 = pneg %p141
        $region73: #{_lambda_.21} parent=70 // pred_check_branch
          %1924 = sbr.rel (%p1922) target = $region75
        $region74: #{_lambda_.21} parent=70 // pred_region
          %s1925 = smul.u32 4, %s23
          %p1926 = scmp.lt.s32.totalorder %s22, 0
          %s1927 = scalar_select %p1926, %s22, 0
          %p1928 = scmp.lt.s32.totalorder %s1925, 15
          %s1929 = scalar_select %p1928, %s1925, 15
          %s1930 = smul.addr %s1927, 16
          %s1931 = sadd.s32 %s1929, %s1930
          %s1932 = smul.addr %s1931, 4
          %s1933 = scalar_lea.vmem %s3, %s1932
        $region75: #{_lambda_.21} parent=70 // pred_fallthru
          _
      $region71: #{_lambda_.21} parent=5 // pred_fallthru
        _
    $region6: #{_lambda_.21} parent=1 // loop_footer
      %s13 = sadd.s32 1, %s9
    $region7: #{_lambda_.21} parent=1 // loop_footer_branch
      %8 = sbr.rel target = $region3
    $region8: #{_lambda_.21} parent=1 // loop_exit
      _

// kernel: _lambda_.27
$region0: #{_lambda_.27}
  #allocation0 [shape = 'u32[]', space=smem, size = 0x4, offset = 0x4, fixed_abs, tag = 'smem constant byte address 0x4 - core index']
  #allocation1 [shape = 'u32[144,128]{1,0:T(1,128)}', space=vmem, size = 0x12000, scoped, tag = 'internal scratch']
  #allocation2 [shape = 'f32[1,1,128]{2,1,0:T(1,128)}', space=vmem, size = 0x200, scoped, tag = 'scratch operand']
  %s0 = inlined_call_operand.vmem [shape: bf16[2,8,512], index: 0, kind: input, shape index: {}]
  %s1 = inlined_call_operand.vmem [shape: bf16[2,1,512], index: 1, kind: output, shape index: {}]
  %s2 = sld [smem:[#allocation0]]
  $region45: #{_lambda_.27} parent=0
    _
  %s4 = ssub.s32 1, %s2
  %s5 = scalar_select 0, %s4, %s2
  loop: start=0, step=1, limit=10
  $region2: #{_lambda_.27} parent=0 // loop_pre_header
    _
  $region3: #{_lambda_.27} parent=0 // loop_header
    %s7 = sphi 0, %s11
    %p8 = scmp.ge.s32.totalorder %s7, 10
    %s14 = sphi 0, %s33
    %s15 = sphi 0, %s29
    %s16 = sphi 0, %s25
    %s17 = sphi 0, %s14
    %s18 = sphi 0, %s15
    %s19 = sphi 0, %s16
    %s20 = sphi 0, %s17
    %s21 = sphi 0, %s18
    %s22 = sphi 0, %s19
    %s40 = sphi 0, %s42
    %s43 = sphi 0, %s40
    %s44 = sphi 0, %s43
    %s60 = sphi 0, %s44
    %s68 = sphi 0, %s70
    %s71 = sphi 0, %s68
    %s72 = sphi 0, %s71
    %s88 = sphi 0, %s72
  $region4: #{_lambda_.27} parent=0 // loop_header_branch
    %10 = sbr.rel (%p8) target = $region8
  $region5: #{_lambda_.27} parent=0 // loop_body
    %s12 = ssub.s32 %s7, 1
    %s13 = ssub.s32 %s7, 2
    %s23 = sadd.s32 1, %s16
    %p24 = scmp.ge.s32.totalorder %s23, 1
    %s25 = scalar_select %p24, 0, %s23
    %s26 = sadd.s32 1, %s15
    %s27 = scalar_select %p24, %s26, %s15
    %p28 = scmp.ge.s32.totalorder %s27, 4
    %s29 = scalar_select %p28, 0, %s27
    %s30 = sadd.s32 1, %s14
    %s31 = scalar_select %p28, %s30, %s14
    %p32 = scmp.ge.s32.totalorder %s31, 2
    %s33 = scalar_select %p32, 0, %s31
    %s34 = ssub.s32 %s14, %s33
    %s35 = ssub.s32 %s16, %s25
    %s36 = sor.u32 %s34, %s35
    %s37 = ssub.s32 %s15, %s29
    %s38 = sor.u32 %s36, %s37
    %p39 = scmp.eq.s32.totalorder %s38, 0
    %s41 = sadd.s32 %s40, 1
    %s42 = scalar_select %p39, %s40, %s41
    %p45 = pneg %p39
    %p46 = scmp.eq.s32.totalorder %s7, 7
    %p47 = por %p45, %p46
    %p48 = scmp.ne.s32.totalorder %s40, %s43
    %p49 = scmp.eq.s32.totalorder %s7, 0
    %p50 = por %p48, %p49
    %p51 = scmp.ne.s32.totalorder %s40, %s43
    %p52 = scmp.eq.s32.totalorder %s12, 7
    %p53 = por %p51, %p52
    %p54 = scmp.ne.s32.totalorder %s43, %s44
    %p55 = scmp.eq.s32.totalorder %s12, 0
    %p56 = por %p54, %p55
    %p57 = scmp.ne.s32.totalorder %s43, %s44
    %p58 = scmp.eq.s32.totalorder %s13, 7
    %p59 = por %p57, %p58
    %p61 = scmp.ne.s32.totalorder %s44, %s60
    %p62 = scmp.eq.s32.totalorder %s13, 0
    %p63 = por %p61, %p62
    %s64 = ssub.s32 %s14, %s33
    %s65 = ssub.s32 %s15, %s29
    %s66 = sor.u32 %s64, %s65
    %p67 = scmp.eq.s32.totalorder %s66, 0
    %s69 = sadd.s32 %s68, 1
    %s70 = scalar_select %p67, %s68, %s69
    %p73 = pneg %p67
    %p74 = scmp.eq.s32.totalorder %s7, 7
    %p75 = por %p73, %p74
    %p76 = scmp.ne.s32.totalorder %s68, %s71
    %p77 = scmp.eq.s32.totalorder %s7, 0
    %p78 = por %p76, %p77
    %p79 = scmp.ne.s32.totalorder %s68, %s71
    %p80 = scmp.eq.s32.totalorder %s12, 7
    %p81 = por %p79, %p80
    %p82 = scmp.ne.s32.totalorder %s71, %s72
    %p83 = scmp.eq.s32.totalorder %s12, 0
    %p84 = por %p82, %p83
    %p85 = scmp.ne.s32.totalorder %s71, %s72
    %p86 = scmp.eq.s32.totalorder %s13, 7
    %p87 = por %p85, %p86
    %p89 = scmp.ne.s32.totalorder %s72, %s88
    %p90 = scmp.eq.s32.totalorder %s13, 0
    %p91 = por %p89, %p90
    %p92 = scmp.le.s32.totalorder 1, %s7
    %p93 = scmp.lt.s32.totalorder %s7, 9
    %p94 = pnand %p92, %p93
    %p95 = pneg %p94
    // Predicated region
    $region9: #{_lambda_.27} parent=5 // pred_check
      _
    $region10: #{_lambda_.27} parent=5 // pred_check_branch
      %97 = sbr.rel (%p94) target = $region12
    $region11: #{_lambda_.27} parent=5 // pred_region
      %s98 = ssub.s32 %s7, 1
    $region12: #{_lambda_.27} parent=5 // pred_fallthru
      _
    %p99 = scmp.lt.s32.totalorder %s7, 8
    // Predicated region
    $region13: #{_lambda_.27} parent=5 // pred_check
      %p100 = pneg %p99
    $region14: #{_lambda_.27} parent=5 // pred_check_branch
      %102 = sbr.rel (%p100) target = $region16
    $region15: #{_lambda_.27} parent=5 // pred_region
      // Predicated region
      $region17: #{_lambda_.27} parent=15 // pred_check
        %p103 = pneg %p50
      $region18: #{_lambda_.27} parent=15 // pred_check_branch
        %105 = sbr.rel (%p103) target = $region20
      $region19: #{_lambda_.27} parent=15 // pred_region
        %p106 = scmp.lt.s32.totalorder %s14, 1
        %s107 = scalar_select %p106, %s14, 1
        %p108 = scmp.lt.s32.totalorder %s16, 0
        %s109 = scalar_select %p108, %s16, 0
        %p110 = scmp.lt.s32.totalorder %s15, 3
        %s111 = scalar_select %p110, %s15, 3
        %s112 = smul.addr %s109, 4
        %s113 = sadd.s32 %s111, %s112
        %s114 = smul.addr %s107, 4
        %s115 = sadd.s32 %s113, %s114
        %s116 = smul.addr %s115, 4
        %s117 = scalar_lea.vmem %s0, %s116
      $region20: #{_lambda_.27} parent=15 // pred_fallthru
        _
    $region16: #{_lambda_.27} parent=5 // pred_fallthru
      _
    %p118 = scmp.le.s32.totalorder 1, %s7
    %p119 = scmp.lt.s32.totalorder %s7, 9
    %p120 = pnand %p118, %p119
    %p121 = pneg %p120
    // Predicated region
    $region21: #{_lambda_.27} parent=5 // pred_check
      _
    $region22: #{_lambda_.27} parent=5 // pred_check_branch
      %123 = sbr.rel (%p120) target = $region24
    $region23: #{_lambda_.27} parent=5 // pred_region
      %s124 = ssub.s32 %s7, 1
      %p125 = scmp.lt.s32.totalorder %s17, 1
      %s126 = scalar_select %p125, %s17, 1
      %p127 = scmp.lt.s32.totalorder %s19, 0
      %s128 = scalar_select %p127, %s19, 0
      %p129 = scmp.lt.s32.totalorder %s18, 3
      %s130 = scalar_select %p129, %s18, 3
      %s131 = smul.addr %s128, 4
      %s132 = sadd.s32 %s130, %s131
      %s133 = smul.addr %s126, 4
      %s134 = sadd.s32 %s132, %s133
      %s135 = smul.addr %s134, 4
      %s136 = scalar_lea.vmem %s0, %s135
      %p137 = pneg %p56
      %p138 = pneg %p53
      %p139 = pneg %p84
      %p140 = pneg %p81
      %p141 = scmp.lt.s32.totalorder %s17, 1
      %s142 = scalar_select %p141, %s17, 1
      %p143 = scmp.lt.s32.totalorder %s18, 3
      %s144 = scalar_select %p143, %s18, 3
      %s145 = smul.addr %s142, 4
      %s146 = sadd.s32 %s144, %s145
      %s147 = scalar_lea.vmem %s1, %s146
      %p148 = scmp.lt.s32.totalorder %s17, 1
      %s149 = scalar_select %p148, %s17, 1
      %p150 = scmp.lt.s32.totalorder %s19, 0
      %s151 = scalar_select %p150, %s19, 0
      %p152 = scmp.lt.s32.totalorder %s18, 3
      %s153 = scalar_select %p152, %s18, 3
      %s154 = smul.addr %s151, 4
      %s155 = sadd.s32 %s153, %s154
      %s156 = smul.addr %s149, 4
      %s157 = sadd.s32 %s155, %s156
      %s158 = smul.addr %s157, 4
      %s159 = scalar_lea.vmem %s0, %s158
      %p160 = scmp.lt.s32.totalorder %s17, 1
      %s161 = scalar_select %p160, %s17, 1
      %p162 = scmp.lt.s32.totalorder %s18, 3
      %s163 = scalar_select %p162, %s18, 3
      %s164 = smul.addr %s161, 4
      %s165 = sadd.s32 %s163, %s164
      %s166 = scalar_lea.vmem %s1, %s165
      %p167 = scmp.eq.s32.totalorder %s19, 0
      // Predicated region
      $region25: #{_lambda_.27} parent=23 // pred_check
        %p168 = pneg %p167
      $region26: #{_lambda_.27} parent=23 // pred_check_branch
        %170 = sbr.rel (%p168) target = $region28
      $region27: #{_lambda_.27} parent=23 // pred_region
        %171 = vst [vmem:[#allocation2] sm:$0x1] 0.0
      $region28: #{_lambda_.27} parent=23 // pred_fallthru
        _
      %v172 = vld [vmem:[#allocation2] sm:$0x1]
      %v173 = vld [vmem:[%s159] sm:$0xf]
      %v174 = vunpack.c.l.bf16 %v173
      %v175 = vrot.slane %v174, 4
      %v176 = vadd.f32 %v174, %v175
      %v177 = vrot.slane %v176, 2
      %v178 = vadd.f32 %v176, %v177
      %v179 = vrot.slane %v178, 1
      %v180 = vadd.f32 %v178, %v179
      %v181 = vadd.f32 %v172, %v180
      %182 = vst [vmem:[#allocation2] sm:$0x1] %v181
      // Predicated region
      $region29: #{_lambda_.27} parent=23 // pred_check
        %p183 = pneg %p167
      $region30: #{_lambda_.27} parent=23 // pred_check_branch
        %185 = sbr.rel (%p183) target = $region32
      $region31: #{_lambda_.27} parent=23 // pred_region
        %v186 = vld [vmem:[#allocation2] sm:$0x1]
        %v187 = vmul.f32 %v186, 0.25
        %v188 = vpack.c.bf16 %v187, %v187
        %vm189 = vcmask 1040384
        %vm190 = vsmask.f32 256
        %vm191 = vmand %vm189, %vm190
        %v192 = vld [vmem:[%s166] sm:$0x1]
        %v193 = vsel %vm191, %v188, %v192
        %194 = vst [vmem:[%s166] sm:$0x1] %v193
      $region32: #{_lambda_.27} parent=23 // pred_fallthru
        _
      %p195 = scmp.lt.s32.totalorder %s17, 1
      %s196 = scalar_select %p195, %s17, 1
      %p197 = scmp.lt.s32.totalorder %s18, 3
      %s198 = scalar_select %p197, %s18, 3
      %s199 = smul.addr %s196, 4
      %s200 = sadd.s32 %s198, %s199
      %s201 = scalar_lea.vmem %s1, %s200
      // Predicated region
      $region33: #{_lambda_.27} parent=23 // pred_check
        %p202 = pneg %p81
      $region34: #{_lambda_.27} parent=23 // pred_check_branch
        %204 = sbr.rel (%p202) target = $region36
      $region35: #{_lambda_.27} parent=23 // pred_region
        _
      $region36: #{_lambda_.27} parent=23 // pred_fallthru
        _
    $region24: #{_lambda_.27} parent=5 // pred_fallthru
      _
    %p205 = scmp.le.s32.totalorder 2, %s7
    // Predicated region
    $region37: #{_lambda_.27} parent=5 // pred_check
      %p206 = pneg %p205
    $region38: #{_lambda_.27} parent=5 // pred_check_branch
      %208 = sbr.rel (%p206) target = $region40
    $region39: #{_lambda_.27} parent=5 // pred_region
      %s209 = ssub.s32 %s7, 2
      // Predicated region
      $region41: #{_lambda_.27} parent=39 // pred_check
        %p210 = pneg %p87
      $region42: #{_lambda_.27} parent=39 // pred_check_branch
        %212 = sbr.rel (%p210) target = $region44
      $region43: #{_lambda_.27} parent=39 // pred_region
        %p213 = scmp.lt.s32.totalorder %s20, 1
        %s214 = scalar_select %p213, %s20, 1
        %p215 = scmp.lt.s32.totalorder %s21, 3
        %s216 = scalar_select %p215, %s21, 3
        %s217 = smul.addr %s214, 4
        %s218 = sadd.s32 %s216, %s217
        %s219 = scalar_lea.vmem %s1, %s218
      $region44: #{_lambda_.27} parent=39 // pred_fallthru
        _
    $region40: #{_lambda_.27} parent=5 // pred_fallthru
      _
  $region6: #{_lambda_.27} parent=0 // loop_footer
    %s11 = sadd.s32 1, %s7
  $region7: #{_lambda_.27} parent=0 // loop_footer_branch
    %6 = sbr.rel target = $region3
  $region8: #{_lambda_.27} parent=0 // loop_exit
    _

// kernel: _lambda_.30
$region0: #{_lambda_.30}
  #allocation0 [shape = 'u32[]', space=smem, size = 0x4, offset = 0x4, fixed_abs, tag = 'smem constant byte address 0x4 - core index']
  #allocation1 [shape = 'u32[144,128]{1,0:T(1,128)}', space=vmem, size = 0x12000, scoped, tag = 'internal scratch']
  #allocation2 [shape = 'f32[8,256]{1,0:T(8,128)}', space=vmem, size = 0x2000, scoped, tag = 'scratch operand']
  %s0 = inlined_call_operand.vmem [shape: bf16[8,256], index: 0, kind: input, shape index: {}]
  %s1 = inlined_call_operand.vmem [shape: bf16[256,256], index: 1, kind: input, shape index: {}]
  %s2 = inlined_call_operand.vmem [shape: f32[1,256], index: 2, kind: input, shape index: {}]
  %s3 = inlined_call_operand.vmem [shape: f32[8,256], index: 3, kind: output, shape index: {}]
  %s4 = sld [smem:[#allocation0]]
  $region30: #{_lambda_.30} parent=0
    _
  %s6 = ssub.s32 1, %s4
  %s7 = scalar_select 0, %s6, %s4
  // Predicated region
  $region2: #{_lambda_.30} parent=0 // pred_check
    _
  $region3: #{_lambda_.30} parent=0 // pred_check_branch
    %9 = sbr.rel (0) target = $region5
  $region4: #{_lambda_.30} parent=0 // pred_region
    _
  $region5: #{_lambda_.30} parent=0 // pred_fallthru
    _
  // Predicated region
  $region6: #{_lambda_.30} parent=0 // pred_check
    _
  $region7: #{_lambda_.30} parent=0 // pred_check_branch
    %11 = sbr.rel (0) target = $region9
  $region8: #{_lambda_.30} parent=0 // pred_region
    _
  $region9: #{_lambda_.30} parent=0 // pred_fallthru
    _
  // Predicated region
  $region10: #{_lambda_.30} parent=0 // pred_check
    _
  $region11: #{_lambda_.30} parent=0 // pred_check_branch
    %13 = sbr.rel (0) target = $region13
  $region12: #{_lambda_.30} parent=0 // pred_region
    _
  $region13: #{_lambda_.30} parent=0 // pred_fallthru
    _
  %p14 = scmp.eq.s32.totalorder 0, 0
  // Predicated region
  $region14: #{_lambda_.30} parent=0 // pred_check
    %p15 = pneg %p14
  $region15: #{_lambda_.30} parent=0 // pred_check_branch
    %17 = sbr.rel (%p15) target = $region17
  $region16: #{_lambda_.30} parent=0 // pred_region
    %18 = vst [vmem:[#allocation2] sm:$0xff] 0.0
    %19 = vst [vmem:[#allocation2 + $0x8] sm:$0xff] 0.0
  $region17: #{_lambda_.30} parent=0 // pred_fallthru
    _
  %v20 = vld [vmem:[#allocation2] sm:$0xff]
  %v21 = vld [vmem:[#allocation2 + $0x8] sm:$0xff]
  %v22 = vld [vmem:[%s0] sm:$0xff]
  %v23 = vld [vmem:[%s1] sm:$0xff]
  %v24 = vld [vmem:[%s1 + $0x8] sm:$0xff]
  %v25 = vld [vmem:[%s1 + $0x10] sm:$0xff]
  %v26 = vld [vmem:[%s1 + $0x18] sm:$0xff]
  %v27 = vld [vmem:[%s1 + $0x20] sm:$0xff]
  %v28 = vld [vmem:[%s1 + $0x28] sm:$0xff]
  %v29 = vld [vmem:[%s1 + $0x30] sm:$0xff]
  %v30 = vld [vmem:[%s1 + $0x38] sm:$0xff]
  %v31 = vld [vmem:[%s1 + $0x40] sm:$0xff]
  %v32 = vld [vmem:[%s1 + $0x48] sm:$0xff]
  %v33 = vld [vmem:[%s1 + $0x50] sm:$0xff]
  %v34 = vld [vmem:[%s1 + $0x58] sm:$0xff]
  %v35 = vld [vmem:[%s1 + $0x60] sm:$0xff]
  %v36 = vld [vmem:[%s1 + $0x68] sm:$0xff]
  %v37 = vld [vmem:[%s1 + $0x70] sm:$0xff]
  %v38 = vld [vmem:[%s1 + $0x78] sm:$0xff]
  %v39 = vld [vmem:[%s1 + $0x80] sm:$0xff]
  %v40 = vld [vmem:[%s1 + $0x88] sm:$0xff]
  %v41 = vld [vmem:[%s1 + $0x90] sm:$0xff]
  %v42 = vld [vmem:[%s1 + $0x98] sm:$0xff]
  %v43 = vld [vmem:[%s1 + $0xa0] sm:$0xff]
  %v44 = vld [vmem:[%s1 + $0xa8] sm:$0xff]
  %v45 = vld [vmem:[%s1 + $0xb0] sm:$0xff]
  %v46 = vld [vmem:[%s1 + $0xb8] sm:$0xff]
  %v47 = vld [vmem:[%s1 + $0xc0] sm:$0xff]
  %v48 = vld [vmem:[%s1 + $0xc8] sm:$0xff]
  %v49 = vld [vmem:[%s1 + $0xd0] sm:$0xff]
  %v50 = vld [vmem:[%s1 + $0xd8] sm:$0xff]
  %v51 = vld [vmem:[%s1 + $0xe0] sm:$0xff]
  %v52 = vld [vmem:[%s1 + $0xe8] sm:$0xff]
  %v53 = vld [vmem:[%s1 + $0xf0] sm:$0xff]
  %v54 = vld [vmem:[%s1 + $0xf8] sm:$0xff]
  %v56 = vunpack.c.l.b16 %v22
  %v57 = vunpack.c.h.b16 %v22
  %v58 = vpack.c.b16 %v56, %v56
  %v59 = vpack.c.b16 %v57, %v57
  %v94 = vunpack.c.l.b16 %v23
  %v95 = vunpack.c.h.b16 %v23
  %v96 = vunpack.c.l.b16 %v24
  %v97 = vunpack.c.h.b16 %v24
  %v98 = vunpack.c.l.b16 %v25
  %v99 = vunpack.c.h.b16 %v25
  %v100 = vunpack.c.l.b16 %v26
  %v101 = vunpack.c.h.b16 %v26
  %v102 = vunpack.c.l.b16 %v27
  %v103 = vunpack.c.h.b16 %v27
  %v104 = vunpack.c.l.b16 %v28
  %v105 = vunpack.c.h.b16 %v28
  %v106 = vunpack.c.l.b16 %v29
  %v107 = vunpack.c.h.b16 %v29
  %v108 = vunpack.c.l.b16 %v30
  %v109 = vunpack.c.h.b16 %v30
  %v110 = vunpack.c.l.b16 %v31
  %v111 = vunpack.c.h.b16 %v31
  %v112 = vunpack.c.l.b16 %v32
  %v113 = vunpack.c.h.b16 %v32
  %v114 = vunpack.c.l.b16 %v33
  %v115 = vunpack.c.h.b16 %v33
  %v116 = vunpack.c.l.b16 %v34
  %v117 = vunpack.c.h.b16 %v34
  %v118 = vunpack.c.l.b16 %v35
  %v119 = vunpack.c.h.b16 %v35
  %v120 = vunpack.c.l.b16 %v36
  %v121 = vunpack.c.h.b16 %v36
  %v122 = vunpack.c.l.b16 %v37
  %v123 = vunpack.c.h.b16 %v37
  %v124 = vunpack.c.l.b16 %v38
  %v125 = vunpack.c.h.b16 %v38
  %v126 = vunpack.c.l.b16 %v39
  %v127 = vunpack.c.h.b16 %v39
  %v128 = vunpack.c.l.b16 %v40
  %v129 = vunpack.c.h.b16 %v40
  %v130 = vunpack.c.l.b16 %v41
  %v131 = vunpack.c.h.b16 %v41
  %v132 = vunpack.c.l.b16 %v42
  %v133 = vunpack.c.h.b16 %v42
  %v134 = vunpack.c.l.b16 %v43
  %v135 = vunpack.c.h.b16 %v43
  %v136 = vunpack.c.l.b16 %v44
  %v137 = vunpack.c.h.b16 %v44
  %v138 = vunpack.c.l.b16 %v45
  %v139 = vunpack.c.h.b16 %v45
  %v140 = vunpack.c.l.b16 %v46
  %v141 = vunpack.c.h.b16 %v46
  %v142 = vunpack.c.l.b16 %v47
  %v143 = vunpack.c.h.b16 %v47
  %v144 = vunpack.c.l.b16 %v48
  %v145 = vunpack.c.h.b16 %v48
  %v146 = vunpack.c.l.b16 %v49
  %v147 = vunpack.c.h.b16 %v49
  %v148 = vunpack.c.l.b16 %v50
  %v149 = vunpack.c.h.b16 %v50
  %v150 = vunpack.c.l.b16 %v51
  %v151 = vunpack.c.h.b16 %v51
  %v152 = vunpack.c.l.b16 %v52
  %v153 = vunpack.c.h.b16 %v52
  %v154 = vunpack.c.l.b16 %v53
  %v155 = vunpack.c.h.b16 %v53
  %v156 = vunpack.c.l.b16 %v54
  %v157 = vunpack.c.h.b16 %v54
  %v158 = vpack.c.b16 %v96, %v94
  %v159 = vpack.c.b16 %v97, %v95
  %v160 = vpack.c.b16 %v100, %v98
  %v161 = vpack.c.b16 %v101, %v99
  %v162 = vpack.c.b16 %v104, %v102
  %v163 = vpack.c.b16 %v105, %v103
  %v164 = vpack.c.b16 %v108, %v106
  %v165 = vpack.c.b16 %v109, %v107
  %v166 = vpack.c.b16 %v112, %v110
  %v167 = vpack.c.b16 %v113, %v111
  %v168 = vpack.c.b16 %v116, %v114
  %v169 = vpack.c.b16 %v117, %v115
  %v170 = vpack.c.b16 %v120, %v118
  %v171 = vpack.c.b16 %v121, %v119
  %v172 = vpack.c.b16 %v124, %v122
  %v173 = vpack.c.b16 %v125, %v123
  %v174 = vpack.c.b16 %v128, %v126
  %v175 = vpack.c.b16 %v129, %v127
  %v176 = vpack.c.b16 %v132, %v130
  %v177 = vpack.c.b16 %v133, %v131
  %v178 = vpack.c.b16 %v136, %v134
  %v179 = vpack.c.b16 %v137, %v135
  %v180 = vpack.c.b16 %v140, %v138
  %v181 = vpack.c.b16 %v141, %v139
  %v182 = vpack.c.b16 %v144, %v142
  %v183 = vpack.c.b16 %v145, %v143
  %v184 = vpack.c.b16 %v148, %v146
  %v185 = vpack.c.b16 %v149, %v147
  %v186 = vpack.c.b16 %v152, %v150
  %v187 = vpack.c.b16 %v153, %v151
  %v188 = vpack.c.b16 %v156, %v154
  %v189 = vpack.c.b16 %v157, %v155
  %222 = vmatprep.subr.bf16.mxu0 %v173
  %223 = vmatpush1.bf16.msra.mxu0 %v172
  %224 = vmatprep.subr.bf16.mxu0 %v171
  %225 = vmatpush1.bf16.msra.mxu0 %v170
  %226 = vmatprep.subr.bf16.mxu0 %v169
  %227 = vmatpush1.bf16.msra.mxu0 %v168
  %228 = vmatprep.subr.bf16.mxu0 %v167
  %229 = vmatpush1.bf16.msra.mxu0 %v166
  %230 = vmatprep.subr.bf16.mxu0 %v165
  %231 = vmatpush1.bf16.msra.mxu0 %v164
  %232 = vmatprep.subr.bf16.mxu0 %v163
  %233 = vmatpush1.bf16.msra.mxu0 %v162
  %234 = vmatprep.subr.bf16.mxu0 %v161
  %235 = vmatpush1.bf16.msra.mxu0 %v160
  %236 = vmatprep.subr.bf16.mxu0 %v159
  %237 = vmatpush1.bf16.msra.mxu0 %v158
  %238 = vmatprep.subr.bf16.mxu0 %v189
  %239 = vmatpush2.bf16.msra.mxu0 %v188
  %240 = vmatprep.subr.bf16.mxu0 %v187
  %241 = vmatpush2.bf16.msra.mxu0 %v186
  %242 = vmatprep.subr.bf16.mxu0 %v185
  %243 = vmatpush2.bf16.msra.mxu0 %v184
  %244 = vmatprep.subr.bf16.mxu0 %v183
  %245 = vmatpush2.bf16.msra.mxu0 %v182
  %246 = vmatprep.subr.bf16.mxu0 %v181
  %247 = vmatpush2.bf16.msra.mxu0 %v180
  %248 = vmatprep.subr.bf16.mxu0 %v179
  %249 = vmatpush2.bf16.msra.mxu0 %v178
  %250 = vmatprep.subr.bf16.mxu0 %v177
  %251 = vmatpush2.bf16.msra.mxu0 %v176
  %252 = vmatprep.subr.bf16.mxu0 %v175
  %253 = vmatpush2.bf16.msra.mxu0 %v174
  %254 = vmatprep.mubr.bf16.mxu0 %v59
  %255 = vmatmul.mubr.bf16.gmra.mxu0 %v58
  %v256 = vpop.f32.mrf.mxu0
  %v257 = vadd.f32 0.0, %v256
  %v258 = vpop.f32.mrf.mxu0
  %v259 = vadd.f32 0.0, %v258
  %v260 = vpop.f32.mrf.mxu0
  %v261 = vpop.f32.mrf.mxu0
  %262 = vdwg.mxu0
  %v263 = vadd.f32 %v20, %v257
  %v264 = vadd.f32 %v21, %v259
  %265 = vst [vmem:[#allocation2] sm:$0xff] %v263
  %266 = vst [vmem:[#allocation2 + $0x8] sm:$0xff] %v264
  // Predicated region
  $region18: #{_lambda_.30} parent=0 // pred_check
    %p267 = pneg %p14
  $region19: #{_lambda_.30} parent=0 // pred_check_branch
    %269 = sbr.rel (%p267) target = $region21
  $region20: #{_lambda_.30} parent=0 // pred_region
    %v270 = vld [vmem:[#allocation2] sm:$0xff]
    %v271 = vld [vmem:[#allocation2 + $0x8] sm:$0xff]
    %v272 = vld [vmem:[%s2] sm:$0x3]
    %v274 = vlaneseq
    %v275 = vshrl.u32 %v274, 7
    %v276 = vsub.s32 0, %v275
    %v277 = vrot.slane %v272, %v276
    %v278 = vlaneseq
    %v279 = vshrl.u32 %v278, 7
    %v280 = vsub.s32 1, %v279
    %v281 = vrot.slane %v272, %v280
    %v284 = vadd.f32 %v270, %v277
    %v285 = vadd.f32 %v271, %v281
    %286 = vst [vmem:[%s3] sm:$0xff] %v284
    %287 = vst [vmem:[%s3 + $0x8] sm:$0xff] %v285
  $region21: #{_lambda_.30} parent=0 // pred_fallthru
    _
  // Predicated region
  $region22: #{_lambda_.30} parent=0 // pred_check
    _
  $region23: #{_lambda_.30} parent=0 // pred_check_branch
    %289 = sbr.rel (0) target = $region25
  $region24: #{_lambda_.30} parent=0 // pred_region
    _
  $region25: #{_lambda_.30} parent=0 // pred_fallthru
    _
  // Predicated region
  $region26: #{_lambda_.30} parent=0 // pred_check
    _
  $region27: #{_lambda_.30} parent=0 // pred_check_branch
    %291 = sbr.rel (0) target = $region29
  $region28: #{_lambda_.30} parent=0 // pred_region
    _
  $region29: #{_lambda_.30} parent=0 // pred_fallthru
    _

// kernel: _lambda_.29
$region0: #{_lambda_.29}
  #allocation0 [shape = 'u32[]', space=smem, size = 0x4, offset = 0x4, fixed_abs, tag = 'smem constant byte address 0x4 - core index']
  #allocation1 [shape = 'u32[144,128]{1,0:T(1,128)}', space=vmem, size = 0x12000, scoped, tag = 'internal scratch']
  #allocation2 [shape = 'f32[8,256]{1,0:T(8,128)}', space=vmem, size = 0x2000, scoped, tag = 'scratch operand']
  %s0 = inlined_call_operand.vmem [shape: bf16[8,1024], index: 0, kind: input, shape index: {}]
  %s1 = inlined_call_operand.vmem [shape: bf16[1024,256], index: 1, kind: input, shape index: {}]
  %s2 = inlined_call_operand.vmem [shape: f32[1,256], index: 2, kind: input, shape index: {}]
  %s3 = inlined_call_operand.vmem [shape: bf16[8,256], index: 3, kind: output, shape index: {}]
  %s4 = sld [smem:[#allocation0]]
  $region30: #{_lambda_.29} parent=0
    _
  %s6 = ssub.s32 1, %s4
  %s7 = scalar_select 0, %s6, %s4
  // Predicated region
  $region2: #{_lambda_.29} parent=0 // pred_check
    _
  $region3: #{_lambda_.29} parent=0 // pred_check_branch
    %9 = sbr.rel (0) target = $region5
  $region4: #{_lambda_.29} parent=0 // pred_region
    _
  $region5: #{_lambda_.29} parent=0 // pred_fallthru
    _
  // Predicated region
  $region6: #{_lambda_.29} parent=0 // pred_check
    _
  $region7: #{_lambda_.29} parent=0 // pred_check_branch
    %11 = sbr.rel (0) target = $region9
  $region8: #{_lambda_.29} parent=0 // pred_region
    _
  $region9: #{_lambda_.29} parent=0 // pred_fallthru
    _
  // Predicated region
  $region10: #{_lambda_.29} parent=0 // pred_check
    _
  $region11: #{_lambda_.29} parent=0 // pred_check_branch
    %13 = sbr.rel (0) target = $region13
  $region12: #{_lambda_.29} parent=0 // pred_region
    _
  $region13: #{_lambda_.29} parent=0 // pred_fallthru
    _
  %p14 = scmp.eq.s32.totalorder 0, 0
  // Predicated region
  $region14: #{_lambda_.29} parent=0 // pred_check
    %p15 = pneg %p14
  $region15: #{_lambda_.29} parent=0 // pred_check_branch
    %17 = sbr.rel (%p15) target = $region17
  $region16: #{_lambda_.29} parent=0 // pred_region
    %18 = vst [vmem:[#allocation2] sm:$0xff] 0.0
    %19 = vst [vmem:[#allocation2 + $0x8] sm:$0xff] 0.0
  $region17: #{_lambda_.29} parent=0 // pred_fallthru
    _
  %v20 = vld [vmem:[#allocation2] sm:$0xff]
  %v21 = vld [vmem:[#allocation2 + $0x8] sm:$0xff]
  %v22 = vld [vmem:[%s0] sm:$0xff]
  %v23 = vld [vmem:[%s0 + $0x8] sm:$0xff]
  %v24 = vld [vmem:[%s0 + $0x10] sm:$0xff]
  %v25 = vld [vmem:[%s0 + $0x18] sm:$0xff]
  %v26 = vld [vmem:[%s1] sm:$0xff]
  %v27 = vld [vmem:[%s1 + $0x8] sm:$0xff]
  %v28 = vld [vmem:[%s1 + $0x10] sm:$0xff]
  %v29 = vld [vmem:[%s1 + $0x18] sm:$0xff]
  %v30 = vld [vmem:[%s1 + $0x20] sm:$0xff]
  %v31 = vld [vmem:[%s1 + $0x28] sm:$0xff]
  %v32 = vld [vmem:[%s1 + $0x30] sm:$0xff]
  %v33 = vld [vmem:[%s1 + $0x38] sm:$0xff]
  %v34 = vld [vmem:[%s1 + $0x40] sm:$0xff]
  %v35 = vld [vmem:[%s1 + $0x48] sm:$0xff]
  %v36 = vld [vmem:[%s1 + $0x50] sm:$0xff]
  %v37 = vld [vmem:[%s1 + $0x58] sm:$0xff]
  %v38 = vld [vmem:[%s1 + $0x60] sm:$0xff]
  %v39 = vld [vmem:[%s1 + $0x68] sm:$0xff]
  %v40 = vld [vmem:[%s1 + $0x70] sm:$0xff]
  %v41 = vld [vmem:[%s1 + $0x78] sm:$0xff]
  %v42 = vld [vmem:[%s1 + $0x80] sm:$0xff]
  %v43 = vld [vmem:[%s1 + $0x88] sm:$0xff]
  %v44 = vld [vmem:[%s1 + $0x90] sm:$0xff]
  %v45 = vld [vmem:[%s1 + $0x98] sm:$0xff]
  %v46 = vld [vmem:[%s1 + $0xa0] sm:$0xff]
  %v47 = vld [vmem:[%s1 + $0xa8] sm:$0xff]
  %v48 = vld [vmem:[%s1 + $0xb0] sm:$0xff]
  %v49 = vld [vmem:[%s1 + $0xb8] sm:$0xff]
  %v50 = vld [vmem:[%s1 + $0xc0] sm:$0xff]
  %v51 = vld [vmem:[%s1 + $0xc8] sm:$0xff]
  %v52 = vld [vmem:[%s1 + $0xd0] sm:$0xff]
  %v53 = vld [vmem:[%s1 + $0xd8] sm:$0xff]
  %v54 = vld [vmem:[%s1 + $0xe0] sm:$0xff]
  %v55 = vld [vmem:[%s1 + $0xe8] sm:$0xff]
  %v56 = vld [vmem:[%s1 + $0xf0] sm:$0xff]
  %v57 = vld [vmem:[%s1 + $0xf8] sm:$0xff]
  %v58 = vld [vmem:[%s1 + $0x100] sm:$0xff]
  %v59 = vld [vmem:[%s1 + $0x108] sm:$0xff]
  %v60 = vld [vmem:[%s1 + $0x110] sm:$0xff]
  %v61 = vld [vmem:[%s1 + $0x118] sm:$0xff]
  %v62 = vld [vmem:[%s1 + $0x120] sm:$0xff]
  %v63 = vld [vmem:[%s1 + $0x128] sm:$0xff]
  %v64 = vld [vmem:[%s1 + $0x130] sm:$0xff]
  %v65 = vld [vmem:[%s1 + $0x138] sm:$0xff]
  %v66 = vld [vmem:[%s1 + $0x140] sm:$0xff]
  %v67 = vld [vmem:[%s1 + $0x148] sm:$0xff]
  %v68 = vld [vmem:[%s1 + $0x150] sm:$0xff]
  %v69 = vld [vmem:[%s1 + $0x158] sm:$0xff]
  %v70 = vld [vmem:[%s1 + $0x160] sm:$0xff]
  %v71 = vld [vmem:[%s1 + $0x168] sm:$0xff]
  %v72 = vld [vmem:[%s1 + $0x170] sm:$0xff]
  %v73 = vld [vmem:[%s1 + $0x178] sm:$0xff]
  %v74 = vld [vmem:[%s1 + $0x180] sm:$0xff]
  %v75 = vld [vmem:[%s1 + $0x188] sm:$0xff]
  %v76 = vld [vmem:[%s1 + $0x190] sm:$0xff]
  %v77 = vld [vmem:[%s1 + $0x198] sm:$0xff]
  %v78 = vld [vmem:[%s1 + $0x1a0] sm:$0xff]
  %v79 = vld [vmem:[%s1 + $0x1a8] sm:$0xff]
  %v80 = vld [vmem:[%s1 + $0x1b0] sm:$0xff]
  %v81 = vld [vmem:[%s1 + $0x1b8] sm:$0xff]
  %v82 = vld [vmem:[%s1 + $0x1c0] sm:$0xff]
  %v83 = vld [vmem:[%s1 + $0x1c8] sm:$0xff]
  %v84 = vld [vmem:[%s1 + $0x1d0] sm:$0xff]
  %v85 = vld [vmem:[%s1 + $0x1d8] sm:$0xff]
  %v86 = vld [vmem:[%s1 + $0x1e0] sm:$0xff]
  %v87 = vld [vmem:[%s1 + $0x1e8] sm:$0xff]
  %v88 = vld [vmem:[%s1 + $0x1f0] sm:$0xff]
  %v89 = vld [vmem:[%s1 + $0x1f8] sm:$0xff]
  %v90 = vld [vmem:[%s1 + $0x200] sm:$0xff]
  %v91 = vld [vmem:[%s1 + $0x208] sm:$0xff]
  %v92 = vld [vmem:[%s1 + $0x210] sm:$0xff]
  %v93 = vld [vmem:[%s1 + $0x218] sm:$0xff]
  %v94 = vld [vmem:[%s1 + $0x220] sm:$0xff]
  %v95 = vld [vmem:[%s1 + $0x228] sm:$0xff]
  %v96 = vld [vmem:[%s1 + $0x230] sm:$0xff]
  %v97 = vld [vmem:[%s1 + $0x238] sm:$0xff]
  %v98 = vld [vmem:[%s1 + $0x240] sm:$0xff]
  %v99 = vld [vmem:[%s1 + $0x248] sm:$0xff]
  %v100 = vld [vmem:[%s1 + $0x250] sm:$0xff]
  %v101 = vld [vmem:[%s1 + $0x258] sm:$0xff]
  %v102 = vld [vmem:[%s1 + $0x260] sm:$0xff]
  %v103 = vld [vmem:[%s1 + $0x268] sm:$0xff]
  %v104 = vld [vmem:[%s1 + $0x270] sm:$0xff]
  %v105 = vld [vmem:[%s1 + $0x278] sm:$0xff]
  %v106 = vld [vmem:[%s1 + $0x280] sm:$0xff]
  %v107 = vld [vmem:[%s1 + $0x288] sm:$0xff]
  %v108 = vld [vmem:[%s1 + $0x290] sm:$0xff]
  %v109 = vld [vmem:[%s1 + $0x298] sm:$0xff]
  %v110 = vld [vmem:[%s1 + $0x2a0] sm:$0xff]
  %v111 = vld [vmem:[%s1 + $0x2a8] sm:$0xff]
  %v112 = vld [vmem:[%s1 + $0x2b0] sm:$0xff]
  %v113 = vld [vmem:[%s1 + $0x2b8] sm:$0xff]
  %v114 = vld [vmem:[%s1 + $0x2c0] sm:$0xff]
  %v115 = vld [vmem:[%s1 + $0x2c8] sm:$0xff]
  %v116 = vld [vmem:[%s1 + $0x2d0] sm:$0xff]
  %v117 = vld [vmem:[%s1 + $0x2d8] sm:$0xff]
  %v118 = vld [vmem:[%s1 + $0x2e0] sm:$0xff]
  %v119 = vld [vmem:[%s1 + $0x2e8] sm:$0xff]
  %v120 = vld [vmem:[%s1 + $0x2f0] sm:$0xff]
  %v121 = vld [vmem:[%s1 + $0x2f8] sm:$0xff]
  %v122 = vld [vmem:[%s1 + $0x300] sm:$0xff]
  %v123 = vld [vmem:[%s1 + $0x308] sm:$0xff]
  %v124 = vld [vmem:[%s1 + $0x310] sm:$0xff]
  %v125 = vld [vmem:[%s1 + $0x318] sm:$0xff]
  %v126 = vld [vmem:[%s1 + $0x320] sm:$0xff]
  %v127 = vld [vmem:[%s1 + $0x328] sm:$0xff]
  %v128 = vld [vmem:[%s1 + $0x330] sm:$0xff]
  %v129 = vld [vmem:[%s1 + $0x338] sm:$0xff]
  %v130 = vld [vmem:[%s1 + $0x340] sm:$0xff]
  %v131 = vld [vmem:[%s1 + $0x348] sm:$0xff]
  %v132 = vld [vmem:[%s1 + $0x350] sm:$0xff]
  %v133 = vld [vmem:[%s1 + $0x358] sm:$0xff]
  %v134 = vld [vmem:[%s1 + $0x360] sm:$0xff]
  %v135 = vld [vmem:[%s1 + $0x368] sm:$0xff]
  %v136 = vld [vmem:[%s1 + $0x370] sm:$0xff]
  %v137 = vld [vmem:[%s1 + $0x378] sm:$0xff]
  %v138 = vld [vmem:[%s1 + $0x380] sm:$0xff]
  %v139 = vld [vmem:[%s1 + $0x388] sm:$0xff]
  %v140 = vld [vmem:[%s1 + $0x390] sm:$0xff]
  %v141 = vld [vmem:[%s1 + $0x398] sm:$0xff]
  %v142 = vld [vmem:[%s1 + $0x3a0] sm:$0xff]
  %v143 = vld [vmem:[%s1 + $0x3a8] sm:$0xff]
  %v144 = vld [vmem:[%s1 + $0x3b0] sm:$0xff]
  %v145 = vld [vmem:[%s1 + $0x3b8] sm:$0xff]
  %v146 = vld [vmem:[%s1 + $0x3c0] sm:$0xff]
  %v147 = vld [vmem:[%s1 + $0x3c8] sm:$0xff]
  %v148 = vld [vmem:[%s1 + $0x3d0] sm:$0xff]
  %v149 = vld [vmem:[%s1 + $0x3d8] sm:$0xff]
  %v150 = vld [vmem:[%s1 + $0x3e0] sm:$0xff]
  %v151 = vld [vmem:[%s1 + $0x3e8] sm:$0xff]
  %v152 = vld [vmem:[%s1 + $0x3f0] sm:$0xff]
  %v153 = vld [vmem:[%s1 + $0x3f8] sm:$0xff]
  %v158 = vunpack.c.l.b16 %v22
  %v159 = vunpack.c.h.b16 %v22
  %v160 = vunpack.c.l.b16 %v23
  %v161 = vunpack.c.h.b16 %v23
  %v162 = vunpack.c.l.b16 %v24
  %v163 = vunpack.c.h.b16 %v24
  %v164 = vunpack.c.l.b16 %v25
  %v165 = vunpack.c.h.b16 %v25
  %v166 = vpack.c.b16 %v158, %v158
  %v167 = vpack.c.b16 %v159, %v159
  %v168 = vpack.c.b16 %v160, %v160
  %v169 = vpack.c.b16 %v161, %v161
  %v170 = vpack.c.b16 %v162, %v162
  %v171 = vpack.c.b16 %v163, %v163
  %v172 = vpack.c.b16 %v164, %v164
  %v173 = vpack.c.b16 %v165, %v165
  %v310 = vunpack.c.l.b16 %v26
  %v311 = vunpack.c.h.b16 %v26
  %v312 = vunpack.c.l.b16 %v27
  %v313 = vunpack.c.h.b16 %v27
  %v314 = vunpack.c.l.b16 %v28
  %v315 = vunpack.c.h.b16 %v28
  %v316 = vunpack.c.l.b16 %v29
  %v317 = vunpack.c.h.b16 %v29
  %v318 = vunpack.c.l.b16 %v30
  %v319 = vunpack.c.h.b16 %v30
  %v320 = vunpack.c.l.b16 %v31
  %v321 = vunpack.c.h.b16 %v31
  %v322 = vunpack.c.l.b16 %v32
  %v323 = vunpack.c.h.b16 %v32
  %v324 = vunpack.c.l.b16 %v33
  %v325 = vunpack.c.h.b16 %v33
  %v326 = vunpack.c.l.b16 %v34
  %v327 = vunpack.c.h.b16 %v34
  %v328 = vunpack.c.l.b16 %v35
  %v329 = vunpack.c.h.b16 %v35
  %v330 = vunpack.c.l.b16 %v36
  %v331 = vunpack.c.h.b16 %v36
  %v332 = vunpack.c.l.b16 %v37
  %v333 = vunpack.c.h.b16 %v37
  %v334 = vunpack.c.l.b16 %v38
  %v335 = vunpack.c.h.b16 %v38
  %v336 = vunpack.c.l.b16 %v39
  %v337 = vunpack.c.h.b16 %v39
  %v338 = vunpack.c.l.b16 %v40
  %v339 = vunpack.c.h.b16 %v40
  %v340 = vunpack.c.l.b16 %v41
  %v341 = vunpack.c.h.b16 %v41
  %v342 = vunpack.c.l.b16 %v42
  %v343 = vunpack.c.h.b16 %v42
  %v344 = vunpack.c.l.b16 %v43
  %v345 = vunpack.c.h.b16 %v43
  %v346 = vunpack.c.l.b16 %v44
  %v347 = vunpack.c.h.b16 %v44
  %v348 = vunpack.c.l.b16 %v45
  %v349 = vunpack.c.h.b16 %v45
  %v350 = vunpack.c.l.b16 %v46
  %v351 = vunpack.c.h.b16 %v46
  %v352 = vunpack.c.l.b16 %v47
  %v353 = vunpack.c.h.b16 %v47
  %v354 = vunpack.c.l.b16 %v48
  %v355 = vunpack.c.h.b16 %v48
  %v356 = vunpack.c.l.b16 %v49
  %v357 = vunpack.c.h.b16 %v49
  %v358 = vunpack.c.l.b16 %v50
  %v359 = vunpack.c.h.b16 %v50
  %v360 = vunpack.c.l.b16 %v51
  %v361 = vunpack.c.h.b16 %v51
  %v362 = vunpack.c.l.b16 %v52
  %v363 = vunpack.c.h.b16 %v52
  %v364 = vunpack.c.l.b16 %v53
  %v365 = vunpack.c.h.b16 %v53
  %v366 = vunpack.c.l.b16 %v54
  %v367 = vunpack.c.h.b16 %v54
  %v368 = vunpack.c.l.b16 %v55
  %v369 = vunpack.c.h.b16 %v55
  %v370 = vunpack.c.l.b16 %v56
  %v371 = vunpack.c.h.b16 %v56
  %v372 = vunpack.c.l.b16 %v57
  %v373 = vunpack.c.h.b16 %v57
  %v374 = vunpack.c.l.b16 %v58
  %v375 = vunpack.c.h.b16 %v58
  %v376 = vunpack.c.l.b16 %v59
  %v377 = vunpack.c.h.b16 %v59
  %v378 = vunpack.c.l.b16 %v60
  %v379 = vunpack.c.h.b16 %v60
  %v380 = vunpack.c.l.b16 %v61
  %v381 = vunpack.c.h.b16 %v61
  %v382 = vunpack.c.l.b16 %v62
  %v383 = vunpack.c.h.b16 %v62
  %v384 = vunpack.c.l.b16 %v63
  %v385 = vunpack.c.h.b16 %v63
  %v386 = vunpack.c.l.b16 %v64
  %v387 = vunpack.c.h.b16 %v64
  %v388 = vunpack.c.l.b16 %v65
  %v389 = vunpack.c.h.b16 %v65
  %v390 = vunpack.c.l.b16 %v66
  %v391 = vunpack.c.h.b16 %v66
  %v392 = vunpack.c.l.b16 %v67
  %v393 = vunpack.c.h.b16 %v67
  %v394 = vunpack.c.l.b16 %v68
  %v395 = vunpack.c.h.b16 %v68
  %v396 = vunpack.c.l.b16 %v69
  %v397 = vunpack.c.h.b16 %v69
  %v398 = vunpack.c.l.b16 %v70
  %v399 = vunpack.c.h.b16 %v70
  %v400 = vunpack.c.l.b16 %v71
  %v401 = vunpack.c.h.b16 %v71
  %v402 = vunpack.c.l.b16 %v72
  %v403 = vunpack.c.h.b16 %v72
  %v404 = vunpack.c.l.b16 %v73
  %v405 = vunpack.c.h.b16 %v73
  %v406 = vunpack.c.l.b16 %v74
  %v407 = vunpack.c.h.b16 %v74
  %v408 = vunpack.c.l.b16 %v75
  %v409 = vunpack.c.h.b16 %v75
  %v410 = vunpack.c.l.b16 %v76
  %v411 = vunpack.c.h.b16 %v76
  %v412 = vunpack.c.l.b16 %v77
  %v413 = vunpack.c.h.b16 %v77
  %v414 = vunpack.c.l.b16 %v78
  %v415 = vunpack.c.h.b16 %v78
  %v416 = vunpack.c.l.b16 %v79
  %v417 = vunpack.c.h.b16 %v79
  %v418 = vunpack.c.l.b16 %v80
  %v419 = vunpack.c.h.b16 %v80
  %v420 = vunpack.c.l.b16 %v81
  %v421 = vunpack.c.h.b16 %v81
  %v422 = vunpack.c.l.b16 %v82
  %v423 = vunpack.c.h.b16 %v82
  %v424 = vunpack.c.l.b16 %v83
  %v425 = vunpack.c.h.b16 %v83
  %v426 = vunpack.c.l.b16 %v84
  %v427 = vunpack.c.h.b16 %v84
  %v428 = vunpack.c.l.b16 %v85
  %v429 = vunpack.c.h.b16 %v85
  %v430 = vunpack.c.l.b16 %v86
  %v431 = vunpack.c.h.b16 %v86
  %v432 = vunpack.c.l.b16 %v87
  %v433 = vunpack.c.h.b16 %v87
  %v434 = vunpack.c.l.b16 %v88
  %v435 = vunpack.c.h.b16 %v88
  %v436 = vunpack.c.l.b16 %v89
  %v437 = vunpack.c.h.b16 %v89
  %v438 = vunpack.c.l.b16 %v90
  %v439 = vunpack.c.h.b16 %v90
  %v440 = vunpack.c.l.b16 %v91
  %v441 = vunpack.c.h.b16 %v91
  %v442 = vunpack.c.l.b16 %v92
  %v443 = vunpack.c.h.b16 %v92
  %v444 = vunpack.c.l.b16 %v93
  %v445 = vunpack.c.h.b16 %v93
  %v446 = vunpack.c.l.b16 %v94
  %v447 = vunpack.c.h.b16 %v94
  %v448 = vunpack.c.l.b16 %v95
  %v449 = vunpack.c.h.b16 %v95
  %v450 = vunpack.c.l.b16 %v96
  %v451 = vunpack.c.h.b16 %v96
  %v452 = vunpack.c.l.b16 %v97
  %v453 = vunpack.c.h.b16 %v97
  %v454 = vunpack.c.l.b16 %v98
  %v455 = vunpack.c.h.b16 %v98
  %v456 = vunpack.c.l.b16 %v99
  %v457 = vunpack.c.h.b16 %v99
  %v458 = vunpack.c.l.b16 %v100
  %v459 = vunpack.c.h.b16 %v100
  %v460 = vunpack.c.l.b16 %v101
  %v461 = vunpack.c.h.b16 %v101
  %v462 = vunpack.c.l.b16 %v102
  %v463 = vunpack.c.h.b16 %v102
  %v464 = vunpack.c.l.b16 %v103
  %v465 = vunpack.c.h.b16 %v103
  %v466 = vunpack.c.l.b16 %v104
  %v467 = vunpack.c.h.b16 %v104
  %v468 = vunpack.c.l.b16 %v105
  %v469 = vunpack.c.h.b16 %v105
  %v470 = vunpack.c.l.b16 %v106
  %v471 = vunpack.c.h.b16 %v106
  %v472 = vunpack.c.l.b16 %v107
  %v473 = vunpack.c.h.b16 %v107
  %v474 = vunpack.c.l.b16 %v108
  %v475 = vunpack.c.h.b16 %v108
  %v476 = vunpack.c.l.b16 %v109
  %v477 = vunpack.c.h.b16 %v109
  %v478 = vunpack.c.l.b16 %v110
  %v479 = vunpack.c.h.b16 %v110
  %v480 = vunpack.c.l.b16 %v111
  %v481 = vunpack.c.h.b16 %v111
  %v482 = vunpack.c.l.b16 %v112
  %v483 = vunpack.c.h.b16 %v112
  %v484 = vunpack.c.l.b16 %v113
  %v485 = vunpack.c.h.b16 %v113
  %v486 = vunpack.c.l.b16 %v114
  %v487 = vunpack.c.h.b16 %v114
  %v488 = vunpack.c.l.b16 %v115
  %v489 = vunpack.c.h.b16 %v115
  %v490 = vunpack.c.l.b16 %v116
  %v491 = vunpack.c.h.b16 %v116
  %v492 = vunpack.c.l.b16 %v117
  %v493 = vunpack.c.h.b16 %v117
  %v494 = vunpack.c.l.b16 %v118
  %v495 = vunpack.c.h.b16 %v118
  %v496 = vunpack.c.l.b16 %v119
  %v497 = vunpack.c.h.b16 %v119
  %v498 = vunpack.c.l.b16 %v120
  %v499 = vunpack.c.h.b16 %v120
  %v500 = vunpack.c.l.b16 %v121
  %v501 = vunpack.c.h.b16 %v121
  %v502 = vunpack.c.l.b16 %v122
  %v503 = vunpack.c.h.b16 %v122
  %v504 = vunpack.c.l.b16 %v123
  %v505 = vunpack.c.h.b16 %v123
  %v506 = vunpack.c.l.b16 %v124
  %v507 = vunpack.c.h.b16 %v124
  %v508 = vunpack.c.l.b16 %v125
  %v509 = vunpack.c.h.b16 %v125
  %v510 = vunpack.c.l.b16 %v126
  %v511 = vunpack.c.h.b16 %v126
  %v512 = vunpack.c.l.b16 %v127
  %v513 = vunpack.c.h.b16 %v127
  %v514 = vunpack.c.l.b16 %v128
  %v515 = vunpack.c.h.b16 %v128
  %v516 = vunpack.c.l.b16 %v129
  %v517 = vunpack.c.h.b16 %v129
  %v518 = vunpack.c.l.b16 %v130
  %v519 = vunpack.c.h.b16 %v130
  %v520 = vunpack.c.l.b16 %v131
  %v521 = vunpack.c.h.b16 %v131
  %v522 = vunpack.c.l.b16 %v132
  %v523 = vunpack.c.h.b16 %v132
  %v524 = vunpack.c.l.b16 %v133
  %v525 = vunpack.c.h.b16 %v133
  %v526 = vunpack.c.l.b16 %v134
  %v527 = vunpack.c.h.b16 %v134
  %v528 = vunpack.c.l.b16 %v135
  %v529 = vunpack.c.h.b16 %v135
  %v530 = vunpack.c.l.b16 %v136
  %v531 = vunpack.c.h.b16 %v136
  %v532 = vunpack.c.l.b16 %v137
  %v533 = vunpack.c.h.b16 %v137
  %v534 = vunpack.c.l.b16 %v138
  %v535 = vunpack.c.h.b16 %v138
  %v536 = vunpack.c.l.b16 %v139
  %v537 = vunpack.c.h.b16 %v139
  %v538 = vunpack.c.l.b16 %v140
  %v539 = vunpack.c.h.b16 %v140
  %v540 = vunpack.c.l.b16 %v141
  %v541 = vunpack.c.h.b16 %v141
  %v542 = vunpack.c.l.b16 %v142
  %v543 = vunpack.c.h.b16 %v142
  %v544 = vunpack.c.l.b16 %v143
  %v545 = vunpack.c.h.b16 %v143
  %v546 = vunpack.c.l.b16 %v144
  %v547 = vunpack.c.h.b16 %v144
  %v548 = vunpack.c.l.b16 %v145
  %v549 = vunpack.c.h.b16 %v145
  %v550 = vunpack.c.l.b16 %v146
  %v551 = vunpack.c.h.b16 %v146
  %v552 = vunpack.c.l.b16 %v147
  %v553 = vunpack.c.h.b16 %v147
  %v554 = vunpack.c.l.b16 %v148
  %v555 = vunpack.c.h.b16 %v148
  %v556 = vunpack.c.l.b16 %v149
  %v557 = vunpack.c.h.b16 %v149
  %v558 = vunpack.c.l.b16 %v150
  %v559 = vunpack.c.h.b16 %v150
  %v560 = vunpack.c.l.b16 %v151
  %v561 = vunpack.c.h.b16 %v151
  %v562 = vunpack.c.l.b16 %v152
  %v563 = vunpack.c.h.b16 %v152
  %v564 = vunpack.c.l.b16 %v153
  %v565 = vunpack.c.h.b16 %v153
  %v566 = vpack.c.b16 %v312, %v310
  %v567 = vpack.c.b16 %v313, %v311
  %v568 = vpack.c.b16 %v316, %v314
  %v569 = vpack.c.b16 %v317, %v315
  %v570 = vpack.c.b16 %v320, %v318
  %v571 = vpack.c.b16 %v321, %v319
  %v572 = vpack.c.b16 %v324, %v322
  %v573 = vpack.c.b16 %v325, %v323
  %v574 = vpack.c.b16 %v328, %v326
  %v575 = vpack.c.b16 %v329, %v327
  %v576 = vpack.c.b16 %v332, %v330
  %v577 = vpack.c.b16 %v333, %v331
  %v578 = vpack.c.b16 %v336, %v334
  %v579 = vpack.c.b16 %v337, %v335
  %v580 = vpack.c.b16 %v340, %v338
  %v581 = vpack.c.b16 %v341, %v339
  %v582 = vpack.c.b16 %v344, %v342
  %v583 = vpack.c.b16 %v345, %v343
  %v584 = vpack.c.b16 %v348, %v346
  %v585 = vpack.c.b16 %v349, %v347
  %v586 = vpack.c.b16 %v352, %v350
  %v587 = vpack.c.b16 %v353, %v351
  %v588 = vpack.c.b16 %v356, %v354
  %v589 = vpack.c.b16 %v357, %v355
  %v590 = vpack.c.b16 %v360, %v358
  %v591 = vpack.c.b16 %v361, %v359
  %v592 = vpack.c.b16 %v364, %v362
  %v593 = vpack.c.b16 %v365, %v363
  %v594 = vpack.c.b16 %v368, %v366
  %v595 = vpack.c.b16 %v369, %v367
  %v596 = vpack.c.b16 %v372, %v370
  %v597 = vpack.c.b16 %v373, %v371
  %v598 = vpack.c.b16 %v376, %v374
  %v599 = vpack.c.b16 %v377, %v375
  %v600 = vpack.c.b16 %v380, %v378
  %v601 = vpack.c.b16 %v381, %v379
  %v602 = vpack.c.b16 %v384, %v382
  %v603 = vpack.c.b16 %v385, %v383
  %v604 = vpack.c.b16 %v388, %v386
  %v605 = vpack.c.b16 %v389, %v387
  %v606 = vpack.c.b16 %v392, %v390
  %v607 = vpack.c.b16 %v393, %v391
  %v608 = vpack.c.b16 %v396, %v394
  %v609 = vpack.c.b16 %v397, %v395
  %v610 = vpack.c.b16 %v400, %v398
  %v611 = vpack.c.b16 %v401, %v399
  %v612 = vpack.c.b16 %v404, %v402
  %v613 = vpack.c.b16 %v405, %v403
  %v614 = vpack.c.b16 %v408, %v406
  %v615 = vpack.c.b16 %v409, %v407
  %v616 = vpack.c.b16 %v412, %v410
  %v617 = vpack.c.b16 %v413, %v411
  %v618 = vpack.c.b16 %v416, %v414
  %v619 = vpack.c.b16 %v417, %v415
  %v620 = vpack.c.b16 %v420, %v418
  %v621 = vpack.c.b16 %v421, %v419
  %v622 = vpack.c.b16 %v424, %v422
  %v623 = vpack.c.b16 %v425, %v423
  %v624 = vpack.c.b16 %v428, %v426
  %v625 = vpack.c.b16 %v429, %v427
  %v626 = vpack.c.b16 %v432, %v430
  %v627 = vpack.c.b16 %v433, %v431
  %v628 = vpack.c.b16 %v436, %v434
  %v629 = vpack.c.b16 %v437, %v435
  %v630 = vpack.c.b16 %v440, %v438
  %v631 = vpack.c.b16 %v441, %v439
  %v632 = vpack.c.b16 %v444, %v442
  %v633 = vpack.c.b16 %v445, %v443
  %v634 = vpack.c.b16 %v448, %v446
  %v635 = vpack.c.b16 %v449, %v447
  %v636 = vpack.c.b16 %v452, %v450
  %v637 = vpack.c.b16 %v453, %v451
  %v638 = vpack.c.b16 %v456, %v454
  %v639 = vpack.c.b16 %v457, %v455
  %v640 = vpack.c.b16 %v460, %v458
  %v641 = vpack.c.b16 %v461, %v459
  %v642 = vpack.c.b16 %v464, %v462
  %v643 = vpack.c.b16 %v465, %v463
  %v644 = vpack.c.b16 %v468, %v466
  %v645 = vpack.c.b16 %v469, %v467
  %v646 = vpack.c.b16 %v472, %v470
  %v647 = vpack.c.b16 %v473, %v471
  %v648 = vpack.c.b16 %v476, %v474
  %v649 = vpack.c.b16 %v477, %v475
  %v650 = vpack.c.b16 %v480, %v478
  %v651 = vpack.c.b16 %v481, %v479
  %v652 = vpack.c.b16 %v484, %v482
  %v653 = vpack.c.b16 %v485, %v483
  %v654 = vpack.c.b16 %v488, %v486
  %v655 = vpack.c.b16 %v489, %v487
  %v656 = vpack.c.b16 %v492, %v490
  %v657 = vpack.c.b16 %v493, %v491
  %v658 = vpack.c.b16 %v496, %v494
  %v659 = vpack.c.b16 %v497, %v495
  %v660 = vpack.c.b16 %v500, %v498
  %v661 = vpack.c.b16 %v501, %v499
  %v662 = vpack.c.b16 %v504, %v502
  %v663 = vpack.c.b16 %v505, %v503
  %v664 = vpack.c.b16 %v508, %v506
  %v665 = vpack.c.b16 %v509, %v507
  %v666 = vpack.c.b16 %v512, %v510
  %v667 = vpack.c.b16 %v513, %v511
  %v668 = vpack.c.b16 %v516, %v514
  %v669 = vpack.c.b16 %v517, %v515
  %v670 = vpack.c.b16 %v520, %v518
  %v671 = vpack.c.b16 %v521, %v519
  %v672 = vpack.c.b16 %v524, %v522
  %v673 = vpack.c.b16 %v525, %v523
  %v674 = vpack.c.b16 %v528, %v526
  %v675 = vpack.c.b16 %v529, %v527
  %v676 = vpack.c.b16 %v532, %v530
  %v677 = vpack.c.b16 %v533, %v531
  %v678 = vpack.c.b16 %v536, %v534
  %v679 = vpack.c.b16 %v537, %v535
  %v680 = vpack.c.b16 %v540, %v538
  %v681 = vpack.c.b16 %v541, %v539
  %v682 = vpack.c.b16 %v544, %v542
  %v683 = vpack.c.b16 %v545, %v543
  %v684 = vpack.c.b16 %v548, %v546
  %v685 = vpack.c.b16 %v549, %v547
  %v686 = vpack.c.b16 %v552, %v550
  %v687 = vpack.c.b16 %v553, %v551
  %v688 = vpack.c.b16 %v556, %v554
  %v689 = vpack.c.b16 %v557, %v555
  %v690 = vpack.c.b16 %v560, %v558
  %v691 = vpack.c.b16 %v561, %v559
  %v692 = vpack.c.b16 %v564, %v562
  %v693 = vpack.c.b16 %v565, %v563
  %822 = vmatprep.subr.bf16.mxu0 %v581
  %823 = vmatpush1.bf16.msra.mxu0 %v580
  %824 = vmatprep.subr.bf16.mxu0 %v579
  %825 = vmatpush1.bf16.msra.mxu0 %v578
  %826 = vmatprep.subr.bf16.mxu0 %v577
  %827 = vmatpush1.bf16.msra.mxu0 %v576
  %828 = vmatprep.subr.bf16.mxu0 %v575
  %829 = vmatpush1.bf16.msra.mxu0 %v574
  %830 = vmatprep.subr.bf16.mxu0 %v573
  %831 = vmatpush1.bf16.msra.mxu0 %v572
  %832 = vmatprep.subr.bf16.mxu0 %v571
  %833 = vmatpush1.bf16.msra.mxu0 %v570
  %834 = vmatprep.subr.bf16.mxu0 %v569
  %835 = vmatpush1.bf16.msra.mxu0 %v568
  %836 = vmatprep.subr.bf16.mxu0 %v567
  %837 = vmatpush1.bf16.msra.mxu0 %v566
  %838 = vmatprep.subr.bf16.mxu0 %v597
  %839 = vmatpush2.bf16.msra.mxu0 %v596
  %840 = vmatprep.subr.bf16.mxu0 %v595
  %841 = vmatpush2.bf16.msra.mxu0 %v594
  %842 = vmatprep.subr.bf16.mxu0 %v593
  %843 = vmatpush2.bf16.msra.mxu0 %v592
  %844 = vmatprep.subr.bf16.mxu0 %v591
  %845 = vmatpush2.bf16.msra.mxu0 %v590
  %846 = vmatprep.subr.bf16.mxu0 %v589
  %847 = vmatpush2.bf16.msra.mxu0 %v588
  %848 = vmatprep.subr.bf16.mxu0 %v587
  %849 = vmatpush2.bf16.msra.mxu0 %v586
  %850 = vmatprep.subr.bf16.mxu0 %v585
  %851 = vmatpush2.bf16.msra.mxu0 %v584
  %852 = vmatprep.subr.bf16.mxu0 %v583
  %853 = vmatpush2.bf16.msra.mxu0 %v582
  %854 = vmatprep.mubr.bf16.mxu0 %v167
  %855 = vmatmul.mubr.bf16.gmra.mxu0 %v166
  %v856 = vpop.f32.mrf.mxu0
  %v857 = vadd.f32 0.0, %v856
  %v858 = vpop.f32.mrf.mxu0
  %v859 = vadd.f32 0.0, %v858
  %v860 = vpop.f32.mrf.mxu0
  %v861 = vpop.f32.mrf.mxu0
  %862 = vdwg.mxu0
  %863 = vmatprep.subr.bf16.mxu0 %v613
  %864 = vmatpush1.bf16.msra.mxu0 %v612
  %865 = vmatprep.subr.bf16.mxu0 %v611
  %866 = vmatpush1.bf16.msra.mxu0 %v610
  %867 = vmatprep.subr.bf16.mxu0 %v609
  %868 = vmatpush1.bf16.msra.mxu0 %v608
  %869 = vmatprep.subr.bf16.mxu0 %v607
  %870 = vmatpush1.bf16.msra.mxu0 %v606
  %871 = vmatprep.subr.bf16.mxu0 %v605
  %872 = vmatpush1.bf16.msra.mxu0 %v604
  %873 = vmatprep.subr.bf16.mxu0 %v603
  %874 = vmatpush1.bf16.msra.mxu0 %v602
  %875 = vmatprep.subr.bf16.mxu0 %v601
  %876 = vmatpush1.bf16.msra.mxu0 %v600
  %877 = vmatprep.subr.bf16.mxu0 %v599
  %878 = vmatpush1.bf16.msra.mxu0 %v598
  %879 = vmatprep.subr.bf16.mxu0 %v629
  %880 = vmatpush2.bf16.msra.mxu0 %v628
  %881 = vmatprep.subr.bf16.mxu0 %v627
  %882 = vmatpush2.bf16.msra.mxu0 %v626
  %883 = vmatprep.subr.bf16.mxu0 %v625
  %884 = vmatpush2.bf16.msra.mxu0 %v624
  %885 = vmatprep.subr.bf16.mxu0 %v623
  %886 = vmatpush2.bf16.msra.mxu0 %v622
  %887 = vmatprep.subr.bf16.mxu0 %v621
  %888 = vmatpush2.bf16.msra.mxu0 %v620
  %889 = vmatprep.subr.bf16.mxu0 %v619
  %890 = vmatpush2.bf16.msra.mxu0 %v618
  %891 = vmatprep.subr.bf16.mxu0 %v617
  %892 = vmatpush2.bf16.msra.mxu0 %v616
  %893 = vmatprep.subr.bf16.mxu0 %v615
  %894 = vmatpush2.bf16.msra.mxu0 %v614
  %895 = vmatprep.mubr.bf16.mxu0 %v169
  %896 = vmatmul.mubr.bf16.gmra.mxu0 %v168
  %v897 = vpop.f32.mrf.mxu0
  %v898 = vadd.f32 %v857, %v897
  %v899 = vpop.f32.mrf.mxu0
  %v900 = vadd.f32 %v859, %v899
  %v901 = vpop.f32.mrf.mxu0
  %v902 = vpop.f32.mrf.mxu0
  %903 = vdwg.mxu0
  %904 = vmatprep.subr.bf16.mxu0 %v645
  %905 = vmatpush1.bf16.msra.mxu0 %v644
  %906 = vmatprep.subr.bf16.mxu0 %v643
  %907 = vmatpush1.bf16.msra.mxu0 %v642
  %908 = vmatprep.subr.bf16.mxu0 %v641
  %909 = vmatpush1.bf16.msra.mxu0 %v640
  %910 = vmatprep.subr.bf16.mxu0 %v639
  %911 = vmatpush1.bf16.msra.mxu0 %v638
  %912 = vmatprep.subr.bf16.mxu0 %v637
  %913 = vmatpush1.bf16.msra.mxu0 %v636
  %914 = vmatprep.subr.bf16.mxu0 %v635
  %915 = vmatpush1.bf16.msra.mxu0 %v634
  %916 = vmatprep.subr.bf16.mxu0 %v633
  %917 = vmatpush1.bf16.msra.mxu0 %v632
  %918 = vmatprep.subr.bf16.mxu0 %v631
  %919 = vmatpush1.bf16.msra.mxu0 %v630
  %920 = vmatprep.subr.bf16.mxu0 %v661
  %921 = vmatpush2.bf16.msra.mxu0 %v660
  %922 = vmatprep.subr.bf16.mxu0 %v659
  %923 = vmatpush2.bf16.msra.mxu0 %v658
  %924 = vmatprep.subr.bf16.mxu0 %v657
  %925 = vmatpush2.bf16.msra.mxu0 %v656
  %926 = vmatprep.subr.bf16.mxu0 %v655
  %927 = vmatpush2.bf16.msra.mxu0 %v654
  %928 = vmatprep.subr.bf16.mxu0 %v653
  %929 = vmatpush2.bf16.msra.mxu0 %v652
  %930 = vmatprep.subr.bf16.mxu0 %v651
  %931 = vmatpush2.bf16.msra.mxu0 %v650
  %932 = vmatprep.subr.bf16.mxu0 %v649
  %933 = vmatpush2.bf16.msra.mxu0 %v648
  %934 = vmatprep.subr.bf16.mxu0 %v647
  %935 = vmatpush2.bf16.msra.mxu0 %v646
  %936 = vmatprep.mubr.bf16.mxu0 %v171
  %937 = vmatmul.mubr.bf16.gmra.mxu0 %v170
  %v938 = vpop.f32.mrf.mxu0
  %v939 = vadd.f32 %v898, %v938
  %v940 = vpop.f32.mrf.mxu0
  %v941 = vadd.f32 %v900, %v940
  %v942 = vpop.f32.mrf.mxu0
  %v943 = vpop.f32.mrf.mxu0
  %944 = vdwg.mxu0
  %945 = vmatprep.subr.bf16.mxu0 %v677
  %946 = vmatpush1.bf16.msra.mxu0 %v676
  %947 = vmatprep.subr.bf16.mxu0 %v675
  %948 = vmatpush1.bf16.msra.mxu0 %v674
  %949 = vmatprep.subr.bf16.mxu0 %v673
  %950 = vmatpush1.bf16.msra.mxu0 %v672
  %951 = vmatprep.subr.bf16.mxu0 %v671
  %952 = vmatpush1.bf16.msra.mxu0 %v670
  %953 = vmatprep.subr.bf16.mxu0 %v669
  %954 = vmatpush1.bf16.msra.mxu0 %v668
  %955 = vmatprep.subr.bf16.mxu0 %v667
  %956 = vmatpush1.bf16.msra.mxu0 %v666
  %957 = vmatprep.subr.bf16.mxu0 %v665
  %958 = vmatpush1.bf16.msra.mxu0 %v664
  %959 = vmatprep.subr.bf16.mxu0 %v663
  %960 = vmatpush1.bf16.msra.mxu0 %v662
  %961 = vmatprep.subr.bf16.mxu0 %v693
  %962 = vmatpush2.bf16.msra.mxu0 %v692
  %963 = vmatprep.subr.bf16.mxu0 %v691
  %964 = vmatpush2.bf16.msra.mxu0 %v690
  %965 = vmatprep.subr.bf16.mxu0 %v689
  %966 = vmatpush2.bf16.msra.mxu0 %v688
  %967 = vmatprep.subr.bf16.mxu0 %v687
  %968 = vmatpush2.bf16.msra.mxu0 %v686
  %969 = vmatprep.subr.bf16.mxu0 %v685
  %970 = vmatpush2.bf16.msra.mxu0 %v684
  %971 = vmatprep.subr.bf16.mxu0 %v683
  %972 = vmatpush2.bf16.msra.mxu0 %v682
  %973 = vmatprep.subr.bf16.mxu0 %v681
  %974 = vmatpush2.bf16.msra.mxu0 %v680
  %975 = vmatprep.subr.bf16.mxu0 %v679
  %976 = vmatpush2.bf16.msra.mxu0 %v678
  %977 = vmatprep.mubr.bf16.mxu0 %v173
  %978 = vmatmul.mubr.bf16.gmra.mxu0 %v172
  %v979 = vpop.f32.mrf.mxu0
  %v980 = vadd.f32 %v939, %v979
  %v981 = vpop.f32.mrf.mxu0
  %v982 = vadd.f32 %v941, %v981
  %v983 = vpop.f32.mrf.mxu0
  %v984 = vpop.f32.mrf.mxu0
  %985 = vdwg.mxu0
  %v986 = vadd.f32 %v20, %v980
  %v987 = vadd.f32 %v21, %v982
  %988 = vst [vmem:[#allocation2] sm:$0xff] %v986
  %989 = vst [vmem:[#allocation2 + $0x8] sm:$0xff] %v987
  // Predicated region
  $region18: #{_lambda_.29} parent=0 // pred_check
    %p990 = pneg %p14
  $region19: #{_lambda_.29} parent=0 // pred_check_branch
    %992 = sbr.rel (%p990) target = $region21
  $region20: #{_lambda_.29} parent=0 // pred_region
    %v993 = vld [vmem:[#allocation2] sm:$0xff]
    %v994 = vld [vmem:[#allocation2 + $0x8] sm:$0xff]
    %v995 = vld [vmem:[%s2] sm:$0x3]
    %v997 = vlaneseq
    %v998 = vshrl.u32 %v997, 7
    %v999 = vsub.s32 0, %v998
    %v1000 = vrot.slane %v995, %v999
    %v1001 = vlaneseq
    %v1002 = vshrl.u32 %v1001, 7
    %v1003 = vsub.s32 1, %v1002
    %v1004 = vrot.slane %v995, %v1003
    %v1007 = vadd.f32 %v993, %v1000
    %v1008 = vadd.f32 %v994, %v1004
    %v1009 = vpack.c.bf16 %v1007, %v1007
    %v1010 = vpack.c.bf16 %v1008, %v1008
    %v1013 = vunpack.c.l.b16 %v1009
    %v1014 = vunpack.c.l.b16 %v1010
    %v1015 = vpack.c.b16 %v1014, %v1013
    %1017 = vst [vmem:[%s3] sm:$0xff] %v1015
  $region21: #{_lambda_.29} parent=0 // pred_fallthru
    _
  // Predicated region
  $region22: #{_lambda_.29} parent=0 // pred_check
    _
  $region23: #{_lambda_.29} parent=0 // pred_check_branch
    %1019 = sbr.rel (0) target = $region25
  $region24: #{_lambda_.29} parent=0 // pred_region
    _
  $region25: #{_lambda_.29} parent=0 // pred_fallthru
    _
  // Predicated region
  $region26: #{_lambda_.29} parent=0 // pred_check
    _
  $region27: #{_lambda_.29} parent=0 // pred_check_branch
    %1021 = sbr.rel (0) target = $region29
  $region28: #{_lambda_.29} parent=0 // pred_region
    _
  $region29: #{_lambda_.29} parent=0 // pred_fallthru
    _

// kernel: _lambda_.31
$region0: #{_lambda_.31}
  #allocation0 [shape = 'u32[]', space=smem, size = 0x4, offset = 0x4, fixed_abs, tag = 'smem constant byte address 0x4 - core index']
  #allocation1 [shape = 'u32[144,128]{1,0:T(1,128)}', space=vmem, size = 0x12000, scoped, tag = 'internal scratch']
  #allocation2 [shape = 'f32[8,128]{1,0:T(8,128)}', space=vmem, size = 0x1000, scoped, tag = 'scratch operand']
  %s0 = inlined_call_operand.vmem [shape: bf16[8,256], index: 0, kind: input, shape index: {}]
  %s1 = inlined_call_operand.vmem [shape: bf16[256,128], index: 1, kind: input, shape index: {}]
  %s2 = inlined_call_operand.vmem [shape: f32[1,128], index: 2, kind: input, shape index: {}]
  %s3 = inlined_call_operand.vmem [shape: f32[8,128], index: 3, kind: output, shape index: {}]
  %s4 = sld [smem:[#allocation0]]
  $region30: #{_lambda_.31} parent=0
    _
  %s6 = ssub.s32 1, %s4
  %s7 = scalar_select 0, %s6, %s4
  // Predicated region
  $region2: #{_lambda_.31} parent=0 // pred_check
    _
  $region3: #{_lambda_.31} parent=0 // pred_check_branch
    %9 = sbr.rel (0) target = $region5
  $region4: #{_lambda_.31} parent=0 // pred_region
    _
  $region5: #{_lambda_.31} parent=0 // pred_fallthru
    _
  // Predicated region
  $region6: #{_lambda_.31} parent=0 // pred_check
    _
  $region7: #{_lambda_.31} parent=0 // pred_check_branch
    %11 = sbr.rel (0) target = $region9
  $region8: #{_lambda_.31} parent=0 // pred_region
    _
  $region9: #{_lambda_.31} parent=0 // pred_fallthru
    _
  // Predicated region
  $region10: #{_lambda_.31} parent=0 // pred_check
    _
  $region11: #{_lambda_.31} parent=0 // pred_check_branch
    %13 = sbr.rel (0) target = $region13
  $region12: #{_lambda_.31} parent=0 // pred_region
    _
  $region13: #{_lambda_.31} parent=0 // pred_fallthru
    _
  %p15 = scmp.eq.s32.totalorder 0, 0
  // Predicated region
  $region14: #{_lambda_.31} parent=0 // pred_check
    %p16 = pneg %p15
  $region15: #{_lambda_.31} parent=0 // pred_check_branch
    %18 = sbr.rel (%p16) target = $region17
  $region16: #{_lambda_.31} parent=0 // pred_region
    %19 = vst [vmem:[#allocation2] sm:$0xff] 0.0
  $region17: #{_lambda_.31} parent=0 // pred_fallthru
    _
  %v20 = vld [vmem:[#allocation2] sm:$0xff]
  %v21 = vld [vmem:[%s0] sm:$0xff]
  %v22 = vld [vmem:[%s1] sm:$0xf]
  %v23 = vld [vmem:[%s1 + $0x4] sm:$0xf]
  %v24 = vld [vmem:[%s1 + $0x8] sm:$0xf]
  %v25 = vld [vmem:[%s1 + $0xc] sm:$0xf]
  %v26 = vld [vmem:[%s1 + $0x10] sm:$0xf]
  %v27 = vld [vmem:[%s1 + $0x14] sm:$0xf]
  %v28 = vld [vmem:[%s1 + $0x18] sm:$0xf]
  %v29 = vld [vmem:[%s1 + $0x1c] sm:$0xf]
  %v30 = vld [vmem:[%s1 + $0x20] sm:$0xf]
  %v31 = vld [vmem:[%s1 + $0x24] sm:$0xf]
  %v32 = vld [vmem:[%s1 + $0x28] sm:$0xf]
  %v33 = vld [vmem:[%s1 + $0x2c] sm:$0xf]
  %v34 = vld [vmem:[%s1 + $0x30] sm:$0xf]
  %v35 = vld [vmem:[%s1 + $0x34] sm:$0xf]
  %v36 = vld [vmem:[%s1 + $0x38] sm:$0xf]
  %v37 = vld [vmem:[%s1 + $0x3c] sm:$0xf]
  %v38 = vld [vmem:[%s1 + $0x40] sm:$0xf]
  %v39 = vld [vmem:[%s1 + $0x44] sm:$0xf]
  %v40 = vld [vmem:[%s1 + $0x48] sm:$0xf]
  %v41 = vld [vmem:[%s1 + $0x4c] sm:$0xf]
  %v42 = vld [vmem:[%s1 + $0x50] sm:$0xf]
  %v43 = vld [vmem:[%s1 + $0x54] sm:$0xf]
  %v44 = vld [vmem:[%s1 + $0x58] sm:$0xf]
  %v45 = vld [vmem:[%s1 + $0x5c] sm:$0xf]
  %v46 = vld [vmem:[%s1 + $0x60] sm:$0xf]
  %v47 = vld [vmem:[%s1 + $0x64] sm:$0xf]
  %v48 = vld [vmem:[%s1 + $0x68] sm:$0xf]
  %v49 = vld [vmem:[%s1 + $0x6c] sm:$0xf]
  %v50 = vld [vmem:[%s1 + $0x70] sm:$0xf]
  %v51 = vld [vmem:[%s1 + $0x74] sm:$0xf]
  %v52 = vld [vmem:[%s1 + $0x78] sm:$0xf]
  %v53 = vld [vmem:[%s1 + $0x7c] sm:$0xf]
  %v55 = vunpack.c.l.b16 %v21
  %v56 = vunpack.c.h.b16 %v21
  %v57 = vpack.c.b16 %v55, %v55
  %v58 = vpack.c.b16 %v56, %v56
  %v93 = vunpack.c.l.b16 %v22
  %v94 = vunpack.c.l.b16 %v23
  %v95 = vunpack.c.l.b16 %v24
  %v96 = vunpack.c.l.b16 %v25
  %v97 = vunpack.c.l.b16 %v26
  %v98 = vunpack.c.l.b16 %v27
  %v99 = vunpack.c.l.b16 %v28
  %v100 = vunpack.c.l.b16 %v29
  %v101 = vunpack.c.l.b16 %v30
  %v102 = vunpack.c.l.b16 %v31
  %v103 = vunpack.c.l.b16 %v32
  %v104 = vunpack.c.l.b16 %v33
  %v105 = vunpack.c.l.b16 %v34
  %v106 = vunpack.c.l.b16 %v35
  %v107 = vunpack.c.l.b16 %v36
  %v108 = vunpack.c.l.b16 %v37
  %v109 = vunpack.c.l.b16 %v38
  %v110 = vunpack.c.l.b16 %v39
  %v111 = vunpack.c.l.b16 %v40
  %v112 = vunpack.c.l.b16 %v41
  %v113 = vunpack.c.l.b16 %v42
  %v114 = vunpack.c.l.b16 %v43
  %v115 = vunpack.c.l.b16 %v44
  %v116 = vunpack.c.l.b16 %v45
  %v117 = vunpack.c.l.b16 %v46
  %v118 = vunpack.c.l.b16 %v47
  %v119 = vunpack.c.l.b16 %v48
  %v120 = vunpack.c.l.b16 %v49
  %v121 = vunpack.c.l.b16 %v50
  %v122 = vunpack.c.l.b16 %v51
  %v123 = vunpack.c.l.b16 %v52
  %v124 = vunpack.c.l.b16 %v53
  %v125 = vpack.c.b16 %v94, %v93
  %v126 = vpack.c.b16 %v96, %v95
  %v127 = vpack.c.b16 %v98, %v97
  %v128 = vpack.c.b16 %v100, %v99
  %v129 = vpack.c.b16 %v102, %v101
  %v130 = vpack.c.b16 %v104, %v103
  %v131 = vpack.c.b16 %v106, %v105
  %v132 = vpack.c.b16 %v108, %v107
  %v133 = vpack.c.b16 %v110, %v109
  %v134 = vpack.c.b16 %v112, %v111
  %v135 = vpack.c.b16 %v114, %v113
  %v136 = vpack.c.b16 %v116, %v115
  %v137 = vpack.c.b16 %v118, %v117
  %v138 = vpack.c.b16 %v120, %v119
  %v139 = vpack.c.b16 %v122, %v121
  %v140 = vpack.c.b16 %v124, %v123
  %157 = vmatprep.subr.bf16.mxu0 0
  %158 = vmatpush1.bf16.msra.mxu0 %v132
  %159 = vmatprep.subr.bf16.mxu0 0
  %160 = vmatpush1.bf16.msra.mxu0 %v131
  %161 = vmatprep.subr.bf16.mxu0 0
  %162 = vmatpush1.bf16.msra.mxu0 %v130
  %163 = vmatprep.subr.bf16.mxu0 0
  %164 = vmatpush1.bf16.msra.mxu0 %v129
  %165 = vmatprep.subr.bf16.mxu0 0
  %166 = vmatpush1.bf16.msra.mxu0 %v128
  %167 = vmatprep.subr.bf16.mxu0 0
  %168 = vmatpush1.bf16.msra.mxu0 %v127
  %169 = vmatprep.subr.bf16.mxu0 0
  %170 = vmatpush1.bf16.msra.mxu0 %v126
  %171 = vmatprep.subr.bf16.mxu0 0
  %172 = vmatpush1.bf16.msra.mxu0 %v125
  %173 = vmatprep.subr.bf16.mxu0 0
  %174 = vmatpush2.bf16.msra.mxu0 %v140
  %175 = vmatprep.subr.bf16.mxu0 0
  %176 = vmatpush2.bf16.msra.mxu0 %v139
  %177 = vmatprep.subr.bf16.mxu0 0
  %178 = vmatpush2.bf16.msra.mxu0 %v138
  %179 = vmatprep.subr.bf16.mxu0 0
  %180 = vmatpush2.bf16.msra.mxu0 %v137
  %181 = vmatprep.subr.bf16.mxu0 0
  %182 = vmatpush2.bf16.msra.mxu0 %v136
  %183 = vmatprep.subr.bf16.mxu0 0
  %184 = vmatpush2.bf16.msra.mxu0 %v135
  %185 = vmatprep.subr.bf16.mxu0 0
  %186 = vmatpush2.bf16.msra.mxu0 %v134
  %187 = vmatprep.subr.bf16.mxu0 0
  %188 = vmatpush2.bf16.msra.mxu0 %v133
  %189 = vmatprep.mubr.bf16.mxu0 %v58
  %190 = vmatmul.mubr.bf16.gmra.mxu0 %v57
  %v191 = vpop.f32.mrf.mxu0
  %v192 = vadd.f32 0.0, %v191
  %v193 = vpop.f32.mrf.mxu0
  %v194 = vpop.f32.mrf.mxu0
  %v195 = vpop.f32.mrf.mxu0
  %196 = vdwg.mxu0
  %v197 = vadd.f32 %v20, %v192
  %198 = vst [vmem:[#allocation2] sm:$0xff] %v197
  // Predicated region
  $region18: #{_lambda_.31} parent=0 // pred_check
    %p199 = pneg %p15
  $region19: #{_lambda_.31} parent=0 // pred_check_branch
    %201 = sbr.rel (%p199) target = $region21
  $region20: #{_lambda_.31} parent=0 // pred_region
    %v202 = vld [vmem:[#allocation2] sm:$0xff]
    %v203 = vld [vmem:[%s2] sm:$0x1]
    %v205 = vlaneseq
    %v206 = vshrl.u32 %v205, 7
    %v207 = vsub.s32 0, %v206
    %v208 = vrot.slane %v203, %v207
    %v210 = vadd.f32 %v202, %v208
    %211 = vst [vmem:[%s3] sm:$0xff] %v210
  $region21: #{_lambda_.31} parent=0 // pred_fallthru
    _
  // Predicated region
  $region22: #{_lambda_.31} parent=0 // pred_check
    _
  $region23: #{_lambda_.31} parent=0 // pred_check_branch
    %213 = sbr.rel (0) target = $region25
  $region24: #{_lambda_.31} parent=0 // pred_region
    _
  $region25: #{_lambda_.31} parent=0 // pred_fallthru
    _
  // Predicated region
  $region26: #{_lambda_.31} parent=0 // pred_check
    _
  $region27: #{_lambda_.31} parent=0 // pred_check_branch
    %215 = sbr.rel (0) target = $region29
  $region28: #{_lambda_.31} parent=0 // pred_region
    _
  $region29: #{_lambda_.31} parent=0 // pred_fallthru
    _

</llo_original>
